<compile_context>
chip_gen: v7x
topology: tpu7x:2x2x1
jax: 0.10.0
libtpu: 0.0.40
codegen_flags: <defaults>
</compile_context>

<pallas_src>
import functools
import math

import jax
import jax.numpy as jnp
from jax import lax
from jax.experimental import pallas as pl
from jax.experimental.pallas import tpu as pltpu


# ----------------------------------------------------------------------------
# Pallas kernels
# ----------------------------------------------------------------------------
def _attn_sublayer_kernel(xq_ref, xkv_ref, m_ref,
                          wq_ref, bq_ref, wkv_ref, bkv_ref, wo_ref, bo_ref,
                          g_ref, b_ref, o_ref, *, n_heads):
    """Fused attention sublayer for one (batch, q-tile) block.

    xq : (1, tq, D) bf16     xkv: (1, Lk, D) bf16
    m  : (1, Mq, Lk) f32 {1=attend, 0=masked}, Mq in {1, tq}
    wq : (D, D) bf16 (1/sqrt(dh) pre-folded), wkv: (D, 2D) bf16, wo: (D, D) bf16
    out: LayerNorm(xq + MHA(xq, xkv)) -> (1, tq, D) bf16
    """
    bf16 = jnp.bfloat16
    f32 = jnp.float32

    xq = xq_ref[0]                                      # (tq, D) bf16
    xkv = xkv_ref[0]                                    # (Lk, D) bf16
    madd = jnp.where(m_ref[0] > 0.5, 0.0, -1e9)         # additive mask built in-kernel

    # fused projections (bf16 MXU operands, f32 accumulate); scale folded in wq/bq
    q = jnp.dot(xq, wq_ref[...], preferred_element_type=f32) + bq_ref[...]       # (tq, D)
    kv = jnp.dot(xkv, wkv_ref[...], preferred_element_type=f32) + bkv_ref[...]   # (Lk, 2D)

    D = xq.shape[-1]
    dh = D // n_heads
    k = kv[:, :D]
    v = kv[:, D:]
    wo = wo_ref[...]

    # Per-head attention; context accumulated straight into the output projection
    # (no (tq, D) concat buffer, no cross-tile lane copies).
    attn_out = jnp.zeros((xq.shape[0], D), f32)
    for h in range(n_heads):                            # static unroll (small n_heads)
        sl = slice(h * dh, (h + 1) * dh)
        qh = q[:, sl].astype(bf16)                      # (tq, dh)
        kh = k[:, sl].astype(bf16)                      # (Lk, dh)
        vh = v[:, sl].astype(bf16)                      # (Lk, dh)
        # scores: contract dh of both operands (no explicit transpose)
        s = lax.dot_general(qh, kh, dimension_numbers=(((1,), (1,)), ((), ())),
                            preferred_element_type=f32)                    # (tq, Lk)
        s = s + madd                                    # broadcasts (Mq,Lk) -> (tq,Lk)
        s = s - jnp.max(s, axis=-1, keepdims=True)
        p = jnp.exp(s)
        p = p * pl.reciprocal(jnp.sum(p, axis=-1, keepdims=True), approx=True)
        ctx = jnp.dot(p.astype(bf16), vh, preferred_element_type=f32)      # (tq, dh)
        attn_out = attn_out + jnp.dot(ctx.astype(bf16), wo[sl, :],
                                      preferred_element_type=f32)          # (tq, D)

    # residual + LayerNorm in f32, store bf16
    y = xq.astype(f32) + attn_out + bo_ref[...]
    mu = jnp.mean(y, axis=-1, keepdims=True)
    var = jnp.mean((y - mu) * (y - mu), axis=-1, keepdims=True)
    o_ref[0] = ((y - mu) * lax.rsqrt(var + 1e-5) * g_ref[...]
                + b_ref[...]).astype(o_ref.dtype)


def _ffn_ln_kernel(x_ref, w1_ref, b1_ref, w2_ref, b2_ref, g_ref, b_ref, o_ref):
    """Fused FFN sublayer: LayerNorm(x + W2 @ relu(W1 @ x)). x bf16, out bf16."""
    f32 = jnp.float32
    x = x_ref[...]                                                         # (tm, D) bf16
    h = jnp.dot(x, w1_ref[...], preferred_element_type=f32) + b1_ref[...]
    h = jnp.maximum(h, 0.0)
    f = jnp.dot(h.astype(jnp.bfloat16), w2_ref[...],
                preferred_element_type=f32) + b2_ref[...]
    y = x.astype(f32) + f
    mu = jnp.mean(y, axis=-1, keepdims=True)
    var = jnp.mean((y - mu) * (y - mu), axis=-1, keepdims=True)
    o_ref[...] = ((y - mu) * lax.rsqrt(var + 1e-5) * g_ref[...]
                  + b_ref[...]).astype(o_ref.dtype)


def _proj_logsoftmax_kernel(x_ref, w_ref, b_ref, o_ref):
    """Fused vocab projection + log-softmax over the (small) vocab axis."""
    logits = jnp.dot(x_ref[...], w_ref[...],
                     preferred_element_type=jnp.float32) + b_ref[...]
    z = logits - jnp.max(logits, axis=-1, keepdims=True)
    lse = jnp.log(jnp.sum(jnp.exp(z), axis=-1, keepdims=True))
    o_ref[...] = z - lse


# ----------------------------------------------------------------------------
# Pallas wrappers
# ----------------------------------------------------------------------------
def _seq_tile(L, max_tile=512):
    # Full extent for small L, otherwise an 8-aligned tile (Pallas masks tail blocks).
    return L if L <= max_tile else max_tile


def attn_sublayer(x_q, x_kv, mask, p, n_heads):
    """x_q/x_kv bf16 (B, L, D); mask f32 (B, Mq, Lk) with Mq in {1, Lq}."""
    B, Lq, D = x_q.shape
    Lk = x_kv.shape[1]
    Mq = mask.shape[1]
    tq = _seq_tile(Lq)
    mq_blk = 1 if Mq == 1 else tq
    mask_map = (lambda b, qi: (b, 0, 0)) if Mq == 1 else (lambda b, qi: (b, qi, 0))
    kern = functools.partial(_attn_sublayer_kernel, n_heads=n_heads)

    def wspec(shape):
        return pl.BlockSpec(shape, lambda b, qi: (0,) * len(shape))

    return pl.pallas_call(
        kern,
        out_shape=jax.ShapeDtypeStruct((B, Lq, D), jnp.bfloat16),
        grid=(B, pl.cdiv(Lq, tq)),
        in_specs=[
            pl.BlockSpec((1, tq, D), lambda b, qi: (b, qi, 0)),
            pl.BlockSpec((1, Lk, D), lambda b, qi: (b, 0, 0)),
            pl.BlockSpec((1, mq_blk, Lk), mask_map),
            wspec((D, D)), wspec((1, D)),
            wspec((D, 2 * D)), wspec((1, 2 * D)),
            wspec((D, D)), wspec((1, D)),
            wspec((1, D)), wspec((1, D)),
        ],
        out_specs=pl.BlockSpec((1, tq, D), lambda b, qi: (b, qi, 0)),
        compiler_params=pltpu.CompilerParams(
            dimension_semantics=("parallel", "parallel")),
    )(x_q, x_kv, mask,
      p["wq"], p["bq"], p["wkv"], p["bkv"], p["wo"], p["bo"],
      p["ln_g"], p["ln_b"])


def ffn_ln_sublayer(x, p):
    B, L, D = x.shape
    F = p["w1"].shape[1]
    M = B * L
    tm = _seq_tile(M)
    x2d = x.reshape(M, D)
    out = pl.pallas_call(
        _ffn_ln_kernel,
        out_shape=jax.ShapeDtypeStruct((M, D), jnp.bfloat16),
        grid=(pl.cdiv(M, tm),),
        in_specs=[
            pl.BlockSpec((tm, D), lambda i: (i, 0)),
            pl.BlockSpec((D, F), lambda i: (0, 0)),
            pl.BlockSpec((1, F), lambda i: (0, 0)),
            pl.BlockSpec((F, D), lambda i: (0, 0)),
            pl.BlockSpec((1, D), lambda i: (0, 0)),
            pl.BlockSpec((1, D), lambda i: (0, 0)),
            pl.BlockSpec((1, D), lambda i: (0, 0)),
        ],
        out_specs=pl.BlockSpec((tm, D), lambda i: (i, 0)),
        compiler_params=pltpu.CompilerParams(dimension_semantics=("parallel",)),
    )(x2d, p["w1"], p["b1"], p["w2"], p["b2"], p["ln_g"], p["ln_b"])
    return out.reshape(B, L, D)


def proj_log_softmax(x2d, w, b):
    M, D = x2d.shape
    V = w.shape[1]
    tm = _seq_tile(M)
    return pl.pallas_call(
        _proj_logsoftmax_kernel,
        out_shape=jax.ShapeDtypeStruct((M, V), jnp.float32),
        grid=(pl.cdiv(M, tm),),
        in_specs=[
            pl.BlockSpec((tm, D), lambda i: (i, 0)),
            pl.BlockSpec((D, V), lambda i: (0, 0)),
            pl.BlockSpec((1, V), lambda i: (0, 0)),
        ],
        out_specs=pl.BlockSpec((tm, V), lambda i: (i, 0)),
        compiler_params=pltpu.CompilerParams(dimension_semantics=("parallel",)),
    )(x2d, w, b)


# ----------------------------------------------------------------------------
# One-time weight preparation (runs once, OUTSIDE the per-step path)
# ----------------------------------------------------------------------------
def prepare_params(params, n_heads):
    """Kernel-ready layout: bf16 matmul weights, (1, N) f32 biases,
    1/sqrt(dh) folded into the Q projection."""
    bf16 = jnp.bfloat16
    f32 = jnp.float32
    D = params["src_emb"].shape[1]
    scale = 1.0 / math.sqrt(D // n_heads)

    def prep_attn(a):
        return {
            "wq": (a["wq"] * scale).astype(bf16),
            "bq": (a["bq"] * scale).reshape(1, D).astype(f32),
            "wkv": a["wkv"].astype(bf16),
            "bkv": a["bkv"].reshape(1, -1).astype(f32),
            "wo": a["wo"].astype(bf16),
            "bo": a["bo"].reshape(1, D).astype(f32),
            "ln_g": a["ln_g"].reshape(1, D).astype(f32),
            "ln_b": a["ln_b"].reshape(1, D).astype(f32),
        }

    def prep_ffn(lp):
        F = lp["w1"].shape[1]
        return {
            "w1": lp["w1"].astype(bf16),
            "b1": lp["b1"].reshape(1, F).astype(f32),
            "w2": lp["w2"].astype(bf16),
            "b2": lp["b2"].reshape(1, D).astype(f32),
            "ln_g": lp["lnf_g"].reshape(1, D).astype(f32),
            "ln_b": lp["lnf_b"].reshape(1, D).astype(f32),
        }

    enc = [{"attn": prep_attn(lp["attn"]), "ffn": prep_ffn(lp)}
           for lp in params["enc_layers"]]
    dec = [{"self_attn": prep_attn(lp["self_attn"]),
            "cross_attn": prep_attn(lp["cross_attn"]),
            "ffn": prep_ffn(lp)}
           for lp in params["dec_layers"]]
    V = params["proj_w"].shape[1]
    return {
        "src_emb": params["src_emb"].astype(f32),
        "tgt_emb": params["tgt_emb"].astype(f32),
        "proj_w": params["proj_w"].astype(bf16),
        "proj_b": params["proj_b"].reshape(1, V).astype(f32),
        "enc_layers": enc,
        "dec_layers": dec,
    }


# ----------------------------------------------------------------------------
# Model glue (plain JAX): embeddings, positional encoding, layer composition
# ----------------------------------------------------------------------------
def sinusoidal_pe(L, d):
    pos = jnp.arange(L, dtype=jnp.float32)[:, None]
    div = jnp.exp(jnp.arange(0, d, 2, dtype=jnp.float32) * (-jnp.log(10000.0) / d))
    pe = jnp.zeros((L, d), jnp.float32)
    pe = pe.at[:, 0::2].set(jnp.sin(pos * div))
    pe = pe.at[:, 1::2].set(jnp.cos(pos * div))
    return pe


def transformer_forward(kp, src, tgt, src_mask, tgt_mask, n_heads):
    B, Ls = src.shape
    Lt = tgt.shape[1]
    D = kp["src_emb"].shape[1]

    src_emb = jnp.take(kp["src_emb"], src, axis=0) + sinusoidal_pe(Ls, D)[None]
    tgt_emb = jnp.take(kp["tgt_emb"], tgt, axis=0) + sinusoidal_pe(Lt, D)[None]

    # compact masks (additive -1e9 mask is generated inside the attention kernel)
    key_mask = src_mask.astype(jnp.float32).reshape(B, 1, Ls)      # (B, 1, Ls)
    self_mask = tgt_mask.astype(jnp.float32)                       # (B, Lt, Lt)

    # bf16 inter-sublayer activations (LayerNorm/softmax math stays f32 in-kernel)
    x = src_emb.astype(jnp.bfloat16)
    for lp in kp["enc_layers"]:
        x = attn_sublayer(x, x, key_mask, lp["attn"], n_heads)
        x = ffn_ln_sublayer(x, lp["ffn"])
    enc_out = x

    y = tgt_emb.astype(jnp.bfloat16)
    for lp in kp["dec_layers"]:
        y = attn_sublayer(y, y, self_mask, lp["self_attn"], n_heads)
        y = attn_sublayer(y, enc_out, key_mask, lp["cross_attn"], n_heads)
        y = ffn_ln_sublayer(y, lp["ffn"])

    V = kp["proj_w"].shape[1]
    out = proj_log_softmax(y.reshape(B * Lt, D), kp["proj_w"], kp["proj_b"])
    return out.reshape(B, Lt, V)


# ----------------------------------------------------------------------------
# Deterministic parameter initialization (xavier_uniform for dim>1, zeros/ones else)
# ----------------------------------------------------------------------------
def _xavier(key, shape):
    bound = (6.0 / (shape[0] + shape[1])) ** 0.5
    return jax.random.uniform(key, shape, jnp.float32, -bound, bound)


def init_params(key, d_model, n_heads, d_ff, n_layers, src_vocab, tgt_vocab):
    keys = iter(jax.random.split(key, 8 + n_layers * 48))

    def attn_params():
        wk = _xavier(next(keys), (d_model, d_model))
        wv = _xavier(next(keys), (d_model, d_model))
        return {
            "wq": _xavier(next(keys), (d_model, d_model)),
            "bq": jnp.zeros((d_model,), jnp.float32),
            "wkv": jnp.concatenate([wk, wv], axis=1),          # fused K/V projection
            "bkv": jnp.zeros((2 * d_model,), jnp.float32),
            "wo": _xavier(next(keys), (d_model, d_model)),
            "bo": jnp.zeros((d_model,), jnp.float32),
            "ln_g": jnp.ones((d_model,), jnp.float32),
            "ln_b": jnp.zeros((d_model,), jnp.float32),
        }

    def ffn_params():
        return {
            "w1": _xavier(next(keys), (d_model, d_ff)),
            "b1": jnp.zeros((d_ff,), jnp.float32),
            "w2": _xavier(next(keys), (d_ff, d_model)),
            "b2": jnp.zeros((d_model,), jnp.float32),
            "lnf_g": jnp.ones((d_model,), jnp.float32),
            "lnf_b": jnp.zeros((d_model,), jnp.float32),
        }

    enc_layers = []
    for _ in range(n_layers):
        lp = {"attn": attn_params()}
        lp.update(ffn_params())
        enc_layers.append(lp)

    dec_layers = []
    for _ in range(n_layers):
        lp = {"self_attn": attn_params(), "cross_attn": attn_params()}
        lp.update(ffn_params())
        dec_layers.append(lp)

    return {
        "src_emb": _xavier(next(keys), (src_vocab, d_model)),
        "tgt_emb": _xavier(next(keys), (tgt_vocab, d_model)),
        "proj_w": _xavier(next(keys), (d_model, tgt_vocab)),
        "proj_b": jnp.zeros((tgt_vocab,), jnp.float32),
        "enc_layers": enc_layers,
        "dec_layers": dec_layers,
    }


# ----------------------------------------------------------------------------
# Main
# ----------------------------------------------------------------------------
if __name__ == "__main__":
    d_model, n_heads, d_ff, n_layers = 32, 4, 64, 2
    src_vocab, tgt_vocab = 50, 48
    B, Ls, Lt = 2, 16, 8

    root = jax.random.PRNGKey(0)
    k_param, k_src, k_tgt = jax.random.split(root, 3)

    params = init_params(k_param, d_model, n_heads, d_ff, n_layers, src_vocab, tgt_vocab)
    # One-time weight conversion (bf16 + scale folding) OUTSIDE the per-step path.
    kparams = prepare_params(params, n_heads)
    kparams = jax.tree_util.tree_map(jax.block_until_ready, kparams)

    src = jax.random.randint(k_src, (B, Ls), 0, src_vocab)
    tgt = jax.random.randint(k_tgt, (B, Lt), 0, tgt_vocab)

    # padding mask for source (True = valid key position)
    src_len = jnp.array([Ls, Ls - 4])
    src_mask = jnp.arange(Ls)[None, :] < src_len[:, None]          # (B, Ls)

    # causal + padding mask for target (True = attend allowed)
    tgt_len = jnp.array([Lt, Lt - 2])
    causal = jnp.tril(jnp.ones((Lt, Lt), dtype=bool))
    tgt_pad = jnp.arange(Lt)[None, :] < tgt_len[:, None]
    tgt_mask = causal[None, :, :] & tgt_pad[:, None, :]            # (B, Lt, Lt)

    fwd = jax.jit(functools.partial(transformer_forward, n_heads=n_heads))
    out = fwd(kparams, src, tgt, src_mask, tgt_mask)
    out = jax.block_until_ready(out)

    assert out.shape == (B, Lt, tgt_vocab), out.shape
    assert jnp.all(jnp.isfinite(out))
    # log_softmax rows must (approximately) sum to 1 after exp
    row_sums = jnp.exp(out).sum(-1)
    assert jnp.allclose(row_sums, 1.0, atol=1e-4)
    print("KERNEL_OK")
</pallas_src>

<mosaic_0001>
module attributes {stable_mosaic.version = 11 : i64} {
  func.func @_ffn_ln_kernel(%arg0: i32, %arg1: memref<32x32xbf16, #tpu.memory_space<vmem>>, %arg2: memref<32x64xbf16, #tpu.memory_space<vmem>>, %arg3: memref<1x64xf32, #tpu.memory_space<vmem>>, %arg4: memref<64x32xbf16, #tpu.memory_space<vmem>>, %arg5: memref<1x32xf32, #tpu.memory_space<vmem>>, %arg6: memref<1x32xf32, #tpu.memory_space<vmem>>, %arg7: memref<1x32xf32, #tpu.memory_space<vmem>>, %arg8: memref<32x32xbf16, #tpu.memory_space<vmem>>) attributes {dimension_semantics = [#tpu.dimension_semantics<parallel>], iteration_bounds = array<i64: 1>, scalar_prefetch = 0 : i64, scratch_operands = 0 : i64, tpu.core_type = #tpu.core_type<tc>, window_params = [{transform_indices = @transform_0, window_bounds = array<i64: 32, 32>}, {pipeline_mode = #tpu.pipeline_mode<synchronous>, transform_indices = @transform_1, window_bounds = array<i64: 32, 64>}, {pipeline_mode = #tpu.pipeline_mode<synchronous>, transform_indices = @transform_2, window_bounds = array<i64: 1, 64>}, {pipeline_mode = #tpu.pipeline_mode<synchronous>, transform_indices = @transform_3, window_bounds = array<i64: 64, 32>}, {pipeline_mode = #tpu.pipeline_mode<synchronous>, transform_indices = @transform_4, window_bounds = array<i64: 1, 32>}, {pipeline_mode = #tpu.pipeline_mode<synchronous>, transform_indices = @transform_5, window_bounds = array<i64: 1, 32>}, {pipeline_mode = #tpu.pipeline_mode<synchronous>, transform_indices = @transform_6, window_bounds = array<i64: 1, 32>}, {transform_indices = @transform_7, window_bounds = array<i64: 32, 32>}]} {
    %c0 = arith.constant 0 : index
    %c0_0 = arith.constant 0 : index
    %0 = vector.load %arg1[%c0, %c0_0] : memref<32x32xbf16, #tpu.memory_space<vmem>>, vector<32x32xbf16>
    %c0_1 = arith.constant 0 : index
    %c0_2 = arith.constant 0 : index
    %1 = vector.load %arg2[%c0_1, %c0_2] : memref<32x64xbf16, #tpu.memory_space<vmem>>, vector<32x64xbf16>
    %cst = arith.constant dense<0.000000e+00> : vector<32x64xf32>
    %2 = tpu.matmul %0, %1, %cst {dimension_numbers = #tpu.dot_dimension_numbers<[1], [0], [0], [1], [0, 0, 1, 1], [], []>} : vector<32x32xbf16>, vector<32x64xbf16>, vector<32x64xf32> -> vector<32x64xf32>
    %c0_3 = arith.constant 0 : index
    %c0_4 = arith.constant 0 : index
    %3 = vector.load %arg3[%c0_3, %c0_4] : memref<1x64xf32, #tpu.memory_space<vmem>>, vector<1x64xf32>
    %4 = vector.broadcast %3 : vector<1x64xf32> to vector<32x64xf32>
    %5 = arith.addf %2, %4 : vector<32x64xf32>
    %cst_5 = arith.constant 0.000000e+00 : f32
    %6 = vector.broadcast %cst_5 : f32 to vector<32x64xf32>
    %7 = arith.maximumf %5, %6 : vector<32x64xf32>
    %8 = arith.truncf %7 : vector<32x64xf32> to vector<32x64xbf16>
    %c0_6 = arith.constant 0 : index
    %c0_7 = arith.constant 0 : index
    %9 = vector.load %arg4[%c0_6, %c0_7] : memref<64x32xbf16, #tpu.memory_space<vmem>>, vector<64x32xbf16>
    %cst_8 = arith.constant dense<0.000000e+00> : vector<32x32xf32>
    %10 = tpu.matmul %8, %9, %cst_8 {dimension_numbers = #tpu.dot_dimension_numbers<[1], [0], [0], [1], [0, 0, 1, 1], [], []>} : vector<32x64xbf16>, vector<64x32xbf16>, vector<32x32xf32> -> vector<32x32xf32>
    %c0_9 = arith.constant 0 : index
    %c0_10 = arith.constant 0 : index
    %11 = vector.load %arg5[%c0_9, %c0_10] : memref<1x32xf32, #tpu.memory_space<vmem>>, vector<1x32xf32>
    %12 = vector.broadcast %11 : vector<1x32xf32> to vector<32x32xf32>
    %13 = arith.addf %10, %12 : vector<32x32xf32>
    %14 = arith.extf %0 : vector<32x32xbf16> to vector<32x32xf32>
    %15 = arith.addf %14, %13 : vector<32x32xf32>
    %cst_11 = arith.constant dense<0.000000e+00> : vector<32xf32>
    %16 = vector.multi_reduction <add>, %15, %cst_11 [1] : vector<32x32xf32> to vector<32xf32>
    %17 = vector.shape_cast %16 : vector<32xf32> to vector<32x1xf32>
    %cst_12 = arith.constant 3.200000e+01 : f32
    %18 = vector.broadcast %cst_12 : f32 to vector<32x1xf32>
    %19 = arith.divf %17, %18 : vector<32x1xf32>
    %20 = vector.broadcast %19 : vector<32x1xf32> to vector<32x32xf32>
    %21 = arith.subf %15, %20 : vector<32x32xf32>
    %22 = vector.broadcast %19 : vector<32x1xf32> to vector<32x32xf32>
    %23 = arith.subf %15, %22 : vector<32x32xf32>
    %24 = arith.mulf %21, %23 : vector<32x32xf32>
    %cst_13 = arith.constant dense<0.000000e+00> : vector<32xf32>
    %25 = vector.multi_reduction <add>, %24, %cst_13 [1] : vector<32x32xf32> to vector<32xf32>
    %26 = vector.shape_cast %25 : vector<32xf32> to vector<32x1xf32>
    %cst_14 = arith.constant 3.200000e+01 : f32
    %27 = vector.broadcast %cst_14 : f32 to vector<32x1xf32>
    %28 = arith.divf %26, %27 : vector<32x1xf32>
    %29 = vector.broadcast %19 : vector<32x1xf32> to vector<32x32xf32>
    %30 = arith.subf %15, %29 : vector<32x32xf32>
    %cst_15 = arith.constant 9.99999974E-6 : f32
    %31 = vector.broadcast %cst_15 : f32 to vector<32x1xf32>
    %32 = arith.addf %28, %31 : vector<32x1xf32>
    %33 = math.rsqrt %32 : vector<32x1xf32>
    %34 = vector.broadcast %33 : vector<32x1xf32> to vector<32x32xf32>
    %35 = arith.mulf %30, %34 : vector<32x32xf32>
    %c0_16 = arith.constant 0 : index
    %c0_17 = arith.constant 0 : index
    %36 = vector.load %arg6[%c0_16, %c0_17] : memref<1x32xf32, #tpu.memory_space<vmem>>, vector<1x32xf32>
    %37 = vector.broadcast %36 : vector<1x32xf32> to vector<32x32xf32>
    %38 = arith.mulf %35, %37 : vector<32x32xf32>
    %c0_18 = arith.constant 0 : index
    %c0_19 = arith.constant 0 : index
    %39 = vector.load %arg7[%c0_18, %c0_19] : memref<1x32xf32, #tpu.memory_space<vmem>>, vector<1x32xf32>
    %40 = vector.broadcast %39 : vector<1x32xf32> to vector<32x32xf32>
    %41 = arith.addf %38, %40 : vector<32x32xf32>
    %42 = arith.truncf %41 : vector<32x32xf32> to vector<32x32xbf16>
    %c0_20 = arith.constant 0 : index
    %c0_21 = arith.constant 0 : index
    %43 = vector.load %arg8[%c0_20, %c0_21] : memref<32x32xbf16, #tpu.memory_space<vmem>>, vector<32x32xbf16>
    tpu.vector_store %arg8[%c0_20, %c0_21], %42 {strides = array<i32>} : memref<32x32xbf16, #tpu.memory_space<vmem>>, vector<32x32xbf16>,
    return
  }
  func.func @transform_0(%arg0: i32) -> (i32, i32) {
    %c0_i32 = arith.constant 0 : i32
    %c0_i32_0 = arith.constant 0 : i32
    return %arg0, %c0_i32 : i32, i32
  }
  func.func @transform_1(%arg0: i32) -> (i32, i32) {
    %c0_i32 = arith.constant 0 : i32
    %c0_i32_0 = arith.constant 0 : i32
    %c0_i32_1 = arith.constant 0 : i32
    return %c0_i32, %c0_i32_0 : i32, i32
  }
  func.func @transform_2(%arg0: i32) -> (i32, i32) {
    %c0_i32 = arith.constant 0 : i32
    %c0_i32_0 = arith.constant 0 : i32
    %c0_i32_1 = arith.constant 0 : i32
    return %c0_i32, %c0_i32_0 : i32, i32
  }
  func.func @transform_3(%arg0: i32) -> (i32, i32) {
    %c0_i32 = arith.constant 0 : i32
    %c0_i32_0 = arith.constant 0 : i32
    %c0_i32_1 = arith.constant 0 : i32
    return %c0_i32, %c0_i32_0 : i32, i32
  }
  func.func @transform_4(%arg0: i32) -> (i32, i32) {
    %c0_i32 = arith.constant 0 : i32
    %c0_i32_0 = arith.constant 0 : i32
    %c0_i32_1 = arith.constant 0 : i32
    return %c0_i32, %c0_i32_0 : i32, i32
  }
  func.func @transform_5(%arg0: i32) -> (i32, i32) {
    %c0_i32 = arith.constant 0 : i32
    %c0_i32_0 = arith.constant 0 : i32
    %c0_i32_1 = arith.constant 0 : i32
    return %c0_i32, %c0_i32_0 : i32, i32
  }
  func.func @transform_6(%arg0: i32) -> (i32, i32) {
    %c0_i32 = arith.constant 0 : i32
    %c0_i32_0 = arith.constant 0 : i32
    %c0_i32_1 = arith.constant 0 : i32
    return %c0_i32, %c0_i32_0 : i32, i32
  }
  func.func @transform_7(%arg0: i32) -> (i32, i32) {
    %c0_i32 = arith.constant 0 : i32
    %c0_i32_0 = arith.constant 0 : i32
    return %arg0, %c0_i32 : i32, i32
  }
}

module attributes {stable_mosaic.version = 11 : i64} {
  func.func @_attn_sublayer_kernel(%arg0: i32, %arg1: i32, %arg2: memref<1x16x32xbf16, #tpu.memory_space<vmem>>, %arg3: memref<1x16x32xbf16, #tpu.memory_space<vmem>>, %arg4: memref<1x1x16xf32, #tpu.memory_space<vmem>>, %arg5: memref<32x32xbf16, #tpu.memory_space<vmem>>, %arg6: memref<1x32xf32, #tpu.memory_space<vmem>>, %arg7: memref<32x64xbf16, #tpu.memory_space<vmem>>, %arg8: memref<1x64xf32, #tpu.memory_space<vmem>>, %arg9: memref<32x32xbf16, #tpu.memory_space<vmem>>, %arg10: memref<1x32xf32, #tpu.memory_space<vmem>>, %arg11: memref<1x32xf32, #tpu.memory_space<vmem>>, %arg12: memref<1x32xf32, #tpu.memory_space<vmem>>, %arg13: memref<1x16x32xbf16, #tpu.memory_space<vmem>>) attributes {dimension_semantics = [#tpu.dimension_semantics<parallel>, #tpu.dimension_semantics<parallel>], iteration_bounds = array<i64: 2, 1>, scalar_prefetch = 0 : i64, scratch_operands = 0 : i64, tpu.core_type = #tpu.core_type<tc>, window_params = [{transform_indices = @transform_0, window_bounds = array<i64: 1, 16, 32>}, {transform_indices = @transform_1, window_bounds = array<i64: 1, 16, 32>}, {transform_indices = @transform_2, window_bounds = array<i64: 1, 1, 16>}, {pipeline_mode = #tpu.pipeline_mode<synchronous>, transform_indices = @transform_3, window_bounds = array<i64: 32, 32>}, {pipeline_mode = #tpu.pipeline_mode<synchronous>, transform_indices = @transform_4, window_bounds = array<i64: 1, 32>}, {pipeline_mode = #tpu.pipeline_mode<synchronous>, transform_indices = @transform_5, window_bounds = array<i64: 32, 64>}, {pipeline_mode = #tpu.pipeline_mode<synchronous>, transform_indices = @transform_6, window_bounds = array<i64: 1, 64>}, {pipeline_mode = #tpu.pipeline_mode<synchronous>, transform_indices = @transform_7, window_bounds = array<i64: 32, 32>}, {pipeline_mode = #tpu.pipeline_mode<synchronous>, transform_indices = @transform_8, window_bounds = array<i64: 1, 32>}, {pipeline_mode = #tpu.pipeline_mode<synchronous>, transform_indices = @transform_9, window_bounds = array<i64: 1, 32>}, {pipeline_mode = #tpu.pipeline_mode<synchronous>, transform_indices = @transform_10, window_bounds = array<i64: 1, 32>}, {transform_indices = @transform_11, window_bounds = array<i64: 1, 16, 32>}]} {
    %c0 = arith.constant 0 : index
    %c0_0 = arith.constant 0 : index
    %c0_1 = arith.constant 0 : index
    %0 = vector.load %arg2[%c0, %c0_0, %c0_1] : memref<1x16x32xbf16, #tpu.memory_space<vmem>>, vector<1x16x32xbf16>
    %1 = vector.shape_cast %0 : vector<1x16x32xbf16> to vector<16x32xbf16>
    %c0_2 = arith.constant 0 : index
    %c0_3 = arith.constant 0 : index
    %c0_4 = arith.constant 0 : index
    %2 = vector.load %arg3[%c0_2, %c0_3, %c0_4] : memref<1x16x32xbf16, #tpu.memory_space<vmem>>, vector<1x16x32xbf16>
    %3 = vector.shape_cast %2 : vector<1x16x32xbf16> to vector<16x32xbf16>
    %c0_5 = arith.constant 0 : index
    %c0_6 = arith.constant 0 : index
    %c0_7 = arith.constant 0 : index
    %4 = vector.load %arg4[%c0_5, %c0_6, %c0_7] : memref<1x1x16xf32, #tpu.memory_space<vmem>>, vector<1x1x16xf32>
    %5 = vector.shape_cast %4 : vector<1x1x16xf32> to vector<1x16xf32>
    %cst = arith.constant 5.000000e-01 : f32
    %6 = vector.broadcast %cst : f32 to vector<1x16xf32>
    %7 = arith.cmpf ogt, %5, %6 : vector<1x16xf32>
    %cst_8 = arith.constant 0.000000e+00 : f32
    %cst_9 = arith.constant -1.000000e+09 : f32
    %8 = vector.broadcast %cst_8 : f32 to vector<1x16xf32>
    %9 = vector.broadcast %cst_9 : f32 to vector<1x16xf32>
    %10 = arith.select %7, %8, %9 : vector<1x16xi1>, vector<1x16xf32>
    %c0_10 = arith.constant 0 : index
    %c0_11 = arith.constant 0 : index
    %11 = vector.load %arg5[%c0_10, %c0_11] : memref<32x32xbf16, #tpu.memory_space<vmem>>, vector<32x32xbf16>
    %cst_12 = arith.constant dense<0.000000e+00> : vector<16x32xf32>
    %12 = tpu.matmul %1, %11, %cst_12 {dimension_numbers = #tpu.dot_dimension_numbers<[1], [0], [0], [1], [0, 0, 1, 1], [], []>} : vector<16x32xbf16>, vector<32x32xbf16>, vector<16x32xf32> -> vector<16x32xf32>
    %c0_13 = arith.constant 0 : index
    %c0_14 = arith.constant 0 : index
    %13 = vector.load %arg6[%c0_13, %c0_14] : memref<1x32xf32, #tpu.memory_space<vmem>>, vector<1x32xf32>
    %14 = vector.broadcast %13 : vector<1x32xf32> to vector<16x32xf32>
    %15 = arith.addf %12, %14 : vector<16x32xf32>
    %c0_15 = arith.constant 0 : index
    %c0_16 = arith.constant 0 : index
    %16 = vector.load %arg7[%c0_15, %c0_16] : memref<32x64xbf16, #tpu.memory_space<vmem>>, vector<32x64xbf16>
    %cst_17 = arith.constant dense<0.000000e+00> : vector<16x64xf32>
    %17 = tpu.matmul %3, %16, %cst_17 {dimension_numbers = #tpu.dot_dimension_numbers<[1], [0], [0], [1], [0, 0, 1, 1], [], []>} : vector<16x32xbf16>, vector<32x64xbf16>, vector<16x64xf32> -> vector<16x64xf32>
    %c0_18 = arith.constant 0 : index
    %c0_19 = arith.constant 0 : index
    %18 = vector.load %arg8[%c0_18, %c0_19] : memref<1x64xf32, #tpu.memory_space<vmem>>, vector<1x64xf32>
    %19 = vector.broadcast %18 : vector<1x64xf32> to vector<16x64xf32>
    %20 = arith.addf %17, %19 : vector<16x64xf32>
    %21 = vector.extract_strided_slice %20 {offsets = [0, 0], sizes = [16, 32], strides = [1, 1]} : vector<16x64xf32> to vector<16x32xf32>
    %22 = vector.extract_strided_slice %20 {offsets = [0, 32], sizes = [16, 32], strides = [1, 1]} : vector<16x64xf32> to vector<16x32xf32>
    %c0_20 = arith.constant 0 : index
    %c0_21 = arith.constant 0 : index
    %23 = vector.load %arg9[%c0_20, %c0_21] : memref<32x32xbf16, #tpu.memory_space<vmem>>, vector<32x32xbf16>
    %cst_22 = arith.constant 0.000000e+00 : f32
    %24 = vector.broadcast %cst_22 : f32 to vector<16x32xf32>
    %25 = vector.extract_strided_slice %15 {offsets = [0, 0], sizes = [16, 8], strides = [1, 1]} : vector<16x32xf32> to vector<16x8xf32>
    %26 = arith.truncf %25 : vector<16x8xf32> to vector<16x8xbf16>
    %27 = vector.extract_strided_slice %21 {offsets = [0, 0], sizes = [16, 8], strides = [1, 1]} : vector<16x32xf32> to vector<16x8xf32>
    %28 = arith.truncf %27 : vector<16x8xf32> to vector<16x8xbf16>
    %29 = vector.extract_strided_slice %22 {offsets = [0, 0], sizes = [16, 8], strides = [1, 1]} : vector<16x32xf32> to vector<16x8xf32>
    %30 = arith.truncf %29 : vector<16x8xf32> to vector<16x8xbf16>
    %cst_23 = arith.constant dense<0.000000e+00> : vector<16x16xf32>
    %31 = tpu.matmul %26, %28, %cst_23 {dimension_numbers = #tpu.dot_dimension_numbers<[1], [1], [0], [0], [0, 0, 1, 0], [], []>} : vector<16x8xbf16>, vector<16x8xbf16>, vector<16x16xf32> -> vector<16x16xf32>
    %32 = vector.broadcast %10 : vector<1x16xf32> to vector<16x16xf32>
    %33 = arith.addf %31, %32 : vector<16x16xf32>
    %cst_24 = arith.constant dense<0xFF800000> : vector<16xf32>
    %34 = vector.multi_reduction <maximumf>, %33, %cst_24 [1] : vector<16x16xf32> to vector<16xf32>
    %35 = vector.shape_cast %34 : vector<16xf32> to vector<16x1xf32>
    %36 = vector.broadcast %35 : vector<16x1xf32> to vector<16x16xf32>
    %37 = arith.subf %33, %36 : vector<16x16xf32>
    %38 = math.exp %37 : vector<16x16xf32>
    %cst_25 = arith.constant dense<0.000000e+00> : vector<16xf32>
    %39 = vector.multi_reduction <add>, %38, %cst_25 [1] : vector<16x16xf32> to vector<16xf32>
    %40 = vector.shape_cast %39 : vector<16xf32> to vector<16x1xf32>
    %41 = tpu.reciprocal %40 {approx = true} : vector<16x1xf32> -> vector<16x1xf32>
    %42 = vector.broadcast %41 : vector<16x1xf32> to vector<16x16xf32>
    %43 = arith.mulf %38, %42 : vector<16x16xf32>
    %44 = arith.truncf %43 : vector<16x16xf32> to vector<16x16xbf16>
    %cst_26 = arith.constant dense<0.000000e+00> : vector<16x8xf32>
    %45 = tpu.matmul %44, %30, %cst_26 {dimension_numbers = #tpu.dot_dimension_numbers<[1], [0], [0], [1], [0, 0, 1, 1], [], []>} : vector<16x16xbf16>, vector<16x8xbf16>, vector<16x8xf32> -> vector<16x8xf32>
    %46 = arith.truncf %45 : vector<16x8xf32> to vector<16x8xbf16>
    %47 = vector.extract_strided_slice %23 {offsets = [0, 0], sizes = [8, 32], strides = [1, 1]} : vector<32x32xbf16> to vector<8x32xbf16>
    %cst_27 = arith.constant dense<0.000000e+00> : vector<16x32xf32>
    %48 = tpu.matmul %46, %47, %cst_27 {dimension_numbers = #tpu.dot_dimension_numbers<[1], [0], [0], [1], [0, 0, 1, 1], [], []>} : vector<16x8xbf16>, vector<8x32xbf16>, vector<16x32xf32> -> vector<16x32xf32>
    %49 = arith.addf %24, %48 : vector<16x32xf32>
    %50 = vector.extract_strided_slice %15 {offsets = [0, 8], sizes = [16, 8], strides = [1, 1]} : vector<16x32xf32> to vector<16x8xf32>
    %51 = arith.truncf %50 : vector<16x8xf32> to vector<16x8xbf16>
    %52 = vector.extract_strided_slice %21 {offsets = [0, 8], sizes = [16, 8], strides = [1, 1]} : vector<16x32xf32> to vector<16x8xf32>
    %53 = arith.truncf %52 : vector<16x8xf32> to vector<16x8xbf16>
    %54 = vector.extract_strided_slice %22 {offsets = [0, 8], sizes = [16, 8], strides = [1, 1]} : vector<16x32xf32> to vector<16x8xf32>
    %55 = arith.truncf %54 : vector<16x8xf32> to vector<16x8xbf16>
    %cst_28 = arith.constant dense<0.000000e+00> : vector<16x16xf32>
    %56 = tpu.matmul %51, %53, %cst_28 {dimension_numbers = #tpu.dot_dimension_numbers<[1], [1], [0], [0], [0, 0, 1, 0], [], []>} : vector<16x8xbf16>, vector<16x8xbf16>, vector<16x16xf32> -> vector<16x16xf32>
    %57 = vector.broadcast %10 : vector<1x16xf32> to vector<16x16xf32>
    %58 = arith.addf %56, %57 : vector<16x16xf32>
    %cst_29 = arith.constant dense<0xFF800000> : vector<16xf32>
    %59 = vector.multi_reduction <maximumf>, %58, %cst_29 [1] : vector<16x16xf32> to vector<16xf32>
    %60 = vector.shape_cast %59 : vector<16xf32> to vector<16x1xf32>
    %61 = vector.broadcast %60 : vector<16x1xf32> to vector<16x16xf32>
    %62 = arith.subf %58, %61 : vector<16x16xf32>
    %63 = math.exp %62 : vector<16x16xf32>
    %cst_30 = arith.constant dense<0.000000e+00> : vector<16xf32>
    %64 = vector.multi_reduction <add>, %63, %cst_30 [1] : vector<16x16xf32> to vector<16xf32>
    %65 = vector.shape_cast %64 : vector<16xf32> to vector<16x1xf32>
    %66 = tpu.reciprocal %65 {approx = true} : vector<16x1xf32> -> vector<16x1xf32>
    %67 = vector.broadcast %66 : vector<16x1xf32> to vector<16x16xf32>
    %68 = arith.mulf %63, %67 : vector<16x16xf32>
    %69 = arith.truncf %68 : vector<16x16xf32> to vector<16x16xbf16>
    %cst_31 = arith.constant dense<0.000000e+00> : vector<16x8xf32>
    %70 = tpu.matmul %69, %55, %cst_31 {dimension_numbers = #tpu.dot_dimension_numbers<[1], [0], [0], [1], [0, 0, 1, 1], [], []>} : vector<16x16xbf16>, vector<16x8xbf16>, vector<16x8xf32> -> vector<16x8xf32>
    %71 = arith.truncf %70 : vector<16x8xf32> to vector<16x8xbf16>
    %72 = vector.extract_strided_slice %23 {offsets = [8, 0], sizes = [8, 32], strides = [1, 1]} : vector<32x32xbf16> to vector<8x32xbf16>
    %cst_32 = arith.constant dense<0.000000e+00> : vector<16x32xf32>
    %73 = tpu.matmul %71, %72, %cst_32 {dimension_numbers = #tpu.dot_dimension_numbers<[1], [0], [0], [1], [0, 0, 1, 1], [], []>} : vector<16x8xbf16>, vector<8x32xbf16>, vector<16x32xf32> -> vector<16x32xf32>
    %74 = arith.addf %49, %73 : vector<16x32xf32>
    %75 = vector.extract_strided_slice %15 {offsets = [0, 16], sizes = [16, 8], strides = [1, 1]} : vector<16x32xf32> to vector<16x8xf32>
    %76 = arith.truncf %75 : vector<16x8xf32> to vector<16x8xbf16>
    %77 = vector.extract_strided_slice %21 {offsets = [0, 16], sizes = [16, 8], strides = [1, 1]} : vector<16x32xf32> to vector<16x8xf32>
    %78 = arith.truncf %77 : vector<16x8xf32> to vector<16x8xbf16>
    %79 = vector.extract_strided_slice %22 {offsets = [0, 16], sizes = [16, 8], strides = [1, 1]} : vector<16x32xf32> to vector<16x8xf32>
    %80 = arith.truncf %79 : vector<16x8xf32> to vector<16x8xbf16>
    %cst_33 = arith.constant dense<0.000000e+00> : vector<16x16xf32>
    %81 = tpu.matmul %76, %78, %cst_33 {dimension_numbers = #tpu.dot_dimension_numbers<[1], [1], [0], [0], [0, 0, 1, 0], [], []>} : vector<16x8xbf16>, vector<16x8xbf16>, vector<16x16xf32> -> vector<16x16xf32>
    %82 = vector.broadcast %10 : vector<1x16xf32> to vector<16x16xf32>
    %83 = arith.addf %81, %82 : vector<16x16xf32>
    %cst_34 = arith.constant dense<0xFF800000> : vector<16xf32>
    %84 = vector.multi_reduction <maximumf>, %83, %cst_34 [1] : vector<16x16xf32> to vector<16xf32>
    %85 = vector.shape_cast %84 : vector<16xf32> to vector<16x1xf32>
    %86 = vector.broadcast %85 : vector<16x1xf32> to vector<16x16xf32>
    %87 = arith.subf %83, %86 : vector<16x16xf32>
    %88 = math.exp %87 : vector<16x16xf32>
    %cst_35 = arith.constant dense<0.000000e+00> : vector<16xf32>
    %89 = vector.multi_reduction <add>, %88, %cst_35 [1] : vector<16x16xf32> to vector<16xf32>
    %90 = vector.shape_cast %89 : vector<16xf32> to vector<16x1xf32>
    %91 = tpu.reciprocal %90 {approx = true} : vector<16x1xf32> -> vector<16x1xf32>
    %92 = vector.broadcast %91 : vector<16x1xf32> to vector<16x16xf32>
    %93 = arith.mulf %88, %92 : vector<16x16xf32>
    %94 = arith.truncf %93 : vector<16x16xf32> to vector<16x16xbf16>
    %cst_36 = arith.constant dense<0.000000e+00> : vector<16x8xf32>
    %95 = tpu.matmul %94, %80, %cst_36 {dimension_numbers = #tpu.dot_dimension_numbers<[1], [0], [0], [1], [0, 0, 1, 1], [], []>} : vector<16x16xbf16>, vector<16x8xbf16>, vector<16x8xf32> -> vector<16x8xf32>
    %96 = arith.truncf %95 : vector<16x8xf32> to vector<16x8xbf16>
    %97 = vector.extract_strided_slice %23 {offsets = [16, 0], sizes = [8, 32], strides = [1, 1]} : vector<32x32xbf16> to vector<8x32xbf16>
    %cst_37 = arith.constant dense<0.000000e+00> : vector<16x32xf32>
    %98 = tpu.matmul %96, %97, %cst_37 {dimension_numbers = #tpu.dot_dimension_numbers<[1], [0], [0], [1], [0, 0, 1, 1], [], []>} : vector<16x8xbf16>, vector<8x32xbf16>, vector<16x32xf32> -> vector<16x32xf32>
    %99 = arith.addf %74, %98 : vector<16x32xf32>
    %100 = vector.extract_strided_slice %15 {offsets = [0, 24], sizes = [16, 8], strides = [1, 1]} : vector<16x32xf32> to vector<16x8xf32>
    %101 = arith.truncf %100 : vector<16x8xf32> to vector<16x8xbf16>
    %102 = vector.extract_strided_slice %21 {offsets = [0, 24], sizes = [16, 8], strides = [1, 1]} : vector<16x32xf32> to vector<16x8xf32>
    %103 = arith.truncf %102 : vector<16x8xf32> to vector<16x8xbf16>
    %104 = vector.extract_strided_slice %22 {offsets = [0, 24], sizes = [16, 8], strides = [1, 1]} : vector<16x32xf32> to vector<16x8xf32>
    %105 = arith.truncf %104 : vector<16x8xf32> to vector<16x8xbf16>
    %cst_38 = arith.constant dense<0.000000e+00> : vector<16x16xf32>
    %106 = tpu.matmul %101, %103, %cst_38 {dimension_numbers = #tpu.dot_dimension_numbers<[1], [1], [0], [0], [0, 0, 1, 0], [], []>} : vector<16x8xbf16>, vector<16x8xbf16>, vector<16x16xf32> -> vector<16x16xf32>
    %107 = vector.broadcast %10 : vector<1x16xf32> to vector<16x16xf32>
    %108 = arith.addf %106, %107 : vector<16x16xf32>
    %cst_39 = arith.constant dense<0xFF800000> : vector<16xf32>
    %109 = vector.multi_reduction <maximumf>, %108, %cst_39 [1] : vector<16x16xf32> to vector<16xf32>
    %110 = vector.shape_cast %109 : vector<16xf32> to vector<16x1xf32>
    %111 = vector.broadcast %110 : vector<16x1xf32> to vector<16x16xf32>
    %112 = arith.subf %108, %111 : vector<16x16xf32>
    %113 = math.exp %112 : vector<16x16xf32>
    %cst_40 = arith.constant dense<0.000000e+00> : vector<16xf32>
    %114 = vector.multi_reduction <add>, %113, %cst_40 [1] : vector<16x16xf32> to vector<16xf32>
    %115 = vector.shape_cast %114 : vector<16xf32> to vector<16x1xf32>
    %116 = tpu.reciprocal %115 {approx = true} : vector<16x1xf32> -> vector<16x1xf32>
    %117 = vector.broadcast %116 : vector<16x1xf32> to vector<16x16xf32>
    %118 = arith.mulf %113, %117 : vector<16x16xf32>
    %119 = arith.truncf %118 : vector<16x16xf32> to vector<16x16xbf16>
    %cst_41 = arith.constant dense<0.000000e+00> : vector<16x8xf32>
    %120 = tpu.matmul %119, %105, %cst_41 {dimension_numbers = #tpu.dot_dimension_numbers<[1], [0], [0], [1], [0, 0, 1, 1], [], []>} : vector<16x16xbf16>, vector<16x8xbf16>, vector<16x8xf32> -> vector<16x8xf32>
    %121 = arith.truncf %120 : vector<16x8xf32> to vector<16x8xbf16>
    %122 = vector.extract_strided_slice %23 {offsets = [24, 0], sizes = [8, 32], strides = [1, 1]} : vector<32x32xbf16> to vector<8x32xbf16>
    %cst_42 = arith.constant dense<0.000000e+00> : vector<16x32xf32>
    %123 = tpu.matmul %121, %122, %cst_42 {dimension_numbers = #tpu.dot_dimension_numbers<[1], [0], [0], [1], [0, 0, 1, 1], [], []>} : vector<16x8xbf16>, vector<8x32xbf16>, vector<16x32xf32> -> vector<16x32xf32>
    %124 = arith.addf %99, %123 : vector<16x32xf32>
    %125 = arith.extf %1 : vector<16x32xbf16> to vector<16x32xf32>
    %126 = arith.addf %125, %124 : vector<16x32xf32>
    %c0_43 = arith.constant 0 : index
    %c0_44 = arith.constant 0 : index
    %127 = vector.load %arg10[%c0_43, %c0_44] : memref<1x32xf32, #tpu.memory_space<vmem>>, vector<1x32xf32>
    %128 = vector.broadcast %127 : vector<1x32xf32> to vector<16x32xf32>
    %129 = arith.addf %126, %128 : vector<16x32xf32>
    %cst_45 = arith.constant dense<0.000000e+00> : vector<16xf32>
    %130 = vector.multi_reduction <add>, %129, %cst_45 [1] : vector<16x32xf32> to vector<16xf32>
    %131 = vector.shape_cast %130 : vector<16xf32> to vector<16x1xf32>
    %cst_46 = arith.constant 3.200000e+01 : f32
    %132 = vector.broadcast %cst_46 : f32 to vector<16x1xf32>
    %133 = arith.divf %131, %132 : vector<16x1xf32>
    %134 = vector.broadcast %133 : vector<16x1xf32> to vector<16x32xf32>
    %135 = arith.subf %129, %134 : vector<16x32xf32>
    %136 = vector.broadcast %133 : vector<16x1xf32> to vector<16x32xf32>
    %137 = arith.subf %129, %136 : vector<16x32xf32>
    %138 = arith.mulf %135, %137 : vector<16x32xf32>
    %cst_47 = arith.constant dense<0.000000e+00> : vector<16xf32>
    %139 = vector.multi_reduction <add>, %138, %cst_47 [1] : vector<16x32xf32> to vector<16xf32>
    %140 = vector.shape_cast %139 : vector<16xf32> to vector<16x1xf32>
    %cst_48 = arith.constant 3.200000e+01 : f32
    %141 = vector.broadcast %cst_48 : f32 to vector<16x1xf32>
    %142 = arith.divf %140, %141 : vector<16x1xf32>
    %143 = vector.broadcast %133 : vector<16x1xf32> to vector<16x32xf32>
    %144 = arith.subf %129, %143 : vector<16x32xf32>
    %cst_49 = arith.constant 9.99999974E-6 : f32
    %145 = vector.broadcast %cst_49 : f32 to vector<16x1xf32>
    %146 = arith.addf %142, %145 : vector<16x1xf32>
    %147 = math.rsqrt %146 : vector<16x1xf32>
    %148 = vector.broadcast %147 : vector<16x1xf32> to vector<16x32xf32>
    %149 = arith.mulf %144, %148 : vector<16x32xf32>
    %c0_50 = arith.constant 0 : index
    %c0_51 = arith.constant 0 : index
    %150 = vector.load %arg11[%c0_50, %c0_51] : memref<1x32xf32, #tpu.memory_space<vmem>>, vector<1x32xf32>
    %151 = vector.broadcast %150 : vector<1x32xf32> to vector<16x32xf32>
    %152 = arith.mulf %149, %151 : vector<16x32xf32>
    %c0_52 = arith.constant 0 : index
    %c0_53 = arith.constant 0 : index
    %153 = vector.load %arg12[%c0_52, %c0_53] : memref<1x32xf32, #tpu.memory_space<vmem>>, vector<1x32xf32>
    %154 = vector.broadcast %153 : vector<1x32xf32> to vector<16x32xf32>
    %155 = arith.addf %152, %154 : vector<16x32xf32>
    %156 = arith.truncf %155 : vector<16x32xf32> to vector<16x32xbf16>
    %c0_54 = arith.constant 0 : index
    %c0_55 = arith.constant 0 : index
    %c0_56 = arith.constant 0 : index
    %157 = vector.load %arg13[%c0_54, %c0_55, %c0_56] : memref<1x16x32xbf16, #tpu.memory_space<vmem>>, vector<1x16x32xbf16>
    %158 = vector.shape_cast %157 : vector<1x16x32xbf16> to vector<16x32xbf16>
    %159 = vector.shape_cast %156 : vector<16x32xbf16> to vector<1x16x32xbf16>
    tpu.vector_store %arg13[%c0_54, %c0_55, %c0_56], %159 {strides = array<i32>} : memref<1x16x32xbf16, #tpu.memory_space<vmem>>, vector<1x16x32xbf16>,
    return
  }
  func.func @transform_0(%arg0: i32, %arg1: i32) -> (i32, i32, i32) {
    %c0_i32 = arith.constant 0 : i32
    %c0_i32_0 = arith.constant 0 : i32
    return %arg0, %arg1, %c0_i32 : i32, i32, i32
  }
  func.func @transform_1(%arg0: i32, %arg1: i32) -> (i32, i32, i32) {
    %c0_i32 = arith.constant 0 : i32
    %c0_i32_0 = arith.constant 0 : i32
    %c0_i32_1 = arith.constant 0 : i32
    return %arg0, %c0_i32, %c0_i32_0 : i32, i32, i32
  }
  func.func @transform_2(%arg0: i32, %arg1: i32) -> (i32, i32, i32) {
    %c0_i32 = arith.constant 0 : i32
    %c0_i32_0 = arith.constant 0 : i32
    %c0_i32_1 = arith.constant 0 : i32
    return %arg0, %c0_i32, %c0_i32_0 : i32, i32, i32
  }
  func.func @transform_3(%arg0: i32, %arg1: i32) -> (i32, i32) {
    %c0_i32 = arith.constant 0 : i32
    %c0_i32_0 = arith.constant 0 : i32
    %c0_i32_1 = arith.constant 0 : i32
    return %c0_i32, %c0_i32_0 : i32, i32
  }
  func.func @transform_4(%arg0: i32, %arg1: i32) -> (i32, i32) {
    %c0_i32 = arith.constant 0 : i32
    %c0_i32_0 = arith.constant 0 : i32
    %c0_i32_1 = arith.constant 0 : i32
    return %c0_i32, %c0_i32_0 : i32, i32
  }
  func.func @transform_5(%arg0: i32, %arg1: i32) -> (i32, i32) {
    %c0_i32 = arith.constant 0 : i32
    %c0_i32_0 = arith.constant 0 : i32
    %c0_i32_1 = arith.constant 0 : i32
    return %c0_i32, %c0_i32_0 : i32, i32
  }
  func.func @transform_6(%arg0: i32, %arg1: i32) -> (i32, i32) {
    %c0_i32 = arith.constant 0 : i32
    %c0_i32_0 = arith.constant 0 : i32
    %c0_i32_1 = arith.constant 0 : i32
    return %c0_i32, %c0_i32_0 : i32, i32
  }
  func.func @transform_7(%arg0: i32, %arg1: i32) -> (i32, i32) {
    %c0_i32 = arith.constant 0 : i32
    %c0_i32_0 = arith.constant 0 : i32
    %c0_i32_1 = arith.constant 0 : i32
    return %c0_i32, %c0_i32_0 : i32, i32
  }
  func.func @transform_8(%arg0: i32, %arg1: i32) -> (i32, i32) {
    %c0_i32 = arith.constant 0 : i32
    %c0_i32_0 = arith.constant 0 : i32
    %c0_i32_1 = arith.constant 0 : i32
    return %c0_i32, %c0_i32_0 : i32, i32
  }
  func.func @transform_9(%arg0: i32, %arg1: i32) -> (i32, i32) {
    %c0_i32 = arith.constant 0 : i32
    %c0_i32_0 = arith.constant 0 : i32
    %c0_i32_1 = arith.constant 0 : i32
    return %c0_i32, %c0_i32_0 : i32, i32
  }
  func.func @transform_10(%arg0: i32, %arg1: i32) -> (i32, i32) {
    %c0_i32 = arith.constant 0 : i32
    %c0_i32_0 = arith.constant 0 : i32
    %c0_i32_1 = arith.constant 0 : i32
    return %c0_i32, %c0_i32_0 : i32, i32
  }
  func.func @transform_11(%arg0: i32, %arg1: i32) -> (i32, i32, i32) {
    %c0_i32 = arith.constant 0 : i32
    %c0_i32_0 = arith.constant 0 : i32
    return %arg0, %arg1, %c0_i32 : i32, i32, i32
  }
}

module attributes {stable_mosaic.version = 11 : i64} {
  func.func @_attn_sublayer_kernel(%arg0: i32, %arg1: i32, %arg2: memref<1x8x32xbf16, #tpu.memory_space<vmem>>, %arg3: memref<1x8x32xbf16, #tpu.memory_space<vmem>>, %arg4: memref<1x8x8xf32, #tpu.memory_space<vmem>>, %arg5: memref<32x32xbf16, #tpu.memory_space<vmem>>, %arg6: memref<1x32xf32, #tpu.memory_space<vmem>>, %arg7: memref<32x64xbf16, #tpu.memory_space<vmem>>, %arg8: memref<1x64xf32, #tpu.memory_space<vmem>>, %arg9: memref<32x32xbf16, #tpu.memory_space<vmem>>, %arg10: memref<1x32xf32, #tpu.memory_space<vmem>>, %arg11: memref<1x32xf32, #tpu.memory_space<vmem>>, %arg12: memref<1x32xf32, #tpu.memory_space<vmem>>, %arg13: memref<1x8x32xbf16, #tpu.memory_space<vmem>>) attributes {dimension_semantics = [#tpu.dimension_semantics<parallel>, #tpu.dimension_semantics<parallel>], iteration_bounds = array<i64: 2, 1>, scalar_prefetch = 0 : i64, scratch_operands = 0 : i64, tpu.core_type = #tpu.core_type<tc>, window_params = [{transform_indices = @transform_0, window_bounds = array<i64: 1, 8, 32>}, {transform_indices = @transform_1, window_bounds = array<i64: 1, 8, 32>}, {transform_indices = @transform_2, window_bounds = array<i64: 1, 8, 8>}, {pipeline_mode = #tpu.pipeline_mode<synchronous>, transform_indices = @transform_3, window_bounds = array<i64: 32, 32>}, {pipeline_mode = #tpu.pipeline_mode<synchronous>, transform_indices = @transform_4, window_bounds = array<i64: 1, 32>}, {pipeline_mode = #tpu.pipeline_mode<synchronous>, transform_indices = @transform_5, window_bounds = array<i64: 32, 64>}, {pipeline_mode = #tpu.pipeline_mode<synchronous>, transform_indices = @transform_6, window_bounds = array<i64: 1, 64>}, {pipeline_mode = #tpu.pipeline_mode<synchronous>, transform_indices = @transform_7, window_bounds = array<i64: 32, 32>}, {pipeline_mode = #tpu.pipeline_mode<synchronous>, transform_indices = @transform_8, window_bounds = array<i64: 1, 32>}, {pipeline_mode = #tpu.pipeline_mode<synchronous>, transform_indices = @transform_9, window_bounds = array<i64: 1, 32>}, {pipeline_mode = #tpu.pipeline_mode<synchronous>, transform_indices = @transform_10, window_bounds = array<i64: 1, 32>}, {transform_indices = @transform_11, window_bounds = array<i64: 1, 8, 32>}]} {
    %c0 = arith.constant 0 : index
    %c0_0 = arith.constant 0 : index
    %c0_1 = arith.constant 0 : index
    %0 = vector.load %arg2[%c0, %c0_0, %c0_1] : memref<1x8x32xbf16, #tpu.memory_space<vmem>>, vector<1x8x32xbf16>
    %1 = vector.shape_cast %0 : vector<1x8x32xbf16> to vector<8x32xbf16>
    %c0_2 = arith.constant 0 : index
    %c0_3 = arith.constant 0 : index
    %c0_4 = arith.constant 0 : index
    %2 = vector.load %arg3[%c0_2, %c0_3, %c0_4] : memref<1x8x32xbf16, #tpu.memory_space<vmem>>, vector<1x8x32xbf16>
    %3 = vector.shape_cast %2 : vector<1x8x32xbf16> to vector<8x32xbf16>
    %c0_5 = arith.constant 0 : index
    %c0_6 = arith.constant 0 : index
    %c0_7 = arith.constant 0 : index
    %4 = vector.load %arg4[%c0_5, %c0_6, %c0_7] : memref<1x8x8xf32, #tpu.memory_space<vmem>>, vector<1x8x8xf32>
    %5 = vector.shape_cast %4 : vector<1x8x8xf32> to vector<8x8xf32>
    %cst = arith.constant 5.000000e-01 : f32
    %6 = vector.broadcast %cst : f32 to vector<8x8xf32>
    %7 = arith.cmpf ogt, %5, %6 : vector<8x8xf32>
    %cst_8 = arith.constant 0.000000e+00 : f32
    %cst_9 = arith.constant -1.000000e+09 : f32
    %8 = vector.broadcast %cst_8 : f32 to vector<8x8xf32>
    %9 = vector.broadcast %cst_9 : f32 to vector<8x8xf32>
    %10 = arith.select %7, %8, %9 : vector<8x8xi1>, vector<8x8xf32>
    %c0_10 = arith.constant 0 : index
    %c0_11 = arith.constant 0 : index
    %11 = vector.load %arg5[%c0_10, %c0_11] : memref<32x32xbf16, #tpu.memory_space<vmem>>, vector<32x32xbf16>
    %cst_12 = arith.constant dense<0.000000e+00> : vector<8x32xf32>
    %12 = tpu.matmul %1, %11, %cst_12 {dimension_numbers = #tpu.dot_dimension_numbers<[1], [0], [0], [1], [0, 0, 1, 1], [], []>} : vector<8x32xbf16>, vector<32x32xbf16>, vector<8x32xf32> -> vector<8x32xf32>
    %c0_13 = arith.constant 0 : index
    %c0_14 = arith.constant 0 : index
    %13 = vector.load %arg6[%c0_13, %c0_14] : memref<1x32xf32, #tpu.memory_space<vmem>>, vector<1x32xf32>
    %14 = vector.broadcast %13 : vector<1x32xf32> to vector<8x32xf32>
    %15 = arith.addf %12, %14 : vector<8x32xf32>
    %c0_15 = arith.constant 0 : index
    %c0_16 = arith.constant 0 : index
    %16 = vector.load %arg7[%c0_15, %c0_16] : memref<32x64xbf16, #tpu.memory_space<vmem>>, vector<32x64xbf16>
    %cst_17 = arith.constant dense<0.000000e+00> : vector<8x64xf32>
    %17 = tpu.matmul %3, %16, %cst_17 {dimension_numbers = #tpu.dot_dimension_numbers<[1], [0], [0], [1], [0, 0, 1, 1], [], []>} : vector<8x32xbf16>, vector<32x64xbf16>, vector<8x64xf32> -> vector<8x64xf32>
    %c0_18 = arith.constant 0 : index
    %c0_19 = arith.constant 0 : index
    %18 = vector.load %arg8[%c0_18, %c0_19] : memref<1x64xf32, #tpu.memory_space<vmem>>, vector<1x64xf32>
    %19 = vector.broadcast %18 : vector<1x64xf32> to vector<8x64xf32>
    %20 = arith.addf %17, %19 : vector<8x64xf32>
    %21 = vector.extract_strided_slice %20 {offsets = [0, 0], sizes = [8, 32], strides = [1, 1]} : vector<8x64xf32> to vector<8x32xf32>
    %22 = vector.extract_strided_slice %20 {offsets = [0, 32], sizes = [8, 32], strides = [1, 1]} : vector<8x64xf32> to vector<8x32xf32>
    %c0_20 = arith.constant 0 : index
    %c0_21 = arith.constant 0 : index
    %23 = vector.load %arg9[%c0_20, %c0_21] : memref<32x32xbf16, #tpu.memory_space<vmem>>, vector<32x32xbf16>
    %cst_22 = arith.constant 0.000000e+00 : f32
    %24 = vector.broadcast %cst_22 : f32 to vector<8x32xf32>
    %25 = vector.extract_strided_slice %15 {offsets = [0, 0], sizes = [8, 8], strides = [1, 1]} : vector<8x32xf32> to vector<8x8xf32>
    %26 = arith.truncf %25 : vector<8x8xf32> to vector<8x8xbf16>
    %27 = vector.extract_strided_slice %21 {offsets = [0, 0], sizes = [8, 8], strides = [1, 1]} : vector<8x32xf32> to vector<8x8xf32>
    %28 = arith.truncf %27 : vector<8x8xf32> to vector<8x8xbf16>
    %29 = vector.extract_strided_slice %22 {offsets = [0, 0], sizes = [8, 8], strides = [1, 1]} : vector<8x32xf32> to vector<8x8xf32>
    %30 = arith.truncf %29 : vector<8x8xf32> to vector<8x8xbf16>
    %cst_23 = arith.constant dense<0.000000e+00> : vector<8x8xf32>
    %31 = tpu.matmul %26, %28, %cst_23 {dimension_numbers = #tpu.dot_dimension_numbers<[1], [1], [0], [0], [0, 0, 1, 0], [], []>} : vector<8x8xbf16>, vector<8x8xbf16>, vector<8x8xf32> -> vector<8x8xf32>
    %32 = arith.addf %31, %10 : vector<8x8xf32>
    %cst_24 = arith.constant dense<0xFF800000> : vector<8xf32>
    %33 = vector.multi_reduction <maximumf>, %32, %cst_24 [1] : vector<8x8xf32> to vector<8xf32>
    %34 = vector.shape_cast %33 : vector<8xf32> to vector<8x1xf32>
    %35 = vector.broadcast %34 : vector<8x1xf32> to vector<8x8xf32>
    %36 = arith.subf %32, %35 : vector<8x8xf32>
    %37 = math.exp %36 : vector<8x8xf32>
    %cst_25 = arith.constant dense<0.000000e+00> : vector<8xf32>
    %38 = vector.multi_reduction <add>, %37, %cst_25 [1] : vector<8x8xf32> to vector<8xf32>
    %39 = vector.shape_cast %38 : vector<8xf32> to vector<8x1xf32>
    %40 = tpu.reciprocal %39 {approx = true} : vector<8x1xf32> -> vector<8x1xf32>
    %41 = vector.broadcast %40 : vector<8x1xf32> to vector<8x8xf32>
    %42 = arith.mulf %37, %41 : vector<8x8xf32>
    %43 = arith.truncf %42 : vector<8x8xf32> to vector<8x8xbf16>
    %cst_26 = arith.constant dense<0.000000e+00> : vector<8x8xf32>
    %44 = tpu.matmul %43, %30, %cst_26 {dimension_numbers = #tpu.dot_dimension_numbers<[1], [0], [0], [1], [0, 0, 1, 1], [], []>} : vector<8x8xbf16>, vector<8x8xbf16>, vector<8x8xf32> -> vector<8x8xf32>
    %45 = arith.truncf %44 : vector<8x8xf32> to vector<8x8xbf16>
    %46 = vector.extract_strided_slice %23 {offsets = [0, 0], sizes = [8, 32], strides = [1, 1]} : vector<32x32xbf16> to vector<8x32xbf16>
    %cst_27 = arith.constant dense<0.000000e+00> : vector<8x32xf32>
    %47 = tpu.matmul %45, %46, %cst_27 {dimension_numbers = #tpu.dot_dimension_numbers<[1], [0], [0], [1], [0, 0, 1, 1], [], []>} : vector<8x8xbf16>, vector<8x32xbf16>, vector<8x32xf32> -> vector<8x32xf32>
    %48 = arith.addf %24, %47 : vector<8x32xf32>
    %49 = vector.extract_strided_slice %15 {offsets = [0, 8], sizes = [8, 8], strides = [1, 1]} : vector<8x32xf32> to vector<8x8xf32>
    %50 = arith.truncf %49 : vector<8x8xf32> to vector<8x8xbf16>
    %51 = vector.extract_strided_slice %21 {offsets = [0, 8], sizes = [8, 8], strides = [1, 1]} : vector<8x32xf32> to vector<8x8xf32>
    %52 = arith.truncf %51 : vector<8x8xf32> to vector<8x8xbf16>
    %53 = vector.extract_strided_slice %22 {offsets = [0, 8], sizes = [8, 8], strides = [1, 1]} : vector<8x32xf32> to vector<8x8xf32>
    %54 = arith.truncf %53 : vector<8x8xf32> to vector<8x8xbf16>
    %cst_28 = arith.constant dense<0.000000e+00> : vector<8x8xf32>
    %55 = tpu.matmul %50, %52, %cst_28 {dimension_numbers = #tpu.dot_dimension_numbers<[1], [1], [0], [0], [0, 0, 1, 0], [], []>} : vector<8x8xbf16>, vector<8x8xbf16>, vector<8x8xf32> -> vector<8x8xf32>
    %56 = arith.addf %55, %10 : vector<8x8xf32>
    %cst_29 = arith.constant dense<0xFF800000> : vector<8xf32>
    %57 = vector.multi_reduction <maximumf>, %56, %cst_29 [1] : vector<8x8xf32> to vector<8xf32>
    %58 = vector.shape_cast %57 : vector<8xf32> to vector<8x1xf32>
    %59 = vector.broadcast %58 : vector<8x1xf32> to vector<8x8xf32>
    %60 = arith.subf %56, %59 : vector<8x8xf32>
    %61 = math.exp %60 : vector<8x8xf32>
    %cst_30 = arith.constant dense<0.000000e+00> : vector<8xf32>
    %62 = vector.multi_reduction <add>, %61, %cst_30 [1] : vector<8x8xf32> to vector<8xf32>
    %63 = vector.shape_cast %62 : vector<8xf32> to vector<8x1xf32>
    %64 = tpu.reciprocal %63 {approx = true} : vector<8x1xf32> -> vector<8x1xf32>
    %65 = vector.broadcast %64 : vector<8x1xf32> to vector<8x8xf32>
    %66 = arith.mulf %61, %65 : vector<8x8xf32>
    %67 = arith.truncf %66 : vector<8x8xf32> to vector<8x8xbf16>
    %cst_31 = arith.constant dense<0.000000e+00> : vector<8x8xf32>
    %68 = tpu.matmul %67, %54, %cst_31 {dimension_numbers = #tpu.dot_dimension_numbers<[1], [0], [0], [1], [0, 0, 1, 1], [], []>} : vector<8x8xbf16>, vector<8x8xbf16>, vector<8x8xf32> -> vector<8x8xf32>
    %69 = arith.truncf %68 : vector<8x8xf32> to vector<8x8xbf16>
    %70 = vector.extract_strided_slice %23 {offsets = [8, 0], sizes = [8, 32], strides = [1, 1]} : vector<32x32xbf16> to vector<8x32xbf16>
    %cst_32 = arith.constant dense<0.000000e+00> : vector<8x32xf32>
    %71 = tpu.matmul %69, %70, %cst_32 {dimension_numbers = #tpu.dot_dimension_numbers<[1], [0], [0], [1], [0, 0, 1, 1], [], []>} : vector<8x8xbf16>, vector<8x32xbf16>, vector<8x32xf32> -> vector<8x32xf32>
    %72 = arith.addf %48, %71 : vector<8x32xf32>
    %73 = vector.extract_strided_slice %15 {offsets = [0, 16], sizes = [8, 8], strides = [1, 1]} : vector<8x32xf32> to vector<8x8xf32>
    %74 = arith.truncf %73 : vector<8x8xf32> to vector<8x8xbf16>
    %75 = vector.extract_strided_slice %21 {offsets = [0, 16], sizes = [8, 8], strides = [1, 1]} : vector<8x32xf32> to vector<8x8xf32>
    %76 = arith.truncf %75 : vector<8x8xf32> to vector<8x8xbf16>
    %77 = vector.extract_strided_slice %22 {offsets = [0, 16], sizes = [8, 8], strides = [1, 1]} : vector<8x32xf32> to vector<8x8xf32>
    %78 = arith.truncf %77 : vector<8x8xf32> to vector<8x8xbf16>
    %cst_33 = arith.constant dense<0.000000e+00> : vector<8x8xf32>
    %79 = tpu.matmul %74, %76, %cst_33 {dimension_numbers = #tpu.dot_dimension_numbers<[1], [1], [0], [0], [0, 0, 1, 0], [], []>} : vector<8x8xbf16>, vector<8x8xbf16>, vector<8x8xf32> -> vector<8x8xf32>
    %80 = arith.addf %79, %10 : vector<8x8xf32>
    %cst_34 = arith.constant dense<0xFF800000> : vector<8xf32>
    %81 = vector.multi_reduction <maximumf>, %80, %cst_34 [1] : vector<8x8xf32> to vector<8xf32>
    %82 = vector.shape_cast %81 : vector<8xf32> to vector<8x1xf32>
    %83 = vector.broadcast %82 : vector<8x1xf32> to vector<8x8xf32>
    %84 = arith.subf %80, %83 : vector<8x8xf32>
    %85 = math.exp %84 : vector<8x8xf32>
    %cst_35 = arith.constant dense<0.000000e+00> : vector<8xf32>
    %86 = vector.multi_reduction <add>, %85, %cst_35 [1] : vector<8x8xf32> to vector<8xf32>
    %87 = vector.shape_cast %86 : vector<8xf32> to vector<8x1xf32>
    %88 = tpu.reciprocal %87 {approx = true} : vector<8x1xf32> -> vector<8x1xf32>
    %89 = vector.broadcast %88 : vector<8x1xf32> to vector<8x8xf32>
    %90 = arith.mulf %85, %89 : vector<8x8xf32>
    %91 = arith.truncf %90 : vector<8x8xf32> to vector<8x8xbf16>
    %cst_36 = arith.constant dense<0.000000e+00> : vector<8x8xf32>
    %92 = tpu.matmul %91, %78, %cst_36 {dimension_numbers = #tpu.dot_dimension_numbers<[1], [0], [0], [1], [0, 0, 1, 1], [], []>} : vector<8x8xbf16>, vector<8x8xbf16>, vector<8x8xf32> -> vector<8x8xf32>
    %93 = arith.truncf %92 : vector<8x8xf32> to vector<8x8xbf16>
    %94 = vector.extract_strided_slice %23 {offsets = [16, 0], sizes = [8, 32], strides = [1, 1]} : vector<32x32xbf16> to vector<8x32xbf16>
    %cst_37 = arith.constant dense<0.000000e+00> : vector<8x32xf32>
    %95 = tpu.matmul %93, %94, %cst_37 {dimension_numbers = #tpu.dot_dimension_numbers<[1], [0], [0], [1], [0, 0, 1, 1], [], []>} : vector<8x8xbf16>, vector<8x32xbf16>, vector<8x32xf32> -> vector<8x32xf32>
    %96 = arith.addf %72, %95 : vector<8x32xf32>
    %97 = vector.extract_strided_slice %15 {offsets = [0, 24], sizes = [8, 8], strides = [1, 1]} : vector<8x32xf32> to vector<8x8xf32>
    %98 = arith.truncf %97 : vector<8x8xf32> to vector<8x8xbf16>
    %99 = vector.extract_strided_slice %21 {offsets = [0, 24], sizes = [8, 8], strides = [1, 1]} : vector<8x32xf32> to vector<8x8xf32>
    %100 = arith.truncf %99 : vector<8x8xf32> to vector<8x8xbf16>
    %101 = vector.extract_strided_slice %22 {offsets = [0, 24], sizes = [8, 8], strides = [1, 1]} : vector<8x32xf32> to vector<8x8xf32>
    %102 = arith.truncf %101 : vector<8x8xf32> to vector<8x8xbf16>
    %cst_38 = arith.constant dense<0.000000e+00> : vector<8x8xf32>
    %103 = tpu.matmul %98, %100, %cst_38 {dimension_numbers = #tpu.dot_dimension_numbers<[1], [1], [0], [0], [0, 0, 1, 0], [], []>} : vector<8x8xbf16>, vector<8x8xbf16>, vector<8x8xf32> -> vector<8x8xf32>
    %104 = arith.addf %103, %10 : vector<8x8xf32>
    %cst_39 = arith.constant dense<0xFF800000> : vector<8xf32>
    %105 = vector.multi_reduction <maximumf>, %104, %cst_39 [1] : vector<8x8xf32> to vector<8xf32>
    %106 = vector.shape_cast %105 : vector<8xf32> to vector<8x1xf32>
    %107 = vector.broadcast %106 : vector<8x1xf32> to vector<8x8xf32>
    %108 = arith.subf %104, %107 : vector<8x8xf32>
    %109 = math.exp %108 : vector<8x8xf32>
    %cst_40 = arith.constant dense<0.000000e+00> : vector<8xf32>
    %110 = vector.multi_reduction <add>, %109, %cst_40 [1] : vector<8x8xf32> to vector<8xf32>
    %111 = vector.shape_cast %110 : vector<8xf32> to vector<8x1xf32>
    %112 = tpu.reciprocal %111 {approx = true} : vector<8x1xf32> -> vector<8x1xf32>
    %113 = vector.broadcast %112 : vector<8x1xf32> to vector<8x8xf32>
    %114 = arith.mulf %109, %113 : vector<8x8xf32>
    %115 = arith.truncf %114 : vector<8x8xf32> to vector<8x8xbf16>
    %cst_41 = arith.constant dense<0.000000e+00> : vector<8x8xf32>
    %116 = tpu.matmul %115, %102, %cst_41 {dimension_numbers = #tpu.dot_dimension_numbers<[1], [0], [0], [1], [0, 0, 1, 1], [], []>} : vector<8x8xbf16>, vector<8x8xbf16>, vector<8x8xf32> -> vector<8x8xf32>
    %117 = arith.truncf %116 : vector<8x8xf32> to vector<8x8xbf16>
    %118 = vector.extract_strided_slice %23 {offsets = [24, 0], sizes = [8, 32], strides = [1, 1]} : vector<32x32xbf16> to vector<8x32xbf16>
    %cst_42 = arith.constant dense<0.000000e+00> : vector<8x32xf32>
    %119 = tpu.matmul %117, %118, %cst_42 {dimension_numbers = #tpu.dot_dimension_numbers<[1], [0], [0], [1], [0, 0, 1, 1], [], []>} : vector<8x8xbf16>, vector<8x32xbf16>, vector<8x32xf32> -> vector<8x32xf32>
    %120 = arith.addf %96, %119 : vector<8x32xf32>
    %121 = arith.extf %1 : vector<8x32xbf16> to vector<8x32xf32>
    %122 = arith.addf %121, %120 : vector<8x32xf32>
    %c0_43 = arith.constant 0 : index
    %c0_44 = arith.constant 0 : index
    %123 = vector.load %arg10[%c0_43, %c0_44] : memref<1x32xf32, #tpu.memory_space<vmem>>, vector<1x32xf32>
    %124 = vector.broadcast %123 : vector<1x32xf32> to vector<8x32xf32>
    %125 = arith.addf %122, %124 : vector<8x32xf32>
    %cst_45 = arith.constant dense<0.000000e+00> : vector<8xf32>
    %126 = vector.multi_reduction <add>, %125, %cst_45 [1] : vector<8x32xf32> to vector<8xf32>
    %127 = vector.shape_cast %126 : vector<8xf32> to vector<8x1xf32>
    %cst_46 = arith.constant 3.200000e+01 : f32
    %128 = vector.broadcast %cst_46 : f32 to vector<8x1xf32>
    %129 = arith.divf %127, %128 : vector<8x1xf32>
    %130 = vector.broadcast %129 : vector<8x1xf32> to vector<8x32xf32>
    %131 = arith.subf %125, %130 : vector<8x32xf32>
    %132 = vector.broadcast %129 : vector<8x1xf32> to vector<8x32xf32>
    %133 = arith.subf %125, %132 : vector<8x32xf32>
    %134 = arith.mulf %131, %133 : vector<8x32xf32>
    %cst_47 = arith.constant dense<0.000000e+00> : vector<8xf32>
    %135 = vector.multi_reduction <add>, %134, %cst_47 [1] : vector<8x32xf32> to vector<8xf32>
    %136 = vector.shape_cast %135 : vector<8xf32> to vector<8x1xf32>
    %cst_48 = arith.constant 3.200000e+01 : f32
    %137 = vector.broadcast %cst_48 : f32 to vector<8x1xf32>
    %138 = arith.divf %136, %137 : vector<8x1xf32>
    %139 = vector.broadcast %129 : vector<8x1xf32> to vector<8x32xf32>
    %140 = arith.subf %125, %139 : vector<8x32xf32>
    %cst_49 = arith.constant 9.99999974E-6 : f32
    %141 = vector.broadcast %cst_49 : f32 to vector<8x1xf32>
    %142 = arith.addf %138, %141 : vector<8x1xf32>
    %143 = math.rsqrt %142 : vector<8x1xf32>
    %144 = vector.broadcast %143 : vector<8x1xf32> to vector<8x32xf32>
    %145 = arith.mulf %140, %144 : vector<8x32xf32>
    %c0_50 = arith.constant 0 : index
    %c0_51 = arith.constant 0 : index
    %146 = vector.load %arg11[%c0_50, %c0_51] : memref<1x32xf32, #tpu.memory_space<vmem>>, vector<1x32xf32>
    %147 = vector.broadcast %146 : vector<1x32xf32> to vector<8x32xf32>
    %148 = arith.mulf %145, %147 : vector<8x32xf32>
    %c0_52 = arith.constant 0 : index
    %c0_53 = arith.constant 0 : index
    %149 = vector.load %arg12[%c0_52, %c0_53] : memref<1x32xf32, #tpu.memory_space<vmem>>, vector<1x32xf32>
    %150 = vector.broadcast %149 : vector<1x32xf32> to vector<8x32xf32>
    %151 = arith.addf %148, %150 : vector<8x32xf32>
    %152 = arith.truncf %151 : vector<8x32xf32> to vector<8x32xbf16>
    %c0_54 = arith.constant 0 : index
    %c0_55 = arith.constant 0 : index
    %c0_56 = arith.constant 0 : index
    %153 = vector.load %arg13[%c0_54, %c0_55, %c0_56] : memref<1x8x32xbf16, #tpu.memory_space<vmem>>, vector<1x8x32xbf16>
    %154 = vector.shape_cast %153 : vector<1x8x32xbf16> to vector<8x32xbf16>
    %155 = vector.shape_cast %152 : vector<8x32xbf16> to vector<1x8x32xbf16>
    tpu.vector_store %arg13[%c0_54, %c0_55, %c0_56], %155 {strides = array<i32>} : memref<1x8x32xbf16, #tpu.memory_space<vmem>>, vector<1x8x32xbf16>,
    return
  }
  func.func @transform_0(%arg0: i32, %arg1: i32) -> (i32, i32, i32) {
    %c0_i32 = arith.constant 0 : i32
    %c0_i32_0 = arith.constant 0 : i32
    return %arg0, %arg1, %c0_i32 : i32, i32, i32
  }
  func.func @transform_1(%arg0: i32, %arg1: i32) -> (i32, i32, i32) {
    %c0_i32 = arith.constant 0 : i32
    %c0_i32_0 = arith.constant 0 : i32
    %c0_i32_1 = arith.constant 0 : i32
    return %arg0, %c0_i32, %c0_i32_0 : i32, i32, i32
  }
  func.func @transform_2(%arg0: i32, %arg1: i32) -> (i32, i32, i32) {
    %c0_i32 = arith.constant 0 : i32
    %c0_i32_0 = arith.constant 0 : i32
    return %arg0, %arg1, %c0_i32 : i32, i32, i32
  }
  func.func @transform_3(%arg0: i32, %arg1: i32) -> (i32, i32) {
    %c0_i32 = arith.constant 0 : i32
    %c0_i32_0 = arith.constant 0 : i32
    %c0_i32_1 = arith.constant 0 : i32
    return %c0_i32, %c0_i32_0 : i32, i32
  }
  func.func @transform_4(%arg0: i32, %arg1: i32) -> (i32, i32) {
    %c0_i32 = arith.constant 0 : i32
    %c0_i32_0 = arith.constant 0 : i32
    %c0_i32_1 = arith.constant 0 : i32
    return %c0_i32, %c0_i32_0 : i32, i32
  }
  func.func @transform_5(%arg0: i32, %arg1: i32) -> (i32, i32) {
    %c0_i32 = arith.constant 0 : i32
    %c0_i32_0 = arith.constant 0 : i32
    %c0_i32_1 = arith.constant 0 : i32
    return %c0_i32, %c0_i32_0 : i32, i32
  }
  func.func @transform_6(%arg0: i32, %arg1: i32) -> (i32, i32) {
    %c0_i32 = arith.constant 0 : i32
    %c0_i32_0 = arith.constant 0 : i32
    %c0_i32_1 = arith.constant 0 : i32
    return %c0_i32, %c0_i32_0 : i32, i32
  }
  func.func @transform_7(%arg0: i32, %arg1: i32) -> (i32, i32) {
    %c0_i32 = arith.constant 0 : i32
    %c0_i32_0 = arith.constant 0 : i32
    %c0_i32_1 = arith.constant 0 : i32
    return %c0_i32, %c0_i32_0 : i32, i32
  }
  func.func @transform_8(%arg0: i32, %arg1: i32) -> (i32, i32) {
    %c0_i32 = arith.constant 0 : i32
    %c0_i32_0 = arith.constant 0 : i32
    %c0_i32_1 = arith.constant 0 : i32
    return %c0_i32, %c0_i32_0 : i32, i32
  }
  func.func @transform_9(%arg0: i32, %arg1: i32) -> (i32, i32) {
    %c0_i32 = arith.constant 0 : i32
    %c0_i32_0 = arith.constant 0 : i32
    %c0_i32_1 = arith.constant 0 : i32
    return %c0_i32, %c0_i32_0 : i32, i32
  }
  func.func @transform_10(%arg0: i32, %arg1: i32) -> (i32, i32) {
    %c0_i32 = arith.constant 0 : i32
    %c0_i32_0 = arith.constant 0 : i32
    %c0_i32_1 = arith.constant 0 : i32
    return %c0_i32, %c0_i32_0 : i32, i32
  }
  func.func @transform_11(%arg0: i32, %arg1: i32) -> (i32, i32, i32) {
    %c0_i32 = arith.constant 0 : i32
    %c0_i32_0 = arith.constant 0 : i32
    return %arg0, %arg1, %c0_i32 : i32, i32, i32
  }
}

module attributes {stable_mosaic.version = 11 : i64} {
  func.func @_attn_sublayer_kernel(%arg0: i32, %arg1: i32, %arg2: memref<1x8x32xbf16, #tpu.memory_space<vmem>>, %arg3: memref<1x16x32xbf16, #tpu.memory_space<vmem>>, %arg4: memref<1x1x16xf32, #tpu.memory_space<vmem>>, %arg5: memref<32x32xbf16, #tpu.memory_space<vmem>>, %arg6: memref<1x32xf32, #tpu.memory_space<vmem>>, %arg7: memref<32x64xbf16, #tpu.memory_space<vmem>>, %arg8: memref<1x64xf32, #tpu.memory_space<vmem>>, %arg9: memref<32x32xbf16, #tpu.memory_space<vmem>>, %arg10: memref<1x32xf32, #tpu.memory_space<vmem>>, %arg11: memref<1x32xf32, #tpu.memory_space<vmem>>, %arg12: memref<1x32xf32, #tpu.memory_space<vmem>>, %arg13: memref<1x8x32xbf16, #tpu.memory_space<vmem>>) attributes {dimension_semantics = [#tpu.dimension_semantics<parallel>, #tpu.dimension_semantics<parallel>], iteration_bounds = array<i64: 2, 1>, scalar_prefetch = 0 : i64, scratch_operands = 0 : i64, tpu.core_type = #tpu.core_type<tc>, window_params = [{transform_indices = @transform_0, window_bounds = array<i64: 1, 8, 32>}, {transform_indices = @transform_1, window_bounds = array<i64: 1, 16, 32>}, {transform_indices = @transform_2, window_bounds = array<i64: 1, 1, 16>}, {pipeline_mode = #tpu.pipeline_mode<synchronous>, transform_indices = @transform_3, window_bounds = array<i64: 32, 32>}, {pipeline_mode = #tpu.pipeline_mode<synchronous>, transform_indices = @transform_4, window_bounds = array<i64: 1, 32>}, {pipeline_mode = #tpu.pipeline_mode<synchronous>, transform_indices = @transform_5, window_bounds = array<i64: 32, 64>}, {pipeline_mode = #tpu.pipeline_mode<synchronous>, transform_indices = @transform_6, window_bounds = array<i64: 1, 64>}, {pipeline_mode = #tpu.pipeline_mode<synchronous>, transform_indices = @transform_7, window_bounds = array<i64: 32, 32>}, {pipeline_mode = #tpu.pipeline_mode<synchronous>, transform_indices = @transform_8, window_bounds = array<i64: 1, 32>}, {pipeline_mode = #tpu.pipeline_mode<synchronous>, transform_indices = @transform_9, window_bounds = array<i64: 1, 32>}, {pipeline_mode = #tpu.pipeline_mode<synchronous>, transform_indices = @transform_10, window_bounds = array<i64: 1, 32>}, {transform_indices = @transform_11, window_bounds = array<i64: 1, 8, 32>}]} {
    %c0 = arith.constant 0 : index
    %c0_0 = arith.constant 0 : index
    %c0_1 = arith.constant 0 : index
    %0 = vector.load %arg2[%c0, %c0_0, %c0_1] : memref<1x8x32xbf16, #tpu.memory_space<vmem>>, vector<1x8x32xbf16>
    %1 = vector.shape_cast %0 : vector<1x8x32xbf16> to vector<8x32xbf16>
    %c0_2 = arith.constant 0 : index
    %c0_3 = arith.constant 0 : index
    %c0_4 = arith.constant 0 : index
    %2 = vector.load %arg3[%c0_2, %c0_3, %c0_4] : memref<1x16x32xbf16, #tpu.memory_space<vmem>>, vector<1x16x32xbf16>
    %3 = vector.shape_cast %2 : vector<1x16x32xbf16> to vector<16x32xbf16>
    %c0_5 = arith.constant 0 : index
    %c0_6 = arith.constant 0 : index
    %c0_7 = arith.constant 0 : index
    %4 = vector.load %arg4[%c0_5, %c0_6, %c0_7] : memref<1x1x16xf32, #tpu.memory_space<vmem>>, vector<1x1x16xf32>
    %5 = vector.shape_cast %4 : vector<1x1x16xf32> to vector<1x16xf32>
    %cst = arith.constant 5.000000e-01 : f32
    %6 = vector.broadcast %cst : f32 to vector<1x16xf32>
    %7 = arith.cmpf ogt, %5, %6 : vector<1x16xf32>
    %cst_8 = arith.constant 0.000000e+00 : f32
    %cst_9 = arith.constant -1.000000e+09 : f32
    %8 = vector.broadcast %cst_8 : f32 to vector<1x16xf32>
    %9 = vector.broadcast %cst_9 : f32 to vector<1x16xf32>
    %10 = arith.select %7, %8, %9 : vector<1x16xi1>, vector<1x16xf32>
    %c0_10 = arith.constant 0 : index
    %c0_11 = arith.constant 0 : index
    %11 = vector.load %arg5[%c0_10, %c0_11] : memref<32x32xbf16, #tpu.memory_space<vmem>>, vector<32x32xbf16>
    %cst_12 = arith.constant dense<0.000000e+00> : vector<8x32xf32>
    %12 = tpu.matmul %1, %11, %cst_12 {dimension_numbers = #tpu.dot_dimension_numbers<[1], [0], [0], [1], [0, 0, 1, 1], [], []>} : vector<8x32xbf16>, vector<32x32xbf16>, vector<8x32xf32> -> vector<8x32xf32>
    %c0_13 = arith.constant 0 : index
    %c0_14 = arith.constant 0 : index
    %13 = vector.load %arg6[%c0_13, %c0_14] : memref<1x32xf32, #tpu.memory_space<vmem>>, vector<1x32xf32>
    %14 = vector.broadcast %13 : vector<1x32xf32> to vector<8x32xf32>
    %15 = arith.addf %12, %14 : vector<8x32xf32>
    %c0_15 = arith.constant 0 : index
    %c0_16 = arith.constant 0 : index
    %16 = vector.load %arg7[%c0_15, %c0_16] : memref<32x64xbf16, #tpu.memory_space<vmem>>, vector<32x64xbf16>
    %cst_17 = arith.constant dense<0.000000e+00> : vector<16x64xf32>
    %17 = tpu.matmul %3, %16, %cst_17 {dimension_numbers = #tpu.dot_dimension_numbers<[1], [0], [0], [1], [0, 0, 1, 1], [], []>} : vector<16x32xbf16>, vector<32x64xbf16>, vector<16x64xf32> -> vector<16x64xf32>
    %c0_18 = arith.constant 0 : index
    %c0_19 = arith.constant 0 : index
    %18 = vector.load %arg8[%c0_18, %c0_19] : memref<1x64xf32, #tpu.memory_space<vmem>>, vector<1x64xf32>
    %19 = vector.broadcast %18 : vector<1x64xf32> to vector<16x64xf32>
    %20 = arith.addf %17, %19 : vector<16x64xf32>
    %21 = vector.extract_strided_slice %20 {offsets = [0, 0], sizes = [16, 32], strides = [1, 1]} : vector<16x64xf32> to vector<16x32xf32>
    %22 = vector.extract_strided_slice %20 {offsets = [0, 32], sizes = [16, 32], strides = [1, 1]} : vector<16x64xf32> to vector<16x32xf32>
    %c0_20 = arith.constant 0 : index
    %c0_21 = arith.constant 0 : index
    %23 = vector.load %arg9[%c0_20, %c0_21] : memref<32x32xbf16, #tpu.memory_space<vmem>>, vector<32x32xbf16>
    %cst_22 = arith.constant 0.000000e+00 : f32
    %24 = vector.broadcast %cst_22 : f32 to vector<8x32xf32>
    %25 = vector.extract_strided_slice %15 {offsets = [0, 0], sizes = [8, 8], strides = [1, 1]} : vector<8x32xf32> to vector<8x8xf32>
    %26 = arith.truncf %25 : vector<8x8xf32> to vector<8x8xbf16>
    %27 = vector.extract_strided_slice %21 {offsets = [0, 0], sizes = [16, 8], strides = [1, 1]} : vector<16x32xf32> to vector<16x8xf32>
    %28 = arith.truncf %27 : vector<16x8xf32> to vector<16x8xbf16>
    %29 = vector.extract_strided_slice %22 {offsets = [0, 0], sizes = [16, 8], strides = [1, 1]} : vector<16x32xf32> to vector<16x8xf32>
    %30 = arith.truncf %29 : vector<16x8xf32> to vector<16x8xbf16>
    %cst_23 = arith.constant dense<0.000000e+00> : vector<8x16xf32>
    %31 = tpu.matmul %26, %28, %cst_23 {dimension_numbers = #tpu.dot_dimension_numbers<[1], [1], [0], [0], [0, 0, 1, 0], [], []>} : vector<8x8xbf16>, vector<16x8xbf16>, vector<8x16xf32> -> vector<8x16xf32>
    %32 = vector.broadcast %10 : vector<1x16xf32> to vector<8x16xf32>
    %33 = arith.addf %31, %32 : vector<8x16xf32>
    %cst_24 = arith.constant dense<0xFF800000> : vector<8xf32>
    %34 = vector.multi_reduction <maximumf>, %33, %cst_24 [1] : vector<8x16xf32> to vector<8xf32>
    %35 = vector.shape_cast %34 : vector<8xf32> to vector<8x1xf32>
    %36 = vector.broadcast %35 : vector<8x1xf32> to vector<8x16xf32>
    %37 = arith.subf %33, %36 : vector<8x16xf32>
    %38 = math.exp %37 : vector<8x16xf32>
    %cst_25 = arith.constant dense<0.000000e+00> : vector<8xf32>
    %39 = vector.multi_reduction <add>, %38, %cst_25 [1] : vector<8x16xf32> to vector<8xf32>
    %40 = vector.shape_cast %39 : vector<8xf32> to vector<8x1xf32>
    %41 = tpu.reciprocal %40 {approx = true} : vector<8x1xf32> -> vector<8x1xf32>
    %42 = vector.broadcast %41 : vector<8x1xf32> to vector<8x16xf32>
    %43 = arith.mulf %38, %42 : vector<8x16xf32>
    %44 = arith.truncf %43 : vector<8x16xf32> to vector<8x16xbf16>
    %cst_26 = arith.constant dense<0.000000e+00> : vector<8x8xf32>
    %45 = tpu.matmul %44, %30, %cst_26 {dimension_numbers = #tpu.dot_dimension_numbers<[1], [0], [0], [1], [0, 0, 1, 1], [], []>} : vector<8x16xbf16>, vector<16x8xbf16>, vector<8x8xf32> -> vector<8x8xf32>
    %46 = arith.truncf %45 : vector<8x8xf32> to vector<8x8xbf16>
    %47 = vector.extract_strided_slice %23 {offsets = [0, 0], sizes = [8, 32], strides = [1, 1]} : vector<32x32xbf16> to vector<8x32xbf16>
    %cst_27 = arith.constant dense<0.000000e+00> : vector<8x32xf32>
    %48 = tpu.matmul %46, %47, %cst_27 {dimension_numbers = #tpu.dot_dimension_numbers<[1], [0], [0], [1], [0, 0, 1, 1], [], []>} : vector<8x8xbf16>, vector<8x32xbf16>, vector<8x32xf32> -> vector<8x32xf32>
    %49 = arith.addf %24, %48 : vector<8x32xf32>
    %50 = vector.extract_strided_slice %15 {offsets = [0, 8], sizes = [8, 8], strides = [1, 1]} : vector<8x32xf32> to vector<8x8xf32>
    %51 = arith.truncf %50 : vector<8x8xf32> to vector<8x8xbf16>
    %52 = vector.extract_strided_slice %21 {offsets = [0, 8], sizes = [16, 8], strides = [1, 1]} : vector<16x32xf32> to vector<16x8xf32>
    %53 = arith.truncf %52 : vector<16x8xf32> to vector<16x8xbf16>
    %54 = vector.extract_strided_slice %22 {offsets = [0, 8], sizes = [16, 8], strides = [1, 1]} : vector<16x32xf32> to vector<16x8xf32>
    %55 = arith.truncf %54 : vector<16x8xf32> to vector<16x8xbf16>
    %cst_28 = arith.constant dense<0.000000e+00> : vector<8x16xf32>
    %56 = tpu.matmul %51, %53, %cst_28 {dimension_numbers = #tpu.dot_dimension_numbers<[1], [1], [0], [0], [0, 0, 1, 0], [], []>} : vector<8x8xbf16>, vector<16x8xbf16>, vector<8x16xf32> -> vector<8x16xf32>
    %57 = vector.broadcast %10 : vector<1x16xf32> to vector<8x16xf32>
    %58 = arith.addf %56, %57 : vector<8x16xf32>
    %cst_29 = arith.constant dense<0xFF800000> : vector<8xf32>
    %59 = vector.multi_reduction <maximumf>, %58, %cst_29 [1] : vector<8x16xf32> to vector<8xf32>
    %60 = vector.shape_cast %59 : vector<8xf32> to vector<8x1xf32>
    %61 = vector.broadcast %60 : vector<8x1xf32> to vector<8x16xf32>
    %62 = arith.subf %58, %61 : vector<8x16xf32>
    %63 = math.exp %62 : vector<8x16xf32>
    %cst_30 = arith.constant dense<0.000000e+00> : vector<8xf32>
    %64 = vector.multi_reduction <add>, %63, %cst_30 [1] : vector<8x16xf32> to vector<8xf32>
    %65 = vector.shape_cast %64 : vector<8xf32> to vector<8x1xf32>
    %66 = tpu.reciprocal %65 {approx = true} : vector<8x1xf32> -> vector<8x1xf32>
    %67 = vector.broadcast %66 : vector<8x1xf32> to vector<8x16xf32>
    %68 = arith.mulf %63, %67 : vector<8x16xf32>
    %69 = arith.truncf %68 : vector<8x16xf32> to vector<8x16xbf16>
    %cst_31 = arith.constant dense<0.000000e+00> : vector<8x8xf32>
    %70 = tpu.matmul %69, %55, %cst_31 {dimension_numbers = #tpu.dot_dimension_numbers<[1], [0], [0], [1], [0, 0, 1, 1], [], []>} : vector<8x16xbf16>, vector<16x8xbf16>, vector<8x8xf32> -> vector<8x8xf32>
    %71 = arith.truncf %70 : vector<8x8xf32> to vector<8x8xbf16>
    %72 = vector.extract_strided_slice %23 {offsets = [8, 0], sizes = [8, 32], strides = [1, 1]} : vector<32x32xbf16> to vector<8x32xbf16>
    %cst_32 = arith.constant dense<0.000000e+00> : vector<8x32xf32>
    %73 = tpu.matmul %71, %72, %cst_32 {dimension_numbers = #tpu.dot_dimension_numbers<[1], [0], [0], [1], [0, 0, 1, 1], [], []>} : vector<8x8xbf16>, vector<8x32xbf16>, vector<8x32xf32> -> vector<8x32xf32>
    %74 = arith.addf %49, %73 : vector<8x32xf32>
    %75 = vector.extract_strided_slice %15 {offsets = [0, 16], sizes = [8, 8], strides = [1, 1]} : vector<8x32xf32> to vector<8x8xf32>
    %76 = arith.truncf %75 : vector<8x8xf32> to vector<8x8xbf16>
    %77 = vector.extract_strided_slice %21 {offsets = [0, 16], sizes = [16, 8], strides = [1, 1]} : vector<16x32xf32> to vector<16x8xf32>
    %78 = arith.truncf %77 : vector<16x8xf32> to vector<16x8xbf16>
    %79 = vector.extract_strided_slice %22 {offsets = [0, 16], sizes = [16, 8], strides = [1, 1]} : vector<16x32xf32> to vector<16x8xf32>
    %80 = arith.truncf %79 : vector<16x8xf32> to vector<16x8xbf16>
    %cst_33 = arith.constant dense<0.000000e+00> : vector<8x16xf32>
    %81 = tpu.matmul %76, %78, %cst_33 {dimension_numbers = #tpu.dot_dimension_numbers<[1], [1], [0], [0], [0, 0, 1, 0], [], []>} : vector<8x8xbf16>, vector<16x8xbf16>, vector<8x16xf32> -> vector<8x16xf32>
    %82 = vector.broadcast %10 : vector<1x16xf32> to vector<8x16xf32>
    %83 = arith.addf %81, %82 : vector<8x16xf32>
    %cst_34 = arith.constant dense<0xFF800000> : vector<8xf32>
    %84 = vector.multi_reduction <maximumf>, %83, %cst_34 [1] : vector<8x16xf32> to vector<8xf32>
    %85 = vector.shape_cast %84 : vector<8xf32> to vector<8x1xf32>
    %86 = vector.broadcast %85 : vector<8x1xf32> to vector<8x16xf32>
    %87 = arith.subf %83, %86 : vector<8x16xf32>
    %88 = math.exp %87 : vector<8x16xf32>
    %cst_35 = arith.constant dense<0.000000e+00> : vector<8xf32>
    %89 = vector.multi_reduction <add>, %88, %cst_35 [1] : vector<8x16xf32> to vector<8xf32>
    %90 = vector.shape_cast %89 : vector<8xf32> to vector<8x1xf32>
    %91 = tpu.reciprocal %90 {approx = true} : vector<8x1xf32> -> vector<8x1xf32>
    %92 = vector.broadcast %91 : vector<8x1xf32> to vector<8x16xf32>
    %93 = arith.mulf %88, %92 : vector<8x16xf32>
    %94 = arith.truncf %93 : vector<8x16xf32> to vector<8x16xbf16>
    %cst_36 = arith.constant dense<0.000000e+00> : vector<8x8xf32>
    %95 = tpu.matmul %94, %80, %cst_36 {dimension_numbers = #tpu.dot_dimension_numbers<[1], [0], [0], [1], [0, 0, 1, 1], [], []>} : vector<8x16xbf16>, vector<16x8xbf16>, vector<8x8xf32> -> vector<8x8xf32>
    %96 = arith.truncf %95 : vector<8x8xf32> to vector<8x8xbf16>
    %97 = vector.extract_strided_slice %23 {offsets = [16, 0], sizes = [8, 32], strides = [1, 1]} : vector<32x32xbf16> to vector<8x32xbf16>
    %cst_37 = arith.constant dense<0.000000e+00> : vector<8x32xf32>
    %98 = tpu.matmul %96, %97, %cst_37 {dimension_numbers = #tpu.dot_dimension_numbers<[1], [0], [0], [1], [0, 0, 1, 1], [], []>} : vector<8x8xbf16>, vector<8x32xbf16>, vector<8x32xf32> -> vector<8x32xf32>
    %99 = arith.addf %74, %98 : vector<8x32xf32>
    %100 = vector.extract_strided_slice %15 {offsets = [0, 24], sizes = [8, 8], strides = [1, 1]} : vector<8x32xf32> to vector<8x8xf32>
    %101 = arith.truncf %100 : vector<8x8xf32> to vector<8x8xbf16>
    %102 = vector.extract_strided_slice %21 {offsets = [0, 24], sizes = [16, 8], strides = [1, 1]} : vector<16x32xf32> to vector<16x8xf32>
    %103 = arith.truncf %102 : vector<16x8xf32> to vector<16x8xbf16>
    %104 = vector.extract_strided_slice %22 {offsets = [0, 24], sizes = [16, 8], strides = [1, 1]} : vector<16x32xf32> to vector<16x8xf32>
    %105 = arith.truncf %104 : vector<16x8xf32> to vector<16x8xbf16>
    %cst_38 = arith.constant dense<0.000000e+00> : vector<8x16xf32>
    %106 = tpu.matmul %101, %103, %cst_38 {dimension_numbers = #tpu.dot_dimension_numbers<[1], [1], [0], [0], [0, 0, 1, 0], [], []>} : vector<8x8xbf16>, vector<16x8xbf16>, vector<8x16xf32> -> vector<8x16xf32>
    %107 = vector.broadcast %10 : vector<1x16xf32> to vector<8x16xf32>
    %108 = arith.addf %106, %107 : vector<8x16xf32>
    %cst_39 = arith.constant dense<0xFF800000> : vector<8xf32>
    %109 = vector.multi_reduction <maximumf>, %108, %cst_39 [1] : vector<8x16xf32> to vector<8xf32>
    %110 = vector.shape_cast %109 : vector<8xf32> to vector<8x1xf32>
    %111 = vector.broadcast %110 : vector<8x1xf32> to vector<8x16xf32>
    %112 = arith.subf %108, %111 : vector<8x16xf32>
    %113 = math.exp %112 : vector<8x16xf32>
    %cst_40 = arith.constant dense<0.000000e+00> : vector<8xf32>
    %114 = vector.multi_reduction <add>, %113, %cst_40 [1] : vector<8x16xf32> to vector<8xf32>
    %115 = vector.shape_cast %114 : vector<8xf32> to vector<8x1xf32>
    %116 = tpu.reciprocal %115 {approx = true} : vector<8x1xf32> -> vector<8x1xf32>
    %117 = vector.broadcast %116 : vector<8x1xf32> to vector<8x16xf32>
    %118 = arith.mulf %113, %117 : vector<8x16xf32>
    %119 = arith.truncf %118 : vector<8x16xf32> to vector<8x16xbf16>
    %cst_41 = arith.constant dense<0.000000e+00> : vector<8x8xf32>
    %120 = tpu.matmul %119, %105, %cst_41 {dimension_numbers = #tpu.dot_dimension_numbers<[1], [0], [0], [1], [0, 0, 1, 1], [], []>} : vector<8x16xbf16>, vector<16x8xbf16>, vector<8x8xf32> -> vector<8x8xf32>
    %121 = arith.truncf %120 : vector<8x8xf32> to vector<8x8xbf16>
    %122 = vector.extract_strided_slice %23 {offsets = [24, 0], sizes = [8, 32], strides = [1, 1]} : vector<32x32xbf16> to vector<8x32xbf16>
    %cst_42 = arith.constant dense<0.000000e+00> : vector<8x32xf32>
    %123 = tpu.matmul %121, %122, %cst_42 {dimension_numbers = #tpu.dot_dimension_numbers<[1], [0], [0], [1], [0, 0, 1, 1], [], []>} : vector<8x8xbf16>, vector<8x32xbf16>, vector<8x32xf32> -> vector<8x32xf32>
    %124 = arith.addf %99, %123 : vector<8x32xf32>
    %125 = arith.extf %1 : vector<8x32xbf16> to vector<8x32xf32>
    %126 = arith.addf %125, %124 : vector<8x32xf32>
    %c0_43 = arith.constant 0 : index
    %c0_44 = arith.constant 0 : index
    %127 = vector.load %arg10[%c0_43, %c0_44] : memref<1x32xf32, #tpu.memory_space<vmem>>, vector<1x32xf32>
    %128 = vector.broadcast %127 : vector<1x32xf32> to vector<8x32xf32>
    %129 = arith.addf %126, %128 : vector<8x32xf32>
    %cst_45 = arith.constant dense<0.000000e+00> : vector<8xf32>
    %130 = vector.multi_reduction <add>, %129, %cst_45 [1] : vector<8x32xf32> to vector<8xf32>
    %131 = vector.shape_cast %130 : vector<8xf32> to vector<8x1xf32>
    %cst_46 = arith.constant 3.200000e+01 : f32
    %132 = vector.broadcast %cst_46 : f32 to vector<8x1xf32>
    %133 = arith.divf %131, %132 : vector<8x1xf32>
    %134 = vector.broadcast %133 : vector<8x1xf32> to vector<8x32xf32>
    %135 = arith.subf %129, %134 : vector<8x32xf32>
    %136 = vector.broadcast %133 : vector<8x1xf32> to vector<8x32xf32>
    %137 = arith.subf %129, %136 : vector<8x32xf32>
    %138 = arith.mulf %135, %137 : vector<8x32xf32>
    %cst_47 = arith.constant dense<0.000000e+00> : vector<8xf32>
    %139 = vector.multi_reduction <add>, %138, %cst_47 [1] : vector<8x32xf32> to vector<8xf32>
    %140 = vector.shape_cast %139 : vector<8xf32> to vector<8x1xf32>
    %cst_48 = arith.constant 3.200000e+01 : f32
    %141 = vector.broadcast %cst_48 : f32 to vector<8x1xf32>
    %142 = arith.divf %140, %141 : vector<8x1xf32>
    %143 = vector.broadcast %133 : vector<8x1xf32> to vector<8x32xf32>
    %144 = arith.subf %129, %143 : vector<8x32xf32>
    %cst_49 = arith.constant 9.99999974E-6 : f32
    %145 = vector.broadcast %cst_49 : f32 to vector<8x1xf32>
    %146 = arith.addf %142, %145 : vector<8x1xf32>
    %147 = math.rsqrt %146 : vector<8x1xf32>
    %148 = vector.broadcast %147 : vector<8x1xf32> to vector<8x32xf32>
    %149 = arith.mulf %144, %148 : vector<8x32xf32>
    %c0_50 = arith.constant 0 : index
    %c0_51 = arith.constant 0 : index
    %150 = vector.load %arg11[%c0_50, %c0_51] : memref<1x32xf32, #tpu.memory_space<vmem>>, vector<1x32xf32>
    %151 = vector.broadcast %150 : vector<1x32xf32> to vector<8x32xf32>
    %152 = arith.mulf %149, %151 : vector<8x32xf32>
    %c0_52 = arith.constant 0 : index
    %c0_53 = arith.constant 0 : index
    %153 = vector.load %arg12[%c0_52, %c0_53] : memref<1x32xf32, #tpu.memory_space<vmem>>, vector<1x32xf32>
    %154 = vector.broadcast %153 : vector<1x32xf32> to vector<8x32xf32>
    %155 = arith.addf %152, %154 : vector<8x32xf32>
    %156 = arith.truncf %155 : vector<8x32xf32> to vector<8x32xbf16>
    %c0_54 = arith.constant 0 : index
    %c0_55 = arith.constant 0 : index
    %c0_56 = arith.constant 0 : index
    %157 = vector.load %arg13[%c0_54, %c0_55, %c0_56] : memref<1x8x32xbf16, #tpu.memory_space<vmem>>, vector<1x8x32xbf16>
    %158 = vector.shape_cast %157 : vector<1x8x32xbf16> to vector<8x32xbf16>
    %159 = vector.shape_cast %156 : vector<8x32xbf16> to vector<1x8x32xbf16>
    tpu.vector_store %arg13[%c0_54, %c0_55, %c0_56], %159 {strides = array<i32>} : memref<1x8x32xbf16, #tpu.memory_space<vmem>>, vector<1x8x32xbf16>,
    return
  }
  func.func @transform_0(%arg0: i32, %arg1: i32) -> (i32, i32, i32) {
    %c0_i32 = arith.constant 0 : i32
    %c0_i32_0 = arith.constant 0 : i32
    return %arg0, %arg1, %c0_i32 : i32, i32, i32
  }
  func.func @transform_1(%arg0: i32, %arg1: i32) -> (i32, i32, i32) {
    %c0_i32 = arith.constant 0 : i32
    %c0_i32_0 = arith.constant 0 : i32
    %c0_i32_1 = arith.constant 0 : i32
    return %arg0, %c0_i32, %c0_i32_0 : i32, i32, i32
  }
  func.func @transform_2(%arg0: i32, %arg1: i32) -> (i32, i32, i32) {
    %c0_i32 = arith.constant 0 : i32
    %c0_i32_0 = arith.constant 0 : i32
    %c0_i32_1 = arith.constant 0 : i32
    return %arg0, %c0_i32, %c0_i32_0 : i32, i32, i32
  }
  func.func @transform_3(%arg0: i32, %arg1: i32) -> (i32, i32) {
    %c0_i32 = arith.constant 0 : i32
    %c0_i32_0 = arith.constant 0 : i32
    %c0_i32_1 = arith.constant 0 : i32
    return %c0_i32, %c0_i32_0 : i32, i32
  }
  func.func @transform_4(%arg0: i32, %arg1: i32) -> (i32, i32) {
    %c0_i32 = arith.constant 0 : i32
    %c0_i32_0 = arith.constant 0 : i32
    %c0_i32_1 = arith.constant 0 : i32
    return %c0_i32, %c0_i32_0 : i32, i32
  }
  func.func @transform_5(%arg0: i32, %arg1: i32) -> (i32, i32) {
    %c0_i32 = arith.constant 0 : i32
    %c0_i32_0 = arith.constant 0 : i32
    %c0_i32_1 = arith.constant 0 : i32
    return %c0_i32, %c0_i32_0 : i32, i32
  }
  func.func @transform_6(%arg0: i32, %arg1: i32) -> (i32, i32) {
    %c0_i32 = arith.constant 0 : i32
    %c0_i32_0 = arith.constant 0 : i32
    %c0_i32_1 = arith.constant 0 : i32
    return %c0_i32, %c0_i32_0 : i32, i32
  }
  func.func @transform_7(%arg0: i32, %arg1: i32) -> (i32, i32) {
    %c0_i32 = arith.constant 0 : i32
    %c0_i32_0 = arith.constant 0 : i32
    %c0_i32_1 = arith.constant 0 : i32
    return %c0_i32, %c0_i32_0 : i32, i32
  }
  func.func @transform_8(%arg0: i32, %arg1: i32) -> (i32, i32) {
    %c0_i32 = arith.constant 0 : i32
    %c0_i32_0 = arith.constant 0 : i32
    %c0_i32_1 = arith.constant 0 : i32
    return %c0_i32, %c0_i32_0 : i32, i32
  }
  func.func @transform_9(%arg0: i32, %arg1: i32) -> (i32, i32) {
    %c0_i32 = arith.constant 0 : i32
    %c0_i32_0 = arith.constant 0 : i32
    %c0_i32_1 = arith.constant 0 : i32
    return %c0_i32, %c0_i32_0 : i32, i32
  }
  func.func @transform_10(%arg0: i32, %arg1: i32) -> (i32, i32) {
    %c0_i32 = arith.constant 0 : i32
    %c0_i32_0 = arith.constant 0 : i32
    %c0_i32_1 = arith.constant 0 : i32
    return %c0_i32, %c0_i32_0 : i32, i32
  }
  func.func @transform_11(%arg0: i32, %arg1: i32) -> (i32, i32, i32) {
    %c0_i32 = arith.constant 0 : i32
    %c0_i32_0 = arith.constant 0 : i32
    return %arg0, %arg1, %c0_i32 : i32, i32, i32
  }
}

module attributes {stable_mosaic.version = 11 : i64} {
  func.func @_ffn_ln_kernel(%arg0: i32, %arg1: memref<16x32xbf16, #tpu.memory_space<vmem>>, %arg2: memref<32x64xbf16, #tpu.memory_space<vmem>>, %arg3: memref<1x64xf32, #tpu.memory_space<vmem>>, %arg4: memref<64x32xbf16, #tpu.memory_space<vmem>>, %arg5: memref<1x32xf32, #tpu.memory_space<vmem>>, %arg6: memref<1x32xf32, #tpu.memory_space<vmem>>, %arg7: memref<1x32xf32, #tpu.memory_space<vmem>>, %arg8: memref<16x32xbf16, #tpu.memory_space<vmem>>) attributes {dimension_semantics = [#tpu.dimension_semantics<parallel>], iteration_bounds = array<i64: 1>, scalar_prefetch = 0 : i64, scratch_operands = 0 : i64, tpu.core_type = #tpu.core_type<tc>, window_params = [{transform_indices = @transform_0, window_bounds = array<i64: 16, 32>}, {pipeline_mode = #tpu.pipeline_mode<synchronous>, transform_indices = @transform_1, window_bounds = array<i64: 32, 64>}, {pipeline_mode = #tpu.pipeline_mode<synchronous>, transform_indices = @transform_2, window_bounds = array<i64: 1, 64>}, {pipeline_mode = #tpu.pipeline_mode<synchronous>, transform_indices = @transform_3, window_bounds = array<i64: 64, 32>}, {pipeline_mode = #tpu.pipeline_mode<synchronous>, transform_indices = @transform_4, window_bounds = array<i64: 1, 32>}, {pipeline_mode = #tpu.pipeline_mode<synchronous>, transform_indices = @transform_5, window_bounds = array<i64: 1, 32>}, {pipeline_mode = #tpu.pipeline_mode<synchronous>, transform_indices = @transform_6, window_bounds = array<i64: 1, 32>}, {transform_indices = @transform_7, window_bounds = array<i64: 16, 32>}]} {
    %c0 = arith.constant 0 : index
    %c0_0 = arith.constant 0 : index
    %0 = vector.load %arg1[%c0, %c0_0] : memref<16x32xbf16, #tpu.memory_space<vmem>>, vector<16x32xbf16>
    %c0_1 = arith.constant 0 : index
    %c0_2 = arith.constant 0 : index
    %1 = vector.load %arg2[%c0_1, %c0_2] : memref<32x64xbf16, #tpu.memory_space<vmem>>, vector<32x64xbf16>
    %cst = arith.constant dense<0.000000e+00> : vector<16x64xf32>
    %2 = tpu.matmul %0, %1, %cst {dimension_numbers = #tpu.dot_dimension_numbers<[1], [0], [0], [1], [0, 0, 1, 1], [], []>} : vector<16x32xbf16>, vector<32x64xbf16>, vector<16x64xf32> -> vector<16x64xf32>
    %c0_3 = arith.constant 0 : index
    %c0_4 = arith.constant 0 : index
    %3 = vector.load %arg3[%c0_3, %c0_4] : memref<1x64xf32, #tpu.memory_space<vmem>>, vector<1x64xf32>
    %4 = vector.broadcast %3 : vector<1x64xf32> to vector<16x64xf32>
    %5 = arith.addf %2, %4 : vector<16x64xf32>
    %cst_5 = arith.constant 0.000000e+00 : f32
    %6 = vector.broadcast %cst_5 : f32 to vector<16x64xf32>
    %7 = arith.maximumf %5, %6 : vector<16x64xf32>
    %8 = arith.truncf %7 : vector<16x64xf32> to vector<16x64xbf16>
    %c0_6 = arith.constant 0 : index
    %c0_7 = arith.constant 0 : index
    %9 = vector.load %arg4[%c0_6, %c0_7] : memref<64x32xbf16, #tpu.memory_space<vmem>>, vector<64x32xbf16>
    %cst_8 = arith.constant dense<0.000000e+00> : vector<16x32xf32>
    %10 = tpu.matmul %8, %9, %cst_8 {dimension_numbers = #tpu.dot_dimension_numbers<[1], [0], [0], [1], [0, 0, 1, 1], [], []>} : vector<16x64xbf16>, vector<64x32xbf16>, vector<16x32xf32> -> vector<16x32xf32>
    %c0_9 = arith.constant 0 : index
    %c0_10 = arith.constant 0 : index
    %11 = vector.load %arg5[%c0_9, %c0_10] : memref<1x32xf32, #tpu.memory_space<vmem>>, vector<1x32xf32>
    %12 = vector.broadcast %11 : vector<1x32xf32> to vector<16x32xf32>
    %13 = arith.addf %10, %12 : vector<16x32xf32>
    %14 = arith.extf %0 : vector<16x32xbf16> to vector<16x32xf32>
    %15 = arith.addf %14, %13 : vector<16x32xf32>
    %cst_11 = arith.constant dense<0.000000e+00> : vector<16xf32>
    %16 = vector.multi_reduction <add>, %15, %cst_11 [1] : vector<16x32xf32> to vector<16xf32>
    %17 = vector.shape_cast %16 : vector<16xf32> to vector<16x1xf32>
    %cst_12 = arith.constant 3.200000e+01 : f32
    %18 = vector.broadcast %cst_12 : f32 to vector<16x1xf32>
    %19 = arith.divf %17, %18 : vector<16x1xf32>
    %20 = vector.broadcast %19 : vector<16x1xf32> to vector<16x32xf32>
    %21 = arith.subf %15, %20 : vector<16x32xf32>
    %22 = vector.broadcast %19 : vector<16x1xf32> to vector<16x32xf32>
    %23 = arith.subf %15, %22 : vector<16x32xf32>
    %24 = arith.mulf %21, %23 : vector<16x32xf32>
    %cst_13 = arith.constant dense<0.000000e+00> : vector<16xf32>
    %25 = vector.multi_reduction <add>, %24, %cst_13 [1] : vector<16x32xf32> to vector<16xf32>
    %26 = vector.shape_cast %25 : vector<16xf32> to vector<16x1xf32>
    %cst_14 = arith.constant 3.200000e+01 : f32
    %27 = vector.broadcast %cst_14 : f32 to vector<16x1xf32>
    %28 = arith.divf %26, %27 : vector<16x1xf32>
    %29 = vector.broadcast %19 : vector<16x1xf32> to vector<16x32xf32>
    %30 = arith.subf %15, %29 : vector<16x32xf32>
    %cst_15 = arith.constant 9.99999974E-6 : f32
    %31 = vector.broadcast %cst_15 : f32 to vector<16x1xf32>
    %32 = arith.addf %28, %31 : vector<16x1xf32>
    %33 = math.rsqrt %32 : vector<16x1xf32>
    %34 = vector.broadcast %33 : vector<16x1xf32> to vector<16x32xf32>
    %35 = arith.mulf %30, %34 : vector<16x32xf32>
    %c0_16 = arith.constant 0 : index
    %c0_17 = arith.constant 0 : index
    %36 = vector.load %arg6[%c0_16, %c0_17] : memref<1x32xf32, #tpu.memory_space<vmem>>, vector<1x32xf32>
    %37 = vector.broadcast %36 : vector<1x32xf32> to vector<16x32xf32>
    %38 = arith.mulf %35, %37 : vector<16x32xf32>
    %c0_18 = arith.constant 0 : index
    %c0_19 = arith.constant 0 : index
    %39 = vector.load %arg7[%c0_18, %c0_19] : memref<1x32xf32, #tpu.memory_space<vmem>>, vector<1x32xf32>
    %40 = vector.broadcast %39 : vector<1x32xf32> to vector<16x32xf32>
    %41 = arith.addf %38, %40 : vector<16x32xf32>
    %42 = arith.truncf %41 : vector<16x32xf32> to vector<16x32xbf16>
    %c0_20 = arith.constant 0 : index
    %c0_21 = arith.constant 0 : index
    %43 = vector.load %arg8[%c0_20, %c0_21] : memref<16x32xbf16, #tpu.memory_space<vmem>>, vector<16x32xbf16>
    tpu.vector_store %arg8[%c0_20, %c0_21], %42 {strides = array<i32>} : memref<16x32xbf16, #tpu.memory_space<vmem>>, vector<16x32xbf16>,
    return
  }
  func.func @transform_0(%arg0: i32) -> (i32, i32) {
    %c0_i32 = arith.constant 0 : i32
    %c0_i32_0 = arith.constant 0 : i32
    return %arg0, %c0_i32 : i32, i32
  }
  func.func @transform_1(%arg0: i32) -> (i32, i32) {
    %c0_i32 = arith.constant 0 : i32
    %c0_i32_0 = arith.constant 0 : i32
    %c0_i32_1 = arith.constant 0 : i32
    return %c0_i32, %c0_i32_0 : i32, i32
  }
  func.func @transform_2(%arg0: i32) -> (i32, i32) {
    %c0_i32 = arith.constant 0 : i32
    %c0_i32_0 = arith.constant 0 : i32
    %c0_i32_1 = arith.constant 0 : i32
    return %c0_i32, %c0_i32_0 : i32, i32
  }
  func.func @transform_3(%arg0: i32) -> (i32, i32) {
    %c0_i32 = arith.constant 0 : i32
    %c0_i32_0 = arith.constant 0 : i32
    %c0_i32_1 = arith.constant 0 : i32
    return %c0_i32, %c0_i32_0 : i32, i32
  }
  func.func @transform_4(%arg0: i32) -> (i32, i32) {
    %c0_i32 = arith.constant 0 : i32
    %c0_i32_0 = arith.constant 0 : i32
    %c0_i32_1 = arith.constant 0 : i32
    return %c0_i32, %c0_i32_0 : i32, i32
  }
  func.func @transform_5(%arg0: i32) -> (i32, i32) {
    %c0_i32 = arith.constant 0 : i32
    %c0_i32_0 = arith.constant 0 : i32
    %c0_i32_1 = arith.constant 0 : i32
    return %c0_i32, %c0_i32_0 : i32, i32
  }
  func.func @transform_6(%arg0: i32) -> (i32, i32) {
    %c0_i32 = arith.constant 0 : i32
    %c0_i32_0 = arith.constant 0 : i32
    %c0_i32_1 = arith.constant 0 : i32
    return %c0_i32, %c0_i32_0 : i32, i32
  }
  func.func @transform_7(%arg0: i32) -> (i32, i32) {
    %c0_i32 = arith.constant 0 : i32
    %c0_i32_0 = arith.constant 0 : i32
    return %arg0, %c0_i32 : i32, i32
  }
}

module attributes {stable_mosaic.version = 11 : i64} {
  func.func @_proj_logsoftmax_kernel(%arg0: i32, %arg1: memref<16x32xbf16, #tpu.memory_space<vmem>>, %arg2: memref<32x48xbf16, #tpu.memory_space<vmem>>, %arg3: memref<1x48xf32, #tpu.memory_space<vmem>>, %arg4: memref<16x48xf32, #tpu.memory_space<vmem>>) attributes {dimension_semantics = [#tpu.dimension_semantics<parallel>], iteration_bounds = array<i64: 1>, scalar_prefetch = 0 : i64, scratch_operands = 0 : i64, tpu.core_type = #tpu.core_type<tc>, window_params = [{transform_indices = @transform_0, window_bounds = array<i64: 16, 32>}, {pipeline_mode = #tpu.pipeline_mode<synchronous>, transform_indices = @transform_1, window_bounds = array<i64: 32, 48>}, {pipeline_mode = #tpu.pipeline_mode<synchronous>, transform_indices = @transform_2, window_bounds = array<i64: 1, 48>}, {transform_indices = @transform_3, window_bounds = array<i64: 16, 48>}]} {
    %c0 = arith.constant 0 : index
    %c0_0 = arith.constant 0 : index
    %0 = vector.load %arg1[%c0, %c0_0] : memref<16x32xbf16, #tpu.memory_space<vmem>>, vector<16x32xbf16>
    %c0_1 = arith.constant 0 : index
    %c0_2 = arith.constant 0 : index
    %1 = vector.load %arg2[%c0_1, %c0_2] : memref<32x48xbf16, #tpu.memory_space<vmem>>, vector<32x48xbf16>
    %cst = arith.constant dense<0.000000e+00> : vector<16x48xf32>
    %2 = tpu.matmul %0, %1, %cst {dimension_numbers = #tpu.dot_dimension_numbers<[1], [0], [0], [1], [0, 0, 1, 1], [], []>} : vector<16x32xbf16>, vector<32x48xbf16>, vector<16x48xf32> -> vector<16x48xf32>
    %c0_3 = arith.constant 0 : index
    %c0_4 = arith.constant 0 : index
    %3 = vector.load %arg3[%c0_3, %c0_4] : memref<1x48xf32, #tpu.memory_space<vmem>>, vector<1x48xf32>
    %4 = vector.broadcast %3 : vector<1x48xf32> to vector<16x48xf32>
    %5 = arith.addf %2, %4 : vector<16x48xf32>
    %cst_5 = arith.constant dense<0xFF800000> : vector<16xf32>
    %6 = vector.multi_reduction <maximumf>, %5, %cst_5 [1] : vector<16x48xf32> to vector<16xf32>
    %7 = vector.shape_cast %6 : vector<16xf32> to vector<16x1xf32>
    %8 = vector.broadcast %7 : vector<16x1xf32> to vector<16x48xf32>
    %9 = arith.subf %5, %8 : vector<16x48xf32>
    %10 = math.exp %9 : vector<16x48xf32>
    %cst_6 = arith.constant dense<0.000000e+00> : vector<16xf32>
    %11 = vector.multi_reduction <add>, %10, %cst_6 [1] : vector<16x48xf32> to vector<16xf32>
    %12 = vector.shape_cast %11 : vector<16xf32> to vector<16x1xf32>
    %13 = math.log %12 : vector<16x1xf32>
    %14 = vector.broadcast %13 : vector<16x1xf32> to vector<16x48xf32>
    %15 = arith.subf %9, %14 : vector<16x48xf32>
    %c0_7 = arith.constant 0 : index
    %c0_8 = arith.constant 0 : index
    %16 = vector.load %arg4[%c0_7, %c0_8] : memref<16x48xf32, #tpu.memory_space<vmem>>, vector<16x48xf32>
    tpu.vector_store %arg4[%c0_7, %c0_8], %15 {strides = array<i32>} : memref<16x48xf32, #tpu.memory_space<vmem>>, vector<16x48xf32>,
    return
  }
  func.func @transform_0(%arg0: i32) -> (i32, i32) {
    %c0_i32 = arith.constant 0 : i32
    %c0_i32_0 = arith.constant 0 : i32
    return %arg0, %c0_i32 : i32, i32
  }
  func.func @transform_1(%arg0: i32) -> (i32, i32) {
    %c0_i32 = arith.constant 0 : i32
    %c0_i32_0 = arith.constant 0 : i32
    %c0_i32_1 = arith.constant 0 : i32
    return %c0_i32, %c0_i32_0 : i32, i32
  }
  func.func @transform_2(%arg0: i32) -> (i32, i32) {
    %c0_i32 = arith.constant 0 : i32
    %c0_i32_0 = arith.constant 0 : i32
    %c0_i32_1 = arith.constant 0 : i32
    return %c0_i32, %c0_i32_0 : i32, i32
  }
  func.func @transform_3(%arg0: i32) -> (i32, i32) {
    %c0_i32 = arith.constant 0 : i32
    %c0_i32_0 = arith.constant 0 : i32
    return %arg0, %c0_i32 : i32, i32
  }
}

</mosaic_0001>

<llo_original>
// kernel: transformer_forward.12
$region0: #{transformer_forward.12}
  #allocation0 [shape = 'u32[]', space=smem, size = 0x4, offset = 0x4, fixed_abs, tag = 'smem constant byte address 0x4 - core index']
  #allocation1 [shape = 'u32[144,128]{1,0:T(1,128)}', space=vmem, size = 0x12000, scoped, tag = 'internal scratch']
  %s0 = inlined_call_operand.vmem [shape: bf16[32,32], index: 0, kind: input, shape index: {}]
  %s1 = inlined_call_operand.vmem [shape: bf16[32,64], index: 1, kind: input, shape index: {}]
  %s2 = inlined_call_operand.vmem [shape: f32[1,64], index: 2, kind: input, shape index: {}]
  %s3 = inlined_call_operand.vmem [shape: bf16[64,32], index: 3, kind: input, shape index: {}]
  %s4 = inlined_call_operand.vmem [shape: f32[1,32], index: 4, kind: input, shape index: {}]
  %s5 = inlined_call_operand.vmem [shape: f32[1,32], index: 5, kind: input, shape index: {}]
  %s6 = inlined_call_operand.vmem [shape: f32[1,32], index: 6, kind: input, shape index: {}]
  %s7 = inlined_call_operand.vmem [shape: bf16[32,32], index: 7, kind: output, shape index: {}]
  %s8 = sld [smem:[#allocation0]]
  $region38: #{transformer_forward.12} parent=0
    _
  %s10 = ssub.s32 1, %s8
  %s11 = scalar_select 0, %s10, %s8
  // Predicated region
  $region2: #{transformer_forward.12} parent=0 // pred_check
    _
  $region3: #{transformer_forward.12} parent=0 // pred_check_branch
    %13 = sbr.rel (0) target = $region5
  $region4: #{transformer_forward.12} parent=0 // pred_region
    _
  $region5: #{transformer_forward.12} parent=0 // pred_fallthru
    _
  // Predicated region
  $region6: #{transformer_forward.12} parent=0 // pred_check
    _
  $region7: #{transformer_forward.12} parent=0 // pred_check_branch
    %15 = sbr.rel (0) target = $region9
  $region8: #{transformer_forward.12} parent=0 // pred_region
    _
  $region9: #{transformer_forward.12} parent=0 // pred_fallthru
    _
  // Predicated region
  $region10: #{transformer_forward.12} parent=0 // pred_check
    _
  $region11: #{transformer_forward.12} parent=0 // pred_check_branch
    %17 = sbr.rel (0) target = $region13
  $region12: #{transformer_forward.12} parent=0 // pred_region
    _
  $region13: #{transformer_forward.12} parent=0 // pred_fallthru
    _
  // Predicated region
  $region14: #{transformer_forward.12} parent=0 // pred_check
    _
  $region15: #{transformer_forward.12} parent=0 // pred_check_branch
    %19 = sbr.rel (0) target = $region17
  $region16: #{transformer_forward.12} parent=0 // pred_region
    _
  $region17: #{transformer_forward.12} parent=0 // pred_fallthru
    _
  // Predicated region
  $region18: #{transformer_forward.12} parent=0 // pred_check
    _
  $region19: #{transformer_forward.12} parent=0 // pred_check_branch
    %21 = sbr.rel (0) target = $region21
  $region20: #{transformer_forward.12} parent=0 // pred_region
    _
  $region21: #{transformer_forward.12} parent=0 // pred_fallthru
    _
  // Predicated region
  $region22: #{transformer_forward.12} parent=0 // pred_check
    _
  $region23: #{transformer_forward.12} parent=0 // pred_check_branch
    %23 = sbr.rel (0) target = $region25
  $region24: #{transformer_forward.12} parent=0 // pred_region
    _
  $region25: #{transformer_forward.12} parent=0 // pred_fallthru
    _
  // Predicated region
  $region26: #{transformer_forward.12} parent=0 // pred_check
    _
  $region27: #{transformer_forward.12} parent=0 // pred_check_branch
    %25 = sbr.rel (0) target = $region29
  $region28: #{transformer_forward.12} parent=0 // pred_region
    _
  $region29: #{transformer_forward.12} parent=0 // pred_fallthru
    _
  %v27 = vld [vmem:[%s0] sm:$0xf]
  %v28 = vld [vmem:[%s0 + $0x4] sm:$0xf]
  %v29 = vld [vmem:[%s0 + $0x8] sm:$0xf]
  %v30 = vld [vmem:[%s0 + $0xc] sm:$0xf]
  %v31 = vld [vmem:[%s1] sm:$0xf]
  %v32 = vld [vmem:[%s1 + $0x4] sm:$0xf]
  %v33 = vld [vmem:[%s1 + $0x8] sm:$0xf]
  %v34 = vld [vmem:[%s1 + $0xc] sm:$0xf]
  %v35 = vld [vmem:[%s2] sm:$0x1]
  %v37 = vlaneseq
  %v38 = vshrl.u32 %v37, 7
  %v39 = vsub.s32 0, %v38
  %v40 = vrot.slane %v35, %v39
  %v46 = vunpack.c.l.b16 %v27
  %v47 = vunpack.c.l.b16 %v28
  %v48 = vunpack.c.l.b16 %v29
  %v49 = vunpack.c.l.b16 %v30
  %v50 = vpack.c.b16 %v47, %v46
  %v51 = vpack.c.b16 %v49, %v48
  %v56 = vunpack.c.l.b16 %v31
  %v57 = vunpack.c.l.b16 %v32
  %v58 = vunpack.c.l.b16 %v33
  %v59 = vunpack.c.l.b16 %v34
  %v60 = vpack.c.b16 %v57, %v56
  %v61 = vpack.c.b16 %v59, %v58
  %vm64 = vcmask 261120
  %v66 = vsel %vm64, %v50, 0
  %v69 = vsel %vm64, %v51, 0
  %71 = vmatprep.subr.bf16.mxu0 0
  %72 = vmatpush1.bf16.msra.mxu0 %v60
  %73 = vmatprep.subr.bf16.mxu0 0
  %74 = vmatpush1.bf16.msra.mxu0 %v61
  %75 = vmatprep.subr.bf16.mxu0 0
  %76 = vmatpush1.bf16.msra.mxu0 0
  %77 = vmatprep.subr.bf16.mxu0 0
  %78 = vmatpush1.bf16.msra.mxu0 0
  %79 = vmatprep.subr.bf16.mxu0 0
  %80 = vmatpush1.bf16.msra.mxu0 0
  %81 = vmatprep.subr.bf16.mxu0 0
  %82 = vmatpush1.bf16.msra.mxu0 0
  %83 = vmatprep.subr.bf16.mxu0 0
  %84 = vmatpush1.bf16.msra.mxu0 0
  %85 = vmatprep.subr.bf16.mxu0 0
  %86 = vmatpush1.bf16.msra.mxu0 0
  %87 = vmatprep.subr.bf16.mxu0 0
  %88 = vmatpush1.bf16.msra.mxu0 0
  %89 = vmatprep.subr.bf16.mxu0 0
  %90 = vmatpush1.bf16.msra.mxu0 0
  %91 = vmatprep.subr.bf16.mxu0 0
  %92 = vmatpush1.bf16.msra.mxu0 0
  %93 = vmatprep.subr.bf16.mxu0 0
  %94 = vmatpush1.bf16.msra.mxu0 0
  %95 = vmatprep.subr.bf16.mxu0 0
  %96 = vmatpush1.bf16.msra.mxu0 0
  %97 = vmatprep.subr.bf16.mxu0 0
  %98 = vmatpush1.bf16.msra.mxu0 0
  %99 = vmatprep.subr.bf16.mxu0 0
  %100 = vmatpush1.bf16.msra.mxu0 0
  %101 = vmatprep.subr.bf16.mxu0 0
  %102 = vmatpush1.bf16.msra.mxu0 0
  %103 = vmatprep.mubr.bf16.mxu0 0
  %104 = vmatmul.mubr.bf16.gmra.mrb[0].mxu0 %v66
  %v105 = vpop.f32.mrb[0].mxu0
  %v106 = vadd.f32 %v40, %v105
  %v107 = vpop.f32.mrb[0].mxu0
  %v108 = vpop.f32.mrb[0].mxu0
  %v109 = vadd.f32 %v40, %v108
  %v110 = vpop.f32.mrb[0].mxu0
  %111 = vmatprep.mubr.bf16.mxu0 0
  %112 = vmatmul.mubr.bf16.gmra.mrb[0].mxu0 %v69
  %v113 = vpop.f32.mrb[0].mxu0
  %v114 = vadd.f32 %v40, %v113
  %v115 = vpop.f32.mrb[0].mxu0
  %v116 = vpop.f32.mrb[0].mxu0
  %v117 = vadd.f32 %v40, %v116
  %v118 = vpop.f32.mrb[0].mxu0
  %119 = vdwg.mxu0
  %v120 = vmax.f32 %v106, 0.0
  %v121 = vmax.f32 %v109, 0.0
  %v122 = vmax.f32 %v114, 0.0
  %v123 = vmax.f32 %v117, 0.0
  %v124 = vpack.c.bf16 %v121, %v120
  %v125 = vpack.c.bf16 %v123, %v122
  %v126 = vld [vmem:[%s3] sm:$0xf]
  %v127 = vld [vmem:[%s3 + $0x4] sm:$0xf]
  %v128 = vld [vmem:[%s3 + $0x8] sm:$0xf]
  %v129 = vld [vmem:[%s3 + $0xc] sm:$0xf]
  %v130 = vld [vmem:[%s3 + $0x10] sm:$0xf]
  %v131 = vld [vmem:[%s3 + $0x14] sm:$0xf]
  %v132 = vld [vmem:[%s3 + $0x18] sm:$0xf]
  %v133 = vld [vmem:[%s3 + $0x1c] sm:$0xf]
  %v134 = vld [vmem:[%s4] sm:$0x1]
  %v136 = vlaneseq
  %v137 = vshrl.u32 %v136, 7
  %v138 = vsub.s32 0, %v137
  %v139 = vrot.slane %v134, %v138
  %v149 = vunpack.c.l.b16 %v126
  %v150 = vunpack.c.l.b16 %v127
  %v151 = vunpack.c.l.b16 %v128
  %v152 = vunpack.c.l.b16 %v129
  %v153 = vunpack.c.l.b16 %v130
  %v154 = vunpack.c.l.b16 %v131
  %v155 = vunpack.c.l.b16 %v132
  %v156 = vunpack.c.l.b16 %v133
  %v157 = vpack.c.b16 %v150, %v149
  %v158 = vpack.c.b16 %v152, %v151
  %v159 = vpack.c.b16 %v154, %v153
  %v160 = vpack.c.b16 %v156, %v155
  %vm165 = vcmask 523264
  %v167 = vsel %vm165, %v124, 0
  %v170 = vsel %vm165, %v125, 0
  %172 = vmatprep.subr.bf16.mxu0 0
  %173 = vmatpush1.bf16.msra.mxu0 %v157
  %174 = vmatprep.subr.bf16.mxu0 0
  %175 = vmatpush1.bf16.msra.mxu0 %v158
  %176 = vmatprep.subr.bf16.mxu0 0
  %177 = vmatpush1.bf16.msra.mxu0 %v159
  %178 = vmatprep.subr.bf16.mxu0 0
  %179 = vmatpush1.bf16.msra.mxu0 %v160
  %180 = vmatprep.subr.bf16.mxu0 0
  %181 = vmatpush1.bf16.msra.mxu0 0
  %182 = vmatprep.subr.bf16.mxu0 0
  %183 = vmatpush1.bf16.msra.mxu0 0
  %184 = vmatprep.subr.bf16.mxu0 0
  %185 = vmatpush1.bf16.msra.mxu0 0
  %186 = vmatprep.subr.bf16.mxu0 0
  %187 = vmatpush1.bf16.msra.mxu0 0
  %188 = vmatprep.subr.bf16.mxu0 0
  %189 = vmatpush1.bf16.msra.mxu0 0
  %190 = vmatprep.subr.bf16.mxu0 0
  %191 = vmatpush1.bf16.msra.mxu0 0
  %192 = vmatprep.subr.bf16.mxu0 0
  %193 = vmatpush1.bf16.msra.mxu0 0
  %194 = vmatprep.subr.bf16.mxu0 0
  %195 = vmatpush1.bf16.msra.mxu0 0
  %196 = vmatprep.subr.bf16.mxu0 0
  %197 = vmatpush1.bf16.msra.mxu0 0
  %198 = vmatprep.subr.bf16.mxu0 0
  %199 = vmatpush1.bf16.msra.mxu0 0
  %200 = vmatprep.subr.bf16.mxu0 0
  %201 = vmatpush1.bf16.msra.mxu0 0
  %202 = vmatprep.subr.bf16.mxu0 0
  %203 = vmatpush1.bf16.msra.mxu0 0
  %204 = vmatprep.mubr.bf16.mxu0 0
  %205 = vmatmul.mubr.bf16.gmra.mrb[0].mxu0 %v167
  %v206 = vpop.f32.mrb[0].mxu0
  %v207 = vadd.f32 %v139, %v206
  %v208 = vpop.f32.mrb[0].mxu0
  %v209 = vpop.f32.mrb[0].mxu0
  %v210 = vadd.f32 %v139, %v209
  %v211 = vpop.f32.mrb[0].mxu0
  %212 = vmatprep.mubr.bf16.mxu0 0
  %213 = vmatmul.mubr.bf16.gmra.mrb[0].mxu0 %v170
  %v214 = vpop.f32.mrb[0].mxu0
  %v215 = vadd.f32 %v139, %v214
  %v216 = vpop.f32.mrb[0].mxu0
  %v217 = vpop.f32.mrb[0].mxu0
  %v218 = vadd.f32 %v139, %v217
  %v219 = vpop.f32.mrb[0].mxu0
  %220 = vdwg.mxu0
  %v221 = vunpack.c.l.bf16 %v27
  %v222 = vunpack.c.l.bf16 %v28
  %v223 = vunpack.c.l.bf16 %v29
  %v224 = vunpack.c.l.bf16 %v30
  %v225 = vadd.f32 %v221, %v207
  %v226 = vadd.f32 %v222, %v210
  %v227 = vadd.f32 %v223, %v215
  %v228 = vadd.f32 %v224, %v218
  %v229 = vsel %vm64, %v225, 0.0
  %230 = vadd.xlane.f32.xlu0 %v229
  %v231 = vpop.xlane.xlu0 %230
  %v232 = vsel %vm64, %v226, 0.0
  %233 = vadd.xlane.f32.xlu0 %v232
  %v234 = vpop.xlane.xlu0 %233
  %v235 = vsel %vm64, %v227, 0.0
  %236 = vadd.xlane.f32.xlu0 %v235
  %v237 = vpop.xlane.xlu0 %236
  %v238 = vsel %vm64, %v228, 0.0
  %239 = vadd.xlane.f32.xlu0 %v238
  %v240 = vpop.xlane.xlu0 %239
  %v241 = vrcp.pop 32.0
  %v242 = vmul.f32 %v231, %v241
  %v243 = vmul.f32 %v234, %v241
  %v244 = vmul.f32 %v237, %v241
  %v245 = vmul.f32 %v240, %v241
  %v246 = vsub.f32 %v225, %v242
  %v247 = vsub.f32 %v226, %v243
  %v248 = vsub.f32 %v227, %v244
  %v249 = vsub.f32 %v228, %v245
  %v250 = vmul.f32 %v246, %v246
  %v251 = vmul.f32 %v247, %v247
  %v252 = vmul.f32 %v248, %v248
  %v253 = vmul.f32 %v249, %v249
  %v254 = vsel %vm64, %v250, 0.0
  %255 = vadd.xlane.f32.xlu0 %v254
  %v256 = vpop.xlane.xlu0 %255
  %v257 = vsel %vm64, %v251, 0.0
  %258 = vadd.xlane.f32.xlu0 %v257
  %v259 = vpop.xlane.xlu0 %258
  %v260 = vsel %vm64, %v252, 0.0
  %261 = vadd.xlane.f32.xlu0 %v260
  %v262 = vpop.xlane.xlu0 %261
  %v263 = vsel %vm64, %v253, 0.0
  %264 = vadd.xlane.f32.xlu0 %v263
  %v265 = vpop.xlane.xlu0 %264
  %v266 = vmul.f32 %v256, %v241
  %v267 = vmul.f32 %v259, %v241
  %v268 = vmul.f32 %v262, %v241
  %v269 = vmul.f32 %v265, %v241
  %v270 = vadd.f32 %v266, 1e-05
  %v271 = vadd.f32 %v267, 1e-05
  %v272 = vadd.f32 %v268, 1e-05
  %v273 = vadd.f32 %v269, 1e-05
  %v274 = vrsqrt.pop %v270
  %v275 = vrsqrt.pop %v271
  %v276 = vrsqrt.pop %v272
  %v277 = vrsqrt.pop %v273
  %v278 = vmul.f32 %v246, %v274
  %v279 = vmul.f32 %v247, %v275
  %v280 = vmul.f32 %v248, %v276
  %v281 = vmul.f32 %v249, %v277
  %v282 = vld [vmem:[%s5] sm:$0x1]
  %v284 = vlaneseq
  %v285 = vshrl.u32 %v284, 7
  %v286 = vsub.s32 0, %v285
  %v287 = vrot.slane %v282, %v286
  %v289 = vmul.f32 %v278, %v287
  %v290 = vmul.f32 %v279, %v287
  %v291 = vmul.f32 %v280, %v287
  %v292 = vmul.f32 %v281, %v287
  %v293 = vld [vmem:[%s6] sm:$0x1]
  %v295 = vlaneseq
  %v296 = vshrl.u32 %v295, 7
  %v297 = vsub.s32 0, %v296
  %v298 = vrot.slane %v293, %v297
  %v300 = vadd.f32 %v289, %v298
  %v301 = vadd.f32 %v290, %v298
  %v302 = vadd.f32 %v291, %v298
  %v303 = vadd.f32 %v292, %v298
  %v304 = vpack.c.bf16 %v301, %v300
  %v305 = vpack.c.bf16 %v303, %v302
  %v308 = vunpack.c.l.b16 %v304
  %v309 = vunpack.c.h.b16 %v304
  %v310 = vunpack.c.l.b16 %v305
  %v311 = vunpack.c.h.b16 %v305
  %v312 = vpack.c.b16 %v308, %v308
  %v313 = vpack.c.b16 %v309, %v309
  %v314 = vpack.c.b16 %v310, %v310
  %v315 = vpack.c.b16 %v311, %v311
  %vm320 = vcmask 257024
  %321 = vst.msk [vmem:[%s7] sm:$0xf] %vm320, %v312
  %322 = vst.msk [vmem:[%s7 + $0x4] sm:$0xf] %vm320, %v313
  %323 = vst.msk [vmem:[%s7 + $0x8] sm:$0xf] %vm320, %v314
  %324 = vst.msk [vmem:[%s7 + $0xc] sm:$0xf] %vm320, %v315
  // Predicated region
  $region30: #{transformer_forward.12} parent=0 // pred_check
    _
  $region31: #{transformer_forward.12} parent=0 // pred_check_branch
    %326 = sbr.rel (0) target = $region33
  $region32: #{transformer_forward.12} parent=0 // pred_region
    _
  $region33: #{transformer_forward.12} parent=0 // pred_fallthru
    _
  // Predicated region
  $region34: #{transformer_forward.12} parent=0 // pred_check
    _
  $region35: #{transformer_forward.12} parent=0 // pred_check_branch
    %328 = sbr.rel (0) target = $region37
  $region36: #{transformer_forward.12} parent=0 // pred_region
    _
  $region37: #{transformer_forward.12} parent=0 // pred_fallthru
    _

// kernel: transformer_forward.11
$region0: #{transformer_forward.11}
  #allocation0 [shape = 'u32[]', space=smem, size = 0x4, offset = 0x4, fixed_abs, tag = 'smem constant byte address 0x4 - core index']
  #allocation1 [shape = 'u32[144,128]{1,0:T(1,128)}', space=vmem, size = 0x12000, scoped, tag = 'internal scratch']
  %s0 = inlined_call_operand.vmem [shape: bf16[2,16,32], index: 0, kind: input, shape index: {}, may-alias: {0,1}]
  %s1 = inlined_call_operand.vmem [shape: bf16[2,16,32], index: 1, kind: input, shape index: {}, may-alias: {0,1}]
  %s2 = inlined_call_operand.vmem [shape: f32[2,1,16], index: 2, kind: input, shape index: {}]
  %s3 = inlined_call_operand.vmem [shape: bf16[32,32], index: 3, kind: input, shape index: {}]
  %s4 = inlined_call_operand.vmem [shape: f32[1,32], index: 4, kind: input, shape index: {}]
  %s5 = inlined_call_operand.vmem [shape: bf16[32,64], index: 5, kind: input, shape index: {}]
  %s6 = inlined_call_operand.vmem [shape: f32[1,64], index: 6, kind: input, shape index: {}]
  %s7 = inlined_call_operand.vmem [shape: bf16[32,32], index: 7, kind: input, shape index: {}]
  %s8 = inlined_call_operand.vmem [shape: f32[1,32], index: 8, kind: input, shape index: {}]
  %s9 = inlined_call_operand.vmem [shape: f32[1,32], index: 9, kind: input, shape index: {}]
  %s10 = inlined_call_operand.vmem [shape: f32[1,32], index: 10, kind: input, shape index: {}]
  %s11 = inlined_call_operand.vmem [shape: bf16[2,16,32], index: 11, kind: output, shape index: {}]
  %s12 = sld [smem:[#allocation0]]
  $region77: #{transformer_forward.11} parent=0
    _
  %s14 = ssub.s32 1, %s12
  %s15 = scalar_select 0, %s14, %s12
  loop: start=0, step=1, limit=4
  $region2: #{transformer_forward.11} parent=0 // loop_pre_header
    _
  $region3: #{transformer_forward.11} parent=0 // loop_header
    %s17 = sphi 0, %s21
    %p18 = scmp.ge.s32.totalorder %s17, 4
    %s24 = sphi 0, %s36
    %s25 = sphi 0, %s32
    %s26 = sphi 0, %s24
    %s27 = sphi 0, %s25
    %s28 = sphi 0, %s26
    %s29 = sphi 0, %s27
    %s41 = sphi 0, %s43
    %s44 = sphi 0, %s41
    %s45 = sphi 0, %s44
    %s61 = sphi 0, %s45
    %s67 = sphi 0, %s69
    %s70 = sphi 0, %s67
    %s71 = sphi 0, %s70
    %s87 = sphi 0, %s71
    %s93 = sphi 0, %s95
    %s96 = sphi 0, %s93
    %s97 = sphi 0, %s96
    %s113 = sphi 0, %s97
    %s117 = sphi 0, %s117
    %s119 = sphi 0, %s117
    %s120 = sphi 0, %s119
    %s134 = sphi 0, %s120
    %s138 = sphi 0, %s138
    %s140 = sphi 0, %s138
    %s141 = sphi 0, %s140
    %s155 = sphi 0, %s141
    %s159 = sphi 0, %s159
    %s161 = sphi 0, %s159
    %s162 = sphi 0, %s161
    %s176 = sphi 0, %s162
    %s180 = sphi 0, %s180
    %s182 = sphi 0, %s180
    %s183 = sphi 0, %s182
    %s197 = sphi 0, %s183
    %s201 = sphi 0, %s201
    %s203 = sphi 0, %s201
    %s204 = sphi 0, %s203
    %s218 = sphi 0, %s204
    %s222 = sphi 0, %s222
    %s224 = sphi 0, %s222
    %s225 = sphi 0, %s224
    %s239 = sphi 0, %s225
    %s243 = sphi 0, %s243
    %s245 = sphi 0, %s243
    %s246 = sphi 0, %s245
    %s260 = sphi 0, %s246
    %s264 = sphi 0, %s264
    %s266 = sphi 0, %s264
    %s267 = sphi 0, %s266
    %s281 = sphi 0, %s267
    %s289 = sphi 0, %s291
    %s292 = sphi 0, %s289
    %s293 = sphi 0, %s292
    %s309 = sphi 0, %s293
  $region4: #{transformer_forward.11} parent=0 // loop_header_branch
    %20 = sbr.rel (%p18) target = $region8
  $region5: #{transformer_forward.11} parent=0 // loop_body
    %s22 = ssub.s32 %s17, 1
    %s23 = ssub.s32 %s17, 2
    %s30 = sadd.s32 1, %s25
    %p31 = scmp.ge.s32.totalorder %s30, 1
    %s32 = scalar_select %p31, 0, %s30
    %s33 = sadd.s32 1, %s24
    %s34 = scalar_select %p31, %s33, %s24
    %p35 = scmp.ge.s32.totalorder %s34, 2
    %s36 = scalar_select %p35, 0, %s34
    %s37 = ssub.s32 %s24, %s36
    %s38 = ssub.s32 %s25, %s32
    %s39 = sor.u32 %s37, %s38
    %p40 = scmp.eq.s32.totalorder %s39, 0
    %s42 = sadd.s32 %s41, 1
    %s43 = scalar_select %p40, %s41, %s42
    %p46 = pneg %p40
    %p47 = scmp.eq.s32.totalorder %s17, 1
    %p48 = por %p46, %p47
    %p49 = scmp.ne.s32.totalorder %s41, %s44
    %p50 = scmp.eq.s32.totalorder %s17, 0
    %p51 = por %p49, %p50
    %p52 = scmp.ne.s32.totalorder %s41, %s44
    %p53 = scmp.eq.s32.totalorder %s22, 1
    %p54 = por %p52, %p53
    %p55 = scmp.ne.s32.totalorder %s44, %s45
    %p56 = scmp.eq.s32.totalorder %s22, 0
    %p57 = por %p55, %p56
    %p58 = scmp.ne.s32.totalorder %s44, %s45
    %p59 = scmp.eq.s32.totalorder %s23, 1
    %p60 = por %p58, %p59
    %p62 = scmp.ne.s32.totalorder %s45, %s61
    %p63 = scmp.eq.s32.totalorder %s23, 0
    %p64 = por %p62, %p63
    %s65 = ssub.s32 %s24, %s36
    %p66 = scmp.eq.s32.totalorder %s65, 0
    %s68 = sadd.s32 %s67, 1
    %s69 = scalar_select %p66, %s67, %s68
    %p72 = pneg %p66
    %p73 = scmp.eq.s32.totalorder %s17, 1
    %p74 = por %p72, %p73
    %p75 = scmp.ne.s32.totalorder %s67, %s70
    %p76 = scmp.eq.s32.totalorder %s17, 0
    %p77 = por %p75, %p76
    %p78 = scmp.ne.s32.totalorder %s67, %s70
    %p79 = scmp.eq.s32.totalorder %s22, 1
    %p80 = por %p78, %p79
    %p81 = scmp.ne.s32.totalorder %s70, %s71
    %p82 = scmp.eq.s32.totalorder %s22, 0
    %p83 = por %p81, %p82
    %p84 = scmp.ne.s32.totalorder %s70, %s71
    %p85 = scmp.eq.s32.totalorder %s23, 1
    %p86 = por %p84, %p85
    %p88 = scmp.ne.s32.totalorder %s71, %s87
    %p89 = scmp.eq.s32.totalorder %s23, 0
    %p90 = por %p88, %p89
    %s91 = ssub.s32 %s24, %s36
    %p92 = scmp.eq.s32.totalorder %s91, 0
    %s94 = sadd.s32 %s93, 1
    %s95 = scalar_select %p92, %s93, %s94
    %p98 = pneg %p92
    %p99 = scmp.eq.s32.totalorder %s17, 1
    %p100 = por %p98, %p99
    %p101 = scmp.ne.s32.totalorder %s93, %s96
    %p102 = scmp.eq.s32.totalorder %s17, 0
    %p103 = por %p101, %p102
    %p104 = scmp.ne.s32.totalorder %s93, %s96
    %p105 = scmp.eq.s32.totalorder %s22, 1
    %p106 = por %p104, %p105
    %p107 = scmp.ne.s32.totalorder %s96, %s97
    %p108 = scmp.eq.s32.totalorder %s22, 0
    %p109 = por %p107, %p108
    %p110 = scmp.ne.s32.totalorder %s96, %s97
    %p111 = scmp.eq.s32.totalorder %s23, 1
    %p112 = por %p110, %p111
    %p114 = scmp.ne.s32.totalorder %s97, %s113
    %p115 = scmp.eq.s32.totalorder %s23, 0
    %p116 = por %p114, %p115
    %s118 = sadd.s32 %s117, 1
    %p121 = scmp.eq.s32.totalorder %s17, 1
    %p122 = scmp.ne.s32.totalorder %s117, %s119
    %p123 = scmp.eq.s32.totalorder %s17, 0
    %p124 = por %p122, %p123
    %p125 = scmp.ne.s32.totalorder %s117, %s119
    %p126 = scmp.eq.s32.totalorder %s22, 1
    %p127 = por %p125, %p126
    %p128 = scmp.ne.s32.totalorder %s119, %s120
    %p129 = scmp.eq.s32.totalorder %s22, 0
    %p130 = por %p128, %p129
    %p131 = scmp.ne.s32.totalorder %s119, %s120
    %p132 = scmp.eq.s32.totalorder %s23, 1
    %p133 = por %p131, %p132
    %p135 = scmp.ne.s32.totalorder %s120, %s134
    %p136 = scmp.eq.s32.totalorder %s23, 0
    %p137 = por %p135, %p136
    %s139 = sadd.s32 %s138, 1
    %p142 = scmp.eq.s32.totalorder %s17, 1
    %p143 = scmp.ne.s32.totalorder %s138, %s140
    %p144 = scmp.eq.s32.totalorder %s17, 0
    %p145 = por %p143, %p144
    %p146 = scmp.ne.s32.totalorder %s138, %s140
    %p147 = scmp.eq.s32.totalorder %s22, 1
    %p148 = por %p146, %p147
    %p149 = scmp.ne.s32.totalorder %s140, %s141
    %p150 = scmp.eq.s32.totalorder %s22, 0
    %p151 = por %p149, %p150
    %p152 = scmp.ne.s32.totalorder %s140, %s141
    %p153 = scmp.eq.s32.totalorder %s23, 1
    %p154 = por %p152, %p153
    %p156 = scmp.ne.s32.totalorder %s141, %s155
    %p157 = scmp.eq.s32.totalorder %s23, 0
    %p158 = por %p156, %p157
    %s160 = sadd.s32 %s159, 1
    %p163 = scmp.eq.s32.totalorder %s17, 1
    %p164 = scmp.ne.s32.totalorder %s159, %s161
    %p165 = scmp.eq.s32.totalorder %s17, 0
    %p166 = por %p164, %p165
    %p167 = scmp.ne.s32.totalorder %s159, %s161
    %p168 = scmp.eq.s32.totalorder %s22, 1
    %p169 = por %p167, %p168
    %p170 = scmp.ne.s32.totalorder %s161, %s162
    %p171 = scmp.eq.s32.totalorder %s22, 0
    %p172 = por %p170, %p171
    %p173 = scmp.ne.s32.totalorder %s161, %s162
    %p174 = scmp.eq.s32.totalorder %s23, 1
    %p175 = por %p173, %p174
    %p177 = scmp.ne.s32.totalorder %s162, %s176
    %p178 = scmp.eq.s32.totalorder %s23, 0
    %p179 = por %p177, %p178
    %s181 = sadd.s32 %s180, 1
    %p184 = scmp.eq.s32.totalorder %s17, 1
    %p185 = scmp.ne.s32.totalorder %s180, %s182
    %p186 = scmp.eq.s32.totalorder %s17, 0
    %p187 = por %p185, %p186
    %p188 = scmp.ne.s32.totalorder %s180, %s182
    %p189 = scmp.eq.s32.totalorder %s22, 1
    %p190 = por %p188, %p189
    %p191 = scmp.ne.s32.totalorder %s182, %s183
    %p192 = scmp.eq.s32.totalorder %s22, 0
    %p193 = por %p191, %p192
    %p194 = scmp.ne.s32.totalorder %s182, %s183
    %p195 = scmp.eq.s32.totalorder %s23, 1
    %p196 = por %p194, %p195
    %p198 = scmp.ne.s32.totalorder %s183, %s197
    %p199 = scmp.eq.s32.totalorder %s23, 0
    %p200 = por %p198, %p199
    %s202 = sadd.s32 %s201, 1
    %p205 = scmp.eq.s32.totalorder %s17, 1
    %p206 = scmp.ne.s32.totalorder %s201, %s203
    %p207 = scmp.eq.s32.totalorder %s17, 0
    %p208 = por %p206, %p207
    %p209 = scmp.ne.s32.totalorder %s201, %s203
    %p210 = scmp.eq.s32.totalorder %s22, 1
    %p211 = por %p209, %p210
    %p212 = scmp.ne.s32.totalorder %s203, %s204
    %p213 = scmp.eq.s32.totalorder %s22, 0
    %p214 = por %p212, %p213
    %p215 = scmp.ne.s32.totalorder %s203, %s204
    %p216 = scmp.eq.s32.totalorder %s23, 1
    %p217 = por %p215, %p216
    %p219 = scmp.ne.s32.totalorder %s204, %s218
    %p220 = scmp.eq.s32.totalorder %s23, 0
    %p221 = por %p219, %p220
    %s223 = sadd.s32 %s222, 1
    %p226 = scmp.eq.s32.totalorder %s17, 1
    %p227 = scmp.ne.s32.totalorder %s222, %s224
    %p228 = scmp.eq.s32.totalorder %s17, 0
    %p229 = por %p227, %p228
    %p230 = scmp.ne.s32.totalorder %s222, %s224
    %p231 = scmp.eq.s32.totalorder %s22, 1
    %p232 = por %p230, %p231
    %p233 = scmp.ne.s32.totalorder %s224, %s225
    %p234 = scmp.eq.s32.totalorder %s22, 0
    %p235 = por %p233, %p234
    %p236 = scmp.ne.s32.totalorder %s224, %s225
    %p237 = scmp.eq.s32.totalorder %s23, 1
    %p238 = por %p236, %p237
    %p240 = scmp.ne.s32.totalorder %s225, %s239
    %p241 = scmp.eq.s32.totalorder %s23, 0
    %p242 = por %p240, %p241
    %s244 = sadd.s32 %s243, 1
    %p247 = scmp.eq.s32.totalorder %s17, 1
    %p248 = scmp.ne.s32.totalorder %s243, %s245
    %p249 = scmp.eq.s32.totalorder %s17, 0
    %p250 = por %p248, %p249
    %p251 = scmp.ne.s32.totalorder %s243, %s245
    %p252 = scmp.eq.s32.totalorder %s22, 1
    %p253 = por %p251, %p252
    %p254 = scmp.ne.s32.totalorder %s245, %s246
    %p255 = scmp.eq.s32.totalorder %s22, 0
    %p256 = por %p254, %p255
    %p257 = scmp.ne.s32.totalorder %s245, %s246
    %p258 = scmp.eq.s32.totalorder %s23, 1
    %p259 = por %p257, %p258
    %p261 = scmp.ne.s32.totalorder %s246, %s260
    %p262 = scmp.eq.s32.totalorder %s23, 0
    %p263 = por %p261, %p262
    %s265 = sadd.s32 %s264, 1
    %p268 = scmp.eq.s32.totalorder %s17, 1
    %p269 = scmp.ne.s32.totalorder %s264, %s266
    %p270 = scmp.eq.s32.totalorder %s17, 0
    %p271 = por %p269, %p270
    %p272 = scmp.ne.s32.totalorder %s264, %s266
    %p273 = scmp.eq.s32.totalorder %s22, 1
    %p274 = por %p272, %p273
    %p275 = scmp.ne.s32.totalorder %s266, %s267
    %p276 = scmp.eq.s32.totalorder %s22, 0
    %p277 = por %p275, %p276
    %p278 = scmp.ne.s32.totalorder %s266, %s267
    %p279 = scmp.eq.s32.totalorder %s23, 1
    %p280 = por %p278, %p279
    %p282 = scmp.ne.s32.totalorder %s267, %s281
    %p283 = scmp.eq.s32.totalorder %s23, 0
    %p284 = por %p282, %p283
    %s285 = ssub.s32 %s24, %s36
    %s286 = ssub.s32 %s25, %s32
    %s287 = sor.u32 %s285, %s286
    %p288 = scmp.eq.s32.totalorder %s287, 0
    %s290 = sadd.s32 %s289, 1
    %s291 = scalar_select %p288, %s289, %s290
    %p294 = pneg %p288
    %p295 = scmp.eq.s32.totalorder %s17, 1
    %p296 = por %p294, %p295
    %p297 = scmp.ne.s32.totalorder %s289, %s292
    %p298 = scmp.eq.s32.totalorder %s17, 0
    %p299 = por %p297, %p298
    %p300 = scmp.ne.s32.totalorder %s289, %s292
    %p301 = scmp.eq.s32.totalorder %s22, 1
    %p302 = por %p300, %p301
    %p303 = scmp.ne.s32.totalorder %s292, %s293
    %p304 = scmp.eq.s32.totalorder %s22, 0
    %p305 = por %p303, %p304
    %p306 = scmp.ne.s32.totalorder %s292, %s293
    %p307 = scmp.eq.s32.totalorder %s23, 1
    %p308 = por %p306, %p307
    %p310 = scmp.ne.s32.totalorder %s293, %s309
    %p311 = scmp.eq.s32.totalorder %s23, 0
    %p312 = por %p310, %p311
    %p313 = scmp.le.s32.totalorder 1, %s17
    %p314 = scmp.lt.s32.totalorder %s17, 3
    %p315 = pnand %p313, %p314
    %p316 = pneg %p315
    // Predicated region
    $region9: #{transformer_forward.11} parent=5 // pred_check
      _
    $region10: #{transformer_forward.11} parent=5 // pred_check_branch
      %318 = sbr.rel (%p315) target = $region12
    $region11: #{transformer_forward.11} parent=5 // pred_region
      %s319 = ssub.s32 %s17, 1
      // Predicated region
      $region13: #{transformer_forward.11} parent=11 // pred_check
        %p320 = pneg %p130
      $region14: #{transformer_forward.11} parent=11 // pred_check_branch
        %322 = sbr.rel (%p320) target = $region16
      $region15: #{transformer_forward.11} parent=11 // pred_region
        _
      $region16: #{transformer_forward.11} parent=11 // pred_fallthru
        _
      // Predicated region
      $region17: #{transformer_forward.11} parent=11 // pred_check
        %p323 = pneg %p151
      $region18: #{transformer_forward.11} parent=11 // pred_check_branch
        %325 = sbr.rel (%p323) target = $region20
      $region19: #{transformer_forward.11} parent=11 // pred_region
        _
      $region20: #{transformer_forward.11} parent=11 // pred_fallthru
        _
      // Predicated region
      $region21: #{transformer_forward.11} parent=11 // pred_check
        %p326 = pneg %p172
      $region22: #{transformer_forward.11} parent=11 // pred_check_branch
        %328 = sbr.rel (%p326) target = $region24
      $region23: #{transformer_forward.11} parent=11 // pred_region
        _
      $region24: #{transformer_forward.11} parent=11 // pred_fallthru
        _
      // Predicated region
      $region25: #{transformer_forward.11} parent=11 // pred_check
        %p329 = pneg %p193
      $region26: #{transformer_forward.11} parent=11 // pred_check_branch
        %331 = sbr.rel (%p329) target = $region28
      $region27: #{transformer_forward.11} parent=11 // pred_region
        _
      $region28: #{transformer_forward.11} parent=11 // pred_fallthru
        _
      // Predicated region
      $region29: #{transformer_forward.11} parent=11 // pred_check
        %p332 = pneg %p214
      $region30: #{transformer_forward.11} parent=11 // pred_check_branch
        %334 = sbr.rel (%p332) target = $region32
      $region31: #{transformer_forward.11} parent=11 // pred_region
        _
      $region32: #{transformer_forward.11} parent=11 // pred_fallthru
        _
      // Predicated region
      $region33: #{transformer_forward.11} parent=11 // pred_check
        %p335 = pneg %p235
      $region34: #{transformer_forward.11} parent=11 // pred_check_branch
        %337 = sbr.rel (%p335) target = $region36
      $region35: #{transformer_forward.11} parent=11 // pred_region
        _
      $region36: #{transformer_forward.11} parent=11 // pred_fallthru
        _
      // Predicated region
      $region37: #{transformer_forward.11} parent=11 // pred_check
        %p338 = pneg %p256
      $region38: #{transformer_forward.11} parent=11 // pred_check_branch
        %340 = sbr.rel (%p338) target = $region40
      $region39: #{transformer_forward.11} parent=11 // pred_region
        _
      $region40: #{transformer_forward.11} parent=11 // pred_fallthru
        _
      // Predicated region
      $region41: #{transformer_forward.11} parent=11 // pred_check
        %p341 = pneg %p277
      $region42: #{transformer_forward.11} parent=11 // pred_check_branch
        %343 = sbr.rel (%p341) target = $region44
      $region43: #{transformer_forward.11} parent=11 // pred_region
        _
      $region44: #{transformer_forward.11} parent=11 // pred_fallthru
        _
    $region12: #{transformer_forward.11} parent=5 // pred_fallthru
      _
    %p344 = scmp.lt.s32.totalorder %s17, 2
    // Predicated region
    $region45: #{transformer_forward.11} parent=5 // pred_check
      %p345 = pneg %p344
    $region46: #{transformer_forward.11} parent=5 // pred_check_branch
      %347 = sbr.rel (%p345) target = $region48
    $region47: #{transformer_forward.11} parent=5 // pred_region
      // Predicated region
      $region49: #{transformer_forward.11} parent=47 // pred_check
        %p348 = pneg %p51
      $region50: #{transformer_forward.11} parent=47 // pred_check_branch
        %350 = sbr.rel (%p348) target = $region52
      $region51: #{transformer_forward.11} parent=47 // pred_region
        %s351 = smul.u32 2, %s25
        %p352 = scmp.lt.s32.totalorder %s24, 1
        %s353 = scalar_select %p352, %s24, 1
        %p354 = scmp.lt.s32.totalorder %s351, 1
        %s355 = scalar_select %p354, %s351, 1
        %s356 = smul.addr %s353, 2
        %s357 = sadd.s32 %s355, %s356
        %s358 = smul.addr %s357, 4
        %s359 = scalar_lea.vmem %s0, %s358
        %s360 = smul.u32 2, %s25
      $region52: #{transformer_forward.11} parent=47 // pred_fallthru
        _
      // Predicated region
      $region53: #{transformer_forward.11} parent=47 // pred_check
        %p361 = pneg %p77
      $region54: #{transformer_forward.11} parent=47 // pred_check_branch
        %363 = sbr.rel (%p361) target = $region56
      $region55: #{transformer_forward.11} parent=47 // pred_region
        %p364 = scmp.lt.s32.totalorder %s24, 1
        %s365 = scalar_select %p364, %s24, 1
        %s366 = smul.addr %s365, 2
        %s367 = smul.addr %s366, 4
        %s368 = scalar_lea.vmem %s1, %s367
      $region56: #{transformer_forward.11} parent=47 // pred_fallthru
        _
      // Predicated region
      $region57: #{transformer_forward.11} parent=47 // pred_check
        %p369 = pneg %p103
      $region58: #{transformer_forward.11} parent=47 // pred_check_branch
        %371 = sbr.rel (%p369) target = $region60
      $region59: #{transformer_forward.11} parent=47 // pred_region
        %p372 = scmp.lt.s32.totalorder %s24, 1
        %s373 = scalar_select %p372, %s24, 1
        %s374 = scalar_lea.vmem %s2, %s373
      $region60: #{transformer_forward.11} parent=47 // pred_fallthru
        _
    $region48: #{transformer_forward.11} parent=5 // pred_fallthru
      _
    %p375 = scmp.le.s32.totalorder 1, %s17
    %p376 = scmp.lt.s32.totalorder %s17, 3
    %p377 = pnand %p375, %p376
    %p378 = pneg %p377
    // Predicated region
    $region61: #{transformer_forward.11} parent=5 // pred_check
      _
    $region62: #{transformer_forward.11} parent=5 // pred_check_branch
      %380 = sbr.rel (%p377) target = $region64
    $region63: #{transformer_forward.11} parent=5 // pred_region
      %s381 = ssub.s32 %s17, 1
      %s382 = smul.u32 2, %s27
      %p383 = scmp.lt.s32.totalorder %s26, 1
      %s384 = scalar_select %p383, %s26, 1
      %p385 = scmp.lt.s32.totalorder %s382, 1
      %s386 = scalar_select %p385, %s382, 1
      %s387 = smul.addr %s384, 2
      %s388 = sadd.s32 %s386, %s387
      %s389 = smul.addr %s388, 4
      %s390 = scalar_lea.vmem %s0, %s389
      %p391 = pneg %p57
      %p392 = pneg %p54
      %p393 = scmp.lt.s32.totalorder %s26, 1
      %s394 = scalar_select %p393, %s26, 1
      %s395 = smul.addr %s394, 2
      %s396 = smul.addr %s395, 4
      %s397 = scalar_lea.vmem %s1, %s396
      %p398 = pneg %p83
      %p399 = pneg %p80
      %p400 = scmp.lt.s32.totalorder %s26, 1
      %s401 = scalar_select %p400, %s26, 1
      %s402 = scalar_lea.vmem %s2, %s401
      %p403 = pneg %p109
      %p404 = pneg %p106
      %p405 = pneg %p130
      %p406 = pneg %p127
      %p407 = pneg %p151
      %p408 = pneg %p148
      %p409 = pneg %p172
      %p410 = pneg %p169
      %p411 = pneg %p193
      %p412 = pneg %p190
      %p413 = pneg %p214
      %p414 = pneg %p211
      %p415 = pneg %p235
      %p416 = pneg %p232
      %p417 = pneg %p256
      %p418 = pneg %p253
      %p419 = pneg %p277
      %p420 = pneg %p274
      %p421 = pneg %p305
      %p422 = pneg %p302
      %s423 = smul.u32 2, %s27
      %p424 = scmp.lt.s32.totalorder %s26, 1
      %s425 = scalar_select %p424, %s26, 1
      %p426 = scmp.lt.s32.totalorder %s423, 1
      %s427 = scalar_select %p426, %s423, 1
      %s428 = smul.addr %s425, 2
      %s429 = sadd.s32 %s427, %s428
      %s430 = smul.addr %s429, 4
      %s431 = scalar_lea.vmem %s11, %s430
      %s432 = smul.u32 2, %s27
      %p433 = scmp.lt.s32.totalorder %s26, 1
      %s434 = scalar_select %p433, %s26, 1
      %p435 = scmp.lt.s32.totalorder %s432, 1
      %s436 = scalar_select %p435, %s432, 1
      %s437 = smul.addr %s434, 2
      %s438 = sadd.s32 %s436, %s437
      %s439 = smul.addr %s438, 4
      %s440 = scalar_lea.vmem %s0, %s439
      %s441 = smul.u32 2, %s27
      %p442 = scmp.lt.s32.totalorder %s26, 1
      %s443 = scalar_select %p442, %s26, 1
      %s444 = smul.addr %s443, 2
      %s445 = smul.addr %s444, 4
      %s446 = scalar_lea.vmem %s1, %s445
      %p447 = scmp.lt.s32.totalorder %s26, 1
      %s448 = scalar_select %p447, %s26, 1
      %s449 = scalar_lea.vmem %s2, %s448
      %s450 = smul.u32 2, %s27
      %p451 = scmp.lt.s32.totalorder %s26, 1
      %s452 = scalar_select %p451, %s26, 1
      %p453 = scmp.lt.s32.totalorder %s450, 1
      %s454 = scalar_select %p453, %s450, 1
      %s455 = smul.addr %s452, 2
      %s456 = sadd.s32 %s454, %s455
      %s457 = smul.addr %s456, 4
      %s458 = scalar_lea.vmem %s11, %s457
      %s459 = smul.u32 2, %s27
      %v461 = vld [vmem:[%s440] sm:$0xf]
      %v462 = vld [vmem:[%s440 + $0x4] sm:$0xf]
      %v463 = vld [vmem:[%s446] sm:$0xf]
      %v464 = vld [vmem:[%s446 + $0x4] sm:$0xf]
      %v465 = vld [vmem:[%s449] sm:$0x1]
      %vm466 = vcmp.gt.f32.partialorder %v465, 0.5
      %v467 = vsel %vm466, 0.0, -1e+09
      %v468 = vld [vmem:[%s3] sm:$0xf]
      %v469 = vld [vmem:[%s3 + $0x4] sm:$0xf]
      %v470 = vld [vmem:[%s3 + $0x8] sm:$0xf]
      %v471 = vld [vmem:[%s3 + $0xc] sm:$0xf]
      %v472 = vld [vmem:[%s4] sm:$0x1]
      %v474 = vlaneseq
      %v475 = vshrl.u32 %v474, 7
      %v476 = vsub.s32 0, %v475
      %v477 = vrot.slane %v472, %v476
      %v481 = vunpack.c.l.b16 %v461
      %v482 = vunpack.c.l.b16 %v462
      %v483 = vpack.c.b16 %v482, %v481
      %v488 = vunpack.c.l.b16 %v468
      %v489 = vunpack.c.l.b16 %v469
      %v490 = vunpack.c.l.b16 %v470
      %v491 = vunpack.c.l.b16 %v471
      %v492 = vpack.c.b16 %v489, %v488
      %v493 = vpack.c.b16 %v491, %v490
      %vm496 = vcmask 261120
      %v498 = vsel %vm496, %v483, 0
      %500 = vmatprep.subr.bf16.mxu0 0
      %501 = vmatpush1.bf16.msra.mxu0 %v492
      %502 = vmatprep.subr.bf16.mxu0 0
      %503 = vmatpush1.bf16.msra.mxu0 %v493
      %504 = vmatprep.subr.bf16.mxu0 0
      %505 = vmatpush1.bf16.msra.mxu0 0
      %506 = vmatprep.subr.bf16.mxu0 0
      %507 = vmatpush1.bf16.msra.mxu0 0
      %508 = vmatprep.subr.bf16.mxu0 0
      %509 = vmatpush1.bf16.msra.mxu0 0
      %510 = vmatprep.subr.bf16.mxu0 0
      %511 = vmatpush1.bf16.msra.mxu0 0
      %512 = vmatprep.subr.bf16.mxu0 0
      %513 = vmatpush1.bf16.msra.mxu0 0
      %514 = vmatprep.subr.bf16.mxu0 0
      %515 = vmatpush1.bf16.msra.mxu0 0
      %516 = vmatprep.subr.bf16.mxu0 0
      %517 = vmatpush1.bf16.msra.mxu0 0
      %518 = vmatprep.subr.bf16.mxu0 0
      %519 = vmatpush1.bf16.msra.mxu0 0
      %520 = vmatprep.subr.bf16.mxu0 0
      %521 = vmatpush1.bf16.msra.mxu0 0
      %522 = vmatprep.subr.bf16.mxu0 0
      %523 = vmatpush1.bf16.msra.mxu0 0
      %524 = vmatprep.subr.bf16.mxu0 0
      %525 = vmatpush1.bf16.msra.mxu0 0
      %526 = vmatprep.subr.bf16.mxu0 0
      %527 = vmatpush1.bf16.msra.mxu0 0
      %528 = vmatprep.subr.bf16.mxu0 0
      %529 = vmatpush1.bf16.msra.mxu0 0
      %530 = vmatprep.subr.bf16.mxu0 0
      %531 = vmatpush1.bf16.msra.mxu0 0
      %532 = vmatprep.mubr.bf16.mxu0 0
      %533 = vmatmul.mubr.bf16.gmra.mrb[0].mxu0 %v498
      %v534 = vpop.f32.mrb[0].mxu0
      %v535 = vadd.f32 %v477, %v534
      %v536 = vpop.f32.mrb[0].mxu0
      %v537 = vpop.f32.mrb[0].mxu0
      %v538 = vadd.f32 %v477, %v537
      %v539 = vpop.f32.mrb[0].mxu0
      %540 = vdwg.mxu0
      %v541 = vld [vmem:[%s5] sm:$0xf]
      %v542 = vld [vmem:[%s5 + $0x4] sm:$0xf]
      %v543 = vld [vmem:[%s5 + $0x8] sm:$0xf]
      %v544 = vld [vmem:[%s5 + $0xc] sm:$0xf]
      %v545 = vld [vmem:[%s6] sm:$0x1]
      %v547 = vlaneseq
      %v548 = vshrl.u32 %v547, 7
      %v549 = vsub.s32 0, %v548
      %v550 = vrot.slane %v545, %v549
      %v554 = vunpack.c.l.b16 %v463
      %v555 = vunpack.c.l.b16 %v464
      %v556 = vpack.c.b16 %v555, %v554
      %v561 = vunpack.c.l.b16 %v541
      %v562 = vunpack.c.l.b16 %v542
      %v563 = vunpack.c.l.b16 %v543
      %v564 = vunpack.c.l.b16 %v544
      %v565 = vpack.c.b16 %v562, %v561
      %v566 = vpack.c.b16 %v564, %v563
      %v570 = vsel %vm496, %v556, 0
      %572 = vmatprep.subr.bf16.mxu0 0
      %573 = vmatpush1.bf16.msra.mxu0 %v565
      %574 = vmatprep.subr.bf16.mxu0 0
      %575 = vmatpush1.bf16.msra.mxu0 %v566
      %576 = vmatprep.subr.bf16.mxu0 0
      %577 = vmatpush1.bf16.msra.mxu0 0
      %578 = vmatprep.subr.bf16.mxu0 0
      %579 = vmatpush1.bf16.msra.mxu0 0
      %580 = vmatprep.subr.bf16.mxu0 0
      %581 = vmatpush1.bf16.msra.mxu0 0
      %582 = vmatprep.subr.bf16.mxu0 0
      %583 = vmatpush1.bf16.msra.mxu0 0
      %584 = vmatprep.subr.bf16.mxu0 0
      %585 = vmatpush1.bf16.msra.mxu0 0
      %586 = vmatprep.subr.bf16.mxu0 0
      %587 = vmatpush1.bf16.msra.mxu0 0
      %588 = vmatprep.subr.bf16.mxu0 0
      %589 = vmatpush1.bf16.msra.mxu0 0
      %590 = vmatprep.subr.bf16.mxu0 0
      %591 = vmatpush1.bf16.msra.mxu0 0
      %592 = vmatprep.subr.bf16.mxu0 0
      %593 = vmatpush1.bf16.msra.mxu0 0
      %594 = vmatprep.subr.bf16.mxu0 0
      %595 = vmatpush1.bf16.msra.mxu0 0
      %596 = vmatprep.subr.bf16.mxu0 0
      %597 = vmatpush1.bf16.msra.mxu0 0
      %598 = vmatprep.subr.bf16.mxu0 0
      %599 = vmatpush1.bf16.msra.mxu0 0
      %600 = vmatprep.subr.bf16.mxu0 0
      %601 = vmatpush1.bf16.msra.mxu0 0
      %602 = vmatprep.subr.bf16.mxu0 0
      %603 = vmatpush1.bf16.msra.mxu0 0
      %604 = vmatprep.mubr.bf16.mxu0 0
      %605 = vmatmul.mubr.bf16.gmra.mrb[0].mxu0 %v570
      %v606 = vpop.f32.mrb[0].mxu0
      %v607 = vadd.f32 %v550, %v606
      %v608 = vpop.f32.mrb[0].mxu0
      %v609 = vpop.f32.mrb[0].mxu0
      %v610 = vadd.f32 %v550, %v609
      %v611 = vpop.f32.mrb[0].mxu0
      %612 = vdwg.mxu0
      %v613 = vld [vmem:[%s7] sm:$0xf]
      %v614 = vld [vmem:[%s7 + $0x4] sm:$0xf]
      %v615 = vld [vmem:[%s7 + $0x8] sm:$0xf]
      %v616 = vld [vmem:[%s7 + $0xc] sm:$0xf]
      %v617 = vpack.c.bf16 %v538, %v535
      %v618 = vpack.c.bf16 %v610, %v607
      %v620 = vlaneseq
      %v621 = vshrl.u32 %v620, 7
      %v622 = vsub.s32 0, %v621
      %v623 = vrot.slane %v467, %v622
      %vm625 = vcmask 64512
      %v627 = vsel %vm625, %v617, 0
      %v630 = vsel %vm625, %v618, 0
      %632 = vmatprep.subr.bf16.mxu0 0
      %633 = vmatpush1.bf16.xpose.msra.mxu0 %v630
      %634 = vmatprep.subr.bf16.mxu0 0
      %635 = vmatpush1.bf16.xpose.msra.mxu0 0
      %636 = vmatprep.subr.bf16.mxu0 0
      %637 = vmatpush1.bf16.xpose.msra.mxu0 0
      %638 = vmatprep.subr.bf16.mxu0 0
      %639 = vmatpush1.bf16.xpose.msra.mxu0 0
      %640 = vmatprep.subr.bf16.mxu0 0
      %641 = vmatpush1.bf16.xpose.msra.mxu0 0
      %642 = vmatprep.subr.bf16.mxu0 0
      %643 = vmatpush1.bf16.xpose.msra.mxu0 0
      %644 = vmatprep.subr.bf16.mxu0 0
      %645 = vmatpush1.bf16.xpose.msra.mxu0 0
      %646 = vmatprep.subr.bf16.mxu0 0
      %647 = vmatpush1.bf16.xpose.msra.mxu0 0
      %648 = vmatprep.subr.bf16.mxu0 0
      %649 = vmatpush1.bf16.xpose.msra.mxu0 0
      %650 = vmatprep.subr.bf16.mxu0 0
      %651 = vmatpush1.bf16.xpose.msra.mxu0 0
      %652 = vmatprep.subr.bf16.mxu0 0
      %653 = vmatpush1.bf16.xpose.msra.mxu0 0
      %654 = vmatprep.subr.bf16.mxu0 0
      %655 = vmatpush1.bf16.xpose.msra.mxu0 0
      %656 = vmatprep.subr.bf16.mxu0 0
      %657 = vmatpush1.bf16.xpose.msra.mxu0 0
      %658 = vmatprep.subr.bf16.mxu0 0
      %659 = vmatpush1.bf16.xpose.msra.mxu0 0
      %660 = vmatprep.subr.bf16.mxu0 0
      %661 = vmatpush1.bf16.xpose.msra.mxu0 0
      %662 = vmatprep.subr.bf16.mxu0 0
      %663 = vmatpush1.bf16.xpose.msra.mxu0 0
      %664 = vmatprep.mubr.bf16.mxu0 0
      %665 = vmatmul.mubr.bf16.gmra.mrb[0].mxu0 %v627
      %v666 = vpop.f32.mrb[0].mxu0
      %v667 = vadd.f32 %v623, %v666
      %v668 = vpop.f32.mrb[0].mxu0
      %v669 = vpop.f32.mrb[0].mxu0
      %v670 = vadd.f32 %v623, %v669
      %v671 = vpop.f32.mrb[0].mxu0
      %672 = vdwg.mxu0
      %vm673 = vcmask 130048
      %v674 = vsel %vm673, %v667, -inf
      %675 = vmax.xlane.f32.xlu0 %v674
      %v676 = vpop.xlane.xlu0 %675
      %v677 = vsel %vm673, %v670, -inf
      %678 = vmax.xlane.f32.xlu0 %v677
      %v679 = vpop.xlane.xlu0 %678
      %v680 = vsub.f32 %v667, %v676
      %v681 = vsub.f32 %v670, %v679
      %v682 = vmul.f32 %v680, 1.442695
      %v683 = vpow.pop %v682
      %v684 = vmul.f32 %v681, 1.442695
      %v685 = vpow.pop %v684
      %v686 = vsel %vm673, %v683, 0.0
      %687 = vadd.xlane.f32.xlu0 %v686
      %v688 = vpop.xlane.xlu0 %687
      %v689 = vsel %vm673, %v685, 0.0
      %690 = vadd.xlane.f32.xlu0 %v689
      %v691 = vpop.xlane.xlu0 %690
      %v692 = vrcp.pop %v688
      %v693 = vrcp.pop %v691
      %v694 = vmul.f32 %v683, %v692
      %v695 = vmul.f32 %v685, %v693
      %v696 = vpack.c.bf16 %v695, %v694
      %698 = vrot.lane.b32.xlu0 %v618, 96
      %v699 = vpop.permute.xlu0 %698
      %v702 = vsel %vm673, %v696, 0
      %704 = vmatprep.subr.bf16.mxu0 0
      %705 = vmatpush1.bf16.msra.mxu0 %v699
      %706 = vmatprep.subr.bf16.mxu0 0
      %707 = vmatpush1.bf16.msra.mxu0 0
      %708 = vmatprep.subr.bf16.mxu0 0
      %709 = vmatpush1.bf16.msra.mxu0 0
      %710 = vmatprep.subr.bf16.mxu0 0
      %711 = vmatpush1.bf16.msra.mxu0 0
      %712 = vmatprep.subr.bf16.mxu0 0
      %713 = vmatpush1.bf16.msra.mxu0 0
      %714 = vmatprep.subr.bf16.mxu0 0
      %715 = vmatpush1.bf16.msra.mxu0 0
      %716 = vmatprep.subr.bf16.mxu0 0
      %717 = vmatpush1.bf16.msra.mxu0 0
      %718 = vmatprep.subr.bf16.mxu0 0
      %719 = vmatpush1.bf16.msra.mxu0 0
      %720 = vmatprep.subr.bf16.mxu0 0
      %721 = vmatpush1.bf16.msra.mxu0 0
      %722 = vmatprep.subr.bf16.mxu0 0
      %723 = vmatpush1.bf16.msra.mxu0 0
      %724 = vmatprep.subr.bf16.mxu0 0
      %725 = vmatpush1.bf16.msra.mxu0 0
      %726 = vmatprep.subr.bf16.mxu0 0
      %727 = vmatpush1.bf16.msra.mxu0 0
      %728 = vmatprep.subr.bf16.mxu0 0
      %729 = vmatpush1.bf16.msra.mxu0 0
      %730 = vmatprep.subr.bf16.mxu0 0
      %731 = vmatpush1.bf16.msra.mxu0 0
      %732 = vmatprep.subr.bf16.mxu0 0
      %733 = vmatpush1.bf16.msra.mxu0 0
      %734 = vmatprep.subr.bf16.mxu0 0
      %735 = vmatpush1.bf16.msra.mxu0 0
      %736 = vmatprep.mubr.bf16.mxu0 0
      %737 = vmatmul.mubr.bf16.gmra.mrb[0].mxu0 %v702
      %v738 = vpop.f32.mrb[0].mxu0
      %v739 = vadd.f32 0.0, %v738
      %v740 = vpop.f32.mrb[0].mxu0
      %v741 = vpop.f32.mrb[0].mxu0
      %v742 = vadd.f32 0.0, %v741
      %v743 = vpop.f32.mrb[0].mxu0
      %744 = vdwg.mxu0
      %v745 = vpack.c.bf16 %v742, %v739
      %747 = vrot.lane.b32.xlu0 %v617, 120
      %v748 = vpop.permute.xlu0 %747
      %749 = vrot.lane.b32.xlu0 %v618, 120
      %v750 = vpop.permute.xlu0 %749
      %v752 = vsel %vm625, %v748, 0
      %v755 = vsel %vm625, %v750, 0
      %757 = vmatprep.subr.bf16.mxu0 0
      %758 = vmatpush1.bf16.xpose.msra.mxu0 %v755
      %759 = vmatprep.subr.bf16.mxu0 0
      %760 = vmatpush1.bf16.xpose.msra.mxu0 0
      %761 = vmatprep.subr.bf16.mxu0 0
      %762 = vmatpush1.bf16.xpose.msra.mxu0 0
      %763 = vmatprep.subr.bf16.mxu0 0
      %764 = vmatpush1.bf16.xpose.msra.mxu0 0
      %765 = vmatprep.subr.bf16.mxu0 0
      %766 = vmatpush1.bf16.xpose.msra.mxu0 0
      %767 = vmatprep.subr.bf16.mxu0 0
      %768 = vmatpush1.bf16.xpose.msra.mxu0 0
      %769 = vmatprep.subr.bf16.mxu0 0
      %770 = vmatpush1.bf16.xpose.msra.mxu0 0
      %771 = vmatprep.subr.bf16.mxu0 0
      %772 = vmatpush1.bf16.xpose.msra.mxu0 0
      %773 = vmatprep.subr.bf16.mxu0 0
      %774 = vmatpush1.bf16.xpose.msra.mxu0 0
      %775 = vmatprep.subr.bf16.mxu0 0
      %776 = vmatpush1.bf16.xpose.msra.mxu0 0
      %777 = vmatprep.subr.bf16.mxu0 0
      %778 = vmatpush1.bf16.xpose.msra.mxu0 0
      %779 = vmatprep.subr.bf16.mxu0 0
      %780 = vmatpush1.bf16.xpose.msra.mxu0 0
      %781 = vmatprep.subr.bf16.mxu0 0
      %782 = vmatpush1.bf16.xpose.msra.mxu0 0
      %783 = vmatprep.subr.bf16.mxu0 0
      %784 = vmatpush1.bf16.xpose.msra.mxu0 0
      %785 = vmatprep.subr.bf16.mxu0 0
      %786 = vmatpush1.bf16.xpose.msra.mxu0 0
      %787 = vmatprep.subr.bf16.mxu0 0
      %788 = vmatpush1.bf16.xpose.msra.mxu0 0
      %789 = vmatprep.mubr.bf16.mxu0 0
      %790 = vmatmul.mubr.bf16.gmra.mrb[0].mxu0 %v752
      %v791 = vpop.f32.mrb[0].mxu0
      %v792 = vadd.f32 %v623, %v791
      %v793 = vpop.f32.mrb[0].mxu0
      %v794 = vpop.f32.mrb[0].mxu0
      %v795 = vadd.f32 %v623, %v794
      %v796 = vpop.f32.mrb[0].mxu0
      %797 = vdwg.mxu0
      %v798 = vsel %vm673, %v792, -inf
      %799 = vmax.xlane.f32.xlu0 %v798
      %v800 = vpop.xlane.xlu0 %799
      %v801 = vsel %vm673, %v795, -inf
      %802 = vmax.xlane.f32.xlu0 %v801
      %v803 = vpop.xlane.xlu0 %802
      %v804 = vsub.f32 %v792, %v800
      %v805 = vsub.f32 %v795, %v803
      %v806 = vmul.f32 %v804, 1.442695
      %v807 = vpow.pop %v806
      %v808 = vmul.f32 %v805, 1.442695
      %v809 = vpow.pop %v808
      %v810 = vsel %vm673, %v807, 0.0
      %811 = vadd.xlane.f32.xlu0 %v810
      %v812 = vpop.xlane.xlu0 %811
      %v813 = vsel %vm673, %v809, 0.0
      %814 = vadd.xlane.f32.xlu0 %v813
      %v815 = vpop.xlane.xlu0 %814
      %v816 = vrcp.pop %v812
      %v817 = vrcp.pop %v815
      %v818 = vmul.f32 %v807, %v816
      %v819 = vmul.f32 %v809, %v817
      %v820 = vpack.c.bf16 %v819, %v818
      %821 = vrot.lane.b32.xlu0 %v618, 88
      %v822 = vpop.permute.xlu0 %821
      %v825 = vsel %vm673, %v820, 0
      %827 = vmatprep.subr.bf16.mxu0 0
      %828 = vmatpush1.bf16.msra.mxu0 %v822
      %829 = vmatprep.subr.bf16.mxu0 0
      %830 = vmatpush1.bf16.msra.mxu0 0
      %831 = vmatprep.subr.bf16.mxu0 0
      %832 = vmatpush1.bf16.msra.mxu0 0
      %833 = vmatprep.subr.bf16.mxu0 0
      %834 = vmatpush1.bf16.msra.mxu0 0
      %835 = vmatprep.subr.bf16.mxu0 0
      %836 = vmatpush1.bf16.msra.mxu0 0
      %837 = vmatprep.subr.bf16.mxu0 0
      %838 = vmatpush1.bf16.msra.mxu0 0
      %839 = vmatprep.subr.bf16.mxu0 0
      %840 = vmatpush1.bf16.msra.mxu0 0
      %841 = vmatprep.subr.bf16.mxu0 0
      %842 = vmatpush1.bf16.msra.mxu0 0
      %843 = vmatprep.subr.bf16.mxu0 0
      %844 = vmatpush1.bf16.msra.mxu0 0
      %845 = vmatprep.subr.bf16.mxu0 0
      %846 = vmatpush1.bf16.msra.mxu0 0
      %847 = vmatprep.subr.bf16.mxu0 0
      %848 = vmatpush1.bf16.msra.mxu0 0
      %849 = vmatprep.subr.bf16.mxu0 0
      %850 = vmatpush1.bf16.msra.mxu0 0
      %851 = vmatprep.subr.bf16.mxu0 0
      %852 = vmatpush1.bf16.msra.mxu0 0
      %853 = vmatprep.subr.bf16.mxu0 0
      %854 = vmatpush1.bf16.msra.mxu0 0
      %855 = vmatprep.subr.bf16.mxu0 0
      %856 = vmatpush1.bf16.msra.mxu0 0
      %857 = vmatprep.subr.bf16.mxu0 0
      %858 = vmatpush1.bf16.msra.mxu0 0
      %859 = vmatprep.mubr.bf16.mxu0 0
      %860 = vmatmul.mubr.bf16.gmra.mrb[0].mxu0 %v825
      %v861 = vpop.f32.mrb[0].mxu0
      %v862 = vadd.f32 0.0, %v861
      %v863 = vpop.f32.mrb[0].mxu0
      %v864 = vpop.f32.mrb[0].mxu0
      %v865 = vadd.f32 0.0, %v864
      %v866 = vpop.f32.mrb[0].mxu0
      %867 = vdwg.mxu0
      %v868 = vpack.c.bf16 %v865, %v862
      %v870 = vsel %vm625, %v868, 0
      %vm872 = vcmask 1043456
      %v874 = vsel %vm872, %v614, 0
      %876 = vmatprep.subr.bf16.mxu0 0
      %877 = vmatpush1.bf16.msra.mxu0 %v874
      %878 = vmatprep.subr.bf16.mxu0 0
      %879 = vmatpush1.bf16.msra.mxu0 0
      %880 = vmatprep.subr.bf16.mxu0 0
      %881 = vmatpush1.bf16.msra.mxu0 0
      %882 = vmatprep.subr.bf16.mxu0 0
      %883 = vmatpush1.bf16.msra.mxu0 0
      %884 = vmatprep.subr.bf16.mxu0 0
      %885 = vmatpush1.bf16.msra.mxu0 0
      %886 = vmatprep.subr.bf16.mxu0 0
      %887 = vmatpush1.bf16.msra.mxu0 0
      %888 = vmatprep.subr.bf16.mxu0 0
      %889 = vmatpush1.bf16.msra.mxu0 0
      %890 = vmatprep.subr.bf16.mxu0 0
      %891 = vmatpush1.bf16.msra.mxu0 0
      %892 = vmatprep.subr.bf16.mxu0 0
      %893 = vmatpush1.bf16.msra.mxu0 0
      %894 = vmatprep.subr.bf16.mxu0 0
      %895 = vmatpush1.bf16.msra.mxu0 0
      %896 = vmatprep.subr.bf16.mxu0 0
      %897 = vmatpush1.bf16.msra.mxu0 0
      %898 = vmatprep.subr.bf16.mxu0 0
      %899 = vmatpush1.bf16.msra.mxu0 0
      %900 = vmatprep.subr.bf16.mxu0 0
      %901 = vmatpush1.bf16.msra.mxu0 0
      %902 = vmatprep.subr.bf16.mxu0 0
      %903 = vmatpush1.bf16.msra.mxu0 0
      %904 = vmatprep.subr.bf16.mxu0 0
      %905 = vmatpush1.bf16.msra.mxu0 0
      %906 = vmatprep.subr.bf16.mxu0 0
      %907 = vmatpush1.bf16.msra.mxu0 0
      %908 = vmatprep.mubr.bf16.mxu0 0
      %909 = vmatmul.mubr.bf16.gmra.mrb[0].mxu0 %v870
      %v910 = vpop.f32.mrb[0].mxu0
      %v911 = vadd.f32 0.0, %v910
      %v912 = vpop.f32.mrb[0].mxu0
      %v913 = vpop.f32.mrb[0].mxu0
      %v914 = vadd.f32 0.0, %v913
      %v915 = vpop.f32.mrb[0].mxu0
      %916 = vdwg.mxu0
      %v918 = vsel %vm625, %v745, 0
      %v921 = vsel %vm872, %v613, 0
      %923 = vmatprep.subr.bf16.mxu0 0
      %924 = vmatpush1.bf16.msra.mxu0 %v921
      %925 = vmatprep.subr.bf16.mxu0 0
      %926 = vmatpush1.bf16.msra.mxu0 0
      %927 = vmatprep.subr.bf16.mxu0 0
      %928 = vmatpush1.bf16.msra.mxu0 0
      %929 = vmatprep.subr.bf16.mxu0 0
      %930 = vmatpush1.bf16.msra.mxu0 0
      %931 = vmatprep.subr.bf16.mxu0 0
      %932 = vmatpush1.bf16.msra.mxu0 0
      %933 = vmatprep.subr.bf16.mxu0 0
      %934 = vmatpush1.bf16.msra.mxu0 0
      %935 = vmatprep.subr.bf16.mxu0 0
      %936 = vmatpush1.bf16.msra.mxu0 0
      %937 = vmatprep.subr.bf16.mxu0 0
      %938 = vmatpush1.bf16.msra.mxu0 0
      %939 = vmatprep.subr.bf16.mxu0 0
      %940 = vmatpush1.bf16.msra.mxu0 0
      %941 = vmatprep.subr.bf16.mxu0 0
      %942 = vmatpush1.bf16.msra.mxu0 0
      %943 = vmatprep.subr.bf16.mxu0 0
      %944 = vmatpush1.bf16.msra.mxu0 0
      %945 = vmatprep.subr.bf16.mxu0 0
      %946 = vmatpush1.bf16.msra.mxu0 0
      %947 = vmatprep.subr.bf16.mxu0 0
      %948 = vmatpush1.bf16.msra.mxu0 0
      %949 = vmatprep.subr.bf16.mxu0 0
      %950 = vmatpush1.bf16.msra.mxu0 0
      %951 = vmatprep.subr.bf16.mxu0 0
      %952 = vmatpush1.bf16.msra.mxu0 0
      %953 = vmatprep.subr.bf16.mxu0 0
      %954 = vmatpush1.bf16.msra.mxu0 0
      %955 = vmatprep.mubr.bf16.mxu0 0
      %956 = vmatmul.mubr.bf16.gmra.mrb[0].mxu0 %v918
      %v957 = vpop.f32.mrb[0].mxu0
      %v958 = vadd.f32 %v911, %v957
      %v959 = vpop.f32.mrb[0].mxu0
      %v960 = vpop.f32.mrb[0].mxu0
      %v961 = vadd.f32 %v914, %v960
      %v962 = vpop.f32.mrb[0].mxu0
      %963 = vdwg.mxu0
      %964 = vrot.lane.b32.xlu0 %v617, 112
      %v965 = vpop.permute.xlu0 %964
      %966 = vrot.lane.b32.xlu0 %v618, 112
      %v967 = vpop.permute.xlu0 %966
      %v969 = vsel %vm625, %v965, 0
      %v972 = vsel %vm625, %v967, 0
      %974 = vmatprep.subr.bf16.mxu0 0
      %975 = vmatpush1.bf16.xpose.msra.mxu0 %v972
      %976 = vmatprep.subr.bf16.mxu0 0
      %977 = vmatpush1.bf16.xpose.msra.mxu0 0
      %978 = vmatprep.subr.bf16.mxu0 0
      %979 = vmatpush1.bf16.xpose.msra.mxu0 0
      %980 = vmatprep.subr.bf16.mxu0 0
      %981 = vmatpush1.bf16.xpose.msra.mxu0 0
      %982 = vmatprep.subr.bf16.mxu0 0
      %983 = vmatpush1.bf16.xpose.msra.mxu0 0
      %984 = vmatprep.subr.bf16.mxu0 0
      %985 = vmatpush1.bf16.xpose.msra.mxu0 0
      %986 = vmatprep.subr.bf16.mxu0 0
      %987 = vmatpush1.bf16.xpose.msra.mxu0 0
      %988 = vmatprep.subr.bf16.mxu0 0
      %989 = vmatpush1.bf16.xpose.msra.mxu0 0
      %990 = vmatprep.subr.bf16.mxu0 0
      %991 = vmatpush1.bf16.xpose.msra.mxu0 0
      %992 = vmatprep.subr.bf16.mxu0 0
      %993 = vmatpush1.bf16.xpose.msra.mxu0 0
      %994 = vmatprep.subr.bf16.mxu0 0
      %995 = vmatpush1.bf16.xpose.msra.mxu0 0
      %996 = vmatprep.subr.bf16.mxu0 0
      %997 = vmatpush1.bf16.xpose.msra.mxu0 0
      %998 = vmatprep.subr.bf16.mxu0 0
      %999 = vmatpush1.bf16.xpose.msra.mxu0 0
      %1000 = vmatprep.subr.bf16.mxu0 0
      %1001 = vmatpush1.bf16.xpose.msra.mxu0 0
      %1002 = vmatprep.subr.bf16.mxu0 0
      %1003 = vmatpush1.bf16.xpose.msra.mxu0 0
      %1004 = vmatprep.subr.bf16.mxu0 0
      %1005 = vmatpush1.bf16.xpose.msra.mxu0 0
      %1006 = vmatprep.mubr.bf16.mxu0 0
      %1007 = vmatmul.mubr.bf16.gmra.mrb[0].mxu0 %v969
      %v1008 = vpop.f32.mrb[0].mxu0
      %v1009 = vadd.f32 %v623, %v1008
      %v1010 = vpop.f32.mrb[0].mxu0
      %v1011 = vpop.f32.mrb[0].mxu0
      %v1012 = vadd.f32 %v623, %v1011
      %v1013 = vpop.f32.mrb[0].mxu0
      %1014 = vdwg.mxu0
      %v1015 = vsel %vm673, %v1009, -inf
      %1016 = vmax.xlane.f32.xlu0 %v1015
      %v1017 = vpop.xlane.xlu0 %1016
      %v1018 = vsel %vm673, %v1012, -inf
      %1019 = vmax.xlane.f32.xlu0 %v1018
      %v1020 = vpop.xlane.xlu0 %1019
      %v1021 = vsub.f32 %v1009, %v1017
      %v1022 = vsub.f32 %v1012, %v1020
      %v1023 = vmul.f32 %v1021, 1.442695
      %v1024 = vpow.pop %v1023
      %v1025 = vmul.f32 %v1022, 1.442695
      %v1026 = vpow.pop %v1025
      %v1027 = vsel %vm673, %v1024, 0.0
      %1028 = vadd.xlane.f32.xlu0 %v1027
      %v1029 = vpop.xlane.xlu0 %1028
      %v1030 = vsel %vm673, %v1026, 0.0
      %1031 = vadd.xlane.f32.xlu0 %v1030
      %v1032 = vpop.xlane.xlu0 %1031
      %v1033 = vrcp.pop %v1029
      %v1034 = vrcp.pop %v1032
      %v1035 = vmul.f32 %v1024, %v1033
      %v1036 = vmul.f32 %v1026, %v1034
      %v1037 = vpack.c.bf16 %v1036, %v1035
      %1038 = vrot.lane.b32.xlu0 %v618, 80
      %v1039 = vpop.permute.xlu0 %1038
      %v1042 = vsel %vm673, %v1037, 0
      %1044 = vmatprep.subr.bf16.mxu0 0
      %1045 = vmatpush1.bf16.msra.mxu0 %v1039
      %1046 = vmatprep.subr.bf16.mxu0 0
      %1047 = vmatpush1.bf16.msra.mxu0 0
      %1048 = vmatprep.subr.bf16.mxu0 0
      %1049 = vmatpush1.bf16.msra.mxu0 0
      %1050 = vmatprep.subr.bf16.mxu0 0
      %1051 = vmatpush1.bf16.msra.mxu0 0
      %1052 = vmatprep.subr.bf16.mxu0 0
      %1053 = vmatpush1.bf16.msra.mxu0 0
      %1054 = vmatprep.subr.bf16.mxu0 0
      %1055 = vmatpush1.bf16.msra.mxu0 0
      %1056 = vmatprep.subr.bf16.mxu0 0
      %1057 = vmatpush1.bf16.msra.mxu0 0
      %1058 = vmatprep.subr.bf16.mxu0 0
      %1059 = vmatpush1.bf16.msra.mxu0 0
      %1060 = vmatprep.subr.bf16.mxu0 0
      %1061 = vmatpush1.bf16.msra.mxu0 0
      %1062 = vmatprep.subr.bf16.mxu0 0
      %1063 = vmatpush1.bf16.msra.mxu0 0
      %1064 = vmatprep.subr.bf16.mxu0 0
      %1065 = vmatpush1.bf16.msra.mxu0 0
      %1066 = vmatprep.subr.bf16.mxu0 0
      %1067 = vmatpush1.bf16.msra.mxu0 0
      %1068 = vmatprep.subr.bf16.mxu0 0
      %1069 = vmatpush1.bf16.msra.mxu0 0
      %1070 = vmatprep.subr.bf16.mxu0 0
      %1071 = vmatpush1.bf16.msra.mxu0 0
      %1072 = vmatprep.subr.bf16.mxu0 0
      %1073 = vmatpush1.bf16.msra.mxu0 0
      %1074 = vmatprep.subr.bf16.mxu0 0
      %1075 = vmatpush1.bf16.msra.mxu0 0
      %1076 = vmatprep.mubr.bf16.mxu0 0
      %1077 = vmatmul.mubr.bf16.gmra.mrb[0].mxu0 %v1042
      %v1078 = vpop.f32.mrb[0].mxu0
      %v1079 = vadd.f32 0.0, %v1078
      %v1080 = vpop.f32.mrb[0].mxu0
      %v1081 = vpop.f32.mrb[0].mxu0
      %v1082 = vadd.f32 0.0, %v1081
      %v1083 = vpop.f32.mrb[0].mxu0
      %1084 = vdwg.mxu0
      %v1085 = vpack.c.bf16 %v1082, %v1079
      %v1087 = vsel %vm625, %v1085, 0
      %v1090 = vsel %vm872, %v615, 0
      %1092 = vmatprep.subr.bf16.mxu0 0
      %1093 = vmatpush1.bf16.msra.mxu0 %v1090
      %1094 = vmatprep.subr.bf16.mxu0 0
      %1095 = vmatpush1.bf16.msra.mxu0 0
      %1096 = vmatprep.subr.bf16.mxu0 0
      %1097 = vmatpush1.bf16.msra.mxu0 0
      %1098 = vmatprep.subr.bf16.mxu0 0
      %1099 = vmatpush1.bf16.msra.mxu0 0
      %1100 = vmatprep.subr.bf16.mxu0 0
      %1101 = vmatpush1.bf16.msra.mxu0 0
      %1102 = vmatprep.subr.bf16.mxu0 0
      %1103 = vmatpush1.bf16.msra.mxu0 0
      %1104 = vmatprep.subr.bf16.mxu0 0
      %1105 = vmatpush1.bf16.msra.mxu0 0
      %1106 = vmatprep.subr.bf16.mxu0 0
      %1107 = vmatpush1.bf16.msra.mxu0 0
      %1108 = vmatprep.subr.bf16.mxu0 0
      %1109 = vmatpush1.bf16.msra.mxu0 0
      %1110 = vmatprep.subr.bf16.mxu0 0
      %1111 = vmatpush1.bf16.msra.mxu0 0
      %1112 = vmatprep.subr.bf16.mxu0 0
      %1113 = vmatpush1.bf16.msra.mxu0 0
      %1114 = vmatprep.subr.bf16.mxu0 0
      %1115 = vmatpush1.bf16.msra.mxu0 0
      %1116 = vmatprep.subr.bf16.mxu0 0
      %1117 = vmatpush1.bf16.msra.mxu0 0
      %1118 = vmatprep.subr.bf16.mxu0 0
      %1119 = vmatpush1.bf16.msra.mxu0 0
      %1120 = vmatprep.subr.bf16.mxu0 0
      %1121 = vmatpush1.bf16.msra.mxu0 0
      %1122 = vmatprep.subr.bf16.mxu0 0
      %1123 = vmatpush1.bf16.msra.mxu0 0
      %1124 = vmatprep.mubr.bf16.mxu0 0
      %1125 = vmatmul.mubr.bf16.gmra.mrb[0].mxu0 %v1087
      %v1126 = vpop.f32.mrb[0].mxu0
      %v1127 = vadd.f32 0.0, %v1126
      %v1128 = vpop.f32.mrb[0].mxu0
      %v1129 = vpop.f32.mrb[0].mxu0
      %v1130 = vadd.f32 0.0, %v1129
      %v1131 = vpop.f32.mrb[0].mxu0
      %1132 = vdwg.mxu0
      %v1133 = vadd.f32 %v958, %v1127
      %v1134 = vadd.f32 %v961, %v1130
      %1135 = vrot.lane.b32.xlu0 %v617, 104
      %v1136 = vpop.permute.xlu0 %1135
      %1137 = vrot.lane.b32.xlu0 %v618, 104
      %v1138 = vpop.permute.xlu0 %1137
      %v1140 = vsel %vm625, %v1136, 0
      %v1143 = vsel %vm625, %v1138, 0
      %1145 = vmatprep.subr.bf16.mxu0 0
      %1146 = vmatpush1.bf16.xpose.msra.mxu0 %v1143
      %1147 = vmatprep.subr.bf16.mxu0 0
      %1148 = vmatpush1.bf16.xpose.msra.mxu0 0
      %1149 = vmatprep.subr.bf16.mxu0 0
      %1150 = vmatpush1.bf16.xpose.msra.mxu0 0
      %1151 = vmatprep.subr.bf16.mxu0 0
      %1152 = vmatpush1.bf16.xpose.msra.mxu0 0
      %1153 = vmatprep.subr.bf16.mxu0 0
      %1154 = vmatpush1.bf16.xpose.msra.mxu0 0
      %1155 = vmatprep.subr.bf16.mxu0 0
      %1156 = vmatpush1.bf16.xpose.msra.mxu0 0
      %1157 = vmatprep.subr.bf16.mxu0 0
      %1158 = vmatpush1.bf16.xpose.msra.mxu0 0
      %1159 = vmatprep.subr.bf16.mxu0 0
      %1160 = vmatpush1.bf16.xpose.msra.mxu0 0
      %1161 = vmatprep.subr.bf16.mxu0 0
      %1162 = vmatpush1.bf16.xpose.msra.mxu0 0
      %1163 = vmatprep.subr.bf16.mxu0 0
      %1164 = vmatpush1.bf16.xpose.msra.mxu0 0
      %1165 = vmatprep.subr.bf16.mxu0 0
      %1166 = vmatpush1.bf16.xpose.msra.mxu0 0
      %1167 = vmatprep.subr.bf16.mxu0 0
      %1168 = vmatpush1.bf16.xpose.msra.mxu0 0
      %1169 = vmatprep.subr.bf16.mxu0 0
      %1170 = vmatpush1.bf16.xpose.msra.mxu0 0
      %1171 = vmatprep.subr.bf16.mxu0 0
      %1172 = vmatpush1.bf16.xpose.msra.mxu0 0
      %1173 = vmatprep.subr.bf16.mxu0 0
      %1174 = vmatpush1.bf16.xpose.msra.mxu0 0
      %1175 = vmatprep.subr.bf16.mxu0 0
      %1176 = vmatpush1.bf16.xpose.msra.mxu0 0
      %1177 = vmatprep.mubr.bf16.mxu0 0
      %1178 = vmatmul.mubr.bf16.gmra.mrb[0].mxu0 %v1140
      %v1179 = vpop.f32.mrb[0].mxu0
      %v1180 = vadd.f32 %v623, %v1179
      %v1181 = vpop.f32.mrb[0].mxu0
      %v1182 = vpop.f32.mrb[0].mxu0
      %v1183 = vadd.f32 %v623, %v1182
      %v1184 = vpop.f32.mrb[0].mxu0
      %1185 = vdwg.mxu0
      %v1186 = vsel %vm673, %v1180, -inf
      %1187 = vmax.xlane.f32.xlu0 %v1186
      %v1188 = vpop.xlane.xlu0 %1187
      %v1189 = vsel %vm673, %v1183, -inf
      %1190 = vmax.xlane.f32.xlu0 %v1189
      %v1191 = vpop.xlane.xlu0 %1190
      %v1192 = vsub.f32 %v1180, %v1188
      %v1193 = vsub.f32 %v1183, %v1191
      %v1194 = vmul.f32 %v1192, 1.442695
      %v1195 = vpow.pop %v1194
      %v1196 = vmul.f32 %v1193, 1.442695
      %v1197 = vpow.pop %v1196
      %v1198 = vsel %vm673, %v1195, 0.0
      %1199 = vadd.xlane.f32.xlu0 %v1198
      %v1200 = vpop.xlane.xlu0 %1199
      %v1201 = vsel %vm673, %v1197, 0.0
      %1202 = vadd.xlane.f32.xlu0 %v1201
      %v1203 = vpop.xlane.xlu0 %1202
      %v1204 = vrcp.pop %v1200
      %v1205 = vrcp.pop %v1203
      %v1206 = vmul.f32 %v1195, %v1204
      %v1207 = vmul.f32 %v1197, %v1205
      %v1208 = vpack.c.bf16 %v1207, %v1206
      %1209 = vrot.lane.b32.xlu0 %v618, 72
      %v1210 = vpop.permute.xlu0 %1209
      %v1213 = vsel %vm673, %v1208, 0
      %1215 = vmatprep.subr.bf16.mxu0 0
      %1216 = vmatpush1.bf16.msra.mxu0 %v1210
      %1217 = vmatprep.subr.bf16.mxu0 0
      %1218 = vmatpush1.bf16.msra.mxu0 0
      %1219 = vmatprep.subr.bf16.mxu0 0
      %1220 = vmatpush1.bf16.msra.mxu0 0
      %1221 = vmatprep.subr.bf16.mxu0 0
      %1222 = vmatpush1.bf16.msra.mxu0 0
      %1223 = vmatprep.subr.bf16.mxu0 0
      %1224 = vmatpush1.bf16.msra.mxu0 0
      %1225 = vmatprep.subr.bf16.mxu0 0
      %1226 = vmatpush1.bf16.msra.mxu0 0
      %1227 = vmatprep.subr.bf16.mxu0 0
      %1228 = vmatpush1.bf16.msra.mxu0 0
      %1229 = vmatprep.subr.bf16.mxu0 0
      %1230 = vmatpush1.bf16.msra.mxu0 0
      %1231 = vmatprep.subr.bf16.mxu0 0
      %1232 = vmatpush1.bf16.msra.mxu0 0
      %1233 = vmatprep.subr.bf16.mxu0 0
      %1234 = vmatpush1.bf16.msra.mxu0 0
      %1235 = vmatprep.subr.bf16.mxu0 0
      %1236 = vmatpush1.bf16.msra.mxu0 0
      %1237 = vmatprep.subr.bf16.mxu0 0
      %1238 = vmatpush1.bf16.msra.mxu0 0
      %1239 = vmatprep.subr.bf16.mxu0 0
      %1240 = vmatpush1.bf16.msra.mxu0 0
      %1241 = vmatprep.subr.bf16.mxu0 0
      %1242 = vmatpush1.bf16.msra.mxu0 0
      %1243 = vmatprep.subr.bf16.mxu0 0
      %1244 = vmatpush1.bf16.msra.mxu0 0
      %1245 = vmatprep.subr.bf16.mxu0 0
      %1246 = vmatpush1.bf16.msra.mxu0 0
      %1247 = vmatprep.mubr.bf16.mxu0 0
      %1248 = vmatmul.mubr.bf16.gmra.mrb[0].mxu0 %v1213
      %v1249 = vpop.f32.mrb[0].mxu0
      %v1250 = vadd.f32 0.0, %v1249
      %v1251 = vpop.f32.mrb[0].mxu0
      %v1252 = vpop.f32.mrb[0].mxu0
      %v1253 = vadd.f32 0.0, %v1252
      %v1254 = vpop.f32.mrb[0].mxu0
      %1255 = vdwg.mxu0
      %v1256 = vpack.c.bf16 %v1253, %v1250
      %v1258 = vsel %vm625, %v1256, 0
      %v1261 = vsel %vm872, %v616, 0
      %1263 = vmatprep.subr.bf16.mxu0 0
      %1264 = vmatpush1.bf16.msra.mxu0 %v1261
      %1265 = vmatprep.subr.bf16.mxu0 0
      %1266 = vmatpush1.bf16.msra.mxu0 0
      %1267 = vmatprep.subr.bf16.mxu0 0
      %1268 = vmatpush1.bf16.msra.mxu0 0
      %1269 = vmatprep.subr.bf16.mxu0 0
      %1270 = vmatpush1.bf16.msra.mxu0 0
      %1271 = vmatprep.subr.bf16.mxu0 0
      %1272 = vmatpush1.bf16.msra.mxu0 0
      %1273 = vmatprep.subr.bf16.mxu0 0
      %1274 = vmatpush1.bf16.msra.mxu0 0
      %1275 = vmatprep.subr.bf16.mxu0 0
      %1276 = vmatpush1.bf16.msra.mxu0 0
      %1277 = vmatprep.subr.bf16.mxu0 0
      %1278 = vmatpush1.bf16.msra.mxu0 0
      %1279 = vmatprep.subr.bf16.mxu0 0
      %1280 = vmatpush1.bf16.msra.mxu0 0
      %1281 = vmatprep.subr.bf16.mxu0 0
      %1282 = vmatpush1.bf16.msra.mxu0 0
      %1283 = vmatprep.subr.bf16.mxu0 0
      %1284 = vmatpush1.bf16.msra.mxu0 0
      %1285 = vmatprep.subr.bf16.mxu0 0
      %1286 = vmatpush1.bf16.msra.mxu0 0
      %1287 = vmatprep.subr.bf16.mxu0 0
      %1288 = vmatpush1.bf16.msra.mxu0 0
      %1289 = vmatprep.subr.bf16.mxu0 0
      %1290 = vmatpush1.bf16.msra.mxu0 0
      %1291 = vmatprep.subr.bf16.mxu0 0
      %1292 = vmatpush1.bf16.msra.mxu0 0
      %1293 = vmatprep.subr.bf16.mxu0 0
      %1294 = vmatpush1.bf16.msra.mxu0 0
      %1295 = vmatprep.mubr.bf16.mxu0 0
      %1296 = vmatmul.mubr.bf16.gmra.mrb[0].mxu0 %v1258
      %v1297 = vpop.f32.mrb[0].mxu0
      %v1298 = vadd.f32 0.0, %v1297
      %v1299 = vpop.f32.mrb[0].mxu0
      %v1300 = vpop.f32.mrb[0].mxu0
      %v1301 = vadd.f32 0.0, %v1300
      %v1302 = vpop.f32.mrb[0].mxu0
      %1303 = vdwg.mxu0
      %v1304 = vadd.f32 %v1133, %v1298
      %v1305 = vadd.f32 %v1134, %v1301
      %v1306 = vunpack.c.l.bf16 %v461
      %v1307 = vunpack.c.l.bf16 %v462
      %v1308 = vadd.f32 %v1306, %v1304
      %v1309 = vadd.f32 %v1307, %v1305
      %v1310 = vld [vmem:[%s8] sm:$0x1]
      %v1312 = vlaneseq
      %v1313 = vshrl.u32 %v1312, 7
      %v1314 = vsub.s32 0, %v1313
      %v1315 = vrot.slane %v1310, %v1314
      %v1317 = vadd.f32 %v1308, %v1315
      %v1318 = vadd.f32 %v1309, %v1315
      %v1319 = vsel %vm496, %v1317, 0.0
      %1320 = vadd.xlane.f32.xlu0 %v1319
      %v1321 = vpop.xlane.xlu0 %1320
      %v1322 = vsel %vm496, %v1318, 0.0
      %1323 = vadd.xlane.f32.xlu0 %v1322
      %v1324 = vpop.xlane.xlu0 %1323
      %v1325 = vrcp.pop 32.0
      %v1326 = vmul.f32 %v1321, %v1325
      %v1327 = vmul.f32 %v1324, %v1325
      %v1328 = vsub.f32 %v1317, %v1326
      %v1329 = vsub.f32 %v1318, %v1327
      %v1330 = vmul.f32 %v1328, %v1328
      %v1331 = vmul.f32 %v1329, %v1329
      %v1332 = vsel %vm496, %v1330, 0.0
      %1333 = vadd.xlane.f32.xlu0 %v1332
      %v1334 = vpop.xlane.xlu0 %1333
      %v1335 = vsel %vm496, %v1331, 0.0
      %1336 = vadd.xlane.f32.xlu0 %v1335
      %v1337 = vpop.xlane.xlu0 %1336
      %v1338 = vmul.f32 %v1334, %v1325
      %v1339 = vmul.f32 %v1337, %v1325
      %v1340 = vadd.f32 %v1338, 1e-05
      %v1341 = vadd.f32 %v1339, 1e-05
      %v1342 = vrsqrt.pop %v1340
      %v1343 = vrsqrt.pop %v1341
      %v1344 = vmul.f32 %v1328, %v1342
      %v1345 = vmul.f32 %v1329, %v1343
      %v1346 = vld [vmem:[%s9] sm:$0x1]
      %v1348 = vlaneseq
      %v1349 = vshrl.u32 %v1348, 7
      %v1350 = vsub.s32 0, %v1349
      %v1351 = vrot.slane %v1346, %v1350
      %v1353 = vmul.f32 %v1344, %v1351
      %v1354 = vmul.f32 %v1345, %v1351
      %v1355 = vld [vmem:[%s10] sm:$0x1]
      %v1357 = vlaneseq
      %v1358 = vshrl.u32 %v1357, 7
      %v1359 = vsub.s32 0, %v1358
      %v1360 = vrot.slane %v1355, %v1359
      %v1362 = vadd.f32 %v1353, %v1360
      %v1363 = vadd.f32 %v1354, %v1360
      %v1364 = vpack.c.bf16 %v1363, %v1362
      %v1366 = vunpack.c.l.b16 %v1364
      %v1367 = vunpack.c.h.b16 %v1364
      %v1368 = vpack.c.b16 %v1366, %v1366
      %v1369 = vpack.c.b16 %v1367, %v1367
      %vm1372 = vcmask 257024
      %1373 = vst.msk [vmem:[%s458] sm:$0xf] %vm1372, %v1368
      %1374 = vst.msk [vmem:[%s458 + $0x4] sm:$0xf] %vm1372, %v1369
      %s1375 = smul.u32 2, %s27
      %p1376 = scmp.lt.s32.totalorder %s26, 1
      %s1377 = scalar_select %p1376, %s26, 1
      %p1378 = scmp.lt.s32.totalorder %s1375, 1
      %s1379 = scalar_select %p1378, %s1375, 1
      %s1380 = smul.addr %s1377, 2
      %s1381 = sadd.s32 %s1379, %s1380
      %s1382 = smul.addr %s1381, 4
      %s1383 = scalar_lea.vmem %s11, %s1382
      // Predicated region
      $region65: #{transformer_forward.11} parent=63 // pred_check
        %p1384 = pneg %p302
      $region66: #{transformer_forward.11} parent=63 // pred_check_branch
        %1386 = sbr.rel (%p1384) target = $region68
      $region67: #{transformer_forward.11} parent=63 // pred_region
        %s1387 = smul.u32 2, %s27
      $region68: #{transformer_forward.11} parent=63 // pred_fallthru
        _
    $region64: #{transformer_forward.11} parent=5 // pred_fallthru
      _
    %p1388 = scmp.le.s32.totalorder 2, %s17
    // Predicated region
    $region69: #{transformer_forward.11} parent=5 // pred_check
      %p1389 = pneg %p1388
    $region70: #{transformer_forward.11} parent=5 // pred_check_branch
      %1391 = sbr.rel (%p1389) target = $region72
    $region71: #{transformer_forward.11} parent=5 // pred_region
      %s1392 = ssub.s32 %s17, 2
      // Predicated region
      $region73: #{transformer_forward.11} parent=71 // pred_check
        %p1393 = pneg %p308
      $region74: #{transformer_forward.11} parent=71 // pred_check_branch
        %1395 = sbr.rel (%p1393) target = $region76
      $region75: #{transformer_forward.11} parent=71 // pred_region
        %s1396 = smul.u32 2, %s29
        %p1397 = scmp.lt.s32.totalorder %s28, 1
        %s1398 = scalar_select %p1397, %s28, 1
        %p1399 = scmp.lt.s32.totalorder %s1396, 1
        %s1400 = scalar_select %p1399, %s1396, 1
        %s1401 = smul.addr %s1398, 2
        %s1402 = sadd.s32 %s1400, %s1401
        %s1403 = smul.addr %s1402, 4
        %s1404 = scalar_lea.vmem %s11, %s1403
      $region76: #{transformer_forward.11} parent=71 // pred_fallthru
        _
    $region72: #{transformer_forward.11} parent=5 // pred_fallthru
      _
  $region6: #{transformer_forward.11} parent=0 // loop_footer
    %s21 = sadd.s32 1, %s17
  $region7: #{transformer_forward.11} parent=0 // loop_footer_branch
    %16 = sbr.rel target = $region3
  $region8: #{transformer_forward.11} parent=0 // loop_exit
    _

// kernel: transformer_forward.17
$region0: #{transformer_forward.17}
  #allocation0 [shape = 'u32[]', space=smem, size = 0x4, offset = 0x4, fixed_abs, tag = 'smem constant byte address 0x4 - core index']
  #allocation1 [shape = 'u32[144,128]{1,0:T(1,128)}', space=vmem, size = 0x12000, scoped, tag = 'internal scratch']
  %s0 = inlined_call_operand.vmem [shape: bf16[16,32], index: 0, kind: input, shape index: {}]
  %s1 = inlined_call_operand.vmem [shape: bf16[32,64], index: 1, kind: input, shape index: {}]
  %s2 = inlined_call_operand.vmem [shape: f32[1,64], index: 2, kind: input, shape index: {}]
  %s3 = inlined_call_operand.vmem [shape: bf16[64,32], index: 3, kind: input, shape index: {}]
  %s4 = inlined_call_operand.vmem [shape: f32[1,32], index: 4, kind: input, shape index: {}]
  %s5 = inlined_call_operand.vmem [shape: f32[1,32], index: 5, kind: input, shape index: {}]
  %s6 = inlined_call_operand.vmem [shape: f32[1,32], index: 6, kind: input, shape index: {}]
  %s7 = inlined_call_operand.vmem [shape: bf16[16,32], index: 7, kind: output, shape index: {}]
  %s8 = sld [smem:[#allocation0]]
  $region38: #{transformer_forward.17} parent=0
    _
  %s10 = ssub.s32 1, %s8
  %s11 = scalar_select 0, %s10, %s8
  // Predicated region
  $region2: #{transformer_forward.17} parent=0 // pred_check
    _
  $region3: #{transformer_forward.17} parent=0 // pred_check_branch
    %13 = sbr.rel (0) target = $region5
  $region4: #{transformer_forward.17} parent=0 // pred_region
    _
  $region5: #{transformer_forward.17} parent=0 // pred_fallthru
    _
  // Predicated region
  $region6: #{transformer_forward.17} parent=0 // pred_check
    _
  $region7: #{transformer_forward.17} parent=0 // pred_check_branch
    %15 = sbr.rel (0) target = $region9
  $region8: #{transformer_forward.17} parent=0 // pred_region
    _
  $region9: #{transformer_forward.17} parent=0 // pred_fallthru
    _
  // Predicated region
  $region10: #{transformer_forward.17} parent=0 // pred_check
    _
  $region11: #{transformer_forward.17} parent=0 // pred_check_branch
    %17 = sbr.rel (0) target = $region13
  $region12: #{transformer_forward.17} parent=0 // pred_region
    _
  $region13: #{transformer_forward.17} parent=0 // pred_fallthru
    _
  // Predicated region
  $region14: #{transformer_forward.17} parent=0 // pred_check
    _
  $region15: #{transformer_forward.17} parent=0 // pred_check_branch
    %19 = sbr.rel (0) target = $region17
  $region16: #{transformer_forward.17} parent=0 // pred_region
    _
  $region17: #{transformer_forward.17} parent=0 // pred_fallthru
    _
  // Predicated region
  $region18: #{transformer_forward.17} parent=0 // pred_check
    _
  $region19: #{transformer_forward.17} parent=0 // pred_check_branch
    %21 = sbr.rel (0) target = $region21
  $region20: #{transformer_forward.17} parent=0 // pred_region
    _
  $region21: #{transformer_forward.17} parent=0 // pred_fallthru
    _
  // Predicated region
  $region22: #{transformer_forward.17} parent=0 // pred_check
    _
  $region23: #{transformer_forward.17} parent=0 // pred_check_branch
    %23 = sbr.rel (0) target = $region25
  $region24: #{transformer_forward.17} parent=0 // pred_region
    _
  $region25: #{transformer_forward.17} parent=0 // pred_fallthru
    _
  // Predicated region
  $region26: #{transformer_forward.17} parent=0 // pred_check
    _
  $region27: #{transformer_forward.17} parent=0 // pred_check_branch
    %25 = sbr.rel (0) target = $region29
  $region28: #{transformer_forward.17} parent=0 // pred_region
    _
  $region29: #{transformer_forward.17} parent=0 // pred_fallthru
    _
  %v27 = vld [vmem:[%s0] sm:$0xf]
  %v28 = vld [vmem:[%s0 + $0x4] sm:$0xf]
  %v29 = vld [vmem:[%s1] sm:$0xf]
  %v30 = vld [vmem:[%s1 + $0x4] sm:$0xf]
  %v31 = vld [vmem:[%s1 + $0x8] sm:$0xf]
  %v32 = vld [vmem:[%s1 + $0xc] sm:$0xf]
  %v33 = vld [vmem:[%s2] sm:$0x1]
  %v35 = vlaneseq
  %v36 = vshrl.u32 %v35, 7
  %v37 = vsub.s32 0, %v36
  %v38 = vrot.slane %v33, %v37
  %v42 = vunpack.c.l.b16 %v27
  %v43 = vunpack.c.l.b16 %v28
  %v44 = vpack.c.b16 %v43, %v42
  %v49 = vunpack.c.l.b16 %v29
  %v50 = vunpack.c.l.b16 %v30
  %v51 = vunpack.c.l.b16 %v31
  %v52 = vunpack.c.l.b16 %v32
  %v53 = vpack.c.b16 %v50, %v49
  %v54 = vpack.c.b16 %v52, %v51
  %vm57 = vcmask 261120
  %v59 = vsel %vm57, %v44, 0
  %61 = vmatprep.subr.bf16.mxu0 0
  %62 = vmatpush1.bf16.msra.mxu0 %v53
  %63 = vmatprep.subr.bf16.mxu0 0
  %64 = vmatpush1.bf16.msra.mxu0 %v54
  %65 = vmatprep.subr.bf16.mxu0 0
  %66 = vmatpush1.bf16.msra.mxu0 0
  %67 = vmatprep.subr.bf16.mxu0 0
  %68 = vmatpush1.bf16.msra.mxu0 0
  %69 = vmatprep.subr.bf16.mxu0 0
  %70 = vmatpush1.bf16.msra.mxu0 0
  %71 = vmatprep.subr.bf16.mxu0 0
  %72 = vmatpush1.bf16.msra.mxu0 0
  %73 = vmatprep.subr.bf16.mxu0 0
  %74 = vmatpush1.bf16.msra.mxu0 0
  %75 = vmatprep.subr.bf16.mxu0 0
  %76 = vmatpush1.bf16.msra.mxu0 0
  %77 = vmatprep.subr.bf16.mxu0 0
  %78 = vmatpush1.bf16.msra.mxu0 0
  %79 = vmatprep.subr.bf16.mxu0 0
  %80 = vmatpush1.bf16.msra.mxu0 0
  %81 = vmatprep.subr.bf16.mxu0 0
  %82 = vmatpush1.bf16.msra.mxu0 0
  %83 = vmatprep.subr.bf16.mxu0 0
  %84 = vmatpush1.bf16.msra.mxu0 0
  %85 = vmatprep.subr.bf16.mxu0 0
  %86 = vmatpush1.bf16.msra.mxu0 0
  %87 = vmatprep.subr.bf16.mxu0 0
  %88 = vmatpush1.bf16.msra.mxu0 0
  %89 = vmatprep.subr.bf16.mxu0 0
  %90 = vmatpush1.bf16.msra.mxu0 0
  %91 = vmatprep.subr.bf16.mxu0 0
  %92 = vmatpush1.bf16.msra.mxu0 0
  %93 = vmatprep.mubr.bf16.mxu0 0
  %94 = vmatmul.mubr.bf16.gmra.mrb[0].mxu0 %v59
  %v95 = vpop.f32.mrb[0].mxu0
  %v96 = vadd.f32 %v38, %v95
  %v97 = vpop.f32.mrb[0].mxu0
  %v98 = vpop.f32.mrb[0].mxu0
  %v99 = vadd.f32 %v38, %v98
  %v100 = vpop.f32.mrb[0].mxu0
  %101 = vdwg.mxu0
  %v102 = vmax.f32 %v96, 0.0
  %v103 = vmax.f32 %v99, 0.0
  %v104 = vpack.c.bf16 %v103, %v102
  %v105 = vld [vmem:[%s3] sm:$0xf]
  %v106 = vld [vmem:[%s3 + $0x4] sm:$0xf]
  %v107 = vld [vmem:[%s3 + $0x8] sm:$0xf]
  %v108 = vld [vmem:[%s3 + $0xc] sm:$0xf]
  %v109 = vld [vmem:[%s3 + $0x10] sm:$0xf]
  %v110 = vld [vmem:[%s3 + $0x14] sm:$0xf]
  %v111 = vld [vmem:[%s3 + $0x18] sm:$0xf]
  %v112 = vld [vmem:[%s3 + $0x1c] sm:$0xf]
  %v113 = vld [vmem:[%s4] sm:$0x1]
  %v115 = vlaneseq
  %v116 = vshrl.u32 %v115, 7
  %v117 = vsub.s32 0, %v116
  %v118 = vrot.slane %v113, %v117
  %v128 = vunpack.c.l.b16 %v105
  %v129 = vunpack.c.l.b16 %v106
  %v130 = vunpack.c.l.b16 %v107
  %v131 = vunpack.c.l.b16 %v108
  %v132 = vunpack.c.l.b16 %v109
  %v133 = vunpack.c.l.b16 %v110
  %v134 = vunpack.c.l.b16 %v111
  %v135 = vunpack.c.l.b16 %v112
  %v136 = vpack.c.b16 %v129, %v128
  %v137 = vpack.c.b16 %v131, %v130
  %v138 = vpack.c.b16 %v133, %v132
  %v139 = vpack.c.b16 %v135, %v134
  %vm144 = vcmask 523264
  %v146 = vsel %vm144, %v104, 0
  %148 = vmatprep.subr.bf16.mxu0 0
  %149 = vmatpush1.bf16.msra.mxu0 %v136
  %150 = vmatprep.subr.bf16.mxu0 0
  %151 = vmatpush1.bf16.msra.mxu0 %v137
  %152 = vmatprep.subr.bf16.mxu0 0
  %153 = vmatpush1.bf16.msra.mxu0 %v138
  %154 = vmatprep.subr.bf16.mxu0 0
  %155 = vmatpush1.bf16.msra.mxu0 %v139
  %156 = vmatprep.subr.bf16.mxu0 0
  %157 = vmatpush1.bf16.msra.mxu0 0
  %158 = vmatprep.subr.bf16.mxu0 0
  %159 = vmatpush1.bf16.msra.mxu0 0
  %160 = vmatprep.subr.bf16.mxu0 0
  %161 = vmatpush1.bf16.msra.mxu0 0
  %162 = vmatprep.subr.bf16.mxu0 0
  %163 = vmatpush1.bf16.msra.mxu0 0
  %164 = vmatprep.subr.bf16.mxu0 0
  %165 = vmatpush1.bf16.msra.mxu0 0
  %166 = vmatprep.subr.bf16.mxu0 0
  %167 = vmatpush1.bf16.msra.mxu0 0
  %168 = vmatprep.subr.bf16.mxu0 0
  %169 = vmatpush1.bf16.msra.mxu0 0
  %170 = vmatprep.subr.bf16.mxu0 0
  %171 = vmatpush1.bf16.msra.mxu0 0
  %172 = vmatprep.subr.bf16.mxu0 0
  %173 = vmatpush1.bf16.msra.mxu0 0
  %174 = vmatprep.subr.bf16.mxu0 0
  %175 = vmatpush1.bf16.msra.mxu0 0
  %176 = vmatprep.subr.bf16.mxu0 0
  %177 = vmatpush1.bf16.msra.mxu0 0
  %178 = vmatprep.subr.bf16.mxu0 0
  %179 = vmatpush1.bf16.msra.mxu0 0
  %180 = vmatprep.mubr.bf16.mxu0 0
  %181 = vmatmul.mubr.bf16.gmra.mrb[0].mxu0 %v146
  %v182 = vpop.f32.mrb[0].mxu0
  %v183 = vadd.f32 %v118, %v182
  %v184 = vpop.f32.mrb[0].mxu0
  %v185 = vpop.f32.mrb[0].mxu0
  %v186 = vadd.f32 %v118, %v185
  %v187 = vpop.f32.mrb[0].mxu0
  %188 = vdwg.mxu0
  %v189 = vunpack.c.l.bf16 %v27
  %v190 = vunpack.c.l.bf16 %v28
  %v191 = vadd.f32 %v189, %v183
  %v192 = vadd.f32 %v190, %v186
  %v193 = vsel %vm57, %v191, 0.0
  %194 = vadd.xlane.f32.xlu0 %v193
  %v195 = vpop.xlane.xlu0 %194
  %v196 = vsel %vm57, %v192, 0.0
  %197 = vadd.xlane.f32.xlu0 %v196
  %v198 = vpop.xlane.xlu0 %197
  %v199 = vrcp.pop 32.0
  %v200 = vmul.f32 %v195, %v199
  %v201 = vmul.f32 %v198, %v199
  %v202 = vsub.f32 %v191, %v200
  %v203 = vsub.f32 %v192, %v201
  %v204 = vmul.f32 %v202, %v202
  %v205 = vmul.f32 %v203, %v203
  %v206 = vsel %vm57, %v204, 0.0
  %207 = vadd.xlane.f32.xlu0 %v206
  %v208 = vpop.xlane.xlu0 %207
  %v209 = vsel %vm57, %v205, 0.0
  %210 = vadd.xlane.f32.xlu0 %v209
  %v211 = vpop.xlane.xlu0 %210
  %v212 = vmul.f32 %v208, %v199
  %v213 = vmul.f32 %v211, %v199
  %v214 = vadd.f32 %v212, 1e-05
  %v215 = vadd.f32 %v213, 1e-05
  %v216 = vrsqrt.pop %v214
  %v217 = vrsqrt.pop %v215
  %v218 = vmul.f32 %v202, %v216
  %v219 = vmul.f32 %v203, %v217
  %v220 = vld [vmem:[%s5] sm:$0x1]
  %v222 = vlaneseq
  %v223 = vshrl.u32 %v222, 7
  %v224 = vsub.s32 0, %v223
  %v225 = vrot.slane %v220, %v224
  %v227 = vmul.f32 %v218, %v225
  %v228 = vmul.f32 %v219, %v225
  %v229 = vld [vmem:[%s6] sm:$0x1]
  %v231 = vlaneseq
  %v232 = vshrl.u32 %v231, 7
  %v233 = vsub.s32 0, %v232
  %v234 = vrot.slane %v229, %v233
  %v236 = vadd.f32 %v227, %v234
  %v237 = vadd.f32 %v228, %v234
  %v238 = vpack.c.bf16 %v237, %v236
  %v240 = vunpack.c.l.b16 %v238
  %v241 = vunpack.c.h.b16 %v238
  %v242 = vpack.c.b16 %v240, %v240
  %v243 = vpack.c.b16 %v241, %v241
  %vm246 = vcmask 257024
  %247 = vst.msk [vmem:[%s7] sm:$0xf] %vm246, %v242
  %248 = vst.msk [vmem:[%s7 + $0x4] sm:$0xf] %vm246, %v243
  // Predicated region
  $region30: #{transformer_forward.17} parent=0 // pred_check
    _
  $region31: #{transformer_forward.17} parent=0 // pred_check_branch
    %250 = sbr.rel (0) target = $region33
  $region32: #{transformer_forward.17} parent=0 // pred_region
    _
  $region33: #{transformer_forward.17} parent=0 // pred_fallthru
    _
  // Predicated region
  $region34: #{transformer_forward.17} parent=0 // pred_check
    _
  $region35: #{transformer_forward.17} parent=0 // pred_check_branch
    %252 = sbr.rel (0) target = $region37
  $region36: #{transformer_forward.17} parent=0 // pred_region
    _
  $region37: #{transformer_forward.17} parent=0 // pred_fallthru
    _

// kernel: transformer_forward.15
$region0: #{transformer_forward.15}
  #allocation0 [shape = 'u32[]', space=smem, size = 0x4, offset = 0x4, fixed_abs, tag = 'smem constant byte address 0x4 - core index']
  #allocation1 [shape = 'u32[144,128]{1,0:T(1,128)}', space=vmem, size = 0x12000, scoped, tag = 'internal scratch']
  %s0 = inlined_call_operand.vmem [shape: bf16[2,8,32], index: 0, kind: input, shape index: {}, may-alias: {0,1}]
  %s1 = inlined_call_operand.vmem [shape: bf16[2,8,32], index: 1, kind: input, shape index: {}, may-alias: {0,1}]
  %s2 = inlined_call_operand.vmem [shape: f32[2,8,8], index: 2, kind: input, shape index: {}]
  %s3 = inlined_call_operand.vmem [shape: bf16[32,32], index: 3, kind: input, shape index: {}]
  %s4 = inlined_call_operand.vmem [shape: f32[1,32], index: 4, kind: input, shape index: {}]
  %s5 = inlined_call_operand.vmem [shape: bf16[32,64], index: 5, kind: input, shape index: {}]
  %s6 = inlined_call_operand.vmem [shape: f32[1,64], index: 6, kind: input, shape index: {}]
  %s7 = inlined_call_operand.vmem [shape: bf16[32,32], index: 7, kind: input, shape index: {}]
  %s8 = inlined_call_operand.vmem [shape: f32[1,32], index: 8, kind: input, shape index: {}]
  %s9 = inlined_call_operand.vmem [shape: f32[1,32], index: 9, kind: input, shape index: {}]
  %s10 = inlined_call_operand.vmem [shape: f32[1,32], index: 10, kind: input, shape index: {}]
  %s11 = inlined_call_operand.vmem [shape: bf16[2,8,32], index: 11, kind: output, shape index: {}]
  %s12 = sld [smem:[#allocation0]]
  $region77: #{transformer_forward.15} parent=0
    _
  %s14 = ssub.s32 1, %s12
  %s15 = scalar_select 0, %s14, %s12
  loop: start=0, step=1, limit=4
  $region2: #{transformer_forward.15} parent=0 // loop_pre_header
    _
  $region3: #{transformer_forward.15} parent=0 // loop_header
    %s17 = sphi 0, %s21
    %p18 = scmp.ge.s32.totalorder %s17, 4
    %s24 = sphi 0, %s36
    %s25 = sphi 0, %s32
    %s26 = sphi 0, %s24
    %s27 = sphi 0, %s25
    %s28 = sphi 0, %s26
    %s29 = sphi 0, %s27
    %s41 = sphi 0, %s43
    %s44 = sphi 0, %s41
    %s45 = sphi 0, %s44
    %s61 = sphi 0, %s45
    %s67 = sphi 0, %s69
    %s70 = sphi 0, %s67
    %s71 = sphi 0, %s70
    %s87 = sphi 0, %s71
    %s95 = sphi 0, %s97
    %s98 = sphi 0, %s95
    %s99 = sphi 0, %s98
    %s115 = sphi 0, %s99
    %s119 = sphi 0, %s119
    %s121 = sphi 0, %s119
    %s122 = sphi 0, %s121
    %s136 = sphi 0, %s122
    %s140 = sphi 0, %s140
    %s142 = sphi 0, %s140
    %s143 = sphi 0, %s142
    %s157 = sphi 0, %s143
    %s161 = sphi 0, %s161
    %s163 = sphi 0, %s161
    %s164 = sphi 0, %s163
    %s178 = sphi 0, %s164
    %s182 = sphi 0, %s182
    %s184 = sphi 0, %s182
    %s185 = sphi 0, %s184
    %s199 = sphi 0, %s185
    %s203 = sphi 0, %s203
    %s205 = sphi 0, %s203
    %s206 = sphi 0, %s205
    %s220 = sphi 0, %s206
    %s224 = sphi 0, %s224
    %s226 = sphi 0, %s224
    %s227 = sphi 0, %s226
    %s241 = sphi 0, %s227
    %s245 = sphi 0, %s245
    %s247 = sphi 0, %s245
    %s248 = sphi 0, %s247
    %s262 = sphi 0, %s248
    %s266 = sphi 0, %s266
    %s268 = sphi 0, %s266
    %s269 = sphi 0, %s268
    %s283 = sphi 0, %s269
    %s291 = sphi 0, %s293
    %s294 = sphi 0, %s291
    %s295 = sphi 0, %s294
    %s311 = sphi 0, %s295
  $region4: #{transformer_forward.15} parent=0 // loop_header_branch
    %20 = sbr.rel (%p18) target = $region8
  $region5: #{transformer_forward.15} parent=0 // loop_body
    %s22 = ssub.s32 %s17, 1
    %s23 = ssub.s32 %s17, 2
    %s30 = sadd.s32 1, %s25
    %p31 = scmp.ge.s32.totalorder %s30, 1
    %s32 = scalar_select %p31, 0, %s30
    %s33 = sadd.s32 1, %s24
    %s34 = scalar_select %p31, %s33, %s24
    %p35 = scmp.ge.s32.totalorder %s34, 2
    %s36 = scalar_select %p35, 0, %s34
    %s37 = ssub.s32 %s24, %s36
    %s38 = ssub.s32 %s25, %s32
    %s39 = sor.u32 %s37, %s38
    %p40 = scmp.eq.s32.totalorder %s39, 0
    %s42 = sadd.s32 %s41, 1
    %s43 = scalar_select %p40, %s41, %s42
    %p46 = pneg %p40
    %p47 = scmp.eq.s32.totalorder %s17, 1
    %p48 = por %p46, %p47
    %p49 = scmp.ne.s32.totalorder %s41, %s44
    %p50 = scmp.eq.s32.totalorder %s17, 0
    %p51 = por %p49, %p50
    %p52 = scmp.ne.s32.totalorder %s41, %s44
    %p53 = scmp.eq.s32.totalorder %s22, 1
    %p54 = por %p52, %p53
    %p55 = scmp.ne.s32.totalorder %s44, %s45
    %p56 = scmp.eq.s32.totalorder %s22, 0
    %p57 = por %p55, %p56
    %p58 = scmp.ne.s32.totalorder %s44, %s45
    %p59 = scmp.eq.s32.totalorder %s23, 1
    %p60 = por %p58, %p59
    %p62 = scmp.ne.s32.totalorder %s45, %s61
    %p63 = scmp.eq.s32.totalorder %s23, 0
    %p64 = por %p62, %p63
    %s65 = ssub.s32 %s24, %s36
    %p66 = scmp.eq.s32.totalorder %s65, 0
    %s68 = sadd.s32 %s67, 1
    %s69 = scalar_select %p66, %s67, %s68
    %p72 = pneg %p66
    %p73 = scmp.eq.s32.totalorder %s17, 1
    %p74 = por %p72, %p73
    %p75 = scmp.ne.s32.totalorder %s67, %s70
    %p76 = scmp.eq.s32.totalorder %s17, 0
    %p77 = por %p75, %p76
    %p78 = scmp.ne.s32.totalorder %s67, %s70
    %p79 = scmp.eq.s32.totalorder %s22, 1
    %p80 = por %p78, %p79
    %p81 = scmp.ne.s32.totalorder %s70, %s71
    %p82 = scmp.eq.s32.totalorder %s22, 0
    %p83 = por %p81, %p82
    %p84 = scmp.ne.s32.totalorder %s70, %s71
    %p85 = scmp.eq.s32.totalorder %s23, 1
    %p86 = por %p84, %p85
    %p88 = scmp.ne.s32.totalorder %s71, %s87
    %p89 = scmp.eq.s32.totalorder %s23, 0
    %p90 = por %p88, %p89
    %s91 = ssub.s32 %s24, %s36
    %s92 = ssub.s32 %s25, %s32
    %s93 = sor.u32 %s91, %s92
    %p94 = scmp.eq.s32.totalorder %s93, 0
    %s96 = sadd.s32 %s95, 1
    %s97 = scalar_select %p94, %s95, %s96
    %p100 = pneg %p94
    %p101 = scmp.eq.s32.totalorder %s17, 1
    %p102 = por %p100, %p101
    %p103 = scmp.ne.s32.totalorder %s95, %s98
    %p104 = scmp.eq.s32.totalorder %s17, 0
    %p105 = por %p103, %p104
    %p106 = scmp.ne.s32.totalorder %s95, %s98
    %p107 = scmp.eq.s32.totalorder %s22, 1
    %p108 = por %p106, %p107
    %p109 = scmp.ne.s32.totalorder %s98, %s99
    %p110 = scmp.eq.s32.totalorder %s22, 0
    %p111 = por %p109, %p110
    %p112 = scmp.ne.s32.totalorder %s98, %s99
    %p113 = scmp.eq.s32.totalorder %s23, 1
    %p114 = por %p112, %p113
    %p116 = scmp.ne.s32.totalorder %s99, %s115
    %p117 = scmp.eq.s32.totalorder %s23, 0
    %p118 = por %p116, %p117
    %s120 = sadd.s32 %s119, 1
    %p123 = scmp.eq.s32.totalorder %s17, 1
    %p124 = scmp.ne.s32.totalorder %s119, %s121
    %p125 = scmp.eq.s32.totalorder %s17, 0
    %p126 = por %p124, %p125
    %p127 = scmp.ne.s32.totalorder %s119, %s121
    %p128 = scmp.eq.s32.totalorder %s22, 1
    %p129 = por %p127, %p128
    %p130 = scmp.ne.s32.totalorder %s121, %s122
    %p131 = scmp.eq.s32.totalorder %s22, 0
    %p132 = por %p130, %p131
    %p133 = scmp.ne.s32.totalorder %s121, %s122
    %p134 = scmp.eq.s32.totalorder %s23, 1
    %p135 = por %p133, %p134
    %p137 = scmp.ne.s32.totalorder %s122, %s136
    %p138 = scmp.eq.s32.totalorder %s23, 0
    %p139 = por %p137, %p138
    %s141 = sadd.s32 %s140, 1
    %p144 = scmp.eq.s32.totalorder %s17, 1
    %p145 = scmp.ne.s32.totalorder %s140, %s142
    %p146 = scmp.eq.s32.totalorder %s17, 0
    %p147 = por %p145, %p146
    %p148 = scmp.ne.s32.totalorder %s140, %s142
    %p149 = scmp.eq.s32.totalorder %s22, 1
    %p150 = por %p148, %p149
    %p151 = scmp.ne.s32.totalorder %s142, %s143
    %p152 = scmp.eq.s32.totalorder %s22, 0
    %p153 = por %p151, %p152
    %p154 = scmp.ne.s32.totalorder %s142, %s143
    %p155 = scmp.eq.s32.totalorder %s23, 1
    %p156 = por %p154, %p155
    %p158 = scmp.ne.s32.totalorder %s143, %s157
    %p159 = scmp.eq.s32.totalorder %s23, 0
    %p160 = por %p158, %p159
    %s162 = sadd.s32 %s161, 1
    %p165 = scmp.eq.s32.totalorder %s17, 1
    %p166 = scmp.ne.s32.totalorder %s161, %s163
    %p167 = scmp.eq.s32.totalorder %s17, 0
    %p168 = por %p166, %p167
    %p169 = scmp.ne.s32.totalorder %s161, %s163
    %p170 = scmp.eq.s32.totalorder %s22, 1
    %p171 = por %p169, %p170
    %p172 = scmp.ne.s32.totalorder %s163, %s164
    %p173 = scmp.eq.s32.totalorder %s22, 0
    %p174 = por %p172, %p173
    %p175 = scmp.ne.s32.totalorder %s163, %s164
    %p176 = scmp.eq.s32.totalorder %s23, 1
    %p177 = por %p175, %p176
    %p179 = scmp.ne.s32.totalorder %s164, %s178
    %p180 = scmp.eq.s32.totalorder %s23, 0
    %p181 = por %p179, %p180
    %s183 = sadd.s32 %s182, 1
    %p186 = scmp.eq.s32.totalorder %s17, 1
    %p187 = scmp.ne.s32.totalorder %s182, %s184
    %p188 = scmp.eq.s32.totalorder %s17, 0
    %p189 = por %p187, %p188
    %p190 = scmp.ne.s32.totalorder %s182, %s184
    %p191 = scmp.eq.s32.totalorder %s22, 1
    %p192 = por %p190, %p191
    %p193 = scmp.ne.s32.totalorder %s184, %s185
    %p194 = scmp.eq.s32.totalorder %s22, 0
    %p195 = por %p193, %p194
    %p196 = scmp.ne.s32.totalorder %s184, %s185
    %p197 = scmp.eq.s32.totalorder %s23, 1
    %p198 = por %p196, %p197
    %p200 = scmp.ne.s32.totalorder %s185, %s199
    %p201 = scmp.eq.s32.totalorder %s23, 0
    %p202 = por %p200, %p201
    %s204 = sadd.s32 %s203, 1
    %p207 = scmp.eq.s32.totalorder %s17, 1
    %p208 = scmp.ne.s32.totalorder %s203, %s205
    %p209 = scmp.eq.s32.totalorder %s17, 0
    %p210 = por %p208, %p209
    %p211 = scmp.ne.s32.totalorder %s203, %s205
    %p212 = scmp.eq.s32.totalorder %s22, 1
    %p213 = por %p211, %p212
    %p214 = scmp.ne.s32.totalorder %s205, %s206
    %p215 = scmp.eq.s32.totalorder %s22, 0
    %p216 = por %p214, %p215
    %p217 = scmp.ne.s32.totalorder %s205, %s206
    %p218 = scmp.eq.s32.totalorder %s23, 1
    %p219 = por %p217, %p218
    %p221 = scmp.ne.s32.totalorder %s206, %s220
    %p222 = scmp.eq.s32.totalorder %s23, 0
    %p223 = por %p221, %p222
    %s225 = sadd.s32 %s224, 1
    %p228 = scmp.eq.s32.totalorder %s17, 1
    %p229 = scmp.ne.s32.totalorder %s224, %s226
    %p230 = scmp.eq.s32.totalorder %s17, 0
    %p231 = por %p229, %p230
    %p232 = scmp.ne.s32.totalorder %s224, %s226
    %p233 = scmp.eq.s32.totalorder %s22, 1
    %p234 = por %p232, %p233
    %p235 = scmp.ne.s32.totalorder %s226, %s227
    %p236 = scmp.eq.s32.totalorder %s22, 0
    %p237 = por %p235, %p236
    %p238 = scmp.ne.s32.totalorder %s226, %s227
    %p239 = scmp.eq.s32.totalorder %s23, 1
    %p240 = por %p238, %p239
    %p242 = scmp.ne.s32.totalorder %s227, %s241
    %p243 = scmp.eq.s32.totalorder %s23, 0
    %p244 = por %p242, %p243
    %s246 = sadd.s32 %s245, 1
    %p249 = scmp.eq.s32.totalorder %s17, 1
    %p250 = scmp.ne.s32.totalorder %s245, %s247
    %p251 = scmp.eq.s32.totalorder %s17, 0
    %p252 = por %p250, %p251
    %p253 = scmp.ne.s32.totalorder %s245, %s247
    %p254 = scmp.eq.s32.totalorder %s22, 1
    %p255 = por %p253, %p254
    %p256 = scmp.ne.s32.totalorder %s247, %s248
    %p257 = scmp.eq.s32.totalorder %s22, 0
    %p258 = por %p256, %p257
    %p259 = scmp.ne.s32.totalorder %s247, %s248
    %p260 = scmp.eq.s32.totalorder %s23, 1
    %p261 = por %p259, %p260
    %p263 = scmp.ne.s32.totalorder %s248, %s262
    %p264 = scmp.eq.s32.totalorder %s23, 0
    %p265 = por %p263, %p264
    %s267 = sadd.s32 %s266, 1
    %p270 = scmp.eq.s32.totalorder %s17, 1
    %p271 = scmp.ne.s32.totalorder %s266, %s268
    %p272 = scmp.eq.s32.totalorder %s17, 0
    %p273 = por %p271, %p272
    %p274 = scmp.ne.s32.totalorder %s266, %s268
    %p275 = scmp.eq.s32.totalorder %s22, 1
    %p276 = por %p274, %p275
    %p277 = scmp.ne.s32.totalorder %s268, %s269
    %p278 = scmp.eq.s32.totalorder %s22, 0
    %p279 = por %p277, %p278
    %p280 = scmp.ne.s32.totalorder %s268, %s269
    %p281 = scmp.eq.s32.totalorder %s23, 1
    %p282 = por %p280, %p281
    %p284 = scmp.ne.s32.totalorder %s269, %s283
    %p285 = scmp.eq.s32.totalorder %s23, 0
    %p286 = por %p284, %p285
    %s287 = ssub.s32 %s24, %s36
    %s288 = ssub.s32 %s25, %s32
    %s289 = sor.u32 %s287, %s288
    %p290 = scmp.eq.s32.totalorder %s289, 0
    %s292 = sadd.s32 %s291, 1
    %s293 = scalar_select %p290, %s291, %s292
    %p296 = pneg %p290
    %p297 = scmp.eq.s32.totalorder %s17, 1
    %p298 = por %p296, %p297
    %p299 = scmp.ne.s32.totalorder %s291, %s294
    %p300 = scmp.eq.s32.totalorder %s17, 0
    %p301 = por %p299, %p300
    %p302 = scmp.ne.s32.totalorder %s291, %s294
    %p303 = scmp.eq.s32.totalorder %s22, 1
    %p304 = por %p302, %p303
    %p305 = scmp.ne.s32.totalorder %s294, %s295
    %p306 = scmp.eq.s32.totalorder %s22, 0
    %p307 = por %p305, %p306
    %p308 = scmp.ne.s32.totalorder %s294, %s295
    %p309 = scmp.eq.s32.totalorder %s23, 1
    %p310 = por %p308, %p309
    %p312 = scmp.ne.s32.totalorder %s295, %s311
    %p313 = scmp.eq.s32.totalorder %s23, 0
    %p314 = por %p312, %p313
    %p315 = scmp.le.s32.totalorder 1, %s17
    %p316 = scmp.lt.s32.totalorder %s17, 3
    %p317 = pnand %p315, %p316
    %p318 = pneg %p317
    // Predicated region
    $region9: #{transformer_forward.15} parent=5 // pred_check
      _
    $region10: #{transformer_forward.15} parent=5 // pred_check_branch
      %320 = sbr.rel (%p317) target = $region12
    $region11: #{transformer_forward.15} parent=5 // pred_region
      %s321 = ssub.s32 %s17, 1
      // Predicated region
      $region13: #{transformer_forward.15} parent=11 // pred_check
        %p322 = pneg %p132
      $region14: #{transformer_forward.15} parent=11 // pred_check_branch
        %324 = sbr.rel (%p322) target = $region16
      $region15: #{transformer_forward.15} parent=11 // pred_region
        _
      $region16: #{transformer_forward.15} parent=11 // pred_fallthru
        _
      // Predicated region
      $region17: #{transformer_forward.15} parent=11 // pred_check
        %p325 = pneg %p153
      $region18: #{transformer_forward.15} parent=11 // pred_check_branch
        %327 = sbr.rel (%p325) target = $region20
      $region19: #{transformer_forward.15} parent=11 // pred_region
        _
      $region20: #{transformer_forward.15} parent=11 // pred_fallthru
        _
      // Predicated region
      $region21: #{transformer_forward.15} parent=11 // pred_check
        %p328 = pneg %p174
      $region22: #{transformer_forward.15} parent=11 // pred_check_branch
        %330 = sbr.rel (%p328) target = $region24
      $region23: #{transformer_forward.15} parent=11 // pred_region
        _
      $region24: #{transformer_forward.15} parent=11 // pred_fallthru
        _
      // Predicated region
      $region25: #{transformer_forward.15} parent=11 // pred_check
        %p331 = pneg %p195
      $region26: #{transformer_forward.15} parent=11 // pred_check_branch
        %333 = sbr.rel (%p331) target = $region28
      $region27: #{transformer_forward.15} parent=11 // pred_region
        _
      $region28: #{transformer_forward.15} parent=11 // pred_fallthru
        _
      // Predicated region
      $region29: #{transformer_forward.15} parent=11 // pred_check
        %p334 = pneg %p216
      $region30: #{transformer_forward.15} parent=11 // pred_check_branch
        %336 = sbr.rel (%p334) target = $region32
      $region31: #{transformer_forward.15} parent=11 // pred_region
        _
      $region32: #{transformer_forward.15} parent=11 // pred_fallthru
        _
      // Predicated region
      $region33: #{transformer_forward.15} parent=11 // pred_check
        %p337 = pneg %p237
      $region34: #{transformer_forward.15} parent=11 // pred_check_branch
        %339 = sbr.rel (%p337) target = $region36
      $region35: #{transformer_forward.15} parent=11 // pred_region
        _
      $region36: #{transformer_forward.15} parent=11 // pred_fallthru
        _
      // Predicated region
      $region37: #{transformer_forward.15} parent=11 // pred_check
        %p340 = pneg %p258
      $region38: #{transformer_forward.15} parent=11 // pred_check_branch
        %342 = sbr.rel (%p340) target = $region40
      $region39: #{transformer_forward.15} parent=11 // pred_region
        _
      $region40: #{transformer_forward.15} parent=11 // pred_fallthru
        _
      // Predicated region
      $region41: #{transformer_forward.15} parent=11 // pred_check
        %p343 = pneg %p279
      $region42: #{transformer_forward.15} parent=11 // pred_check_branch
        %345 = sbr.rel (%p343) target = $region44
      $region43: #{transformer_forward.15} parent=11 // pred_region
        _
      $region44: #{transformer_forward.15} parent=11 // pred_fallthru
        _
    $region12: #{transformer_forward.15} parent=5 // pred_fallthru
      _
    %p346 = scmp.lt.s32.totalorder %s17, 2
    // Predicated region
    $region45: #{transformer_forward.15} parent=5 // pred_check
      %p347 = pneg %p346
    $region46: #{transformer_forward.15} parent=5 // pred_check_branch
      %349 = sbr.rel (%p347) target = $region48
    $region47: #{transformer_forward.15} parent=5 // pred_region
      // Predicated region
      $region49: #{transformer_forward.15} parent=47 // pred_check
        %p350 = pneg %p51
      $region50: #{transformer_forward.15} parent=47 // pred_check_branch
        %352 = sbr.rel (%p350) target = $region52
      $region51: #{transformer_forward.15} parent=47 // pred_region
        %p353 = scmp.lt.s32.totalorder %s24, 1
        %s354 = scalar_select %p353, %s24, 1
        %p355 = scmp.lt.s32.totalorder %s25, 0
        %s356 = scalar_select %p355, %s25, 0
        %s357 = sadd.s32 %s356, %s354
        %s358 = smul.addr %s357, 4
        %s359 = scalar_lea.vmem %s0, %s358
      $region52: #{transformer_forward.15} parent=47 // pred_fallthru
        _
      // Predicated region
      $region53: #{transformer_forward.15} parent=47 // pred_check
        %p360 = pneg %p77
      $region54: #{transformer_forward.15} parent=47 // pred_check_branch
        %362 = sbr.rel (%p360) target = $region56
      $region55: #{transformer_forward.15} parent=47 // pred_region
        %p363 = scmp.lt.s32.totalorder %s24, 1
        %s364 = scalar_select %p363, %s24, 1
        %s365 = smul.addr %s364, 4
        %s366 = scalar_lea.vmem %s1, %s365
      $region56: #{transformer_forward.15} parent=47 // pred_fallthru
        _
      // Predicated region
      $region57: #{transformer_forward.15} parent=47 // pred_check
        %p367 = pneg %p105
      $region58: #{transformer_forward.15} parent=47 // pred_check_branch
        %369 = sbr.rel (%p367) target = $region60
      $region59: #{transformer_forward.15} parent=47 // pred_region
        %p370 = scmp.lt.s32.totalorder %s24, 1
        %s371 = scalar_select %p370, %s24, 1
        %p372 = scmp.lt.s32.totalorder %s25, 0
        %s373 = scalar_select %p372, %s25, 0
        %s374 = sadd.s32 %s373, %s371
        %s375 = smul.addr %s374, 8
        %s376 = scalar_lea.vmem %s2, %s375
      $region60: #{transformer_forward.15} parent=47 // pred_fallthru
        _
    $region48: #{transformer_forward.15} parent=5 // pred_fallthru
      _
    %p377 = scmp.le.s32.totalorder 1, %s17
    %p378 = scmp.lt.s32.totalorder %s17, 3
    %p379 = pnand %p377, %p378
    %p380 = pneg %p379
    // Predicated region
    $region61: #{transformer_forward.15} parent=5 // pred_check
      _
    $region62: #{transformer_forward.15} parent=5 // pred_check_branch
      %382 = sbr.rel (%p379) target = $region64
    $region63: #{transformer_forward.15} parent=5 // pred_region
      %s383 = ssub.s32 %s17, 1
      %p384 = scmp.lt.s32.totalorder %s26, 1
      %s385 = scalar_select %p384, %s26, 1
      %p386 = scmp.lt.s32.totalorder %s27, 0
      %s387 = scalar_select %p386, %s27, 0
      %s388 = sadd.s32 %s387, %s385
      %s389 = smul.addr %s388, 4
      %s390 = scalar_lea.vmem %s0, %s389
      %p391 = pneg %p57
      %p392 = pneg %p54
      %p393 = scmp.lt.s32.totalorder %s26, 1
      %s394 = scalar_select %p393, %s26, 1
      %s395 = smul.addr %s394, 4
      %s396 = scalar_lea.vmem %s1, %s395
      %p397 = pneg %p83
      %p398 = pneg %p80
      %p399 = scmp.lt.s32.totalorder %s26, 1
      %s400 = scalar_select %p399, %s26, 1
      %p401 = scmp.lt.s32.totalorder %s27, 0
      %s402 = scalar_select %p401, %s27, 0
      %s403 = sadd.s32 %s402, %s400
      %s404 = smul.addr %s403, 8
      %s405 = scalar_lea.vmem %s2, %s404
      %p406 = pneg %p111
      %p407 = pneg %p108
      %p408 = pneg %p132
      %p409 = pneg %p129
      %p410 = pneg %p153
      %p411 = pneg %p150
      %p412 = pneg %p174
      %p413 = pneg %p171
      %p414 = pneg %p195
      %p415 = pneg %p192
      %p416 = pneg %p216
      %p417 = pneg %p213
      %p418 = pneg %p237
      %p419 = pneg %p234
      %p420 = pneg %p258
      %p421 = pneg %p255
      %p422 = pneg %p279
      %p423 = pneg %p276
      %p424 = pneg %p307
      %p425 = pneg %p304
      %p426 = scmp.lt.s32.totalorder %s26, 1
      %s427 = scalar_select %p426, %s26, 1
      %p428 = scmp.lt.s32.totalorder %s27, 0
      %s429 = scalar_select %p428, %s27, 0
      %s430 = sadd.s32 %s429, %s427
      %s431 = smul.addr %s430, 4
      %s432 = scalar_lea.vmem %s11, %s431
      %p433 = scmp.lt.s32.totalorder %s26, 1
      %s434 = scalar_select %p433, %s26, 1
      %p435 = scmp.lt.s32.totalorder %s27, 0
      %s436 = scalar_select %p435, %s27, 0
      %s437 = sadd.s32 %s436, %s434
      %s438 = smul.addr %s437, 4
      %s439 = scalar_lea.vmem %s0, %s438
      %p440 = scmp.lt.s32.totalorder %s26, 1
      %s441 = scalar_select %p440, %s26, 1
      %s442 = smul.addr %s441, 4
      %s443 = scalar_lea.vmem %s1, %s442
      %p444 = scmp.lt.s32.totalorder %s26, 1
      %s445 = scalar_select %p444, %s26, 1
      %p446 = scmp.lt.s32.totalorder %s27, 0
      %s447 = scalar_select %p446, %s27, 0
      %s448 = sadd.s32 %s447, %s445
      %s449 = smul.addr %s448, 8
      %s450 = scalar_lea.vmem %s2, %s449
      %p451 = scmp.lt.s32.totalorder %s26, 1
      %s452 = scalar_select %p451, %s26, 1
      %p453 = scmp.lt.s32.totalorder %s27, 0
      %s454 = scalar_select %p453, %s27, 0
      %s455 = sadd.s32 %s454, %s452
      %s456 = smul.addr %s455, 4
      %s457 = scalar_lea.vmem %s11, %s456
      %v459 = vld [vmem:[%s439] sm:$0xf]
      %v460 = vld [vmem:[%s443] sm:$0xf]
      %v461 = vld [vmem:[%s450] sm:$0xff]
      %vm462 = vcmp.gt.f32.partialorder %v461, 0.5
      %v463 = vsel %vm462, 0.0, -1e+09
      %v464 = vld [vmem:[%s3] sm:$0xf]
      %v465 = vld [vmem:[%s3 + $0x4] sm:$0xf]
      %v466 = vld [vmem:[%s3 + $0x8] sm:$0xf]
      %v467 = vld [vmem:[%s3 + $0xc] sm:$0xf]
      %v468 = vld [vmem:[%s4] sm:$0x1]
      %v470 = vlaneseq
      %v471 = vshrl.u32 %v470, 7
      %v472 = vsub.s32 0, %v471
      %v473 = vrot.slane %v468, %v472
      %v479 = vunpack.c.l.b16 %v464
      %v480 = vunpack.c.l.b16 %v465
      %v481 = vunpack.c.l.b16 %v466
      %v482 = vunpack.c.l.b16 %v467
      %v483 = vpack.c.b16 %v480, %v479
      %v484 = vpack.c.b16 %v482, %v481
      %vm487 = vcmask 261120
      %v489 = vsel %vm487, %v459, 0
      %491 = vmatprep.subr.bf16.mxu0 0
      %492 = vmatpush1.bf16.msra.mxu0 %v483
      %493 = vmatprep.subr.bf16.mxu0 0
      %494 = vmatpush1.bf16.msra.mxu0 %v484
      %495 = vmatprep.subr.bf16.mxu0 0
      %496 = vmatpush1.bf16.msra.mxu0 0
      %497 = vmatprep.subr.bf16.mxu0 0
      %498 = vmatpush1.bf16.msra.mxu0 0
      %499 = vmatprep.subr.bf16.mxu0 0
      %500 = vmatpush1.bf16.msra.mxu0 0
      %501 = vmatprep.subr.bf16.mxu0 0
      %502 = vmatpush1.bf16.msra.mxu0 0
      %503 = vmatprep.subr.bf16.mxu0 0
      %504 = vmatpush1.bf16.msra.mxu0 0
      %505 = vmatprep.subr.bf16.mxu0 0
      %506 = vmatpush1.bf16.msra.mxu0 0
      %507 = vmatprep.subr.bf16.mxu0 0
      %508 = vmatpush1.bf16.msra.mxu0 0
      %509 = vmatprep.subr.bf16.mxu0 0
      %510 = vmatpush1.bf16.msra.mxu0 0
      %511 = vmatprep.subr.bf16.mxu0 0
      %512 = vmatpush1.bf16.msra.mxu0 0
      %513 = vmatprep.subr.bf16.mxu0 0
      %514 = vmatpush1.bf16.msra.mxu0 0
      %515 = vmatprep.subr.bf16.mxu0 0
      %516 = vmatpush1.bf16.msra.mxu0 0
      %517 = vmatprep.subr.bf16.mxu0 0
      %518 = vmatpush1.bf16.msra.mxu0 0
      %519 = vmatprep.subr.bf16.mxu0 0
      %520 = vmatpush1.bf16.msra.mxu0 0
      %521 = vmatprep.subr.bf16.mxu0 0
      %522 = vmatpush1.bf16.msra.mxu0 0
      %523 = vmatprep.mubr.bf16.mxu0 0
      %524 = vmatmul.mubr.bf16.gmra.mrb[0].mxu0 %v489
      %v525 = vpop.f32.mrb[0].mxu0
      %v526 = vadd.f32 %v473, %v525
      %v527 = vpop.f32.mrb[0].mxu0
      %v528 = vpop.f32.mrb[0].mxu0
      %v529 = vpop.f32.mrb[0].mxu0
      %530 = vdwg.mxu0
      %v531 = vld [vmem:[%s5] sm:$0xf]
      %v532 = vld [vmem:[%s5 + $0x4] sm:$0xf]
      %v533 = vld [vmem:[%s5 + $0x8] sm:$0xf]
      %v534 = vld [vmem:[%s5 + $0xc] sm:$0xf]
      %v535 = vld [vmem:[%s6] sm:$0x1]
      %v537 = vlaneseq
      %v538 = vshrl.u32 %v537, 7
      %v539 = vsub.s32 0, %v538
      %v540 = vrot.slane %v535, %v539
      %v546 = vunpack.c.l.b16 %v531
      %v547 = vunpack.c.l.b16 %v532
      %v548 = vunpack.c.l.b16 %v533
      %v549 = vunpack.c.l.b16 %v534
      %v550 = vpack.c.b16 %v547, %v546
      %v551 = vpack.c.b16 %v549, %v548
      %v555 = vsel %vm487, %v460, 0
      %557 = vmatprep.subr.bf16.mxu0 0
      %558 = vmatpush1.bf16.msra.mxu0 %v550
      %559 = vmatprep.subr.bf16.mxu0 0
      %560 = vmatpush1.bf16.msra.mxu0 %v551
      %561 = vmatprep.subr.bf16.mxu0 0
      %562 = vmatpush1.bf16.msra.mxu0 0
      %563 = vmatprep.subr.bf16.mxu0 0
      %564 = vmatpush1.bf16.msra.mxu0 0
      %565 = vmatprep.subr.bf16.mxu0 0
      %566 = vmatpush1.bf16.msra.mxu0 0
      %567 = vmatprep.subr.bf16.mxu0 0
      %568 = vmatpush1.bf16.msra.mxu0 0
      %569 = vmatprep.subr.bf16.mxu0 0
      %570 = vmatpush1.bf16.msra.mxu0 0
      %571 = vmatprep.subr.bf16.mxu0 0
      %572 = vmatpush1.bf16.msra.mxu0 0
      %573 = vmatprep.subr.bf16.mxu0 0
      %574 = vmatpush1.bf16.msra.mxu0 0
      %575 = vmatprep.subr.bf16.mxu0 0
      %576 = vmatpush1.bf16.msra.mxu0 0
      %577 = vmatprep.subr.bf16.mxu0 0
      %578 = vmatpush1.bf16.msra.mxu0 0
      %579 = vmatprep.subr.bf16.mxu0 0
      %580 = vmatpush1.bf16.msra.mxu0 0
      %581 = vmatprep.subr.bf16.mxu0 0
      %582 = vmatpush1.bf16.msra.mxu0 0
      %583 = vmatprep.subr.bf16.mxu0 0
      %584 = vmatpush1.bf16.msra.mxu0 0
      %585 = vmatprep.subr.bf16.mxu0 0
      %586 = vmatpush1.bf16.msra.mxu0 0
      %587 = vmatprep.subr.bf16.mxu0 0
      %588 = vmatpush1.bf16.msra.mxu0 0
      %589 = vmatprep.mubr.bf16.mxu0 0
      %590 = vmatmul.mubr.bf16.gmra.mrb[0].mxu0 %v555
      %v591 = vpop.f32.mrb[0].mxu0
      %v592 = vadd.f32 %v540, %v591
      %v593 = vpop.f32.mrb[0].mxu0
      %v594 = vpop.f32.mrb[0].mxu0
      %v595 = vpop.f32.mrb[0].mxu0
      %596 = vdwg.mxu0
      %v597 = vld [vmem:[%s7] sm:$0xf]
      %v598 = vld [vmem:[%s7 + $0x4] sm:$0xf]
      %v599 = vld [vmem:[%s7 + $0x8] sm:$0xf]
      %v600 = vld [vmem:[%s7 + $0xc] sm:$0xf]
      %v601 = vpack.c.bf16 %v526, %v526
      %v602 = vpack.c.bf16 %v592, %v592
      %vm603 = vcmask 64512
      %v605 = vsel %vm603, %v601, 0
      %v608 = vsel %vm603, %v602, 0
      %610 = vmatprep.subr.bf16.mxu0 0
      %611 = vmatpush1.bf16.xpose.msra.mxu0 %v608
      %612 = vmatprep.subr.bf16.mxu0 0
      %613 = vmatpush1.bf16.xpose.msra.mxu0 0
      %614 = vmatprep.subr.bf16.mxu0 0
      %615 = vmatpush1.bf16.xpose.msra.mxu0 0
      %616 = vmatprep.subr.bf16.mxu0 0
      %617 = vmatpush1.bf16.xpose.msra.mxu0 0
      %618 = vmatprep.subr.bf16.mxu0 0
      %619 = vmatpush1.bf16.xpose.msra.mxu0 0
      %620 = vmatprep.subr.bf16.mxu0 0
      %621 = vmatpush1.bf16.xpose.msra.mxu0 0
      %622 = vmatprep.subr.bf16.mxu0 0
      %623 = vmatpush1.bf16.xpose.msra.mxu0 0
      %624 = vmatprep.subr.bf16.mxu0 0
      %625 = vmatpush1.bf16.xpose.msra.mxu0 0
      %626 = vmatprep.subr.bf16.mxu0 0
      %627 = vmatpush1.bf16.xpose.msra.mxu0 0
      %628 = vmatprep.subr.bf16.mxu0 0
      %629 = vmatpush1.bf16.xpose.msra.mxu0 0
      %630 = vmatprep.subr.bf16.mxu0 0
      %631 = vmatpush1.bf16.xpose.msra.mxu0 0
      %632 = vmatprep.subr.bf16.mxu0 0
      %633 = vmatpush1.bf16.xpose.msra.mxu0 0
      %634 = vmatprep.subr.bf16.mxu0 0
      %635 = vmatpush1.bf16.xpose.msra.mxu0 0
      %636 = vmatprep.subr.bf16.mxu0 0
      %637 = vmatpush1.bf16.xpose.msra.mxu0 0
      %638 = vmatprep.subr.bf16.mxu0 0
      %639 = vmatpush1.bf16.xpose.msra.mxu0 0
      %640 = vmatprep.subr.bf16.mxu0 0
      %641 = vmatpush1.bf16.xpose.msra.mxu0 0
      %642 = vmatprep.mubr.bf16.mxu0 0
      %643 = vmatmul.mubr.bf16.gmra.mrb[0].mxu0 %v605
      %v644 = vpop.f32.mrb[0].mxu0
      %v645 = vadd.f32 %v463, %v644
      %v646 = vpop.f32.mrb[0].mxu0
      %v647 = vpop.f32.mrb[0].mxu0
      %v648 = vpop.f32.mrb[0].mxu0
      %649 = vdwg.mxu0
      %v650 = vsel %vm603, %v645, -inf
      %651 = vmax.xlane.f32.xlu0 %v650
      %v652 = vpop.xlane.xlu0 %651
      %v653 = vsub.f32 %v645, %v652
      %v654 = vmul.f32 %v653, 1.442695
      %v655 = vpow.pop %v654
      %v656 = vsel %vm603, %v655, 0.0
      %657 = vadd.xlane.f32.xlu0 %v656
      %v658 = vpop.xlane.xlu0 %657
      %v659 = vrcp.pop %v658
      %v660 = vmul.f32 %v655, %v659
      %v661 = vpack.c.bf16 %v660, %v660
      %663 = vrot.lane.b32.xlu0 %v602, 96
      %v664 = vpop.permute.xlu0 %663
      %v666 = vsel %vm603, %v661, 0
      %vm668 = vcmask 1043456
      %v670 = vsel %vm668, %v664, 0
      %672 = vmatprep.subr.bf16.mxu0 0
      %673 = vmatpush1.bf16.msra.mxu0 %v670
      %674 = vmatprep.subr.bf16.mxu0 0
      %675 = vmatpush1.bf16.msra.mxu0 0
      %676 = vmatprep.subr.bf16.mxu0 0
      %677 = vmatpush1.bf16.msra.mxu0 0
      %678 = vmatprep.subr.bf16.mxu0 0
      %679 = vmatpush1.bf16.msra.mxu0 0
      %680 = vmatprep.subr.bf16.mxu0 0
      %681 = vmatpush1.bf16.msra.mxu0 0
      %682 = vmatprep.subr.bf16.mxu0 0
      %683 = vmatpush1.bf16.msra.mxu0 0
      %684 = vmatprep.subr.bf16.mxu0 0
      %685 = vmatpush1.bf16.msra.mxu0 0
      %686 = vmatprep.subr.bf16.mxu0 0
      %687 = vmatpush1.bf16.msra.mxu0 0
      %688 = vmatprep.subr.bf16.mxu0 0
      %689 = vmatpush1.bf16.msra.mxu0 0
      %690 = vmatprep.subr.bf16.mxu0 0
      %691 = vmatpush1.bf16.msra.mxu0 0
      %692 = vmatprep.subr.bf16.mxu0 0
      %693 = vmatpush1.bf16.msra.mxu0 0
      %694 = vmatprep.subr.bf16.mxu0 0
      %695 = vmatpush1.bf16.msra.mxu0 0
      %696 = vmatprep.subr.bf16.mxu0 0
      %697 = vmatpush1.bf16.msra.mxu0 0
      %698 = vmatprep.subr.bf16.mxu0 0
      %699 = vmatpush1.bf16.msra.mxu0 0
      %700 = vmatprep.subr.bf16.mxu0 0
      %701 = vmatpush1.bf16.msra.mxu0 0
      %702 = vmatprep.subr.bf16.mxu0 0
      %703 = vmatpush1.bf16.msra.mxu0 0
      %704 = vmatprep.mubr.bf16.mxu0 0
      %705 = vmatmul.mubr.bf16.gmra.mrb[0].mxu0 %v666
      %v706 = vpop.f32.mrb[0].mxu0
      %v707 = vadd.f32 0.0, %v706
      %v708 = vpop.f32.mrb[0].mxu0
      %v709 = vpop.f32.mrb[0].mxu0
      %v710 = vpop.f32.mrb[0].mxu0
      %711 = vdwg.mxu0
      %v712 = vpack.c.bf16 %v707, %v707
      %714 = vrot.lane.b32.xlu0 %v601, 120
      %v715 = vpop.permute.xlu0 %714
      %716 = vrot.lane.b32.xlu0 %v602, 120
      %v717 = vpop.permute.xlu0 %716
      %v719 = vsel %vm603, %v715, 0
      %v722 = vsel %vm603, %v717, 0
      %724 = vmatprep.subr.bf16.mxu0 0
      %725 = vmatpush1.bf16.xpose.msra.mxu0 %v722
      %726 = vmatprep.subr.bf16.mxu0 0
      %727 = vmatpush1.bf16.xpose.msra.mxu0 0
      %728 = vmatprep.subr.bf16.mxu0 0
      %729 = vmatpush1.bf16.xpose.msra.mxu0 0
      %730 = vmatprep.subr.bf16.mxu0 0
      %731 = vmatpush1.bf16.xpose.msra.mxu0 0
      %732 = vmatprep.subr.bf16.mxu0 0
      %733 = vmatpush1.bf16.xpose.msra.mxu0 0
      %734 = vmatprep.subr.bf16.mxu0 0
      %735 = vmatpush1.bf16.xpose.msra.mxu0 0
      %736 = vmatprep.subr.bf16.mxu0 0
      %737 = vmatpush1.bf16.xpose.msra.mxu0 0
      %738 = vmatprep.subr.bf16.mxu0 0
      %739 = vmatpush1.bf16.xpose.msra.mxu0 0
      %740 = vmatprep.subr.bf16.mxu0 0
      %741 = vmatpush1.bf16.xpose.msra.mxu0 0
      %742 = vmatprep.subr.bf16.mxu0 0
      %743 = vmatpush1.bf16.xpose.msra.mxu0 0
      %744 = vmatprep.subr.bf16.mxu0 0
      %745 = vmatpush1.bf16.xpose.msra.mxu0 0
      %746 = vmatprep.subr.bf16.mxu0 0
      %747 = vmatpush1.bf16.xpose.msra.mxu0 0
      %748 = vmatprep.subr.bf16.mxu0 0
      %749 = vmatpush1.bf16.xpose.msra.mxu0 0
      %750 = vmatprep.subr.bf16.mxu0 0
      %751 = vmatpush1.bf16.xpose.msra.mxu0 0
      %752 = vmatprep.subr.bf16.mxu0 0
      %753 = vmatpush1.bf16.xpose.msra.mxu0 0
      %754 = vmatprep.subr.bf16.mxu0 0
      %755 = vmatpush1.bf16.xpose.msra.mxu0 0
      %756 = vmatprep.mubr.bf16.mxu0 0
      %757 = vmatmul.mubr.bf16.gmra.mrb[0].mxu0 %v719
      %v758 = vpop.f32.mrb[0].mxu0
      %v759 = vadd.f32 %v463, %v758
      %v760 = vpop.f32.mrb[0].mxu0
      %v761 = vpop.f32.mrb[0].mxu0
      %v762 = vpop.f32.mrb[0].mxu0
      %763 = vdwg.mxu0
      %v764 = vsel %vm603, %v759, -inf
      %765 = vmax.xlane.f32.xlu0 %v764
      %v766 = vpop.xlane.xlu0 %765
      %v767 = vsub.f32 %v759, %v766
      %v768 = vmul.f32 %v767, 1.442695
      %v769 = vpow.pop %v768
      %v770 = vsel %vm603, %v769, 0.0
      %771 = vadd.xlane.f32.xlu0 %v770
      %v772 = vpop.xlane.xlu0 %771
      %v773 = vrcp.pop %v772
      %v774 = vmul.f32 %v769, %v773
      %v775 = vpack.c.bf16 %v774, %v774
      %776 = vrot.lane.b32.xlu0 %v602, 88
      %v777 = vpop.permute.xlu0 %776
      %v779 = vsel %vm603, %v775, 0
      %v782 = vsel %vm668, %v777, 0
      %784 = vmatprep.subr.bf16.mxu0 0
      %785 = vmatpush1.bf16.msra.mxu0 %v782
      %786 = vmatprep.subr.bf16.mxu0 0
      %787 = vmatpush1.bf16.msra.mxu0 0
      %788 = vmatprep.subr.bf16.mxu0 0
      %789 = vmatpush1.bf16.msra.mxu0 0
      %790 = vmatprep.subr.bf16.mxu0 0
      %791 = vmatpush1.bf16.msra.mxu0 0
      %792 = vmatprep.subr.bf16.mxu0 0
      %793 = vmatpush1.bf16.msra.mxu0 0
      %794 = vmatprep.subr.bf16.mxu0 0
      %795 = vmatpush1.bf16.msra.mxu0 0
      %796 = vmatprep.subr.bf16.mxu0 0
      %797 = vmatpush1.bf16.msra.mxu0 0
      %798 = vmatprep.subr.bf16.mxu0 0
      %799 = vmatpush1.bf16.msra.mxu0 0
      %800 = vmatprep.subr.bf16.mxu0 0
      %801 = vmatpush1.bf16.msra.mxu0 0
      %802 = vmatprep.subr.bf16.mxu0 0
      %803 = vmatpush1.bf16.msra.mxu0 0
      %804 = vmatprep.subr.bf16.mxu0 0
      %805 = vmatpush1.bf16.msra.mxu0 0
      %806 = vmatprep.subr.bf16.mxu0 0
      %807 = vmatpush1.bf16.msra.mxu0 0
      %808 = vmatprep.subr.bf16.mxu0 0
      %809 = vmatpush1.bf16.msra.mxu0 0
      %810 = vmatprep.subr.bf16.mxu0 0
      %811 = vmatpush1.bf16.msra.mxu0 0
      %812 = vmatprep.subr.bf16.mxu0 0
      %813 = vmatpush1.bf16.msra.mxu0 0
      %814 = vmatprep.subr.bf16.mxu0 0
      %815 = vmatpush1.bf16.msra.mxu0 0
      %816 = vmatprep.mubr.bf16.mxu0 0
      %817 = vmatmul.mubr.bf16.gmra.mrb[0].mxu0 %v779
      %v818 = vpop.f32.mrb[0].mxu0
      %v819 = vadd.f32 0.0, %v818
      %v820 = vpop.f32.mrb[0].mxu0
      %v821 = vpop.f32.mrb[0].mxu0
      %v822 = vpop.f32.mrb[0].mxu0
      %823 = vdwg.mxu0
      %v824 = vpack.c.bf16 %v819, %v819
      %v826 = vsel %vm603, %v824, 0
      %v829 = vsel %vm668, %v598, 0
      %831 = vmatprep.subr.bf16.mxu0 0
      %832 = vmatpush1.bf16.msra.mxu0 %v829
      %833 = vmatprep.subr.bf16.mxu0 0
      %834 = vmatpush1.bf16.msra.mxu0 0
      %835 = vmatprep.subr.bf16.mxu0 0
      %836 = vmatpush1.bf16.msra.mxu0 0
      %837 = vmatprep.subr.bf16.mxu0 0
      %838 = vmatpush1.bf16.msra.mxu0 0
      %839 = vmatprep.subr.bf16.mxu0 0
      %840 = vmatpush1.bf16.msra.mxu0 0
      %841 = vmatprep.subr.bf16.mxu0 0
      %842 = vmatpush1.bf16.msra.mxu0 0
      %843 = vmatprep.subr.bf16.mxu0 0
      %844 = vmatpush1.bf16.msra.mxu0 0
      %845 = vmatprep.subr.bf16.mxu0 0
      %846 = vmatpush1.bf16.msra.mxu0 0
      %847 = vmatprep.subr.bf16.mxu0 0
      %848 = vmatpush1.bf16.msra.mxu0 0
      %849 = vmatprep.subr.bf16.mxu0 0
      %850 = vmatpush1.bf16.msra.mxu0 0
      %851 = vmatprep.subr.bf16.mxu0 0
      %852 = vmatpush1.bf16.msra.mxu0 0
      %853 = vmatprep.subr.bf16.mxu0 0
      %854 = vmatpush1.bf16.msra.mxu0 0
      %855 = vmatprep.subr.bf16.mxu0 0
      %856 = vmatpush1.bf16.msra.mxu0 0
      %857 = vmatprep.subr.bf16.mxu0 0
      %858 = vmatpush1.bf16.msra.mxu0 0
      %859 = vmatprep.subr.bf16.mxu0 0
      %860 = vmatpush1.bf16.msra.mxu0 0
      %861 = vmatprep.subr.bf16.mxu0 0
      %862 = vmatpush1.bf16.msra.mxu0 0
      %863 = vmatprep.mubr.bf16.mxu0 0
      %864 = vmatmul.mubr.bf16.gmra.mrb[0].mxu0 %v826
      %v865 = vpop.f32.mrb[0].mxu0
      %v866 = vadd.f32 0.0, %v865
      %v867 = vpop.f32.mrb[0].mxu0
      %v868 = vpop.f32.mrb[0].mxu0
      %v869 = vpop.f32.mrb[0].mxu0
      %870 = vdwg.mxu0
      %v872 = vsel %vm603, %v712, 0
      %v875 = vsel %vm668, %v597, 0
      %877 = vmatprep.subr.bf16.mxu0 0
      %878 = vmatpush1.bf16.msra.mxu0 %v875
      %879 = vmatprep.subr.bf16.mxu0 0
      %880 = vmatpush1.bf16.msra.mxu0 0
      %881 = vmatprep.subr.bf16.mxu0 0
      %882 = vmatpush1.bf16.msra.mxu0 0
      %883 = vmatprep.subr.bf16.mxu0 0
      %884 = vmatpush1.bf16.msra.mxu0 0
      %885 = vmatprep.subr.bf16.mxu0 0
      %886 = vmatpush1.bf16.msra.mxu0 0
      %887 = vmatprep.subr.bf16.mxu0 0
      %888 = vmatpush1.bf16.msra.mxu0 0
      %889 = vmatprep.subr.bf16.mxu0 0
      %890 = vmatpush1.bf16.msra.mxu0 0
      %891 = vmatprep.subr.bf16.mxu0 0
      %892 = vmatpush1.bf16.msra.mxu0 0
      %893 = vmatprep.subr.bf16.mxu0 0
      %894 = vmatpush1.bf16.msra.mxu0 0
      %895 = vmatprep.subr.bf16.mxu0 0
      %896 = vmatpush1.bf16.msra.mxu0 0
      %897 = vmatprep.subr.bf16.mxu0 0
      %898 = vmatpush1.bf16.msra.mxu0 0
      %899 = vmatprep.subr.bf16.mxu0 0
      %900 = vmatpush1.bf16.msra.mxu0 0
      %901 = vmatprep.subr.bf16.mxu0 0
      %902 = vmatpush1.bf16.msra.mxu0 0
      %903 = vmatprep.subr.bf16.mxu0 0
      %904 = vmatpush1.bf16.msra.mxu0 0
      %905 = vmatprep.subr.bf16.mxu0 0
      %906 = vmatpush1.bf16.msra.mxu0 0
      %907 = vmatprep.subr.bf16.mxu0 0
      %908 = vmatpush1.bf16.msra.mxu0 0
      %909 = vmatprep.mubr.bf16.mxu0 0
      %910 = vmatmul.mubr.bf16.gmra.mrb[0].mxu0 %v872
      %v911 = vpop.f32.mrb[0].mxu0
      %v912 = vadd.f32 %v866, %v911
      %v913 = vpop.f32.mrb[0].mxu0
      %v914 = vpop.f32.mrb[0].mxu0
      %v915 = vpop.f32.mrb[0].mxu0
      %916 = vdwg.mxu0
      %917 = vrot.lane.b32.xlu0 %v601, 112
      %v918 = vpop.permute.xlu0 %917
      %919 = vrot.lane.b32.xlu0 %v602, 112
      %v920 = vpop.permute.xlu0 %919
      %v922 = vsel %vm603, %v918, 0
      %v925 = vsel %vm603, %v920, 0
      %927 = vmatprep.subr.bf16.mxu0 0
      %928 = vmatpush1.bf16.xpose.msra.mxu0 %v925
      %929 = vmatprep.subr.bf16.mxu0 0
      %930 = vmatpush1.bf16.xpose.msra.mxu0 0
      %931 = vmatprep.subr.bf16.mxu0 0
      %932 = vmatpush1.bf16.xpose.msra.mxu0 0
      %933 = vmatprep.subr.bf16.mxu0 0
      %934 = vmatpush1.bf16.xpose.msra.mxu0 0
      %935 = vmatprep.subr.bf16.mxu0 0
      %936 = vmatpush1.bf16.xpose.msra.mxu0 0
      %937 = vmatprep.subr.bf16.mxu0 0
      %938 = vmatpush1.bf16.xpose.msra.mxu0 0
      %939 = vmatprep.subr.bf16.mxu0 0
      %940 = vmatpush1.bf16.xpose.msra.mxu0 0
      %941 = vmatprep.subr.bf16.mxu0 0
      %942 = vmatpush1.bf16.xpose.msra.mxu0 0
      %943 = vmatprep.subr.bf16.mxu0 0
      %944 = vmatpush1.bf16.xpose.msra.mxu0 0
      %945 = vmatprep.subr.bf16.mxu0 0
      %946 = vmatpush1.bf16.xpose.msra.mxu0 0
      %947 = vmatprep.subr.bf16.mxu0 0
      %948 = vmatpush1.bf16.xpose.msra.mxu0 0
      %949 = vmatprep.subr.bf16.mxu0 0
      %950 = vmatpush1.bf16.xpose.msra.mxu0 0
      %951 = vmatprep.subr.bf16.mxu0 0
      %952 = vmatpush1.bf16.xpose.msra.mxu0 0
      %953 = vmatprep.subr.bf16.mxu0 0
      %954 = vmatpush1.bf16.xpose.msra.mxu0 0
      %955 = vmatprep.subr.bf16.mxu0 0
      %956 = vmatpush1.bf16.xpose.msra.mxu0 0
      %957 = vmatprep.subr.bf16.mxu0 0
      %958 = vmatpush1.bf16.xpose.msra.mxu0 0
      %959 = vmatprep.mubr.bf16.mxu0 0
      %960 = vmatmul.mubr.bf16.gmra.mrb[0].mxu0 %v922
      %v961 = vpop.f32.mrb[0].mxu0
      %v962 = vadd.f32 %v463, %v961
      %v963 = vpop.f32.mrb[0].mxu0
      %v964 = vpop.f32.mrb[0].mxu0
      %v965 = vpop.f32.mrb[0].mxu0
      %966 = vdwg.mxu0
      %v967 = vsel %vm603, %v962, -inf
      %968 = vmax.xlane.f32.xlu0 %v967
      %v969 = vpop.xlane.xlu0 %968
      %v970 = vsub.f32 %v962, %v969
      %v971 = vmul.f32 %v970, 1.442695
      %v972 = vpow.pop %v971
      %v973 = vsel %vm603, %v972, 0.0
      %974 = vadd.xlane.f32.xlu0 %v973
      %v975 = vpop.xlane.xlu0 %974
      %v976 = vrcp.pop %v975
      %v977 = vmul.f32 %v972, %v976
      %v978 = vpack.c.bf16 %v977, %v977
      %979 = vrot.lane.b32.xlu0 %v602, 80
      %v980 = vpop.permute.xlu0 %979
      %v982 = vsel %vm603, %v978, 0
      %v985 = vsel %vm668, %v980, 0
      %987 = vmatprep.subr.bf16.mxu0 0
      %988 = vmatpush1.bf16.msra.mxu0 %v985
      %989 = vmatprep.subr.bf16.mxu0 0
      %990 = vmatpush1.bf16.msra.mxu0 0
      %991 = vmatprep.subr.bf16.mxu0 0
      %992 = vmatpush1.bf16.msra.mxu0 0
      %993 = vmatprep.subr.bf16.mxu0 0
      %994 = vmatpush1.bf16.msra.mxu0 0
      %995 = vmatprep.subr.bf16.mxu0 0
      %996 = vmatpush1.bf16.msra.mxu0 0
      %997 = vmatprep.subr.bf16.mxu0 0
      %998 = vmatpush1.bf16.msra.mxu0 0
      %999 = vmatprep.subr.bf16.mxu0 0
      %1000 = vmatpush1.bf16.msra.mxu0 0
      %1001 = vmatprep.subr.bf16.mxu0 0
      %1002 = vmatpush1.bf16.msra.mxu0 0
      %1003 = vmatprep.subr.bf16.mxu0 0
      %1004 = vmatpush1.bf16.msra.mxu0 0
      %1005 = vmatprep.subr.bf16.mxu0 0
      %1006 = vmatpush1.bf16.msra.mxu0 0
      %1007 = vmatprep.subr.bf16.mxu0 0
      %1008 = vmatpush1.bf16.msra.mxu0 0
      %1009 = vmatprep.subr.bf16.mxu0 0
      %1010 = vmatpush1.bf16.msra.mxu0 0
      %1011 = vmatprep.subr.bf16.mxu0 0
      %1012 = vmatpush1.bf16.msra.mxu0 0
      %1013 = vmatprep.subr.bf16.mxu0 0
      %1014 = vmatpush1.bf16.msra.mxu0 0
      %1015 = vmatprep.subr.bf16.mxu0 0
      %1016 = vmatpush1.bf16.msra.mxu0 0
      %1017 = vmatprep.subr.bf16.mxu0 0
      %1018 = vmatpush1.bf16.msra.mxu0 0
      %1019 = vmatprep.mubr.bf16.mxu0 0
      %1020 = vmatmul.mubr.bf16.gmra.mrb[0].mxu0 %v982
      %v1021 = vpop.f32.mrb[0].mxu0
      %v1022 = vadd.f32 0.0, %v1021
      %v1023 = vpop.f32.mrb[0].mxu0
      %v1024 = vpop.f32.mrb[0].mxu0
      %v1025 = vpop.f32.mrb[0].mxu0
      %1026 = vdwg.mxu0
      %v1027 = vpack.c.bf16 %v1022, %v1022
      %v1029 = vsel %vm603, %v1027, 0
      %v1032 = vsel %vm668, %v599, 0
      %1034 = vmatprep.subr.bf16.mxu0 0
      %1035 = vmatpush1.bf16.msra.mxu0 %v1032
      %1036 = vmatprep.subr.bf16.mxu0 0
      %1037 = vmatpush1.bf16.msra.mxu0 0
      %1038 = vmatprep.subr.bf16.mxu0 0
      %1039 = vmatpush1.bf16.msra.mxu0 0
      %1040 = vmatprep.subr.bf16.mxu0 0
      %1041 = vmatpush1.bf16.msra.mxu0 0
      %1042 = vmatprep.subr.bf16.mxu0 0
      %1043 = vmatpush1.bf16.msra.mxu0 0
      %1044 = vmatprep.subr.bf16.mxu0 0
      %1045 = vmatpush1.bf16.msra.mxu0 0
      %1046 = vmatprep.subr.bf16.mxu0 0
      %1047 = vmatpush1.bf16.msra.mxu0 0
      %1048 = vmatprep.subr.bf16.mxu0 0
      %1049 = vmatpush1.bf16.msra.mxu0 0
      %1050 = vmatprep.subr.bf16.mxu0 0
      %1051 = vmatpush1.bf16.msra.mxu0 0
      %1052 = vmatprep.subr.bf16.mxu0 0
      %1053 = vmatpush1.bf16.msra.mxu0 0
      %1054 = vmatprep.subr.bf16.mxu0 0
      %1055 = vmatpush1.bf16.msra.mxu0 0
      %1056 = vmatprep.subr.bf16.mxu0 0
      %1057 = vmatpush1.bf16.msra.mxu0 0
      %1058 = vmatprep.subr.bf16.mxu0 0
      %1059 = vmatpush1.bf16.msra.mxu0 0
      %1060 = vmatprep.subr.bf16.mxu0 0
      %1061 = vmatpush1.bf16.msra.mxu0 0
      %1062 = vmatprep.subr.bf16.mxu0 0
      %1063 = vmatpush1.bf16.msra.mxu0 0
      %1064 = vmatprep.subr.bf16.mxu0 0
      %1065 = vmatpush1.bf16.msra.mxu0 0
      %1066 = vmatprep.mubr.bf16.mxu0 0
      %1067 = vmatmul.mubr.bf16.gmra.mrb[0].mxu0 %v1029
      %v1068 = vpop.f32.mrb[0].mxu0
      %v1069 = vadd.f32 0.0, %v1068
      %v1070 = vpop.f32.mrb[0].mxu0
      %v1071 = vpop.f32.mrb[0].mxu0
      %v1072 = vpop.f32.mrb[0].mxu0
      %1073 = vdwg.mxu0
      %v1074 = vadd.f32 %v912, %v1069
      %1075 = vrot.lane.b32.xlu0 %v601, 104
      %v1076 = vpop.permute.xlu0 %1075
      %1077 = vrot.lane.b32.xlu0 %v602, 104
      %v1078 = vpop.permute.xlu0 %1077
      %v1080 = vsel %vm603, %v1076, 0
      %v1083 = vsel %vm603, %v1078, 0
      %1085 = vmatprep.subr.bf16.mxu0 0
      %1086 = vmatpush1.bf16.xpose.msra.mxu0 %v1083
      %1087 = vmatprep.subr.bf16.mxu0 0
      %1088 = vmatpush1.bf16.xpose.msra.mxu0 0
      %1089 = vmatprep.subr.bf16.mxu0 0
      %1090 = vmatpush1.bf16.xpose.msra.mxu0 0
      %1091 = vmatprep.subr.bf16.mxu0 0
      %1092 = vmatpush1.bf16.xpose.msra.mxu0 0
      %1093 = vmatprep.subr.bf16.mxu0 0
      %1094 = vmatpush1.bf16.xpose.msra.mxu0 0
      %1095 = vmatprep.subr.bf16.mxu0 0
      %1096 = vmatpush1.bf16.xpose.msra.mxu0 0
      %1097 = vmatprep.subr.bf16.mxu0 0
      %1098 = vmatpush1.bf16.xpose.msra.mxu0 0
      %1099 = vmatprep.subr.bf16.mxu0 0
      %1100 = vmatpush1.bf16.xpose.msra.mxu0 0
      %1101 = vmatprep.subr.bf16.mxu0 0
      %1102 = vmatpush1.bf16.xpose.msra.mxu0 0
      %1103 = vmatprep.subr.bf16.mxu0 0
      %1104 = vmatpush1.bf16.xpose.msra.mxu0 0
      %1105 = vmatprep.subr.bf16.mxu0 0
      %1106 = vmatpush1.bf16.xpose.msra.mxu0 0
      %1107 = vmatprep.subr.bf16.mxu0 0
      %1108 = vmatpush1.bf16.xpose.msra.mxu0 0
      %1109 = vmatprep.subr.bf16.mxu0 0
      %1110 = vmatpush1.bf16.xpose.msra.mxu0 0
      %1111 = vmatprep.subr.bf16.mxu0 0
      %1112 = vmatpush1.bf16.xpose.msra.mxu0 0
      %1113 = vmatprep.subr.bf16.mxu0 0
      %1114 = vmatpush1.bf16.xpose.msra.mxu0 0
      %1115 = vmatprep.subr.bf16.mxu0 0
      %1116 = vmatpush1.bf16.xpose.msra.mxu0 0
      %1117 = vmatprep.mubr.bf16.mxu0 0
      %1118 = vmatmul.mubr.bf16.gmra.mrb[0].mxu0 %v1080
      %v1119 = vpop.f32.mrb[0].mxu0
      %v1120 = vadd.f32 %v463, %v1119
      %v1121 = vpop.f32.mrb[0].mxu0
      %v1122 = vpop.f32.mrb[0].mxu0
      %v1123 = vpop.f32.mrb[0].mxu0
      %1124 = vdwg.mxu0
      %v1125 = vsel %vm603, %v1120, -inf
      %1126 = vmax.xlane.f32.xlu0 %v1125
      %v1127 = vpop.xlane.xlu0 %1126
      %v1128 = vsub.f32 %v1120, %v1127
      %v1129 = vmul.f32 %v1128, 1.442695
      %v1130 = vpow.pop %v1129
      %v1131 = vsel %vm603, %v1130, 0.0
      %1132 = vadd.xlane.f32.xlu0 %v1131
      %v1133 = vpop.xlane.xlu0 %1132
      %v1134 = vrcp.pop %v1133
      %v1135 = vmul.f32 %v1130, %v1134
      %v1136 = vpack.c.bf16 %v1135, %v1135
      %1137 = vrot.lane.b32.xlu0 %v602, 72
      %v1138 = vpop.permute.xlu0 %1137
      %v1140 = vsel %vm603, %v1136, 0
      %v1143 = vsel %vm668, %v1138, 0
      %1145 = vmatprep.subr.bf16.mxu0 0
      %1146 = vmatpush1.bf16.msra.mxu0 %v1143
      %1147 = vmatprep.subr.bf16.mxu0 0
      %1148 = vmatpush1.bf16.msra.mxu0 0
      %1149 = vmatprep.subr.bf16.mxu0 0
      %1150 = vmatpush1.bf16.msra.mxu0 0
      %1151 = vmatprep.subr.bf16.mxu0 0
      %1152 = vmatpush1.bf16.msra.mxu0 0
      %1153 = vmatprep.subr.bf16.mxu0 0
      %1154 = vmatpush1.bf16.msra.mxu0 0
      %1155 = vmatprep.subr.bf16.mxu0 0
      %1156 = vmatpush1.bf16.msra.mxu0 0
      %1157 = vmatprep.subr.bf16.mxu0 0
      %1158 = vmatpush1.bf16.msra.mxu0 0
      %1159 = vmatprep.subr.bf16.mxu0 0
      %1160 = vmatpush1.bf16.msra.mxu0 0
      %1161 = vmatprep.subr.bf16.mxu0 0
      %1162 = vmatpush1.bf16.msra.mxu0 0
      %1163 = vmatprep.subr.bf16.mxu0 0
      %1164 = vmatpush1.bf16.msra.mxu0 0
      %1165 = vmatprep.subr.bf16.mxu0 0
      %1166 = vmatpush1.bf16.msra.mxu0 0
      %1167 = vmatprep.subr.bf16.mxu0 0
      %1168 = vmatpush1.bf16.msra.mxu0 0
      %1169 = vmatprep.subr.bf16.mxu0 0
      %1170 = vmatpush1.bf16.msra.mxu0 0
      %1171 = vmatprep.subr.bf16.mxu0 0
      %1172 = vmatpush1.bf16.msra.mxu0 0
      %1173 = vmatprep.subr.bf16.mxu0 0
      %1174 = vmatpush1.bf16.msra.mxu0 0
      %1175 = vmatprep.subr.bf16.mxu0 0
      %1176 = vmatpush1.bf16.msra.mxu0 0
      %1177 = vmatprep.mubr.bf16.mxu0 0
      %1178 = vmatmul.mubr.bf16.gmra.mrb[0].mxu0 %v1140
      %v1179 = vpop.f32.mrb[0].mxu0
      %v1180 = vadd.f32 0.0, %v1179
      %v1181 = vpop.f32.mrb[0].mxu0
      %v1182 = vpop.f32.mrb[0].mxu0
      %v1183 = vpop.f32.mrb[0].mxu0
      %1184 = vdwg.mxu0
      %v1185 = vpack.c.bf16 %v1180, %v1180
      %v1187 = vsel %vm603, %v1185, 0
      %v1190 = vsel %vm668, %v600, 0
      %1192 = vmatprep.subr.bf16.mxu0 0
      %1193 = vmatpush1.bf16.msra.mxu0 %v1190
      %1194 = vmatprep.subr.bf16.mxu0 0
      %1195 = vmatpush1.bf16.msra.mxu0 0
      %1196 = vmatprep.subr.bf16.mxu0 0
      %1197 = vmatpush1.bf16.msra.mxu0 0
      %1198 = vmatprep.subr.bf16.mxu0 0
      %1199 = vmatpush1.bf16.msra.mxu0 0
      %1200 = vmatprep.subr.bf16.mxu0 0
      %1201 = vmatpush1.bf16.msra.mxu0 0
      %1202 = vmatprep.subr.bf16.mxu0 0
      %1203 = vmatpush1.bf16.msra.mxu0 0
      %1204 = vmatprep.subr.bf16.mxu0 0
      %1205 = vmatpush1.bf16.msra.mxu0 0
      %1206 = vmatprep.subr.bf16.mxu0 0
      %1207 = vmatpush1.bf16.msra.mxu0 0
      %1208 = vmatprep.subr.bf16.mxu0 0
      %1209 = vmatpush1.bf16.msra.mxu0 0
      %1210 = vmatprep.subr.bf16.mxu0 0
      %1211 = vmatpush1.bf16.msra.mxu0 0
      %1212 = vmatprep.subr.bf16.mxu0 0
      %1213 = vmatpush1.bf16.msra.mxu0 0
      %1214 = vmatprep.subr.bf16.mxu0 0
      %1215 = vmatpush1.bf16.msra.mxu0 0
      %1216 = vmatprep.subr.bf16.mxu0 0
      %1217 = vmatpush1.bf16.msra.mxu0 0
      %1218 = vmatprep.subr.bf16.mxu0 0
      %1219 = vmatpush1.bf16.msra.mxu0 0
      %1220 = vmatprep.subr.bf16.mxu0 0
      %1221 = vmatpush1.bf16.msra.mxu0 0
      %1222 = vmatprep.subr.bf16.mxu0 0
      %1223 = vmatpush1.bf16.msra.mxu0 0
      %1224 = vmatprep.mubr.bf16.mxu0 0
      %1225 = vmatmul.mubr.bf16.gmra.mrb[0].mxu0 %v1187
      %v1226 = vpop.f32.mrb[0].mxu0
      %v1227 = vadd.f32 0.0, %v1226
      %v1228 = vpop.f32.mrb[0].mxu0
      %v1229 = vpop.f32.mrb[0].mxu0
      %v1230 = vpop.f32.mrb[0].mxu0
      %1231 = vdwg.mxu0
      %v1232 = vadd.f32 %v1074, %v1227
      %v1233 = vunpack.c.l.bf16 %v459
      %v1234 = vadd.f32 %v1233, %v1232
      %v1235 = vld [vmem:[%s8] sm:$0x1]
      %v1237 = vlaneseq
      %v1238 = vshrl.u32 %v1237, 7
      %v1239 = vsub.s32 0, %v1238
      %v1240 = vrot.slane %v1235, %v1239
      %v1242 = vadd.f32 %v1234, %v1240
      %v1243 = vsel %vm487, %v1242, 0.0
      %1244 = vadd.xlane.f32.xlu0 %v1243
      %v1245 = vpop.xlane.xlu0 %1244
      %v1246 = vrcp.pop 32.0
      %v1247 = vmul.f32 %v1245, %v1246
      %v1248 = vsub.f32 %v1242, %v1247
      %v1249 = vmul.f32 %v1248, %v1248
      %v1250 = vsel %vm487, %v1249, 0.0
      %1251 = vadd.xlane.f32.xlu0 %v1250
      %v1252 = vpop.xlane.xlu0 %1251
      %v1253 = vmul.f32 %v1252, %v1246
      %v1254 = vadd.f32 %v1253, 1e-05
      %v1255 = vrsqrt.pop %v1254
      %v1256 = vmul.f32 %v1248, %v1255
      %v1257 = vld [vmem:[%s9] sm:$0x1]
      %v1259 = vlaneseq
      %v1260 = vshrl.u32 %v1259, 7
      %v1261 = vsub.s32 0, %v1260
      %v1262 = vrot.slane %v1257, %v1261
      %v1264 = vmul.f32 %v1256, %v1262
      %v1265 = vld [vmem:[%s10] sm:$0x1]
      %v1267 = vlaneseq
      %v1268 = vshrl.u32 %v1267, 7
      %v1269 = vsub.s32 0, %v1268
      %v1270 = vrot.slane %v1265, %v1269
      %v1272 = vadd.f32 %v1264, %v1270
      %v1273 = vpack.c.bf16 %v1272, %v1272
      %vm1274 = vcmask 257024
      %1275 = vst.msk [vmem:[%s457] sm:$0xf] %vm1274, %v1273
      %p1276 = scmp.lt.s32.totalorder %s26, 1
      %s1277 = scalar_select %p1276, %s26, 1
      %p1278 = scmp.lt.s32.totalorder %s27, 0
      %s1279 = scalar_select %p1278, %s27, 0
      %s1280 = sadd.s32 %s1279, %s1277
      %s1281 = smul.addr %s1280, 4
      %s1282 = scalar_lea.vmem %s11, %s1281
      // Predicated region
      $region65: #{transformer_forward.15} parent=63 // pred_check
        %p1283 = pneg %p304
      $region66: #{transformer_forward.15} parent=63 // pred_check_branch
        %1285 = sbr.rel (%p1283) target = $region68
      $region67: #{transformer_forward.15} parent=63 // pred_region
        _
      $region68: #{transformer_forward.15} parent=63 // pred_fallthru
        _
    $region64: #{transformer_forward.15} parent=5 // pred_fallthru
      _
    %p1286 = scmp.le.s32.totalorder 2, %s17
    // Predicated region
    $region69: #{transformer_forward.15} parent=5 // pred_check
      %p1287 = pneg %p1286
    $region70: #{transformer_forward.15} parent=5 // pred_check_branch
      %1289 = sbr.rel (%p1287) target = $region72
    $region71: #{transformer_forward.15} parent=5 // pred_region
      %s1290 = ssub.s32 %s17, 2
      // Predicated region
      $region73: #{transformer_forward.15} parent=71 // pred_check
        %p1291 = pneg %p310
      $region74: #{transformer_forward.15} parent=71 // pred_check_branch
        %1293 = sbr.rel (%p1291) target = $region76
      $region75: #{transformer_forward.15} parent=71 // pred_region
        %p1294 = scmp.lt.s32.totalorder %s28, 1
        %s1295 = scalar_select %p1294, %s28, 1
        %p1296 = scmp.lt.s32.totalorder %s29, 0
        %s1297 = scalar_select %p1296, %s29, 0
        %s1298 = sadd.s32 %s1297, %s1295
        %s1299 = smul.addr %s1298, 4
        %s1300 = scalar_lea.vmem %s11, %s1299
      $region76: #{transformer_forward.15} parent=71 // pred_fallthru
        _
    $region72: #{transformer_forward.15} parent=5 // pred_fallthru
      _
  $region6: #{transformer_forward.15} parent=0 // loop_footer
    %s21 = sadd.s32 1, %s17
  $region7: #{transformer_forward.15} parent=0 // loop_footer_branch
    %16 = sbr.rel target = $region3
  $region8: #{transformer_forward.15} parent=0 // loop_exit
    _

// kernel: transformer_forward.16
$region0: #{transformer_forward.16}
  #allocation0 [shape = 'u32[]', space=smem, size = 0x4, offset = 0x4, fixed_abs, tag = 'smem constant byte address 0x4 - core index']
  #allocation1 [shape = 'u32[144,128]{1,0:T(1,128)}', space=vmem, size = 0x12000, scoped, tag = 'internal scratch']
  %s0 = inlined_call_operand.vmem [shape: bf16[2,8,32], index: 0, kind: input, shape index: {}]
  %s1 = inlined_call_operand.vmem [shape: bf16[2,16,32], index: 1, kind: input, shape index: {}]
  %s2 = inlined_call_operand.vmem [shape: f32[2,1,16], index: 2, kind: input, shape index: {}]
  %s3 = inlined_call_operand.vmem [shape: bf16[32,32], index: 3, kind: input, shape index: {}]
  %s4 = inlined_call_operand.vmem [shape: f32[1,32], index: 4, kind: input, shape index: {}]
  %s5 = inlined_call_operand.vmem [shape: bf16[32,64], index: 5, kind: input, shape index: {}]
  %s6 = inlined_call_operand.vmem [shape: f32[1,64], index: 6, kind: input, shape index: {}]
  %s7 = inlined_call_operand.vmem [shape: bf16[32,32], index: 7, kind: input, shape index: {}]
  %s8 = inlined_call_operand.vmem [shape: f32[1,32], index: 8, kind: input, shape index: {}]
  %s9 = inlined_call_operand.vmem [shape: f32[1,32], index: 9, kind: input, shape index: {}]
  %s10 = inlined_call_operand.vmem [shape: f32[1,32], index: 10, kind: input, shape index: {}]
  %s11 = inlined_call_operand.vmem [shape: bf16[2,8,32], index: 11, kind: output, shape index: {}]
  %s12 = sld [smem:[#allocation0]]
  $region77: #{transformer_forward.16} parent=0
    _
  %s14 = ssub.s32 1, %s12
  %s15 = scalar_select 0, %s14, %s12
  loop: start=0, step=1, limit=4
  $region2: #{transformer_forward.16} parent=0 // loop_pre_header
    _
  $region3: #{transformer_forward.16} parent=0 // loop_header
    %s17 = sphi 0, %s21
    %p18 = scmp.ge.s32.totalorder %s17, 4
    %s24 = sphi 0, %s36
    %s25 = sphi 0, %s32
    %s26 = sphi 0, %s24
    %s27 = sphi 0, %s25
    %s28 = sphi 0, %s26
    %s29 = sphi 0, %s27
    %s41 = sphi 0, %s43
    %s44 = sphi 0, %s41
    %s45 = sphi 0, %s44
    %s61 = sphi 0, %s45
    %s67 = sphi 0, %s69
    %s70 = sphi 0, %s67
    %s71 = sphi 0, %s70
    %s87 = sphi 0, %s71
    %s93 = sphi 0, %s95
    %s96 = sphi 0, %s93
    %s97 = sphi 0, %s96
    %s113 = sphi 0, %s97
    %s117 = sphi 0, %s117
    %s119 = sphi 0, %s117
    %s120 = sphi 0, %s119
    %s134 = sphi 0, %s120
    %s138 = sphi 0, %s138
    %s140 = sphi 0, %s138
    %s141 = sphi 0, %s140
    %s155 = sphi 0, %s141
    %s159 = sphi 0, %s159
    %s161 = sphi 0, %s159
    %s162 = sphi 0, %s161
    %s176 = sphi 0, %s162
    %s180 = sphi 0, %s180
    %s182 = sphi 0, %s180
    %s183 = sphi 0, %s182
    %s197 = sphi 0, %s183
    %s201 = sphi 0, %s201
    %s203 = sphi 0, %s201
    %s204 = sphi 0, %s203
    %s218 = sphi 0, %s204
    %s222 = sphi 0, %s222
    %s224 = sphi 0, %s222
    %s225 = sphi 0, %s224
    %s239 = sphi 0, %s225
    %s243 = sphi 0, %s243
    %s245 = sphi 0, %s243
    %s246 = sphi 0, %s245
    %s260 = sphi 0, %s246
    %s264 = sphi 0, %s264
    %s266 = sphi 0, %s264
    %s267 = sphi 0, %s266
    %s281 = sphi 0, %s267
    %s289 = sphi 0, %s291
    %s292 = sphi 0, %s289
    %s293 = sphi 0, %s292
    %s309 = sphi 0, %s293
  $region4: #{transformer_forward.16} parent=0 // loop_header_branch
    %20 = sbr.rel (%p18) target = $region8
  $region5: #{transformer_forward.16} parent=0 // loop_body
    %s22 = ssub.s32 %s17, 1
    %s23 = ssub.s32 %s17, 2
    %s30 = sadd.s32 1, %s25
    %p31 = scmp.ge.s32.totalorder %s30, 1
    %s32 = scalar_select %p31, 0, %s30
    %s33 = sadd.s32 1, %s24
    %s34 = scalar_select %p31, %s33, %s24
    %p35 = scmp.ge.s32.totalorder %s34, 2
    %s36 = scalar_select %p35, 0, %s34
    %s37 = ssub.s32 %s24, %s36
    %s38 = ssub.s32 %s25, %s32
    %s39 = sor.u32 %s37, %s38
    %p40 = scmp.eq.s32.totalorder %s39, 0
    %s42 = sadd.s32 %s41, 1
    %s43 = scalar_select %p40, %s41, %s42
    %p46 = pneg %p40
    %p47 = scmp.eq.s32.totalorder %s17, 1
    %p48 = por %p46, %p47
    %p49 = scmp.ne.s32.totalorder %s41, %s44
    %p50 = scmp.eq.s32.totalorder %s17, 0
    %p51 = por %p49, %p50
    %p52 = scmp.ne.s32.totalorder %s41, %s44
    %p53 = scmp.eq.s32.totalorder %s22, 1
    %p54 = por %p52, %p53
    %p55 = scmp.ne.s32.totalorder %s44, %s45
    %p56 = scmp.eq.s32.totalorder %s22, 0
    %p57 = por %p55, %p56
    %p58 = scmp.ne.s32.totalorder %s44, %s45
    %p59 = scmp.eq.s32.totalorder %s23, 1
    %p60 = por %p58, %p59
    %p62 = scmp.ne.s32.totalorder %s45, %s61
    %p63 = scmp.eq.s32.totalorder %s23, 0
    %p64 = por %p62, %p63
    %s65 = ssub.s32 %s24, %s36
    %p66 = scmp.eq.s32.totalorder %s65, 0
    %s68 = sadd.s32 %s67, 1
    %s69 = scalar_select %p66, %s67, %s68
    %p72 = pneg %p66
    %p73 = scmp.eq.s32.totalorder %s17, 1
    %p74 = por %p72, %p73
    %p75 = scmp.ne.s32.totalorder %s67, %s70
    %p76 = scmp.eq.s32.totalorder %s17, 0
    %p77 = por %p75, %p76
    %p78 = scmp.ne.s32.totalorder %s67, %s70
    %p79 = scmp.eq.s32.totalorder %s22, 1
    %p80 = por %p78, %p79
    %p81 = scmp.ne.s32.totalorder %s70, %s71
    %p82 = scmp.eq.s32.totalorder %s22, 0
    %p83 = por %p81, %p82
    %p84 = scmp.ne.s32.totalorder %s70, %s71
    %p85 = scmp.eq.s32.totalorder %s23, 1
    %p86 = por %p84, %p85
    %p88 = scmp.ne.s32.totalorder %s71, %s87
    %p89 = scmp.eq.s32.totalorder %s23, 0
    %p90 = por %p88, %p89
    %s91 = ssub.s32 %s24, %s36
    %p92 = scmp.eq.s32.totalorder %s91, 0
    %s94 = sadd.s32 %s93, 1
    %s95 = scalar_select %p92, %s93, %s94
    %p98 = pneg %p92
    %p99 = scmp.eq.s32.totalorder %s17, 1
    %p100 = por %p98, %p99
    %p101 = scmp.ne.s32.totalorder %s93, %s96
    %p102 = scmp.eq.s32.totalorder %s17, 0
    %p103 = por %p101, %p102
    %p104 = scmp.ne.s32.totalorder %s93, %s96
    %p105 = scmp.eq.s32.totalorder %s22, 1
    %p106 = por %p104, %p105
    %p107 = scmp.ne.s32.totalorder %s96, %s97
    %p108 = scmp.eq.s32.totalorder %s22, 0
    %p109 = por %p107, %p108
    %p110 = scmp.ne.s32.totalorder %s96, %s97
    %p111 = scmp.eq.s32.totalorder %s23, 1
    %p112 = por %p110, %p111
    %p114 = scmp.ne.s32.totalorder %s97, %s113
    %p115 = scmp.eq.s32.totalorder %s23, 0
    %p116 = por %p114, %p115
    %s118 = sadd.s32 %s117, 1
    %p121 = scmp.eq.s32.totalorder %s17, 1
    %p122 = scmp.ne.s32.totalorder %s117, %s119
    %p123 = scmp.eq.s32.totalorder %s17, 0
    %p124 = por %p122, %p123
    %p125 = scmp.ne.s32.totalorder %s117, %s119
    %p126 = scmp.eq.s32.totalorder %s22, 1
    %p127 = por %p125, %p126
    %p128 = scmp.ne.s32.totalorder %s119, %s120
    %p129 = scmp.eq.s32.totalorder %s22, 0
    %p130 = por %p128, %p129
    %p131 = scmp.ne.s32.totalorder %s119, %s120
    %p132 = scmp.eq.s32.totalorder %s23, 1
    %p133 = por %p131, %p132
    %p135 = scmp.ne.s32.totalorder %s120, %s134
    %p136 = scmp.eq.s32.totalorder %s23, 0
    %p137 = por %p135, %p136
    %s139 = sadd.s32 %s138, 1
    %p142 = scmp.eq.s32.totalorder %s17, 1
    %p143 = scmp.ne.s32.totalorder %s138, %s140
    %p144 = scmp.eq.s32.totalorder %s17, 0
    %p145 = por %p143, %p144
    %p146 = scmp.ne.s32.totalorder %s138, %s140
    %p147 = scmp.eq.s32.totalorder %s22, 1
    %p148 = por %p146, %p147
    %p149 = scmp.ne.s32.totalorder %s140, %s141
    %p150 = scmp.eq.s32.totalorder %s22, 0
    %p151 = por %p149, %p150
    %p152 = scmp.ne.s32.totalorder %s140, %s141
    %p153 = scmp.eq.s32.totalorder %s23, 1
    %p154 = por %p152, %p153
    %p156 = scmp.ne.s32.totalorder %s141, %s155
    %p157 = scmp.eq.s32.totalorder %s23, 0
    %p158 = por %p156, %p157
    %s160 = sadd.s32 %s159, 1
    %p163 = scmp.eq.s32.totalorder %s17, 1
    %p164 = scmp.ne.s32.totalorder %s159, %s161
    %p165 = scmp.eq.s32.totalorder %s17, 0
    %p166 = por %p164, %p165
    %p167 = scmp.ne.s32.totalorder %s159, %s161
    %p168 = scmp.eq.s32.totalorder %s22, 1
    %p169 = por %p167, %p168
    %p170 = scmp.ne.s32.totalorder %s161, %s162
    %p171 = scmp.eq.s32.totalorder %s22, 0
    %p172 = por %p170, %p171
    %p173 = scmp.ne.s32.totalorder %s161, %s162
    %p174 = scmp.eq.s32.totalorder %s23, 1
    %p175 = por %p173, %p174
    %p177 = scmp.ne.s32.totalorder %s162, %s176
    %p178 = scmp.eq.s32.totalorder %s23, 0
    %p179 = por %p177, %p178
    %s181 = sadd.s32 %s180, 1
    %p184 = scmp.eq.s32.totalorder %s17, 1
    %p185 = scmp.ne.s32.totalorder %s180, %s182
    %p186 = scmp.eq.s32.totalorder %s17, 0
    %p187 = por %p185, %p186
    %p188 = scmp.ne.s32.totalorder %s180, %s182
    %p189 = scmp.eq.s32.totalorder %s22, 1
    %p190 = por %p188, %p189
    %p191 = scmp.ne.s32.totalorder %s182, %s183
    %p192 = scmp.eq.s32.totalorder %s22, 0
    %p193 = por %p191, %p192
    %p194 = scmp.ne.s32.totalorder %s182, %s183
    %p195 = scmp.eq.s32.totalorder %s23, 1
    %p196 = por %p194, %p195
    %p198 = scmp.ne.s32.totalorder %s183, %s197
    %p199 = scmp.eq.s32.totalorder %s23, 0
    %p200 = por %p198, %p199
    %s202 = sadd.s32 %s201, 1
    %p205 = scmp.eq.s32.totalorder %s17, 1
    %p206 = scmp.ne.s32.totalorder %s201, %s203
    %p207 = scmp.eq.s32.totalorder %s17, 0
    %p208 = por %p206, %p207
    %p209 = scmp.ne.s32.totalorder %s201, %s203
    %p210 = scmp.eq.s32.totalorder %s22, 1
    %p211 = por %p209, %p210
    %p212 = scmp.ne.s32.totalorder %s203, %s204
    %p213 = scmp.eq.s32.totalorder %s22, 0
    %p214 = por %p212, %p213
    %p215 = scmp.ne.s32.totalorder %s203, %s204
    %p216 = scmp.eq.s32.totalorder %s23, 1
    %p217 = por %p215, %p216
    %p219 = scmp.ne.s32.totalorder %s204, %s218
    %p220 = scmp.eq.s32.totalorder %s23, 0
    %p221 = por %p219, %p220
    %s223 = sadd.s32 %s222, 1
    %p226 = scmp.eq.s32.totalorder %s17, 1
    %p227 = scmp.ne.s32.totalorder %s222, %s224
    %p228 = scmp.eq.s32.totalorder %s17, 0
    %p229 = por %p227, %p228
    %p230 = scmp.ne.s32.totalorder %s222, %s224
    %p231 = scmp.eq.s32.totalorder %s22, 1
    %p232 = por %p230, %p231
    %p233 = scmp.ne.s32.totalorder %s224, %s225
    %p234 = scmp.eq.s32.totalorder %s22, 0
    %p235 = por %p233, %p234
    %p236 = scmp.ne.s32.totalorder %s224, %s225
    %p237 = scmp.eq.s32.totalorder %s23, 1
    %p238 = por %p236, %p237
    %p240 = scmp.ne.s32.totalorder %s225, %s239
    %p241 = scmp.eq.s32.totalorder %s23, 0
    %p242 = por %p240, %p241
    %s244 = sadd.s32 %s243, 1
    %p247 = scmp.eq.s32.totalorder %s17, 1
    %p248 = scmp.ne.s32.totalorder %s243, %s245
    %p249 = scmp.eq.s32.totalorder %s17, 0
    %p250 = por %p248, %p249
    %p251 = scmp.ne.s32.totalorder %s243, %s245
    %p252 = scmp.eq.s32.totalorder %s22, 1
    %p253 = por %p251, %p252
    %p254 = scmp.ne.s32.totalorder %s245, %s246
    %p255 = scmp.eq.s32.totalorder %s22, 0
    %p256 = por %p254, %p255
    %p257 = scmp.ne.s32.totalorder %s245, %s246
    %p258 = scmp.eq.s32.totalorder %s23, 1
    %p259 = por %p257, %p258
    %p261 = scmp.ne.s32.totalorder %s246, %s260
    %p262 = scmp.eq.s32.totalorder %s23, 0
    %p263 = por %p261, %p262
    %s265 = sadd.s32 %s264, 1
    %p268 = scmp.eq.s32.totalorder %s17, 1
    %p269 = scmp.ne.s32.totalorder %s264, %s266
    %p270 = scmp.eq.s32.totalorder %s17, 0
    %p271 = por %p269, %p270
    %p272 = scmp.ne.s32.totalorder %s264, %s266
    %p273 = scmp.eq.s32.totalorder %s22, 1
    %p274 = por %p272, %p273
    %p275 = scmp.ne.s32.totalorder %s266, %s267
    %p276 = scmp.eq.s32.totalorder %s22, 0
    %p277 = por %p275, %p276
    %p278 = scmp.ne.s32.totalorder %s266, %s267
    %p279 = scmp.eq.s32.totalorder %s23, 1
    %p280 = por %p278, %p279
    %p282 = scmp.ne.s32.totalorder %s267, %s281
    %p283 = scmp.eq.s32.totalorder %s23, 0
    %p284 = por %p282, %p283
    %s285 = ssub.s32 %s24, %s36
    %s286 = ssub.s32 %s25, %s32
    %s287 = sor.u32 %s285, %s286
    %p288 = scmp.eq.s32.totalorder %s287, 0
    %s290 = sadd.s32 %s289, 1
    %s291 = scalar_select %p288, %s289, %s290
    %p294 = pneg %p288
    %p295 = scmp.eq.s32.totalorder %s17, 1
    %p296 = por %p294, %p295
    %p297 = scmp.ne.s32.totalorder %s289, %s292
    %p298 = scmp.eq.s32.totalorder %s17, 0
    %p299 = por %p297, %p298
    %p300 = scmp.ne.s32.totalorder %s289, %s292
    %p301 = scmp.eq.s32.totalorder %s22, 1
    %p302 = por %p300, %p301
    %p303 = scmp.ne.s32.totalorder %s292, %s293
    %p304 = scmp.eq.s32.totalorder %s22, 0
    %p305 = por %p303, %p304
    %p306 = scmp.ne.s32.totalorder %s292, %s293
    %p307 = scmp.eq.s32.totalorder %s23, 1
    %p308 = por %p306, %p307
    %p310 = scmp.ne.s32.totalorder %s293, %s309
    %p311 = scmp.eq.s32.totalorder %s23, 0
    %p312 = por %p310, %p311
    %p313 = scmp.le.s32.totalorder 1, %s17
    %p314 = scmp.lt.s32.totalorder %s17, 3
    %p315 = pnand %p313, %p314
    %p316 = pneg %p315
    // Predicated region
    $region9: #{transformer_forward.16} parent=5 // pred_check
      _
    $region10: #{transformer_forward.16} parent=5 // pred_check_branch
      %318 = sbr.rel (%p315) target = $region12
    $region11: #{transformer_forward.16} parent=5 // pred_region
      %s319 = ssub.s32 %s17, 1
      // Predicated region
      $region13: #{transformer_forward.16} parent=11 // pred_check
        %p320 = pneg %p130
      $region14: #{transformer_forward.16} parent=11 // pred_check_branch
        %322 = sbr.rel (%p320) target = $region16
      $region15: #{transformer_forward.16} parent=11 // pred_region
        _
      $region16: #{transformer_forward.16} parent=11 // pred_fallthru
        _
      // Predicated region
      $region17: #{transformer_forward.16} parent=11 // pred_check
        %p323 = pneg %p151
      $region18: #{transformer_forward.16} parent=11 // pred_check_branch
        %325 = sbr.rel (%p323) target = $region20
      $region19: #{transformer_forward.16} parent=11 // pred_region
        _
      $region20: #{transformer_forward.16} parent=11 // pred_fallthru
        _
      // Predicated region
      $region21: #{transformer_forward.16} parent=11 // pred_check
        %p326 = pneg %p172
      $region22: #{transformer_forward.16} parent=11 // pred_check_branch
        %328 = sbr.rel (%p326) target = $region24
      $region23: #{transformer_forward.16} parent=11 // pred_region
        _
      $region24: #{transformer_forward.16} parent=11 // pred_fallthru
        _
      // Predicated region
      $region25: #{transformer_forward.16} parent=11 // pred_check
        %p329 = pneg %p193
      $region26: #{transformer_forward.16} parent=11 // pred_check_branch
        %331 = sbr.rel (%p329) target = $region28
      $region27: #{transformer_forward.16} parent=11 // pred_region
        _
      $region28: #{transformer_forward.16} parent=11 // pred_fallthru
        _
      // Predicated region
      $region29: #{transformer_forward.16} parent=11 // pred_check
        %p332 = pneg %p214
      $region30: #{transformer_forward.16} parent=11 // pred_check_branch
        %334 = sbr.rel (%p332) target = $region32
      $region31: #{transformer_forward.16} parent=11 // pred_region
        _
      $region32: #{transformer_forward.16} parent=11 // pred_fallthru
        _
      // Predicated region
      $region33: #{transformer_forward.16} parent=11 // pred_check
        %p335 = pneg %p235
      $region34: #{transformer_forward.16} parent=11 // pred_check_branch
        %337 = sbr.rel (%p335) target = $region36
      $region35: #{transformer_forward.16} parent=11 // pred_region
        _
      $region36: #{transformer_forward.16} parent=11 // pred_fallthru
        _
      // Predicated region
      $region37: #{transformer_forward.16} parent=11 // pred_check
        %p338 = pneg %p256
      $region38: #{transformer_forward.16} parent=11 // pred_check_branch
        %340 = sbr.rel (%p338) target = $region40
      $region39: #{transformer_forward.16} parent=11 // pred_region
        _
      $region40: #{transformer_forward.16} parent=11 // pred_fallthru
        _
      // Predicated region
      $region41: #{transformer_forward.16} parent=11 // pred_check
        %p341 = pneg %p277
      $region42: #{transformer_forward.16} parent=11 // pred_check_branch
        %343 = sbr.rel (%p341) target = $region44
      $region43: #{transformer_forward.16} parent=11 // pred_region
        _
      $region44: #{transformer_forward.16} parent=11 // pred_fallthru
        _
    $region12: #{transformer_forward.16} parent=5 // pred_fallthru
      _
    %p344 = scmp.lt.s32.totalorder %s17, 2
    // Predicated region
    $region45: #{transformer_forward.16} parent=5 // pred_check
      %p345 = pneg %p344
    $region46: #{transformer_forward.16} parent=5 // pred_check_branch
      %347 = sbr.rel (%p345) target = $region48
    $region47: #{transformer_forward.16} parent=5 // pred_region
      // Predicated region
      $region49: #{transformer_forward.16} parent=47 // pred_check
        %p348 = pneg %p51
      $region50: #{transformer_forward.16} parent=47 // pred_check_branch
        %350 = sbr.rel (%p348) target = $region52
      $region51: #{transformer_forward.16} parent=47 // pred_region
        %p351 = scmp.lt.s32.totalorder %s24, 1
        %s352 = scalar_select %p351, %s24, 1
        %p353 = scmp.lt.s32.totalorder %s25, 0
        %s354 = scalar_select %p353, %s25, 0
        %s355 = sadd.s32 %s354, %s352
        %s356 = smul.addr %s355, 4
        %s357 = scalar_lea.vmem %s0, %s356
      $region52: #{transformer_forward.16} parent=47 // pred_fallthru
        _
      // Predicated region
      $region53: #{transformer_forward.16} parent=47 // pred_check
        %p358 = pneg %p77
      $region54: #{transformer_forward.16} parent=47 // pred_check_branch
        %360 = sbr.rel (%p358) target = $region56
      $region55: #{transformer_forward.16} parent=47 // pred_region
        %p361 = scmp.lt.s32.totalorder %s24, 1
        %s362 = scalar_select %p361, %s24, 1
        %s363 = smul.addr %s362, 2
        %s364 = smul.addr %s363, 4
        %s365 = scalar_lea.vmem %s1, %s364
      $region56: #{transformer_forward.16} parent=47 // pred_fallthru
        _
      // Predicated region
      $region57: #{transformer_forward.16} parent=47 // pred_check
        %p366 = pneg %p103
      $region58: #{transformer_forward.16} parent=47 // pred_check_branch
        %368 = sbr.rel (%p366) target = $region60
      $region59: #{transformer_forward.16} parent=47 // pred_region
        %p369 = scmp.lt.s32.totalorder %s24, 1
        %s370 = scalar_select %p369, %s24, 1
        %s371 = scalar_lea.vmem %s2, %s370
      $region60: #{transformer_forward.16} parent=47 // pred_fallthru
        _
    $region48: #{transformer_forward.16} parent=5 // pred_fallthru
      _
    %p372 = scmp.le.s32.totalorder 1, %s17
    %p373 = scmp.lt.s32.totalorder %s17, 3
    %p374 = pnand %p372, %p373
    %p375 = pneg %p374
    // Predicated region
    $region61: #{transformer_forward.16} parent=5 // pred_check
      _
    $region62: #{transformer_forward.16} parent=5 // pred_check_branch
      %377 = sbr.rel (%p374) target = $region64
    $region63: #{transformer_forward.16} parent=5 // pred_region
      %s378 = ssub.s32 %s17, 1
      %p379 = scmp.lt.s32.totalorder %s26, 1
      %s380 = scalar_select %p379, %s26, 1
      %p381 = scmp.lt.s32.totalorder %s27, 0
      %s382 = scalar_select %p381, %s27, 0
      %s383 = sadd.s32 %s382, %s380
      %s384 = smul.addr %s383, 4
      %s385 = scalar_lea.vmem %s0, %s384
      %p386 = pneg %p57
      %p387 = pneg %p54
      %p388 = scmp.lt.s32.totalorder %s26, 1
      %s389 = scalar_select %p388, %s26, 1
      %s390 = smul.addr %s389, 2
      %s391 = smul.addr %s390, 4
      %s392 = scalar_lea.vmem %s1, %s391
      %p393 = pneg %p83
      %p394 = pneg %p80
      %p395 = scmp.lt.s32.totalorder %s26, 1
      %s396 = scalar_select %p395, %s26, 1
      %s397 = scalar_lea.vmem %s2, %s396
      %p398 = pneg %p109
      %p399 = pneg %p106
      %p400 = pneg %p130
      %p401 = pneg %p127
      %p402 = pneg %p151
      %p403 = pneg %p148
      %p404 = pneg %p172
      %p405 = pneg %p169
      %p406 = pneg %p193
      %p407 = pneg %p190
      %p408 = pneg %p214
      %p409 = pneg %p211
      %p410 = pneg %p235
      %p411 = pneg %p232
      %p412 = pneg %p256
      %p413 = pneg %p253
      %p414 = pneg %p277
      %p415 = pneg %p274
      %p416 = pneg %p305
      %p417 = pneg %p302
      %p418 = scmp.lt.s32.totalorder %s26, 1
      %s419 = scalar_select %p418, %s26, 1
      %p420 = scmp.lt.s32.totalorder %s27, 0
      %s421 = scalar_select %p420, %s27, 0
      %s422 = sadd.s32 %s421, %s419
      %s423 = smul.addr %s422, 4
      %s424 = scalar_lea.vmem %s11, %s423
      %p425 = scmp.lt.s32.totalorder %s26, 1
      %s426 = scalar_select %p425, %s26, 1
      %p427 = scmp.lt.s32.totalorder %s27, 0
      %s428 = scalar_select %p427, %s27, 0
      %s429 = sadd.s32 %s428, %s426
      %s430 = smul.addr %s429, 4
      %s431 = scalar_lea.vmem %s0, %s430
      %p432 = scmp.lt.s32.totalorder %s26, 1
      %s433 = scalar_select %p432, %s26, 1
      %s434 = smul.addr %s433, 2
      %s435 = smul.addr %s434, 4
      %s436 = scalar_lea.vmem %s1, %s435
      %p437 = scmp.lt.s32.totalorder %s26, 1
      %s438 = scalar_select %p437, %s26, 1
      %s439 = scalar_lea.vmem %s2, %s438
      %p440 = scmp.lt.s32.totalorder %s26, 1
      %s441 = scalar_select %p440, %s26, 1
      %p442 = scmp.lt.s32.totalorder %s27, 0
      %s443 = scalar_select %p442, %s27, 0
      %s444 = sadd.s32 %s443, %s441
      %s445 = smul.addr %s444, 4
      %s446 = scalar_lea.vmem %s11, %s445
      %v448 = vld [vmem:[%s431] sm:$0xf]
      %v449 = vld [vmem:[%s436] sm:$0xf]
      %v450 = vld [vmem:[%s436 + $0x4] sm:$0xf]
      %v451 = vld [vmem:[%s439] sm:$0x1]
      %vm452 = vcmp.gt.f32.partialorder %v451, 0.5
      %v453 = vsel %vm452, 0.0, -1e+09
      %v454 = vld [vmem:[%s3] sm:$0xf]
      %v455 = vld [vmem:[%s3 + $0x4] sm:$0xf]
      %v456 = vld [vmem:[%s3 + $0x8] sm:$0xf]
      %v457 = vld [vmem:[%s3 + $0xc] sm:$0xf]
      %v458 = vld [vmem:[%s4] sm:$0x1]
      %v460 = vlaneseq
      %v461 = vshrl.u32 %v460, 7
      %v462 = vsub.s32 0, %v461
      %v463 = vrot.slane %v458, %v462
      %v469 = vunpack.c.l.b16 %v454
      %v470 = vunpack.c.l.b16 %v455
      %v471 = vunpack.c.l.b16 %v456
      %v472 = vunpack.c.l.b16 %v457
      %v473 = vpack.c.b16 %v470, %v469
      %v474 = vpack.c.b16 %v472, %v471
      %vm477 = vcmask 261120
      %v479 = vsel %vm477, %v448, 0
      %481 = vmatprep.subr.bf16.mxu0 0
      %482 = vmatpush1.bf16.msra.mxu0 %v473
      %483 = vmatprep.subr.bf16.mxu0 0
      %484 = vmatpush1.bf16.msra.mxu0 %v474
      %485 = vmatprep.subr.bf16.mxu0 0
      %486 = vmatpush1.bf16.msra.mxu0 0
      %487 = vmatprep.subr.bf16.mxu0 0
      %488 = vmatpush1.bf16.msra.mxu0 0
      %489 = vmatprep.subr.bf16.mxu0 0
      %490 = vmatpush1.bf16.msra.mxu0 0
      %491 = vmatprep.subr.bf16.mxu0 0
      %492 = vmatpush1.bf16.msra.mxu0 0
      %493 = vmatprep.subr.bf16.mxu0 0
      %494 = vmatpush1.bf16.msra.mxu0 0
      %495 = vmatprep.subr.bf16.mxu0 0
      %496 = vmatpush1.bf16.msra.mxu0 0
      %497 = vmatprep.subr.bf16.mxu0 0
      %498 = vmatpush1.bf16.msra.mxu0 0
      %499 = vmatprep.subr.bf16.mxu0 0
      %500 = vmatpush1.bf16.msra.mxu0 0
      %501 = vmatprep.subr.bf16.mxu0 0
      %502 = vmatpush1.bf16.msra.mxu0 0
      %503 = vmatprep.subr.bf16.mxu0 0
      %504 = vmatpush1.bf16.msra.mxu0 0
      %505 = vmatprep.subr.bf16.mxu0 0
      %506 = vmatpush1.bf16.msra.mxu0 0
      %507 = vmatprep.subr.bf16.mxu0 0
      %508 = vmatpush1.bf16.msra.mxu0 0
      %509 = vmatprep.subr.bf16.mxu0 0
      %510 = vmatpush1.bf16.msra.mxu0 0
      %511 = vmatprep.subr.bf16.mxu0 0
      %512 = vmatpush1.bf16.msra.mxu0 0
      %513 = vmatprep.mubr.bf16.mxu0 0
      %514 = vmatmul.mubr.bf16.gmra.mrb[0].mxu0 %v479
      %v515 = vpop.f32.mrb[0].mxu0
      %v516 = vadd.f32 %v463, %v515
      %v517 = vpop.f32.mrb[0].mxu0
      %v518 = vpop.f32.mrb[0].mxu0
      %v519 = vpop.f32.mrb[0].mxu0
      %520 = vdwg.mxu0
      %v521 = vld [vmem:[%s5] sm:$0xf]
      %v522 = vld [vmem:[%s5 + $0x4] sm:$0xf]
      %v523 = vld [vmem:[%s5 + $0x8] sm:$0xf]
      %v524 = vld [vmem:[%s5 + $0xc] sm:$0xf]
      %v525 = vld [vmem:[%s6] sm:$0x1]
      %v527 = vlaneseq
      %v528 = vshrl.u32 %v527, 7
      %v529 = vsub.s32 0, %v528
      %v530 = vrot.slane %v525, %v529
      %v534 = vunpack.c.l.b16 %v449
      %v535 = vunpack.c.l.b16 %v450
      %v536 = vpack.c.b16 %v535, %v534
      %v541 = vunpack.c.l.b16 %v521
      %v542 = vunpack.c.l.b16 %v522
      %v543 = vunpack.c.l.b16 %v523
      %v544 = vunpack.c.l.b16 %v524
      %v545 = vpack.c.b16 %v542, %v541
      %v546 = vpack.c.b16 %v544, %v543
      %v550 = vsel %vm477, %v536, 0
      %552 = vmatprep.subr.bf16.mxu0 0
      %553 = vmatpush1.bf16.msra.mxu0 %v545
      %554 = vmatprep.subr.bf16.mxu0 0
      %555 = vmatpush1.bf16.msra.mxu0 %v546
      %556 = vmatprep.subr.bf16.mxu0 0
      %557 = vmatpush1.bf16.msra.mxu0 0
      %558 = vmatprep.subr.bf16.mxu0 0
      %559 = vmatpush1.bf16.msra.mxu0 0
      %560 = vmatprep.subr.bf16.mxu0 0
      %561 = vmatpush1.bf16.msra.mxu0 0
      %562 = vmatprep.subr.bf16.mxu0 0
      %563 = vmatpush1.bf16.msra.mxu0 0
      %564 = vmatprep.subr.bf16.mxu0 0
      %565 = vmatpush1.bf16.msra.mxu0 0
      %566 = vmatprep.subr.bf16.mxu0 0
      %567 = vmatpush1.bf16.msra.mxu0 0
      %568 = vmatprep.subr.bf16.mxu0 0
      %569 = vmatpush1.bf16.msra.mxu0 0
      %570 = vmatprep.subr.bf16.mxu0 0
      %571 = vmatpush1.bf16.msra.mxu0 0
      %572 = vmatprep.subr.bf16.mxu0 0
      %573 = vmatpush1.bf16.msra.mxu0 0
      %574 = vmatprep.subr.bf16.mxu0 0
      %575 = vmatpush1.bf16.msra.mxu0 0
      %576 = vmatprep.subr.bf16.mxu0 0
      %577 = vmatpush1.bf16.msra.mxu0 0
      %578 = vmatprep.subr.bf16.mxu0 0
      %579 = vmatpush1.bf16.msra.mxu0 0
      %580 = vmatprep.subr.bf16.mxu0 0
      %581 = vmatpush1.bf16.msra.mxu0 0
      %582 = vmatprep.subr.bf16.mxu0 0
      %583 = vmatpush1.bf16.msra.mxu0 0
      %584 = vmatprep.mubr.bf16.mxu0 0
      %585 = vmatmul.mubr.bf16.gmra.mrb[0].mxu0 %v550
      %v586 = vpop.f32.mrb[0].mxu0
      %v587 = vadd.f32 %v530, %v586
      %v588 = vpop.f32.mrb[0].mxu0
      %v589 = vpop.f32.mrb[0].mxu0
      %v590 = vadd.f32 %v530, %v589
      %v591 = vpop.f32.mrb[0].mxu0
      %592 = vdwg.mxu0
      %v593 = vld [vmem:[%s7] sm:$0xf]
      %v594 = vld [vmem:[%s7 + $0x4] sm:$0xf]
      %v595 = vld [vmem:[%s7 + $0x8] sm:$0xf]
      %v596 = vld [vmem:[%s7 + $0xc] sm:$0xf]
      %v597 = vpack.c.bf16 %v516, %v516
      %v598 = vpack.c.bf16 %v590, %v587
      %v600 = vlaneseq
      %v601 = vshrl.u32 %v600, 7
      %v602 = vsub.s32 0, %v601
      %v603 = vrot.slane %v453, %v602
      %vm605 = vcmask 64512
      %v607 = vsel %vm605, %v597, 0
      %v610 = vsel %vm605, %v598, 0
      %612 = vmatprep.subr.bf16.mxu0 0
      %613 = vmatpush1.bf16.xpose.msra.mxu0 %v610
      %614 = vmatprep.subr.bf16.mxu0 0
      %615 = vmatpush1.bf16.xpose.msra.mxu0 0
      %616 = vmatprep.subr.bf16.mxu0 0
      %617 = vmatpush1.bf16.xpose.msra.mxu0 0
      %618 = vmatprep.subr.bf16.mxu0 0
      %619 = vmatpush1.bf16.xpose.msra.mxu0 0
      %620 = vmatprep.subr.bf16.mxu0 0
      %621 = vmatpush1.bf16.xpose.msra.mxu0 0
      %622 = vmatprep.subr.bf16.mxu0 0
      %623 = vmatpush1.bf16.xpose.msra.mxu0 0
      %624 = vmatprep.subr.bf16.mxu0 0
      %625 = vmatpush1.bf16.xpose.msra.mxu0 0
      %626 = vmatprep.subr.bf16.mxu0 0
      %627 = vmatpush1.bf16.xpose.msra.mxu0 0
      %628 = vmatprep.subr.bf16.mxu0 0
      %629 = vmatpush1.bf16.xpose.msra.mxu0 0
      %630 = vmatprep.subr.bf16.mxu0 0
      %631 = vmatpush1.bf16.xpose.msra.mxu0 0
      %632 = vmatprep.subr.bf16.mxu0 0
      %633 = vmatpush1.bf16.xpose.msra.mxu0 0
      %634 = vmatprep.subr.bf16.mxu0 0
      %635 = vmatpush1.bf16.xpose.msra.mxu0 0
      %636 = vmatprep.subr.bf16.mxu0 0
      %637 = vmatpush1.bf16.xpose.msra.mxu0 0
      %638 = vmatprep.subr.bf16.mxu0 0
      %639 = vmatpush1.bf16.xpose.msra.mxu0 0
      %640 = vmatprep.subr.bf16.mxu0 0
      %641 = vmatpush1.bf16.xpose.msra.mxu0 0
      %642 = vmatprep.subr.bf16.mxu0 0
      %643 = vmatpush1.bf16.xpose.msra.mxu0 0
      %644 = vmatprep.mubr.bf16.mxu0 0
      %645 = vmatmul.mubr.bf16.gmra.mrb[0].mxu0 %v607
      %v646 = vpop.f32.mrb[0].mxu0
      %v647 = vadd.f32 %v603, %v646
      %v648 = vpop.f32.mrb[0].mxu0
      %v649 = vpop.f32.mrb[0].mxu0
      %v650 = vpop.f32.mrb[0].mxu0
      %651 = vdwg.mxu0
      %vm652 = vcmask 130048
      %v653 = vsel %vm652, %v647, -inf
      %654 = vmax.xlane.f32.xlu0 %v653
      %v655 = vpop.xlane.xlu0 %654
      %v656 = vsub.f32 %v647, %v655
      %v657 = vmul.f32 %v656, 1.442695
      %v658 = vpow.pop %v657
      %v659 = vsel %vm652, %v658, 0.0
      %660 = vadd.xlane.f32.xlu0 %v659
      %v661 = vpop.xlane.xlu0 %660
      %v662 = vrcp.pop %v661
      %v663 = vmul.f32 %v658, %v662
      %v664 = vpack.c.bf16 %v663, %v663
      %666 = vrot.lane.b32.xlu0 %v598, 96
      %v667 = vpop.permute.xlu0 %666
      %v670 = vsel %vm652, %v664, 0
      %672 = vmatprep.subr.bf16.mxu0 0
      %673 = vmatpush1.bf16.msra.mxu0 %v667
      %674 = vmatprep.subr.bf16.mxu0 0
      %675 = vmatpush1.bf16.msra.mxu0 0
      %676 = vmatprep.subr.bf16.mxu0 0
      %677 = vmatpush1.bf16.msra.mxu0 0
      %678 = vmatprep.subr.bf16.mxu0 0
      %679 = vmatpush1.bf16.msra.mxu0 0
      %680 = vmatprep.subr.bf16.mxu0 0
      %681 = vmatpush1.bf16.msra.mxu0 0
      %682 = vmatprep.subr.bf16.mxu0 0
      %683 = vmatpush1.bf16.msra.mxu0 0
      %684 = vmatprep.subr.bf16.mxu0 0
      %685 = vmatpush1.bf16.msra.mxu0 0
      %686 = vmatprep.subr.bf16.mxu0 0
      %687 = vmatpush1.bf16.msra.mxu0 0
      %688 = vmatprep.subr.bf16.mxu0 0
      %689 = vmatpush1.bf16.msra.mxu0 0
      %690 = vmatprep.subr.bf16.mxu0 0
      %691 = vmatpush1.bf16.msra.mxu0 0
      %692 = vmatprep.subr.bf16.mxu0 0
      %693 = vmatpush1.bf16.msra.mxu0 0
      %694 = vmatprep.subr.bf16.mxu0 0
      %695 = vmatpush1.bf16.msra.mxu0 0
      %696 = vmatprep.subr.bf16.mxu0 0
      %697 = vmatpush1.bf16.msra.mxu0 0
      %698 = vmatprep.subr.bf16.mxu0 0
      %699 = vmatpush1.bf16.msra.mxu0 0
      %700 = vmatprep.subr.bf16.mxu0 0
      %701 = vmatpush1.bf16.msra.mxu0 0
      %702 = vmatprep.subr.bf16.mxu0 0
      %703 = vmatpush1.bf16.msra.mxu0 0
      %704 = vmatprep.mubr.bf16.mxu0 0
      %705 = vmatmul.mubr.bf16.gmra.mrb[0].mxu0 %v670
      %v706 = vpop.f32.mrb[0].mxu0
      %v707 = vadd.f32 0.0, %v706
      %v708 = vpop.f32.mrb[0].mxu0
      %v709 = vpop.f32.mrb[0].mxu0
      %v710 = vpop.f32.mrb[0].mxu0
      %711 = vdwg.mxu0
      %v712 = vpack.c.bf16 %v707, %v707
      %714 = vrot.lane.b32.xlu0 %v597, 120
      %v715 = vpop.permute.xlu0 %714
      %716 = vrot.lane.b32.xlu0 %v598, 120
      %v717 = vpop.permute.xlu0 %716
      %v719 = vsel %vm605, %v715, 0
      %v722 = vsel %vm605, %v717, 0
      %724 = vmatprep.subr.bf16.mxu0 0
      %725 = vmatpush1.bf16.xpose.msra.mxu0 %v722
      %726 = vmatprep.subr.bf16.mxu0 0
      %727 = vmatpush1.bf16.xpose.msra.mxu0 0
      %728 = vmatprep.subr.bf16.mxu0 0
      %729 = vmatpush1.bf16.xpose.msra.mxu0 0
      %730 = vmatprep.subr.bf16.mxu0 0
      %731 = vmatpush1.bf16.xpose.msra.mxu0 0
      %732 = vmatprep.subr.bf16.mxu0 0
      %733 = vmatpush1.bf16.xpose.msra.mxu0 0
      %734 = vmatprep.subr.bf16.mxu0 0
      %735 = vmatpush1.bf16.xpose.msra.mxu0 0
      %736 = vmatprep.subr.bf16.mxu0 0
      %737 = vmatpush1.bf16.xpose.msra.mxu0 0
      %738 = vmatprep.subr.bf16.mxu0 0
      %739 = vmatpush1.bf16.xpose.msra.mxu0 0
      %740 = vmatprep.subr.bf16.mxu0 0
      %741 = vmatpush1.bf16.xpose.msra.mxu0 0
      %742 = vmatprep.subr.bf16.mxu0 0
      %743 = vmatpush1.bf16.xpose.msra.mxu0 0
      %744 = vmatprep.subr.bf16.mxu0 0
      %745 = vmatpush1.bf16.xpose.msra.mxu0 0
      %746 = vmatprep.subr.bf16.mxu0 0
      %747 = vmatpush1.bf16.xpose.msra.mxu0 0
      %748 = vmatprep.subr.bf16.mxu0 0
      %749 = vmatpush1.bf16.xpose.msra.mxu0 0
      %750 = vmatprep.subr.bf16.mxu0 0
      %751 = vmatpush1.bf16.xpose.msra.mxu0 0
      %752 = vmatprep.subr.bf16.mxu0 0
      %753 = vmatpush1.bf16.xpose.msra.mxu0 0
      %754 = vmatprep.subr.bf16.mxu0 0
      %755 = vmatpush1.bf16.xpose.msra.mxu0 0
      %756 = vmatprep.mubr.bf16.mxu0 0
      %757 = vmatmul.mubr.bf16.gmra.mrb[0].mxu0 %v719
      %v758 = vpop.f32.mrb[0].mxu0
      %v759 = vadd.f32 %v603, %v758
      %v760 = vpop.f32.mrb[0].mxu0
      %v761 = vpop.f32.mrb[0].mxu0
      %v762 = vpop.f32.mrb[0].mxu0
      %763 = vdwg.mxu0
      %v764 = vsel %vm652, %v759, -inf
      %765 = vmax.xlane.f32.xlu0 %v764
      %v766 = vpop.xlane.xlu0 %765
      %v767 = vsub.f32 %v759, %v766
      %v768 = vmul.f32 %v767, 1.442695
      %v769 = vpow.pop %v768
      %v770 = vsel %vm652, %v769, 0.0
      %771 = vadd.xlane.f32.xlu0 %v770
      %v772 = vpop.xlane.xlu0 %771
      %v773 = vrcp.pop %v772
      %v774 = vmul.f32 %v769, %v773
      %v775 = vpack.c.bf16 %v774, %v774
      %776 = vrot.lane.b32.xlu0 %v598, 88
      %v777 = vpop.permute.xlu0 %776
      %v780 = vsel %vm652, %v775, 0
      %782 = vmatprep.subr.bf16.mxu0 0
      %783 = vmatpush1.bf16.msra.mxu0 %v777
      %784 = vmatprep.subr.bf16.mxu0 0
      %785 = vmatpush1.bf16.msra.mxu0 0
      %786 = vmatprep.subr.bf16.mxu0 0
      %787 = vmatpush1.bf16.msra.mxu0 0
      %788 = vmatprep.subr.bf16.mxu0 0
      %789 = vmatpush1.bf16.msra.mxu0 0
      %790 = vmatprep.subr.bf16.mxu0 0
      %791 = vmatpush1.bf16.msra.mxu0 0
      %792 = vmatprep.subr.bf16.mxu0 0
      %793 = vmatpush1.bf16.msra.mxu0 0
      %794 = vmatprep.subr.bf16.mxu0 0
      %795 = vmatpush1.bf16.msra.mxu0 0
      %796 = vmatprep.subr.bf16.mxu0 0
      %797 = vmatpush1.bf16.msra.mxu0 0
      %798 = vmatprep.subr.bf16.mxu0 0
      %799 = vmatpush1.bf16.msra.mxu0 0
      %800 = vmatprep.subr.bf16.mxu0 0
      %801 = vmatpush1.bf16.msra.mxu0 0
      %802 = vmatprep.subr.bf16.mxu0 0
      %803 = vmatpush1.bf16.msra.mxu0 0
      %804 = vmatprep.subr.bf16.mxu0 0
      %805 = vmatpush1.bf16.msra.mxu0 0
      %806 = vmatprep.subr.bf16.mxu0 0
      %807 = vmatpush1.bf16.msra.mxu0 0
      %808 = vmatprep.subr.bf16.mxu0 0
      %809 = vmatpush1.bf16.msra.mxu0 0
      %810 = vmatprep.subr.bf16.mxu0 0
      %811 = vmatpush1.bf16.msra.mxu0 0
      %812 = vmatprep.subr.bf16.mxu0 0
      %813 = vmatpush1.bf16.msra.mxu0 0
      %814 = vmatprep.mubr.bf16.mxu0 0
      %815 = vmatmul.mubr.bf16.gmra.mrb[0].mxu0 %v780
      %v816 = vpop.f32.mrb[0].mxu0
      %v817 = vadd.f32 0.0, %v816
      %v818 = vpop.f32.mrb[0].mxu0
      %v819 = vpop.f32.mrb[0].mxu0
      %v820 = vpop.f32.mrb[0].mxu0
      %821 = vdwg.mxu0
      %v822 = vpack.c.bf16 %v817, %v817
      %v824 = vsel %vm605, %v822, 0
      %vm826 = vcmask 1043456
      %v828 = vsel %vm826, %v594, 0
      %830 = vmatprep.subr.bf16.mxu0 0
      %831 = vmatpush1.bf16.msra.mxu0 %v828
      %832 = vmatprep.subr.bf16.mxu0 0
      %833 = vmatpush1.bf16.msra.mxu0 0
      %834 = vmatprep.subr.bf16.mxu0 0
      %835 = vmatpush1.bf16.msra.mxu0 0
      %836 = vmatprep.subr.bf16.mxu0 0
      %837 = vmatpush1.bf16.msra.mxu0 0
      %838 = vmatprep.subr.bf16.mxu0 0
      %839 = vmatpush1.bf16.msra.mxu0 0
      %840 = vmatprep.subr.bf16.mxu0 0
      %841 = vmatpush1.bf16.msra.mxu0 0
      %842 = vmatprep.subr.bf16.mxu0 0
      %843 = vmatpush1.bf16.msra.mxu0 0
      %844 = vmatprep.subr.bf16.mxu0 0
      %845 = vmatpush1.bf16.msra.mxu0 0
      %846 = vmatprep.subr.bf16.mxu0 0
      %847 = vmatpush1.bf16.msra.mxu0 0
      %848 = vmatprep.subr.bf16.mxu0 0
      %849 = vmatpush1.bf16.msra.mxu0 0
      %850 = vmatprep.subr.bf16.mxu0 0
      %851 = vmatpush1.bf16.msra.mxu0 0
      %852 = vmatprep.subr.bf16.mxu0 0
      %853 = vmatpush1.bf16.msra.mxu0 0
      %854 = vmatprep.subr.bf16.mxu0 0
      %855 = vmatpush1.bf16.msra.mxu0 0
      %856 = vmatprep.subr.bf16.mxu0 0
      %857 = vmatpush1.bf16.msra.mxu0 0
      %858 = vmatprep.subr.bf16.mxu0 0
      %859 = vmatpush1.bf16.msra.mxu0 0
      %860 = vmatprep.subr.bf16.mxu0 0
      %861 = vmatpush1.bf16.msra.mxu0 0
      %862 = vmatprep.mubr.bf16.mxu0 0
      %863 = vmatmul.mubr.bf16.gmra.mrb[0].mxu0 %v824
      %v864 = vpop.f32.mrb[0].mxu0
      %v865 = vadd.f32 0.0, %v864
      %v866 = vpop.f32.mrb[0].mxu0
      %v867 = vpop.f32.mrb[0].mxu0
      %v868 = vpop.f32.mrb[0].mxu0
      %869 = vdwg.mxu0
      %v871 = vsel %vm605, %v712, 0
      %v874 = vsel %vm826, %v593, 0
      %876 = vmatprep.subr.bf16.mxu0 0
      %877 = vmatpush1.bf16.msra.mxu0 %v874
      %878 = vmatprep.subr.bf16.mxu0 0
      %879 = vmatpush1.bf16.msra.mxu0 0
      %880 = vmatprep.subr.bf16.mxu0 0
      %881 = vmatpush1.bf16.msra.mxu0 0
      %882 = vmatprep.subr.bf16.mxu0 0
      %883 = vmatpush1.bf16.msra.mxu0 0
      %884 = vmatprep.subr.bf16.mxu0 0
      %885 = vmatpush1.bf16.msra.mxu0 0
      %886 = vmatprep.subr.bf16.mxu0 0
      %887 = vmatpush1.bf16.msra.mxu0 0
      %888 = vmatprep.subr.bf16.mxu0 0
      %889 = vmatpush1.bf16.msra.mxu0 0
      %890 = vmatprep.subr.bf16.mxu0 0
      %891 = vmatpush1.bf16.msra.mxu0 0
      %892 = vmatprep.subr.bf16.mxu0 0
      %893 = vmatpush1.bf16.msra.mxu0 0
      %894 = vmatprep.subr.bf16.mxu0 0
      %895 = vmatpush1.bf16.msra.mxu0 0
      %896 = vmatprep.subr.bf16.mxu0 0
      %897 = vmatpush1.bf16.msra.mxu0 0
      %898 = vmatprep.subr.bf16.mxu0 0
      %899 = vmatpush1.bf16.msra.mxu0 0
      %900 = vmatprep.subr.bf16.mxu0 0
      %901 = vmatpush1.bf16.msra.mxu0 0
      %902 = vmatprep.subr.bf16.mxu0 0
      %903 = vmatpush1.bf16.msra.mxu0 0
      %904 = vmatprep.subr.bf16.mxu0 0
      %905 = vmatpush1.bf16.msra.mxu0 0
      %906 = vmatprep.subr.bf16.mxu0 0
      %907 = vmatpush1.bf16.msra.mxu0 0
      %908 = vmatprep.mubr.bf16.mxu0 0
      %909 = vmatmul.mubr.bf16.gmra.mrb[0].mxu0 %v871
      %v910 = vpop.f32.mrb[0].mxu0
      %v911 = vadd.f32 %v865, %v910
      %v912 = vpop.f32.mrb[0].mxu0
      %v913 = vpop.f32.mrb[0].mxu0
      %v914 = vpop.f32.mrb[0].mxu0
      %915 = vdwg.mxu0
      %916 = vrot.lane.b32.xlu0 %v597, 112
      %v917 = vpop.permute.xlu0 %916
      %918 = vrot.lane.b32.xlu0 %v598, 112
      %v919 = vpop.permute.xlu0 %918
      %v921 = vsel %vm605, %v917, 0
      %v924 = vsel %vm605, %v919, 0
      %926 = vmatprep.subr.bf16.mxu0 0
      %927 = vmatpush1.bf16.xpose.msra.mxu0 %v924
      %928 = vmatprep.subr.bf16.mxu0 0
      %929 = vmatpush1.bf16.xpose.msra.mxu0 0
      %930 = vmatprep.subr.bf16.mxu0 0
      %931 = vmatpush1.bf16.xpose.msra.mxu0 0
      %932 = vmatprep.subr.bf16.mxu0 0
      %933 = vmatpush1.bf16.xpose.msra.mxu0 0
      %934 = vmatprep.subr.bf16.mxu0 0
      %935 = vmatpush1.bf16.xpose.msra.mxu0 0
      %936 = vmatprep.subr.bf16.mxu0 0
      %937 = vmatpush1.bf16.xpose.msra.mxu0 0
      %938 = vmatprep.subr.bf16.mxu0 0
      %939 = vmatpush1.bf16.xpose.msra.mxu0 0
      %940 = vmatprep.subr.bf16.mxu0 0
      %941 = vmatpush1.bf16.xpose.msra.mxu0 0
      %942 = vmatprep.subr.bf16.mxu0 0
      %943 = vmatpush1.bf16.xpose.msra.mxu0 0
      %944 = vmatprep.subr.bf16.mxu0 0
      %945 = vmatpush1.bf16.xpose.msra.mxu0 0
      %946 = vmatprep.subr.bf16.mxu0 0
      %947 = vmatpush1.bf16.xpose.msra.mxu0 0
      %948 = vmatprep.subr.bf16.mxu0 0
      %949 = vmatpush1.bf16.xpose.msra.mxu0 0
      %950 = vmatprep.subr.bf16.mxu0 0
      %951 = vmatpush1.bf16.xpose.msra.mxu0 0
      %952 = vmatprep.subr.bf16.mxu0 0
      %953 = vmatpush1.bf16.xpose.msra.mxu0 0
      %954 = vmatprep.subr.bf16.mxu0 0
      %955 = vmatpush1.bf16.xpose.msra.mxu0 0
      %956 = vmatprep.subr.bf16.mxu0 0
      %957 = vmatpush1.bf16.xpose.msra.mxu0 0
      %958 = vmatprep.mubr.bf16.mxu0 0
      %959 = vmatmul.mubr.bf16.gmra.mrb[0].mxu0 %v921
      %v960 = vpop.f32.mrb[0].mxu0
      %v961 = vadd.f32 %v603, %v960
      %v962 = vpop.f32.mrb[0].mxu0
      %v963 = vpop.f32.mrb[0].mxu0
      %v964 = vpop.f32.mrb[0].mxu0
      %965 = vdwg.mxu0
      %v966 = vsel %vm652, %v961, -inf
      %967 = vmax.xlane.f32.xlu0 %v966
      %v968 = vpop.xlane.xlu0 %967
      %v969 = vsub.f32 %v961, %v968
      %v970 = vmul.f32 %v969, 1.442695
      %v971 = vpow.pop %v970
      %v972 = vsel %vm652, %v971, 0.0
      %973 = vadd.xlane.f32.xlu0 %v972
      %v974 = vpop.xlane.xlu0 %973
      %v975 = vrcp.pop %v974
      %v976 = vmul.f32 %v971, %v975
      %v977 = vpack.c.bf16 %v976, %v976
      %978 = vrot.lane.b32.xlu0 %v598, 80
      %v979 = vpop.permute.xlu0 %978
      %v982 = vsel %vm652, %v977, 0
      %984 = vmatprep.subr.bf16.mxu0 0
      %985 = vmatpush1.bf16.msra.mxu0 %v979
      %986 = vmatprep.subr.bf16.mxu0 0
      %987 = vmatpush1.bf16.msra.mxu0 0
      %988 = vmatprep.subr.bf16.mxu0 0
      %989 = vmatpush1.bf16.msra.mxu0 0
      %990 = vmatprep.subr.bf16.mxu0 0
      %991 = vmatpush1.bf16.msra.mxu0 0
      %992 = vmatprep.subr.bf16.mxu0 0
      %993 = vmatpush1.bf16.msra.mxu0 0
      %994 = vmatprep.subr.bf16.mxu0 0
      %995 = vmatpush1.bf16.msra.mxu0 0
      %996 = vmatprep.subr.bf16.mxu0 0
      %997 = vmatpush1.bf16.msra.mxu0 0
      %998 = vmatprep.subr.bf16.mxu0 0
      %999 = vmatpush1.bf16.msra.mxu0 0
      %1000 = vmatprep.subr.bf16.mxu0 0
      %1001 = vmatpush1.bf16.msra.mxu0 0
      %1002 = vmatprep.subr.bf16.mxu0 0
      %1003 = vmatpush1.bf16.msra.mxu0 0
      %1004 = vmatprep.subr.bf16.mxu0 0
      %1005 = vmatpush1.bf16.msra.mxu0 0
      %1006 = vmatprep.subr.bf16.mxu0 0
      %1007 = vmatpush1.bf16.msra.mxu0 0
      %1008 = vmatprep.subr.bf16.mxu0 0
      %1009 = vmatpush1.bf16.msra.mxu0 0
      %1010 = vmatprep.subr.bf16.mxu0 0
      %1011 = vmatpush1.bf16.msra.mxu0 0
      %1012 = vmatprep.subr.bf16.mxu0 0
      %1013 = vmatpush1.bf16.msra.mxu0 0
      %1014 = vmatprep.subr.bf16.mxu0 0
      %1015 = vmatpush1.bf16.msra.mxu0 0
      %1016 = vmatprep.mubr.bf16.mxu0 0
      %1017 = vmatmul.mubr.bf16.gmra.mrb[0].mxu0 %v982
      %v1018 = vpop.f32.mrb[0].mxu0
      %v1019 = vadd.f32 0.0, %v1018
      %v1020 = vpop.f32.mrb[0].mxu0
      %v1021 = vpop.f32.mrb[0].mxu0
      %v1022 = vpop.f32.mrb[0].mxu0
      %1023 = vdwg.mxu0
      %v1024 = vpack.c.bf16 %v1019, %v1019
      %v1026 = vsel %vm605, %v1024, 0
      %v1029 = vsel %vm826, %v595, 0
      %1031 = vmatprep.subr.bf16.mxu0 0
      %1032 = vmatpush1.bf16.msra.mxu0 %v1029
      %1033 = vmatprep.subr.bf16.mxu0 0
      %1034 = vmatpush1.bf16.msra.mxu0 0
      %1035 = vmatprep.subr.bf16.mxu0 0
      %1036 = vmatpush1.bf16.msra.mxu0 0
      %1037 = vmatprep.subr.bf16.mxu0 0
      %1038 = vmatpush1.bf16.msra.mxu0 0
      %1039 = vmatprep.subr.bf16.mxu0 0
      %1040 = vmatpush1.bf16.msra.mxu0 0
      %1041 = vmatprep.subr.bf16.mxu0 0
      %1042 = vmatpush1.bf16.msra.mxu0 0
      %1043 = vmatprep.subr.bf16.mxu0 0
      %1044 = vmatpush1.bf16.msra.mxu0 0
      %1045 = vmatprep.subr.bf16.mxu0 0
      %1046 = vmatpush1.bf16.msra.mxu0 0
      %1047 = vmatprep.subr.bf16.mxu0 0
      %1048 = vmatpush1.bf16.msra.mxu0 0
      %1049 = vmatprep.subr.bf16.mxu0 0
      %1050 = vmatpush1.bf16.msra.mxu0 0
      %1051 = vmatprep.subr.bf16.mxu0 0
      %1052 = vmatpush1.bf16.msra.mxu0 0
      %1053 = vmatprep.subr.bf16.mxu0 0
      %1054 = vmatpush1.bf16.msra.mxu0 0
      %1055 = vmatprep.subr.bf16.mxu0 0
      %1056 = vmatpush1.bf16.msra.mxu0 0
      %1057 = vmatprep.subr.bf16.mxu0 0
      %1058 = vmatpush1.bf16.msra.mxu0 0
      %1059 = vmatprep.subr.bf16.mxu0 0
      %1060 = vmatpush1.bf16.msra.mxu0 0
      %1061 = vmatprep.subr.bf16.mxu0 0
      %1062 = vmatpush1.bf16.msra.mxu0 0
      %1063 = vmatprep.mubr.bf16.mxu0 0
      %1064 = vmatmul.mubr.bf16.gmra.mrb[0].mxu0 %v1026
      %v1065 = vpop.f32.mrb[0].mxu0
      %v1066 = vadd.f32 0.0, %v1065
      %v1067 = vpop.f32.mrb[0].mxu0
      %v1068 = vpop.f32.mrb[0].mxu0
      %v1069 = vpop.f32.mrb[0].mxu0
      %1070 = vdwg.mxu0
      %v1071 = vadd.f32 %v911, %v1066
      %1072 = vrot.lane.b32.xlu0 %v597, 104
      %v1073 = vpop.permute.xlu0 %1072
      %1074 = vrot.lane.b32.xlu0 %v598, 104
      %v1075 = vpop.permute.xlu0 %1074
      %v1077 = vsel %vm605, %v1073, 0
      %v1080 = vsel %vm605, %v1075, 0
      %1082 = vmatprep.subr.bf16.mxu0 0
      %1083 = vmatpush1.bf16.xpose.msra.mxu0 %v1080
      %1084 = vmatprep.subr.bf16.mxu0 0
      %1085 = vmatpush1.bf16.xpose.msra.mxu0 0
      %1086 = vmatprep.subr.bf16.mxu0 0
      %1087 = vmatpush1.bf16.xpose.msra.mxu0 0
      %1088 = vmatprep.subr.bf16.mxu0 0
      %1089 = vmatpush1.bf16.xpose.msra.mxu0 0
      %1090 = vmatprep.subr.bf16.mxu0 0
      %1091 = vmatpush1.bf16.xpose.msra.mxu0 0
      %1092 = vmatprep.subr.bf16.mxu0 0
      %1093 = vmatpush1.bf16.xpose.msra.mxu0 0
      %1094 = vmatprep.subr.bf16.mxu0 0
      %1095 = vmatpush1.bf16.xpose.msra.mxu0 0
      %1096 = vmatprep.subr.bf16.mxu0 0
      %1097 = vmatpush1.bf16.xpose.msra.mxu0 0
      %1098 = vmatprep.subr.bf16.mxu0 0
      %1099 = vmatpush1.bf16.xpose.msra.mxu0 0
      %1100 = vmatprep.subr.bf16.mxu0 0
      %1101 = vmatpush1.bf16.xpose.msra.mxu0 0
      %1102 = vmatprep.subr.bf16.mxu0 0
      %1103 = vmatpush1.bf16.xpose.msra.mxu0 0
      %1104 = vmatprep.subr.bf16.mxu0 0
      %1105 = vmatpush1.bf16.xpose.msra.mxu0 0
      %1106 = vmatprep.subr.bf16.mxu0 0
      %1107 = vmatpush1.bf16.xpose.msra.mxu0 0
      %1108 = vmatprep.subr.bf16.mxu0 0
      %1109 = vmatpush1.bf16.xpose.msra.mxu0 0
      %1110 = vmatprep.subr.bf16.mxu0 0
      %1111 = vmatpush1.bf16.xpose.msra.mxu0 0
      %1112 = vmatprep.subr.bf16.mxu0 0
      %1113 = vmatpush1.bf16.xpose.msra.mxu0 0
      %1114 = vmatprep.mubr.bf16.mxu0 0
      %1115 = vmatmul.mubr.bf16.gmra.mrb[0].mxu0 %v1077
      %v1116 = vpop.f32.mrb[0].mxu0
      %v1117 = vadd.f32 %v603, %v1116
      %v1118 = vpop.f32.mrb[0].mxu0
      %v1119 = vpop.f32.mrb[0].mxu0
      %v1120 = vpop.f32.mrb[0].mxu0
      %1121 = vdwg.mxu0
      %v1122 = vsel %vm652, %v1117, -inf
      %1123 = vmax.xlane.f32.xlu0 %v1122
      %v1124 = vpop.xlane.xlu0 %1123
      %v1125 = vsub.f32 %v1117, %v1124
      %v1126 = vmul.f32 %v1125, 1.442695
      %v1127 = vpow.pop %v1126
      %v1128 = vsel %vm652, %v1127, 0.0
      %1129 = vadd.xlane.f32.xlu0 %v1128
      %v1130 = vpop.xlane.xlu0 %1129
      %v1131 = vrcp.pop %v1130
      %v1132 = vmul.f32 %v1127, %v1131
      %v1133 = vpack.c.bf16 %v1132, %v1132
      %1134 = vrot.lane.b32.xlu0 %v598, 72
      %v1135 = vpop.permute.xlu0 %1134
      %v1138 = vsel %vm652, %v1133, 0
      %1140 = vmatprep.subr.bf16.mxu0 0
      %1141 = vmatpush1.bf16.msra.mxu0 %v1135
      %1142 = vmatprep.subr.bf16.mxu0 0
      %1143 = vmatpush1.bf16.msra.mxu0 0
      %1144 = vmatprep.subr.bf16.mxu0 0
      %1145 = vmatpush1.bf16.msra.mxu0 0
      %1146 = vmatprep.subr.bf16.mxu0 0
      %1147 = vmatpush1.bf16.msra.mxu0 0
      %1148 = vmatprep.subr.bf16.mxu0 0
      %1149 = vmatpush1.bf16.msra.mxu0 0
      %1150 = vmatprep.subr.bf16.mxu0 0
      %1151 = vmatpush1.bf16.msra.mxu0 0
      %1152 = vmatprep.subr.bf16.mxu0 0
      %1153 = vmatpush1.bf16.msra.mxu0 0
      %1154 = vmatprep.subr.bf16.mxu0 0
      %1155 = vmatpush1.bf16.msra.mxu0 0
      %1156 = vmatprep.subr.bf16.mxu0 0
      %1157 = vmatpush1.bf16.msra.mxu0 0
      %1158 = vmatprep.subr.bf16.mxu0 0
      %1159 = vmatpush1.bf16.msra.mxu0 0
      %1160 = vmatprep.subr.bf16.mxu0 0
      %1161 = vmatpush1.bf16.msra.mxu0 0
      %1162 = vmatprep.subr.bf16.mxu0 0
      %1163 = vmatpush1.bf16.msra.mxu0 0
      %1164 = vmatprep.subr.bf16.mxu0 0
      %1165 = vmatpush1.bf16.msra.mxu0 0
      %1166 = vmatprep.subr.bf16.mxu0 0
      %1167 = vmatpush1.bf16.msra.mxu0 0
      %1168 = vmatprep.subr.bf16.mxu0 0
      %1169 = vmatpush1.bf16.msra.mxu0 0
      %1170 = vmatprep.subr.bf16.mxu0 0
      %1171 = vmatpush1.bf16.msra.mxu0 0
      %1172 = vmatprep.mubr.bf16.mxu0 0
      %1173 = vmatmul.mubr.bf16.gmra.mrb[0].mxu0 %v1138
      %v1174 = vpop.f32.mrb[0].mxu0
      %v1175 = vadd.f32 0.0, %v1174
      %v1176 = vpop.f32.mrb[0].mxu0
      %v1177 = vpop.f32.mrb[0].mxu0
      %v1178 = vpop.f32.mrb[0].mxu0
      %1179 = vdwg.mxu0
      %v1180 = vpack.c.bf16 %v1175, %v1175
      %v1182 = vsel %vm605, %v1180, 0
      %v1185 = vsel %vm826, %v596, 0
      %1187 = vmatprep.subr.bf16.mxu0 0
      %1188 = vmatpush1.bf16.msra.mxu0 %v1185
      %1189 = vmatprep.subr.bf16.mxu0 0
      %1190 = vmatpush1.bf16.msra.mxu0 0
      %1191 = vmatprep.subr.bf16.mxu0 0
      %1192 = vmatpush1.bf16.msra.mxu0 0
      %1193 = vmatprep.subr.bf16.mxu0 0
      %1194 = vmatpush1.bf16.msra.mxu0 0
      %1195 = vmatprep.subr.bf16.mxu0 0
      %1196 = vmatpush1.bf16.msra.mxu0 0
      %1197 = vmatprep.subr.bf16.mxu0 0
      %1198 = vmatpush1.bf16.msra.mxu0 0
      %1199 = vmatprep.subr.bf16.mxu0 0
      %1200 = vmatpush1.bf16.msra.mxu0 0
      %1201 = vmatprep.subr.bf16.mxu0 0
      %1202 = vmatpush1.bf16.msra.mxu0 0
      %1203 = vmatprep.subr.bf16.mxu0 0
      %1204 = vmatpush1.bf16.msra.mxu0 0
      %1205 = vmatprep.subr.bf16.mxu0 0
      %1206 = vmatpush1.bf16.msra.mxu0 0
      %1207 = vmatprep.subr.bf16.mxu0 0
      %1208 = vmatpush1.bf16.msra.mxu0 0
      %1209 = vmatprep.subr.bf16.mxu0 0
      %1210 = vmatpush1.bf16.msra.mxu0 0
      %1211 = vmatprep.subr.bf16.mxu0 0
      %1212 = vmatpush1.bf16.msra.mxu0 0
      %1213 = vmatprep.subr.bf16.mxu0 0
      %1214 = vmatpush1.bf16.msra.mxu0 0
      %1215 = vmatprep.subr.bf16.mxu0 0
      %1216 = vmatpush1.bf16.msra.mxu0 0
      %1217 = vmatprep.subr.bf16.mxu0 0
      %1218 = vmatpush1.bf16.msra.mxu0 0
      %1219 = vmatprep.mubr.bf16.mxu0 0
      %1220 = vmatmul.mubr.bf16.gmra.mrb[0].mxu0 %v1182
      %v1221 = vpop.f32.mrb[0].mxu0
      %v1222 = vadd.f32 0.0, %v1221
      %v1223 = vpop.f32.mrb[0].mxu0
      %v1224 = vpop.f32.mrb[0].mxu0
      %v1225 = vpop.f32.mrb[0].mxu0
      %1226 = vdwg.mxu0
      %v1227 = vadd.f32 %v1071, %v1222
      %v1228 = vunpack.c.l.bf16 %v448
      %v1229 = vadd.f32 %v1228, %v1227
      %v1230 = vld [vmem:[%s8] sm:$0x1]
      %v1232 = vlaneseq
      %v1233 = vshrl.u32 %v1232, 7
      %v1234 = vsub.s32 0, %v1233
      %v1235 = vrot.slane %v1230, %v1234
      %v1237 = vadd.f32 %v1229, %v1235
      %v1238 = vsel %vm477, %v1237, 0.0
      %1239 = vadd.xlane.f32.xlu0 %v1238
      %v1240 = vpop.xlane.xlu0 %1239
      %v1241 = vrcp.pop 32.0
      %v1242 = vmul.f32 %v1240, %v1241
      %v1243 = vsub.f32 %v1237, %v1242
      %v1244 = vmul.f32 %v1243, %v1243
      %v1245 = vsel %vm477, %v1244, 0.0
      %1246 = vadd.xlane.f32.xlu0 %v1245
      %v1247 = vpop.xlane.xlu0 %1246
      %v1248 = vmul.f32 %v1247, %v1241
      %v1249 = vadd.f32 %v1248, 1e-05
      %v1250 = vrsqrt.pop %v1249
      %v1251 = vmul.f32 %v1243, %v1250
      %v1252 = vld [vmem:[%s9] sm:$0x1]
      %v1254 = vlaneseq
      %v1255 = vshrl.u32 %v1254, 7
      %v1256 = vsub.s32 0, %v1255
      %v1257 = vrot.slane %v1252, %v1256
      %v1259 = vmul.f32 %v1251, %v1257
      %v1260 = vld [vmem:[%s10] sm:$0x1]
      %v1262 = vlaneseq
      %v1263 = vshrl.u32 %v1262, 7
      %v1264 = vsub.s32 0, %v1263
      %v1265 = vrot.slane %v1260, %v1264
      %v1267 = vadd.f32 %v1259, %v1265
      %v1268 = vpack.c.bf16 %v1267, %v1267
      %vm1269 = vcmask 257024
      %1270 = vst.msk [vmem:[%s446] sm:$0xf] %vm1269, %v1268
      %p1271 = scmp.lt.s32.totalorder %s26, 1
      %s1272 = scalar_select %p1271, %s26, 1
      %p1273 = scmp.lt.s32.totalorder %s27, 0
      %s1274 = scalar_select %p1273, %s27, 0
      %s1275 = sadd.s32 %s1274, %s1272
      %s1276 = smul.addr %s1275, 4
      %s1277 = scalar_lea.vmem %s11, %s1276
      // Predicated region
      $region65: #{transformer_forward.16} parent=63 // pred_check
        %p1278 = pneg %p302
      $region66: #{transformer_forward.16} parent=63 // pred_check_branch
        %1280 = sbr.rel (%p1278) target = $region68
      $region67: #{transformer_forward.16} parent=63 // pred_region
        _
      $region68: #{transformer_forward.16} parent=63 // pred_fallthru
        _
    $region64: #{transformer_forward.16} parent=5 // pred_fallthru
      _
    %p1281 = scmp.le.s32.totalorder 2, %s17
    // Predicated region
    $region69: #{transformer_forward.16} parent=5 // pred_check
      %p1282 = pneg %p1281
    $region70: #{transformer_forward.16} parent=5 // pred_check_branch
      %1284 = sbr.rel (%p1282) target = $region72
    $region71: #{transformer_forward.16} parent=5 // pred_region
      %s1285 = ssub.s32 %s17, 2
      // Predicated region
      $region73: #{transformer_forward.16} parent=71 // pred_check
        %p1286 = pneg %p308
      $region74: #{transformer_forward.16} parent=71 // pred_check_branch
        %1288 = sbr.rel (%p1286) target = $region76
      $region75: #{transformer_forward.16} parent=71 // pred_region
        %p1289 = scmp.lt.s32.totalorder %s28, 1
        %s1290 = scalar_select %p1289, %s28, 1
        %p1291 = scmp.lt.s32.totalorder %s29, 0
        %s1292 = scalar_select %p1291, %s29, 0
        %s1293 = sadd.s32 %s1292, %s1290
        %s1294 = smul.addr %s1293, 4
        %s1295 = scalar_lea.vmem %s11, %s1294
      $region76: #{transformer_forward.16} parent=71 // pred_fallthru
        _
    $region72: #{transformer_forward.16} parent=5 // pred_fallthru
      _
  $region6: #{transformer_forward.16} parent=0 // loop_footer
    %s21 = sadd.s32 1, %s17
  $region7: #{transformer_forward.16} parent=0 // loop_footer_branch
    %16 = sbr.rel target = $region3
  $region8: #{transformer_forward.16} parent=0 // loop_exit
    _

// kernel: transformer_forward.21
$region0: #{transformer_forward.21}
  #allocation0 [shape = 'u32[]', space=smem, size = 0x4, offset = 0x4, fixed_abs, tag = 'smem constant byte address 0x4 - core index']
  #allocation1 [shape = 'u32[144,128]{1,0:T(1,128)}', space=vmem, size = 0x12000, scoped, tag = 'internal scratch']
  %s0 = inlined_call_operand.vmem [shape: bf16[16,32], index: 0, kind: input, shape index: {}]
  %s1 = inlined_call_operand.vmem [shape: bf16[32,48], index: 1, kind: input, shape index: {}]
  %s2 = inlined_call_operand.vmem [shape: f32[1,48], index: 2, kind: input, shape index: {}]
  %s3 = inlined_call_operand.hbm [shape: f32[16,48], index: 3, kind: output, shape index: {}]
  %s4 = sld [smem:[#allocation0]]
  $region22: #{transformer_forward.21} parent=0
    _
  %s6 = ssub.s32 1, %s4
  %s7 = scalar_select 0, %s6, %s4
  $region1: #{transformer_forward.21} parent=0
    #allocation2 [shape = 'u8[8192]{0}', space=vmem, size = 0x2000, scoped, tag = 'output window, operand 0, single buffered']
    #allocation3 [shape = 's32[1]{0}', space=sflag, size = 0x4, scoped, tag = 'scoped memory for transformer_forward.21']
    %8 = vsyncpa [#allocation3], 0
    // Predicated region
    $region2: #{transformer_forward.21} parent=1 // pred_check
      _
    $region3: #{transformer_forward.21} parent=1 // pred_check_branch
      %10 = sbr.rel (0) target = $region5
    $region4: #{transformer_forward.21} parent=1 // pred_region
      _
    $region5: #{transformer_forward.21} parent=1 // pred_fallthru
      _
    // Predicated region
    $region6: #{transformer_forward.21} parent=1 // pred_check
      _
    $region7: #{transformer_forward.21} parent=1 // pred_check_branch
      %12 = sbr.rel (0) target = $region9
    $region8: #{transformer_forward.21} parent=1 // pred_region
      _
    $region9: #{transformer_forward.21} parent=1 // pred_fallthru
      _
    // Predicated region
    $region10: #{transformer_forward.21} parent=1 // pred_check
      _
    $region11: #{transformer_forward.21} parent=1 // pred_check_branch
      %14 = sbr.rel (0) target = $region13
    $region12: #{transformer_forward.21} parent=1 // pred_region
      _
    $region13: #{transformer_forward.21} parent=1 // pred_fallthru
      _
    %v16 = vld [vmem:[%s0] sm:$0xf]
    %v17 = vld [vmem:[%s0 + $0x4] sm:$0xf]
    %v18 = vld [vmem:[%s1] sm:$0xf]
    %v19 = vld [vmem:[%s1 + $0x4] sm:$0xf]
    %v20 = vld [vmem:[%s1 + $0x8] sm:$0xf]
    %v21 = vld [vmem:[%s1 + $0xc] sm:$0xf]
    %v22 = vld [vmem:[%s2] sm:$0x1]
    %v24 = vlaneseq
    %v25 = vshrl.u32 %v24, 7
    %v26 = vsub.s32 0, %v25
    %v27 = vrot.slane %v22, %v26
    %v31 = vunpack.c.l.b16 %v16
    %v32 = vunpack.c.l.b16 %v17
    %v33 = vpack.c.b16 %v32, %v31
    %v38 = vunpack.c.l.b16 %v18
    %v39 = vunpack.c.l.b16 %v19
    %v40 = vunpack.c.l.b16 %v20
    %v41 = vunpack.c.l.b16 %v21
    %v42 = vpack.c.b16 %v39, %v38
    %v43 = vpack.c.b16 %v41, %v40
    %vm46 = vcmask 261120
    %v48 = vsel %vm46, %v33, 0
    %50 = vmatprep.subr.bf16.mxu0 0
    %51 = vmatpush1.bf16.msra.mxu0 %v42
    %52 = vmatprep.subr.bf16.mxu0 0
    %53 = vmatpush1.bf16.msra.mxu0 %v43
    %54 = vmatprep.subr.bf16.mxu0 0
    %55 = vmatpush1.bf16.msra.mxu0 0
    %56 = vmatprep.subr.bf16.mxu0 0
    %57 = vmatpush1.bf16.msra.mxu0 0
    %58 = vmatprep.subr.bf16.mxu0 0
    %59 = vmatpush1.bf16.msra.mxu0 0
    %60 = vmatprep.subr.bf16.mxu0 0
    %61 = vmatpush1.bf16.msra.mxu0 0
    %62 = vmatprep.subr.bf16.mxu0 0
    %63 = vmatpush1.bf16.msra.mxu0 0
    %64 = vmatprep.subr.bf16.mxu0 0
    %65 = vmatpush1.bf16.msra.mxu0 0
    %66 = vmatprep.subr.bf16.mxu0 0
    %67 = vmatpush1.bf16.msra.mxu0 0
    %68 = vmatprep.subr.bf16.mxu0 0
    %69 = vmatpush1.bf16.msra.mxu0 0
    %70 = vmatprep.subr.bf16.mxu0 0
    %71 = vmatpush1.bf16.msra.mxu0 0
    %72 = vmatprep.subr.bf16.mxu0 0
    %73 = vmatpush1.bf16.msra.mxu0 0
    %74 = vmatprep.subr.bf16.mxu0 0
    %75 = vmatpush1.bf16.msra.mxu0 0
    %76 = vmatprep.subr.bf16.mxu0 0
    %77 = vmatpush1.bf16.msra.mxu0 0
    %78 = vmatprep.subr.bf16.mxu0 0
    %79 = vmatpush1.bf16.msra.mxu0 0
    %80 = vmatprep.subr.bf16.mxu0 0
    %81 = vmatpush1.bf16.msra.mxu0 0
    %82 = vmatprep.mubr.bf16.mxu0 0
    %83 = vmatmul.mubr.bf16.gmra.mrb[0].mxu0 %v48
    %v84 = vpop.f32.mrb[0].mxu0
    %v85 = vadd.f32 %v27, %v84
    %v86 = vpop.f32.mrb[0].mxu0
    %v87 = vpop.f32.mrb[0].mxu0
    %v88 = vadd.f32 %v27, %v87
    %v89 = vpop.f32.mrb[0].mxu0
    %90 = vdwg.mxu0
    %vm91 = vcmask 392192
    %v92 = vsel %vm91, %v85, -inf
    %93 = vmax.xlane.f32.xlu0 %v92
    %v94 = vpop.xlane.xlu0 %93
    %v95 = vsel %vm91, %v88, -inf
    %96 = vmax.xlane.f32.xlu0 %v95
    %v97 = vpop.xlane.xlu0 %96
    %v98 = vsub.f32 %v85, %v94
    %v99 = vsub.f32 %v88, %v97
    %v100 = vmul.f32 %v98, 1.442695
    %v101 = vpow.pop %v100
    %v102 = vmul.f32 %v99, 1.442695
    %v103 = vpow.pop %v102
    %v104 = vsel %vm91, %v101, 0.0
    %105 = vadd.xlane.f32.xlu0 %v104
    %v106 = vpop.xlane.xlu0 %105
    %v107 = vsel %vm91, %v103, 0.0
    %108 = vadd.xlane.f32.xlu0 %v107
    %v109 = vpop.xlane.xlu0 %108
    %v110 = vlog2.pop %v106
    %v111 = vmul.f32 %v110, 0.6931472
    %v112 = vlog2.pop %v109
    %v113 = vmul.f32 %v112, 0.6931472
    %v114 = vsub.f32 %v98, %v111
    %v115 = vsub.f32 %v99, %v113
    %116 = vst.msk [vmem:[#allocation2] sm:$0xff] %vm91, %v114
    %117 = vst.msk [vmem:[#allocation2 + $0x8] sm:$0xff] %vm91, %v115
    // Predicated region
    $region14: #{transformer_forward.21} parent=1 // pred_check
      _
    $region15: #{transformer_forward.21} parent=1 // pred_check_branch
      %119 = sbr.rel (0) target = $region17
    $region16: #{transformer_forward.21} parent=1 // pred_region
      %s121 = ssub.s32 256, 256
      %122 = vsyncadd [#allocation3], %s121
      %s123 = sshll.u32 [#allocation2], 4
      %s124 = int_to_ptr.vmem [resolvable:$true] %s123
      %129 = dma.vmem_to_hbm [thread:$0]  %s124, 256, %s3, [#allocation3], 128, 128, 8
    $region17: #{transformer_forward.21} parent=1 // pred_fallthru
      _
    // Predicated region
    $region18: #{transformer_forward.21} parent=1 // pred_check
      _
    $region19: #{transformer_forward.21} parent=1 // pred_check_branch
      %131 = sbr.rel (0) target = $region21
    $region20: #{transformer_forward.21} parent=1 // pred_region
      %132 = dma.done [#allocation3], 256
    $region21: #{transformer_forward.21} parent=1 // pred_fallthru
      _
    %133 = vsyncpa [#allocation3], 1

</llo_original>
